<compile_context>
chip_gen: v7x
topology: tpu7x:2x2x1
jax: 0.10.0
libtpu: 0.0.40
codegen_flags: <defaults>
</compile_context>

<pallas_src>
import jax
import jax.numpy as jnp
from jax import lax
from jax.experimental import pallas as pl
from jax.experimental.pallas import tpu as pltpu


MXU_DTYPE = jnp.bfloat16   # bf16-native MXU on v6e/v7x; use jnp.float32 for exact f32


# --------------------------------------------------------------------------
# Fused whole-Block kernel (one grid step == one image)
# --------------------------------------------------------------------------
def _make_block_kernel(H, W, cin, sc, cout, mxu_dtype):
    Ho = (H + 2 - 3) // 2 + 1          # conv5: k=3, stride=2, pad=1
    Wo = (W + 2 - 3) // 2 + 1
    HW = H * W
    K9 = 9 * cin
    TAPS = [(dy, dx) for dy in range(3) for dx in range(3)]

    def kernel(x_ref, w14_ref, ca14_ref, w5_ref, ca5_ref, sel_ref,
               o_ref, pad_ref, col_ref):
        # --- zero the halo scratch once per image (border stays zero) --------
        pad_ref[...] = jnp.zeros_like(pad_ref)

        def build_col(act_hwc):
            """Write `act` into the padded halo buffer and gather the 9 shifted
            taps side-by-side into the (H, W, 9*cin) im2col scratch.
            Returns the (HW, 9*cin) matmul operand (cast to the MXU dtype)."""
            pad_ref[pl.ds(1, H), pl.ds(1, W), :] = act_hwc
            for t, (dy, dx) in enumerate(TAPS):
                col_ref[:, :, pl.ds(t * cin, cin)] = pad_ref[pl.ds(dy, H),
                                                             pl.ds(dx, W), :]
            return col_ref[...].reshape(HW, K9).astype(mxu_dtype)

        def conv_bn_prelu(act_hwc, idx):
            """ConvBlock idx (conv1..conv4): one K=9*cin matmul + folded
            bias/BN affine + PReLU.  Returns (H, W, cin) f32."""
            w = w14_ref[pl.ds(idx * K9, K9), :]            # (9*cin, cin) bf16
            c = ca14_ref[pl.ds(2 * idx, 1), :]             # (1, cin) f32
            a = ca14_ref[pl.ds(2 * idx + 1, 1), :]         # (1, cin) f32
            col = build_col(act_hwc)
            y = jnp.dot(col, w, preferred_element_type=jnp.float32) + c
            y = jnp.where(y >= 0.0, y, a * y)              # PReLU
            return y.reshape(H, W, cin)

        x = x_ref[...]                                      # (H, W, cin) f32

        # mask selecting the trailing `sc` side channels
        ch = lax.broadcasted_iota(jnp.int32, (H, W, cin), 2)
        side_mask = ch >= (cin - sc)

        # conv1
        out = conv_bn_prelu(x, 0)
        # conv2 on the side channels (weights zero-embedded into cin->cin
        # offline -> channel-mask merge, no lane slicing)
        out = jnp.where(side_mask, conv_bn_prelu(out, 1), out)
        # conv3
        out = conv_bn_prelu(out, 2)
        # conv4 on the side channels
        out = jnp.where(side_mask, conv_bn_prelu(out, 3), out)

        # conv5 (stride 2) on the residual x + out, then f = BN + PReLU.
        # Dense pre-activation followed by a host-precomputed 0/1 row-selection
        # matmul for the stride-2 subsample (no in-kernel iota/div/mod).
        col5 = build_col(x + out)
        acc5 = jnp.dot(col5, w5_ref[...],
                       preferred_element_type=jnp.float32)          # (HW, cout)
        y5 = jnp.dot(sel_ref[...], acc5,
                     preferred_element_type=jnp.float32)            # (Ho*Wo, cout)
        c5 = ca5_ref[pl.ds(0, 1), :]
        a5 = ca5_ref[pl.ds(1, 1), :]
        y5 = y5 + c5
        y5 = jnp.where(y5 >= 0.0, y5, a5 * y5)
        o_ref[...] = y5.astype(o_ref.dtype)                         # (Ho*Wo, cout)

    return kernel, Ho, Wo


# --------------------------------------------------------------------------
# Wrapper: NCHW boundary transpose, constant packing, single pallas_call
# --------------------------------------------------------------------------
def block_forward(x_nchw, params, side_channels, mxu_dtype=MXU_DTYPE):
    N, cin, H, W = x_nchw.shape
    cout = params["w5"].shape[-1]
    kernel, Ho, Wo = _make_block_kernel(H, W, cin, side_channels, cout, mxu_dtype)

    x = jnp.transpose(x_nchw, (0, 2, 3, 1)).astype(jnp.float32)     # NCHW -> NHWC

    # Host-built stride-2 row-selection constant: sel[r, c] = 1 iff dense output
    # row c corresponds to strided output row r.
    rows = jnp.arange(Ho * Wo, dtype=jnp.int32)
    tgt = (rows // Wo) * (2 * W) + (rows % Wo) * 2
    sel = jax.nn.one_hot(tgt, H * W, dtype=jnp.float32)             # (Ho*Wo, H*W)

    w14 = params["w14"].astype(mxu_dtype)                           # (4*9*cin, cin)
    w5 = params["w5"].astype(mxu_dtype)                             # (9*cin, cout)
    ca14 = params["ca14"].astype(jnp.float32)                       # (8, cin)
    ca5 = params["ca5"].astype(jnp.float32)                         # (2, cout)

    def const2d(arr):   # full-array 2D block, invariant across the batch grid
        return pl.BlockSpec(arr.shape, lambda n: (0, 0))

    y = pl.pallas_call(
        kernel,
        out_shape=jax.ShapeDtypeStruct((N, Ho * Wo, cout), jnp.float32),
        grid_spec=pltpu.PrefetchScalarGridSpec(
            num_scalar_prefetch=0,
            grid=(N,),
            in_specs=[
                pl.BlockSpec((None, H, W, cin), lambda n: (n, 0, 0, 0)),
                const2d(w14), const2d(ca14), const2d(w5), const2d(ca5),
                const2d(sel),
            ],
            out_specs=pl.BlockSpec((None, Ho * Wo, cout), lambda n: (n, 0, 0)),
            scratch_shapes=[
                pltpu.VMEM((H + 2, W + 2, cin), jnp.float32),       # halo buffer
                pltpu.VMEM((H, W, 9 * cin), jnp.float32),           # fused-tap im2col
            ],
        ),
        compiler_params=pltpu.CompilerParams(
            dimension_semantics=("parallel",),                      # v7x: 2 TCs
            vmem_limit_bytes=32 * 1024 * 1024,
        ),
    )(x, w14, ca14, w5, ca5, sel)

    return jnp.transpose(y.reshape(N, Ho, Wo, cout), (0, 3, 1, 2))  # -> NCHW


# --------------------------------------------------------------------------
# Deterministic parameter construction (bias + eval-BN folded offline)
# --------------------------------------------------------------------------
def _fold_bias_bn(w, b):
    """BN(conv(x)+b) = conv_{w*scale}(x) + (b*scale + shift), eval-mode BN with
    PyTorch defaults (gamma=1, beta=0, running_mean=0, running_var=1, eps=1e-5)."""
    cout = w.shape[-1]
    gamma = jnp.ones((cout,), jnp.float32)
    beta = jnp.zeros((cout,), jnp.float32)
    mean = jnp.zeros((cout,), jnp.float32)
    var = jnp.ones((cout,), jnp.float32)
    eps = 1e-5
    scale = gamma / jnp.sqrt(var + eps)
    shift = beta - mean * scale
    return w * scale[None, None, None, :], b * scale + shift


def make_convblock_params(key, cin, cout):
    """ConvBlock(cin -> cout): folded (9*cin, cout) weight, bias row, alpha row."""
    k1, k2 = jax.random.split(key)
    w = jax.random.normal(k1, (3, 3, cin, cout), jnp.float32) * (2.0 / (9 * cin)) ** 0.5
    b = jax.random.normal(k2, (cout,), jnp.float32) * 0.05
    w_f, c_f = _fold_bias_bn(w, b)
    alpha = jnp.full((cout,), 0.25, jnp.float32)                    # PReLU default
    return w_f.reshape(9 * cin, cout), c_f, alpha


def make_side_convblock_params(key, cin, sc):
    """ConvBlock(side_channels -> side_channels), zero-embedded into a cin->cin
    conv so the fused kernel only needs a channel-mask merge (no lane slicing)."""
    k1, k2 = jax.random.split(key)
    w = jax.random.normal(k1, (3, 3, sc, sc), jnp.float32) * (2.0 / (9 * sc)) ** 0.5
    b = jax.random.normal(k2, (sc,), jnp.float32) * 0.05
    w_f, c_f = _fold_bias_bn(w, b)
    w_full = jnp.zeros((3, 3, cin, cin), jnp.float32).at[:, :, cin - sc:, cin - sc:].set(w_f)
    c_full = jnp.zeros((cin,), jnp.float32).at[cin - sc:].set(c_f)
    a_full = jnp.ones((cin,), jnp.float32).at[cin - sc:].set(0.25)
    return w_full.reshape(9 * cin, cin), c_full, a_full


def make_block_params(key, in_channels, side_channels, out_channels):
    keys = jax.random.split(key, 5)
    w1, c1, a1 = make_convblock_params(keys[0], in_channels, in_channels)
    w2, c2, a2 = make_side_convblock_params(keys[1], in_channels, side_channels)
    w3, c3, a3 = make_convblock_params(keys[2], in_channels, in_channels)
    w4, c4, a4 = make_side_convblock_params(keys[3], in_channels, side_channels)
    # conv5 is a plain Conv2d; its bias plus f's eval-BN and PReLU fold to one
    # affine + one PReLU, exactly what make_convblock_params produces.
    w5, c5, a5 = make_convblock_params(keys[4], in_channels, out_channels)
    return dict(
        w14=jnp.concatenate([w1, w2, w3, w4], axis=0),              # (4*9*cin, cin)
        ca14=jnp.stack([c1, a1, c2, a2, c3, a3, c4, a4], axis=0),   # (8, cin)
        w5=w5,                                                      # (9*cin, cout)
        ca5=jnp.stack([c5, a5], axis=0),                            # (2, cout)
    )


if __name__ == "__main__":
    key = jax.random.PRNGKey(0)
    k_x, k_p = jax.random.split(key)

    in_channels, side_channels, out_channels = 4, 2, 8
    N, H, W = 2, 16, 16

    x = jax.random.normal(k_x, (N, in_channels, H, W), jnp.float32)
    params = make_block_params(k_p, in_channels, side_channels, out_channels)

    y = block_forward(x, params, side_channels)
    y = jax.block_until_ready(y)

    assert y.shape == (N, out_channels, H // 2, W // 2), y.shape
    assert bool(jnp.all(jnp.isfinite(y)))
    print("KERNEL_OK")
</pallas_src>

<mosaic_0001>
module attributes {stable_mosaic.version = 11 : i64} {
  func.func @kernel(%arg0: i32, %arg1: memref<1x16x16x4xf32, #tpu.memory_space<vmem>>, %arg2: memref<144x4xbf16, #tpu.memory_space<vmem>>, %arg3: memref<8x4xf32, #tpu.memory_space<vmem>>, %arg4: memref<36x8xbf16, #tpu.memory_space<vmem>>, %arg5: memref<2x8xf32, #tpu.memory_space<vmem>>, %arg6: memref<64x256xf32, #tpu.memory_space<vmem>>, %arg7: memref<1x64x8xf32, #tpu.memory_space<vmem>>, %arg8: memref<18x18x4xf32, #tpu.memory_space<vmem>>, %arg9: memref<16x16x36xf32, #tpu.memory_space<vmem>>) attributes {dimension_semantics = [#tpu.dimension_semantics<parallel>], iteration_bounds = array<i64: 2>, scalar_prefetch = 0 : i64, scratch_operands = 2 : i64, tpu.core_type = #tpu.core_type<tc>, window_params = [{transform_indices = @transform_0, window_bounds = array<i64: 1, 16, 16, 4>}, {pipeline_mode = #tpu.pipeline_mode<synchronous>, transform_indices = @transform_1, window_bounds = array<i64: 144, 4>}, {pipeline_mode = #tpu.pipeline_mode<synchronous>, transform_indices = @transform_2, window_bounds = array<i64: 8, 4>}, {pipeline_mode = #tpu.pipeline_mode<synchronous>, transform_indices = @transform_3, window_bounds = array<i64: 36, 8>}, {pipeline_mode = #tpu.pipeline_mode<synchronous>, transform_indices = @transform_4, window_bounds = array<i64: 2, 8>}, {pipeline_mode = #tpu.pipeline_mode<synchronous>, transform_indices = @transform_5, window_bounds = array<i64: 64, 256>}, {transform_indices = @transform_6, window_bounds = array<i64: 1, 64, 8>}]} {
    %cst = arith.constant 0.000000e+00 : f32
    %0 = vector.broadcast %cst : f32 to vector<18x18x4xf32>
    %c0 = arith.constant 0 : index
    %c0_0 = arith.constant 0 : index
    %c0_1 = arith.constant 0 : index
    %1 = vector.load %arg8[%c0, %c0_0, %c0_1] : memref<18x18x4xf32, #tpu.memory_space<vmem>>, vector<18x18x4xf32>
    tpu.vector_store %arg8[%c0, %c0_0, %c0_1], %0 {strides = array<i32>} : memref<18x18x4xf32, #tpu.memory_space<vmem>>, vector<18x18x4xf32>,
    %c0_2 = arith.constant 0 : index
    %c0_3 = arith.constant 0 : index
    %c0_4 = arith.constant 0 : index
    %c0_5 = arith.constant 0 : index
    %2 = vector.load %arg1[%c0_2, %c0_3, %c0_4, %c0_5] : memref<1x16x16x4xf32, #tpu.memory_space<vmem>>, vector<1x16x16x4xf32>
    %3 = vector.shape_cast %2 : vector<1x16x16x4xf32> to vector<16x16x4xf32>
    %4 = tpu.iota {dimensions = array<i32: 2>} : vector<16x16x4xi32>
    %c2_i32 = arith.constant 2 : i32
    %5 = vector.broadcast %c2_i32 : i32 to vector<16x16x4xi32>
    %6 = arith.cmpi sge, %4, %5 : vector<16x16x4xi32>
    %c0_6 = arith.constant 0 : index
    %c0_7 = arith.constant 0 : index
    %7 = vector.load %arg2[%c0_6, %c0_7] : memref<144x4xbf16, #tpu.memory_space<vmem>>, vector<36x4xbf16>
    %c0_8 = arith.constant 0 : index
    %c0_9 = arith.constant 0 : index
    %8 = vector.load %arg3[%c0_8, %c0_9] : memref<8x4xf32, #tpu.memory_space<vmem>>, vector<1x4xf32>
    %c1 = arith.constant 1 : index
    %c0_10 = arith.constant 0 : index
    %9 = vector.load %arg3[%c1, %c0_10] : memref<8x4xf32, #tpu.memory_space<vmem>>, vector<1x4xf32>
    %c1_11 = arith.constant 1 : index
    %c1_12 = arith.constant 1 : index
    %c0_13 = arith.constant 0 : index
    %10 = vector.load %arg8[%c1_11, %c1_12, %c0_13] : memref<18x18x4xf32, #tpu.memory_space<vmem>>, vector<16x16x4xf32>
    tpu.vector_store %arg8[%c1_11, %c1_12, %c0_13], %3 {strides = array<i32>} : memref<18x18x4xf32, #tpu.memory_space<vmem>>, vector<16x16x4xf32>,
    %c0_14 = arith.constant 0 : index
    %c0_15 = arith.constant 0 : index
    %c0_16 = arith.constant 0 : index
    %11 = vector.load %arg8[%c0_14, %c0_15, %c0_16] : memref<18x18x4xf32, #tpu.memory_space<vmem>>, vector<16x16x4xf32>
    %c0_17 = arith.constant 0 : index
    %c0_18 = arith.constant 0 : index
    %c0_19 = arith.constant 0 : index
    %12 = vector.load %arg9[%c0_17, %c0_18, %c0_19] : memref<16x16x36xf32, #tpu.memory_space<vmem>>, vector<16x16x4xf32>
    tpu.vector_store %arg9[%c0_17, %c0_18, %c0_19], %11 {strides = array<i32>} : memref<16x16x36xf32, #tpu.memory_space<vmem>>, vector<16x16x4xf32>,
    %c0_20 = arith.constant 0 : index
    %c1_21 = arith.constant 1 : index
    %c0_22 = arith.constant 0 : index
    %13 = vector.load %arg8[%c0_20, %c1_21, %c0_22] : memref<18x18x4xf32, #tpu.memory_space<vmem>>, vector<16x16x4xf32>
    %c0_23 = arith.constant 0 : index
    %c0_24 = arith.constant 0 : index
    %c4 = arith.constant 4 : index
    %14 = vector.load %arg9[%c0_23, %c0_24, %c4] : memref<16x16x36xf32, #tpu.memory_space<vmem>>, vector<16x16x4xf32>
    tpu.vector_store %arg9[%c0_23, %c0_24, %c4], %13 {strides = array<i32>} : memref<16x16x36xf32, #tpu.memory_space<vmem>>, vector<16x16x4xf32>,
    %c0_25 = arith.constant 0 : index
    %c2 = arith.constant 2 : index
    %c0_26 = arith.constant 0 : index
    %15 = vector.load %arg8[%c0_25, %c2, %c0_26] : memref<18x18x4xf32, #tpu.memory_space<vmem>>, vector<16x16x4xf32>
    %c0_27 = arith.constant 0 : index
    %c0_28 = arith.constant 0 : index
    %c8 = arith.constant 8 : index
    %16 = vector.load %arg9[%c0_27, %c0_28, %c8] : memref<16x16x36xf32, #tpu.memory_space<vmem>>, vector<16x16x4xf32>
    tpu.vector_store %arg9[%c0_27, %c0_28, %c8], %15 {strides = array<i32>} : memref<16x16x36xf32, #tpu.memory_space<vmem>>, vector<16x16x4xf32>,
    %c1_29 = arith.constant 1 : index
    %c0_30 = arith.constant 0 : index
    %c0_31 = arith.constant 0 : index
    %17 = vector.load %arg8[%c1_29, %c0_30, %c0_31] : memref<18x18x4xf32, #tpu.memory_space<vmem>>, vector<16x16x4xf32>
    %c0_32 = arith.constant 0 : index
    %c0_33 = arith.constant 0 : index
    %c12 = arith.constant 12 : index
    %18 = vector.load %arg9[%c0_32, %c0_33, %c12] : memref<16x16x36xf32, #tpu.memory_space<vmem>>, vector<16x16x4xf32>
    tpu.vector_store %arg9[%c0_32, %c0_33, %c12], %17 {strides = array<i32>} : memref<16x16x36xf32, #tpu.memory_space<vmem>>, vector<16x16x4xf32>,
    %c1_34 = arith.constant 1 : index
    %c1_35 = arith.constant 1 : index
    %c0_36 = arith.constant 0 : index
    %19 = vector.load %arg8[%c1_34, %c1_35, %c0_36] : memref<18x18x4xf32, #tpu.memory_space<vmem>>, vector<16x16x4xf32>
    %c0_37 = arith.constant 0 : index
    %c0_38 = arith.constant 0 : index
    %c16 = arith.constant 16 : index
    %20 = vector.load %arg9[%c0_37, %c0_38, %c16] : memref<16x16x36xf32, #tpu.memory_space<vmem>>, vector<16x16x4xf32>
    tpu.vector_store %arg9[%c0_37, %c0_38, %c16], %19 {strides = array<i32>} : memref<16x16x36xf32, #tpu.memory_space<vmem>>, vector<16x16x4xf32>,
    %c1_39 = arith.constant 1 : index
    %c2_40 = arith.constant 2 : index
    %c0_41 = arith.constant 0 : index
    %21 = vector.load %arg8[%c1_39, %c2_40, %c0_41] : memref<18x18x4xf32, #tpu.memory_space<vmem>>, vector<16x16x4xf32>
    %c0_42 = arith.constant 0 : index
    %c0_43 = arith.constant 0 : index
    %c20 = arith.constant 20 : index
    %22 = vector.load %arg9[%c0_42, %c0_43, %c20] : memref<16x16x36xf32, #tpu.memory_space<vmem>>, vector<16x16x4xf32>
    tpu.vector_store %arg9[%c0_42, %c0_43, %c20], %21 {strides = array<i32>} : memref<16x16x36xf32, #tpu.memory_space<vmem>>, vector<16x16x4xf32>,
    %c2_44 = arith.constant 2 : index
    %c0_45 = arith.constant 0 : index
    %c0_46 = arith.constant 0 : index
    %23 = vector.load %arg8[%c2_44, %c0_45, %c0_46] : memref<18x18x4xf32, #tpu.memory_space<vmem>>, vector<16x16x4xf32>
    %c0_47 = arith.constant 0 : index
    %c0_48 = arith.constant 0 : index
    %c24 = arith.constant 24 : index
    %24 = vector.load %arg9[%c0_47, %c0_48, %c24] : memref<16x16x36xf32, #tpu.memory_space<vmem>>, vector<16x16x4xf32>
    tpu.vector_store %arg9[%c0_47, %c0_48, %c24], %23 {strides = array<i32>} : memref<16x16x36xf32, #tpu.memory_space<vmem>>, vector<16x16x4xf32>,
    %c2_49 = arith.constant 2 : index
    %c1_50 = arith.constant 1 : index
    %c0_51 = arith.constant 0 : index
    %25 = vector.load %arg8[%c2_49, %c1_50, %c0_51] : memref<18x18x4xf32, #tpu.memory_space<vmem>>, vector<16x16x4xf32>
    %c0_52 = arith.constant 0 : index
    %c0_53 = arith.constant 0 : index
    %c28 = arith.constant 28 : index
    %26 = vector.load %arg9[%c0_52, %c0_53, %c28] : memref<16x16x36xf32, #tpu.memory_space<vmem>>, vector<16x16x4xf32>
    tpu.vector_store %arg9[%c0_52, %c0_53, %c28], %25 {strides = array<i32>} : memref<16x16x36xf32, #tpu.memory_space<vmem>>, vector<16x16x4xf32>,
    %c2_54 = arith.constant 2 : index
    %c2_55 = arith.constant 2 : index
    %c0_56 = arith.constant 0 : index
    %27 = vector.load %arg8[%c2_54, %c2_55, %c0_56] : memref<18x18x4xf32, #tpu.memory_space<vmem>>, vector<16x16x4xf32>
    %c0_57 = arith.constant 0 : index
    %c0_58 = arith.constant 0 : index
    %c32 = arith.constant 32 : index
    %28 = vector.load %arg9[%c0_57, %c0_58, %c32] : memref<16x16x36xf32, #tpu.memory_space<vmem>>, vector<16x16x4xf32>
    tpu.vector_store %arg9[%c0_57, %c0_58, %c32], %27 {strides = array<i32>} : memref<16x16x36xf32, #tpu.memory_space<vmem>>, vector<16x16x4xf32>,
    %c0_59 = arith.constant 0 : index
    %c0_60 = arith.constant 0 : index
    %c0_61 = arith.constant 0 : index
    %29 = vector.load %arg9[%c0_59, %c0_60, %c0_61] : memref<16x16x36xf32, #tpu.memory_space<vmem>>, vector<16x16x36xf32>
    %30 = vector.shape_cast %29 : vector<16x16x36xf32> to vector<256x36xf32>
    %31 = arith.truncf %30 : vector<256x36xf32> to vector<256x36xbf16>
    %cst_62 = arith.constant dense<0.000000e+00> : vector<256x4xf32>
    %32 = tpu.matmul %31, %7, %cst_62 {dimension_numbers = #tpu.dot_dimension_numbers<[1], [0], [0], [1], [0, 0, 1, 1], [], []>} : vector<256x36xbf16>, vector<36x4xbf16>, vector<256x4xf32> -> vector<256x4xf32>
    %33 = vector.broadcast %8 : vector<1x4xf32> to vector<256x4xf32>
    %34 = arith.addf %32, %33 : vector<256x4xf32>
    %cst_63 = arith.constant 0.000000e+00 : f32
    %35 = vector.broadcast %cst_63 : f32 to vector<256x4xf32>
    %36 = arith.cmpf oge, %34, %35 : vector<256x4xf32>
    %37 = vector.broadcast %9 : vector<1x4xf32> to vector<256x4xf32>
    %38 = arith.mulf %37, %34 : vector<256x4xf32>
    %39 = arith.select %36, %34, %38 : vector<256x4xi1>, vector<256x4xf32>
    %40 = vector.shape_cast %39 : vector<256x4xf32> to vector<16x16x4xf32>
    %c36 = arith.constant 36 : index
    %c0_64 = arith.constant 0 : index
    %41 = vector.load %arg2[%c36, %c0_64] : memref<144x4xbf16, #tpu.memory_space<vmem>>, vector<36x4xbf16>
    %c2_65 = arith.constant 2 : index
    %c0_66 = arith.constant 0 : index
    %42 = vector.load %arg3[%c2_65, %c0_66] : memref<8x4xf32, #tpu.memory_space<vmem>>, vector<1x4xf32>
    %c3 = arith.constant 3 : index
    %c0_67 = arith.constant 0 : index
    %43 = vector.load %arg3[%c3, %c0_67] : memref<8x4xf32, #tpu.memory_space<vmem>>, vector<1x4xf32>
    %c1_68 = arith.constant 1 : index
    %c1_69 = arith.constant 1 : index
    %c0_70 = arith.constant 0 : index
    %44 = vector.load %arg8[%c1_68, %c1_69, %c0_70] : memref<18x18x4xf32, #tpu.memory_space<vmem>>, vector<16x16x4xf32>
    tpu.vector_store %arg8[%c1_68, %c1_69, %c0_70], %40 {strides = array<i32>} : memref<18x18x4xf32, #tpu.memory_space<vmem>>, vector<16x16x4xf32>,
    %c0_71 = arith.constant 0 : index
    %c0_72 = arith.constant 0 : index
    %c0_73 = arith.constant 0 : index
    %45 = vector.load %arg8[%c0_71, %c0_72, %c0_73] : memref<18x18x4xf32, #tpu.memory_space<vmem>>, vector<16x16x4xf32>
    %c0_74 = arith.constant 0 : index
    %c0_75 = arith.constant 0 : index
    %c0_76 = arith.constant 0 : index
    %46 = vector.load %arg9[%c0_74, %c0_75, %c0_76] : memref<16x16x36xf32, #tpu.memory_space<vmem>>, vector<16x16x4xf32>
    tpu.vector_store %arg9[%c0_74, %c0_75, %c0_76], %45 {strides = array<i32>} : memref<16x16x36xf32, #tpu.memory_space<vmem>>, vector<16x16x4xf32>,
    %c0_77 = arith.constant 0 : index
    %c1_78 = arith.constant 1 : index
    %c0_79 = arith.constant 0 : index
    %47 = vector.load %arg8[%c0_77, %c1_78, %c0_79] : memref<18x18x4xf32, #tpu.memory_space<vmem>>, vector<16x16x4xf32>
    %c0_80 = arith.constant 0 : index
    %c0_81 = arith.constant 0 : index
    %c4_82 = arith.constant 4 : index
    %48 = vector.load %arg9[%c0_80, %c0_81, %c4_82] : memref<16x16x36xf32, #tpu.memory_space<vmem>>, vector<16x16x4xf32>
    tpu.vector_store %arg9[%c0_80, %c0_81, %c4_82], %47 {strides = array<i32>} : memref<16x16x36xf32, #tpu.memory_space<vmem>>, vector<16x16x4xf32>,
    %c0_83 = arith.constant 0 : index
    %c2_84 = arith.constant 2 : index
    %c0_85 = arith.constant 0 : index
    %49 = vector.load %arg8[%c0_83, %c2_84, %c0_85] : memref<18x18x4xf32, #tpu.memory_space<vmem>>, vector<16x16x4xf32>
    %c0_86 = arith.constant 0 : index
    %c0_87 = arith.constant 0 : index
    %c8_88 = arith.constant 8 : index
    %50 = vector.load %arg9[%c0_86, %c0_87, %c8_88] : memref<16x16x36xf32, #tpu.memory_space<vmem>>, vector<16x16x4xf32>
    tpu.vector_store %arg9[%c0_86, %c0_87, %c8_88], %49 {strides = array<i32>} : memref<16x16x36xf32, #tpu.memory_space<vmem>>, vector<16x16x4xf32>,
    %c1_89 = arith.constant 1 : index
    %c0_90 = arith.constant 0 : index
    %c0_91 = arith.constant 0 : index
    %51 = vector.load %arg8[%c1_89, %c0_90, %c0_91] : memref<18x18x4xf32, #tpu.memory_space<vmem>>, vector<16x16x4xf32>
    %c0_92 = arith.constant 0 : index
    %c0_93 = arith.constant 0 : index
    %c12_94 = arith.constant 12 : index
    %52 = vector.load %arg9[%c0_92, %c0_93, %c12_94] : memref<16x16x36xf32, #tpu.memory_space<vmem>>, vector<16x16x4xf32>
    tpu.vector_store %arg9[%c0_92, %c0_93, %c12_94], %51 {strides = array<i32>} : memref<16x16x36xf32, #tpu.memory_space<vmem>>, vector<16x16x4xf32>,
    %c1_95 = arith.constant 1 : index
    %c1_96 = arith.constant 1 : index
    %c0_97 = arith.constant 0 : index
    %53 = vector.load %arg8[%c1_95, %c1_96, %c0_97] : memref<18x18x4xf32, #tpu.memory_space<vmem>>, vector<16x16x4xf32>
    %c0_98 = arith.constant 0 : index
    %c0_99 = arith.constant 0 : index
    %c16_100 = arith.constant 16 : index
    %54 = vector.load %arg9[%c0_98, %c0_99, %c16_100] : memref<16x16x36xf32, #tpu.memory_space<vmem>>, vector<16x16x4xf32>
    tpu.vector_store %arg9[%c0_98, %c0_99, %c16_100], %53 {strides = array<i32>} : memref<16x16x36xf32, #tpu.memory_space<vmem>>, vector<16x16x4xf32>,
    %c1_101 = arith.constant 1 : index
    %c2_102 = arith.constant 2 : index
    %c0_103 = arith.constant 0 : index
    %55 = vector.load %arg8[%c1_101, %c2_102, %c0_103] : memref<18x18x4xf32, #tpu.memory_space<vmem>>, vector<16x16x4xf32>
    %c0_104 = arith.constant 0 : index
    %c0_105 = arith.constant 0 : index
    %c20_106 = arith.constant 20 : index
    %56 = vector.load %arg9[%c0_104, %c0_105, %c20_106] : memref<16x16x36xf32, #tpu.memory_space<vmem>>, vector<16x16x4xf32>
    tpu.vector_store %arg9[%c0_104, %c0_105, %c20_106], %55 {strides = array<i32>} : memref<16x16x36xf32, #tpu.memory_space<vmem>>, vector<16x16x4xf32>,
    %c2_107 = arith.constant 2 : index
    %c0_108 = arith.constant 0 : index
    %c0_109 = arith.constant 0 : index
    %57 = vector.load %arg8[%c2_107, %c0_108, %c0_109] : memref<18x18x4xf32, #tpu.memory_space<vmem>>, vector<16x16x4xf32>
    %c0_110 = arith.constant 0 : index
    %c0_111 = arith.constant 0 : index
    %c24_112 = arith.constant 24 : index
    %58 = vector.load %arg9[%c0_110, %c0_111, %c24_112] : memref<16x16x36xf32, #tpu.memory_space<vmem>>, vector<16x16x4xf32>
    tpu.vector_store %arg9[%c0_110, %c0_111, %c24_112], %57 {strides = array<i32>} : memref<16x16x36xf32, #tpu.memory_space<vmem>>, vector<16x16x4xf32>,
    %c2_113 = arith.constant 2 : index
    %c1_114 = arith.constant 1 : index
    %c0_115 = arith.constant 0 : index
    %59 = vector.load %arg8[%c2_113, %c1_114, %c0_115] : memref<18x18x4xf32, #tpu.memory_space<vmem>>, vector<16x16x4xf32>
    %c0_116 = arith.constant 0 : index
    %c0_117 = arith.constant 0 : index
    %c28_118 = arith.constant 28 : index
    %60 = vector.load %arg9[%c0_116, %c0_117, %c28_118] : memref<16x16x36xf32, #tpu.memory_space<vmem>>, vector<16x16x4xf32>
    tpu.vector_store %arg9[%c0_116, %c0_117, %c28_118], %59 {strides = array<i32>} : memref<16x16x36xf32, #tpu.memory_space<vmem>>, vector<16x16x4xf32>,
    %c2_119 = arith.constant 2 : index
    %c2_120 = arith.constant 2 : index
    %c0_121 = arith.constant 0 : index
    %61 = vector.load %arg8[%c2_119, %c2_120, %c0_121] : memref<18x18x4xf32, #tpu.memory_space<vmem>>, vector<16x16x4xf32>
    %c0_122 = arith.constant 0 : index
    %c0_123 = arith.constant 0 : index
    %c32_124 = arith.constant 32 : index
    %62 = vector.load %arg9[%c0_122, %c0_123, %c32_124] : memref<16x16x36xf32, #tpu.memory_space<vmem>>, vector<16x16x4xf32>
    tpu.vector_store %arg9[%c0_122, %c0_123, %c32_124], %61 {strides = array<i32>} : memref<16x16x36xf32, #tpu.memory_space<vmem>>, vector<16x16x4xf32>,
    %c0_125 = arith.constant 0 : index
    %c0_126 = arith.constant 0 : index
    %c0_127 = arith.constant 0 : index
    %63 = vector.load %arg9[%c0_125, %c0_126, %c0_127] : memref<16x16x36xf32, #tpu.memory_space<vmem>>, vector<16x16x36xf32>
    %64 = vector.shape_cast %63 : vector<16x16x36xf32> to vector<256x36xf32>
    %65 = arith.truncf %64 : vector<256x36xf32> to vector<256x36xbf16>
    %cst_128 = arith.constant dense<0.000000e+00> : vector<256x4xf32>
    %66 = tpu.matmul %65, %41, %cst_128 {dimension_numbers = #tpu.dot_dimension_numbers<[1], [0], [0], [1], [0, 0, 1, 1], [], []>} : vector<256x36xbf16>, vector<36x4xbf16>, vector<256x4xf32> -> vector<256x4xf32>
    %67 = vector.broadcast %42 : vector<1x4xf32> to vector<256x4xf32>
    %68 = arith.addf %66, %67 : vector<256x4xf32>
    %cst_129 = arith.constant 0.000000e+00 : f32
    %69 = vector.broadcast %cst_129 : f32 to vector<256x4xf32>
    %70 = arith.cmpf oge, %68, %69 : vector<256x4xf32>
    %71 = vector.broadcast %43 : vector<1x4xf32> to vector<256x4xf32>
    %72 = arith.mulf %71, %68 : vector<256x4xf32>
    %73 = arith.select %70, %68, %72 : vector<256x4xi1>, vector<256x4xf32>
    %74 = vector.shape_cast %73 : vector<256x4xf32> to vector<16x16x4xf32>
    %75 = arith.select %6, %74, %40 : vector<16x16x4xi1>, vector<16x16x4xf32>
    %c72 = arith.constant 72 : index
    %c0_130 = arith.constant 0 : index
    %76 = vector.load %arg2[%c72, %c0_130] : memref<144x4xbf16, #tpu.memory_space<vmem>>, vector<36x4xbf16>
    %c4_131 = arith.constant 4 : index
    %c0_132 = arith.constant 0 : index
    %77 = vector.load %arg3[%c4_131, %c0_132] : memref<8x4xf32, #tpu.memory_space<vmem>>, vector<1x4xf32>
    %c5 = arith.constant 5 : index
    %c0_133 = arith.constant 0 : index
    %78 = vector.load %arg3[%c5, %c0_133] : memref<8x4xf32, #tpu.memory_space<vmem>>, vector<1x4xf32>
    %c1_134 = arith.constant 1 : index
    %c1_135 = arith.constant 1 : index
    %c0_136 = arith.constant 0 : index
    %79 = vector.load %arg8[%c1_134, %c1_135, %c0_136] : memref<18x18x4xf32, #tpu.memory_space<vmem>>, vector<16x16x4xf32>
    tpu.vector_store %arg8[%c1_134, %c1_135, %c0_136], %75 {strides = array<i32>} : memref<18x18x4xf32, #tpu.memory_space<vmem>>, vector<16x16x4xf32>,
    %c0_137 = arith.constant 0 : index
    %c0_138 = arith.constant 0 : index
    %c0_139 = arith.constant 0 : index
    %80 = vector.load %arg8[%c0_137, %c0_138, %c0_139] : memref<18x18x4xf32, #tpu.memory_space<vmem>>, vector<16x16x4xf32>
    %c0_140 = arith.constant 0 : index
    %c0_141 = arith.constant 0 : index
    %c0_142 = arith.constant 0 : index
    %81 = vector.load %arg9[%c0_140, %c0_141, %c0_142] : memref<16x16x36xf32, #tpu.memory_space<vmem>>, vector<16x16x4xf32>
    tpu.vector_store %arg9[%c0_140, %c0_141, %c0_142], %80 {strides = array<i32>} : memref<16x16x36xf32, #tpu.memory_space<vmem>>, vector<16x16x4xf32>,
    %c0_143 = arith.constant 0 : index
    %c1_144 = arith.constant 1 : index
    %c0_145 = arith.constant 0 : index
    %82 = vector.load %arg8[%c0_143, %c1_144, %c0_145] : memref<18x18x4xf32, #tpu.memory_space<vmem>>, vector<16x16x4xf32>
    %c0_146 = arith.constant 0 : index
    %c0_147 = arith.constant 0 : index
    %c4_148 = arith.constant 4 : index
    %83 = vector.load %arg9[%c0_146, %c0_147, %c4_148] : memref<16x16x36xf32, #tpu.memory_space<vmem>>, vector<16x16x4xf32>
    tpu.vector_store %arg9[%c0_146, %c0_147, %c4_148], %82 {strides = array<i32>} : memref<16x16x36xf32, #tpu.memory_space<vmem>>, vector<16x16x4xf32>,
    %c0_149 = arith.constant 0 : index
    %c2_150 = arith.constant 2 : index
    %c0_151 = arith.constant 0 : index
    %84 = vector.load %arg8[%c0_149, %c2_150, %c0_151] : memref<18x18x4xf32, #tpu.memory_space<vmem>>, vector<16x16x4xf32>
    %c0_152 = arith.constant 0 : index
    %c0_153 = arith.constant 0 : index
    %c8_154 = arith.constant 8 : index
    %85 = vector.load %arg9[%c0_152, %c0_153, %c8_154] : memref<16x16x36xf32, #tpu.memory_space<vmem>>, vector<16x16x4xf32>
    tpu.vector_store %arg9[%c0_152, %c0_153, %c8_154], %84 {strides = array<i32>} : memref<16x16x36xf32, #tpu.memory_space<vmem>>, vector<16x16x4xf32>,
    %c1_155 = arith.constant 1 : index
    %c0_156 = arith.constant 0 : index
    %c0_157 = arith.constant 0 : index
    %86 = vector.load %arg8[%c1_155, %c0_156, %c0_157] : memref<18x18x4xf32, #tpu.memory_space<vmem>>, vector<16x16x4xf32>
    %c0_158 = arith.constant 0 : index
    %c0_159 = arith.constant 0 : index
    %c12_160 = arith.constant 12 : index
    %87 = vector.load %arg9[%c0_158, %c0_159, %c12_160] : memref<16x16x36xf32, #tpu.memory_space<vmem>>, vector<16x16x4xf32>
    tpu.vector_store %arg9[%c0_158, %c0_159, %c12_160], %86 {strides = array<i32>} : memref<16x16x36xf32, #tpu.memory_space<vmem>>, vector<16x16x4xf32>,
    %c1_161 = arith.constant 1 : index
    %c1_162 = arith.constant 1 : index
    %c0_163 = arith.constant 0 : index
    %88 = vector.load %arg8[%c1_161, %c1_162, %c0_163] : memref<18x18x4xf32, #tpu.memory_space<vmem>>, vector<16x16x4xf32>
    %c0_164 = arith.constant 0 : index
    %c0_165 = arith.constant 0 : index
    %c16_166 = arith.constant 16 : index
    %89 = vector.load %arg9[%c0_164, %c0_165, %c16_166] : memref<16x16x36xf32, #tpu.memory_space<vmem>>, vector<16x16x4xf32>
    tpu.vector_store %arg9[%c0_164, %c0_165, %c16_166], %88 {strides = array<i32>} : memref<16x16x36xf32, #tpu.memory_space<vmem>>, vector<16x16x4xf32>,
    %c1_167 = arith.constant 1 : index
    %c2_168 = arith.constant 2 : index
    %c0_169 = arith.constant 0 : index
    %90 = vector.load %arg8[%c1_167, %c2_168, %c0_169] : memref<18x18x4xf32, #tpu.memory_space<vmem>>, vector<16x16x4xf32>
    %c0_170 = arith.constant 0 : index
    %c0_171 = arith.constant 0 : index
    %c20_172 = arith.constant 20 : index
    %91 = vector.load %arg9[%c0_170, %c0_171, %c20_172] : memref<16x16x36xf32, #tpu.memory_space<vmem>>, vector<16x16x4xf32>
    tpu.vector_store %arg9[%c0_170, %c0_171, %c20_172], %90 {strides = array<i32>} : memref<16x16x36xf32, #tpu.memory_space<vmem>>, vector<16x16x4xf32>,
    %c2_173 = arith.constant 2 : index
    %c0_174 = arith.constant 0 : index
    %c0_175 = arith.constant 0 : index
    %92 = vector.load %arg8[%c2_173, %c0_174, %c0_175] : memref<18x18x4xf32, #tpu.memory_space<vmem>>, vector<16x16x4xf32>
    %c0_176 = arith.constant 0 : index
    %c0_177 = arith.constant 0 : index
    %c24_178 = arith.constant 24 : index
    %93 = vector.load %arg9[%c0_176, %c0_177, %c24_178] : memref<16x16x36xf32, #tpu.memory_space<vmem>>, vector<16x16x4xf32>
    tpu.vector_store %arg9[%c0_176, %c0_177, %c24_178], %92 {strides = array<i32>} : memref<16x16x36xf32, #tpu.memory_space<vmem>>, vector<16x16x4xf32>,
    %c2_179 = arith.constant 2 : index
    %c1_180 = arith.constant 1 : index
    %c0_181 = arith.constant 0 : index
    %94 = vector.load %arg8[%c2_179, %c1_180, %c0_181] : memref<18x18x4xf32, #tpu.memory_space<vmem>>, vector<16x16x4xf32>
    %c0_182 = arith.constant 0 : index
    %c0_183 = arith.constant 0 : index
    %c28_184 = arith.constant 28 : index
    %95 = vector.load %arg9[%c0_182, %c0_183, %c28_184] : memref<16x16x36xf32, #tpu.memory_space<vmem>>, vector<16x16x4xf32>
    tpu.vector_store %arg9[%c0_182, %c0_183, %c28_184], %94 {strides = array<i32>} : memref<16x16x36xf32, #tpu.memory_space<vmem>>, vector<16x16x4xf32>,
    %c2_185 = arith.constant 2 : index
    %c2_186 = arith.constant 2 : index
    %c0_187 = arith.constant 0 : index
    %96 = vector.load %arg8[%c2_185, %c2_186, %c0_187] : memref<18x18x4xf32, #tpu.memory_space<vmem>>, vector<16x16x4xf32>
    %c0_188 = arith.constant 0 : index
    %c0_189 = arith.constant 0 : index
    %c32_190 = arith.constant 32 : index
    %97 = vector.load %arg9[%c0_188, %c0_189, %c32_190] : memref<16x16x36xf32, #tpu.memory_space<vmem>>, vector<16x16x4xf32>
    tpu.vector_store %arg9[%c0_188, %c0_189, %c32_190], %96 {strides = array<i32>} : memref<16x16x36xf32, #tpu.memory_space<vmem>>, vector<16x16x4xf32>,
    %c0_191 = arith.constant 0 : index
    %c0_192 = arith.constant 0 : index
    %c0_193 = arith.constant 0 : index
    %98 = vector.load %arg9[%c0_191, %c0_192, %c0_193] : memref<16x16x36xf32, #tpu.memory_space<vmem>>, vector<16x16x36xf32>
    %99 = vector.shape_cast %98 : vector<16x16x36xf32> to vector<256x36xf32>
    %100 = arith.truncf %99 : vector<256x36xf32> to vector<256x36xbf16>
    %cst_194 = arith.constant dense<0.000000e+00> : vector<256x4xf32>
    %101 = tpu.matmul %100, %76, %cst_194 {dimension_numbers = #tpu.dot_dimension_numbers<[1], [0], [0], [1], [0, 0, 1, 1], [], []>} : vector<256x36xbf16>, vector<36x4xbf16>, vector<256x4xf32> -> vector<256x4xf32>
    %102 = vector.broadcast %77 : vector<1x4xf32> to vector<256x4xf32>
    %103 = arith.addf %101, %102 : vector<256x4xf32>
    %cst_195 = arith.constant 0.000000e+00 : f32
    %104 = vector.broadcast %cst_195 : f32 to vector<256x4xf32>
    %105 = arith.cmpf oge, %103, %104 : vector<256x4xf32>
    %106 = vector.broadcast %78 : vector<1x4xf32> to vector<256x4xf32>
    %107 = arith.mulf %106, %103 : vector<256x4xf32>
    %108 = arith.select %105, %103, %107 : vector<256x4xi1>, vector<256x4xf32>
    %109 = vector.shape_cast %108 : vector<256x4xf32> to vector<16x16x4xf32>
    %c108 = arith.constant 108 : index
    %c0_196 = arith.constant 0 : index
    %110 = vector.load %arg2[%c108, %c0_196] : memref<144x4xbf16, #tpu.memory_space<vmem>>, vector<36x4xbf16>
    %c6 = arith.constant 6 : index
    %c0_197 = arith.constant 0 : index
    %111 = vector.load %arg3[%c6, %c0_197] : memref<8x4xf32, #tpu.memory_space<vmem>>, vector<1x4xf32>
    %c7 = arith.constant 7 : index
    %c0_198 = arith.constant 0 : index
    %112 = vector.load %arg3[%c7, %c0_198] : memref<8x4xf32, #tpu.memory_space<vmem>>, vector<1x4xf32>
    %c1_199 = arith.constant 1 : index
    %c1_200 = arith.constant 1 : index
    %c0_201 = arith.constant 0 : index
    %113 = vector.load %arg8[%c1_199, %c1_200, %c0_201] : memref<18x18x4xf32, #tpu.memory_space<vmem>>, vector<16x16x4xf32>
    tpu.vector_store %arg8[%c1_199, %c1_200, %c0_201], %109 {strides = array<i32>} : memref<18x18x4xf32, #tpu.memory_space<vmem>>, vector<16x16x4xf32>,
    %c0_202 = arith.constant 0 : index
    %c0_203 = arith.constant 0 : index
    %c0_204 = arith.constant 0 : index
    %114 = vector.load %arg8[%c0_202, %c0_203, %c0_204] : memref<18x18x4xf32, #tpu.memory_space<vmem>>, vector<16x16x4xf32>
    %c0_205 = arith.constant 0 : index
    %c0_206 = arith.constant 0 : index
    %c0_207 = arith.constant 0 : index
    %115 = vector.load %arg9[%c0_205, %c0_206, %c0_207] : memref<16x16x36xf32, #tpu.memory_space<vmem>>, vector<16x16x4xf32>
    tpu.vector_store %arg9[%c0_205, %c0_206, %c0_207], %114 {strides = array<i32>} : memref<16x16x36xf32, #tpu.memory_space<vmem>>, vector<16x16x4xf32>,
    %c0_208 = arith.constant 0 : index
    %c1_209 = arith.constant 1 : index
    %c0_210 = arith.constant 0 : index
    %116 = vector.load %arg8[%c0_208, %c1_209, %c0_210] : memref<18x18x4xf32, #tpu.memory_space<vmem>>, vector<16x16x4xf32>
    %c0_211 = arith.constant 0 : index
    %c0_212 = arith.constant 0 : index
    %c4_213 = arith.constant 4 : index
    %117 = vector.load %arg9[%c0_211, %c0_212, %c4_213] : memref<16x16x36xf32, #tpu.memory_space<vmem>>, vector<16x16x4xf32>
    tpu.vector_store %arg9[%c0_211, %c0_212, %c4_213], %116 {strides = array<i32>} : memref<16x16x36xf32, #tpu.memory_space<vmem>>, vector<16x16x4xf32>,
    %c0_214 = arith.constant 0 : index
    %c2_215 = arith.constant 2 : index
    %c0_216 = arith.constant 0 : index
    %118 = vector.load %arg8[%c0_214, %c2_215, %c0_216] : memref<18x18x4xf32, #tpu.memory_space<vmem>>, vector<16x16x4xf32>
    %c0_217 = arith.constant 0 : index
    %c0_218 = arith.constant 0 : index
    %c8_219 = arith.constant 8 : index
    %119 = vector.load %arg9[%c0_217, %c0_218, %c8_219] : memref<16x16x36xf32, #tpu.memory_space<vmem>>, vector<16x16x4xf32>
    tpu.vector_store %arg9[%c0_217, %c0_218, %c8_219], %118 {strides = array<i32>} : memref<16x16x36xf32, #tpu.memory_space<vmem>>, vector<16x16x4xf32>,
    %c1_220 = arith.constant 1 : index
    %c0_221 = arith.constant 0 : index
    %c0_222 = arith.constant 0 : index
    %120 = vector.load %arg8[%c1_220, %c0_221, %c0_222] : memref<18x18x4xf32, #tpu.memory_space<vmem>>, vector<16x16x4xf32>
    %c0_223 = arith.constant 0 : index
    %c0_224 = arith.constant 0 : index
    %c12_225 = arith.constant 12 : index
    %121 = vector.load %arg9[%c0_223, %c0_224, %c12_225] : memref<16x16x36xf32, #tpu.memory_space<vmem>>, vector<16x16x4xf32>
    tpu.vector_store %arg9[%c0_223, %c0_224, %c12_225], %120 {strides = array<i32>} : memref<16x16x36xf32, #tpu.memory_space<vmem>>, vector<16x16x4xf32>,
    %c1_226 = arith.constant 1 : index
    %c1_227 = arith.constant 1 : index
    %c0_228 = arith.constant 0 : index
    %122 = vector.load %arg8[%c1_226, %c1_227, %c0_228] : memref<18x18x4xf32, #tpu.memory_space<vmem>>, vector<16x16x4xf32>
    %c0_229 = arith.constant 0 : index
    %c0_230 = arith.constant 0 : index
    %c16_231 = arith.constant 16 : index
    %123 = vector.load %arg9[%c0_229, %c0_230, %c16_231] : memref<16x16x36xf32, #tpu.memory_space<vmem>>, vector<16x16x4xf32>
    tpu.vector_store %arg9[%c0_229, %c0_230, %c16_231], %122 {strides = array<i32>} : memref<16x16x36xf32, #tpu.memory_space<vmem>>, vector<16x16x4xf32>,
    %c1_232 = arith.constant 1 : index
    %c2_233 = arith.constant 2 : index
    %c0_234 = arith.constant 0 : index
    %124 = vector.load %arg8[%c1_232, %c2_233, %c0_234] : memref<18x18x4xf32, #tpu.memory_space<vmem>>, vector<16x16x4xf32>
    %c0_235 = arith.constant 0 : index
    %c0_236 = arith.constant 0 : index
    %c20_237 = arith.constant 20 : index
    %125 = vector.load %arg9[%c0_235, %c0_236, %c20_237] : memref<16x16x36xf32, #tpu.memory_space<vmem>>, vector<16x16x4xf32>
    tpu.vector_store %arg9[%c0_235, %c0_236, %c20_237], %124 {strides = array<i32>} : memref<16x16x36xf32, #tpu.memory_space<vmem>>, vector<16x16x4xf32>,
    %c2_238 = arith.constant 2 : index
    %c0_239 = arith.constant 0 : index
    %c0_240 = arith.constant 0 : index
    %126 = vector.load %arg8[%c2_238, %c0_239, %c0_240] : memref<18x18x4xf32, #tpu.memory_space<vmem>>, vector<16x16x4xf32>
    %c0_241 = arith.constant 0 : index
    %c0_242 = arith.constant 0 : index
    %c24_243 = arith.constant 24 : index
    %127 = vector.load %arg9[%c0_241, %c0_242, %c24_243] : memref<16x16x36xf32, #tpu.memory_space<vmem>>, vector<16x16x4xf32>
    tpu.vector_store %arg9[%c0_241, %c0_242, %c24_243], %126 {strides = array<i32>} : memref<16x16x36xf32, #tpu.memory_space<vmem>>, vector<16x16x4xf32>,
    %c2_244 = arith.constant 2 : index
    %c1_245 = arith.constant 1 : index
    %c0_246 = arith.constant 0 : index
    %128 = vector.load %arg8[%c2_244, %c1_245, %c0_246] : memref<18x18x4xf32, #tpu.memory_space<vmem>>, vector<16x16x4xf32>
    %c0_247 = arith.constant 0 : index
    %c0_248 = arith.constant 0 : index
    %c28_249 = arith.constant 28 : index
    %129 = vector.load %arg9[%c0_247, %c0_248, %c28_249] : memref<16x16x36xf32, #tpu.memory_space<vmem>>, vector<16x16x4xf32>
    tpu.vector_store %arg9[%c0_247, %c0_248, %c28_249], %128 {strides = array<i32>} : memref<16x16x36xf32, #tpu.memory_space<vmem>>, vector<16x16x4xf32>,
    %c2_250 = arith.constant 2 : index
    %c2_251 = arith.constant 2 : index
    %c0_252 = arith.constant 0 : index
    %130 = vector.load %arg8[%c2_250, %c2_251, %c0_252] : memref<18x18x4xf32, #tpu.memory_space<vmem>>, vector<16x16x4xf32>
    %c0_253 = arith.constant 0 : index
    %c0_254 = arith.constant 0 : index
    %c32_255 = arith.constant 32 : index
    %131 = vector.load %arg9[%c0_253, %c0_254, %c32_255] : memref<16x16x36xf32, #tpu.memory_space<vmem>>, vector<16x16x4xf32>
    tpu.vector_store %arg9[%c0_253, %c0_254, %c32_255], %130 {strides = array<i32>} : memref<16x16x36xf32, #tpu.memory_space<vmem>>, vector<16x16x4xf32>,
    %c0_256 = arith.constant 0 : index
    %c0_257 = arith.constant 0 : index
    %c0_258 = arith.constant 0 : index
    %132 = vector.load %arg9[%c0_256, %c0_257, %c0_258] : memref<16x16x36xf32, #tpu.memory_space<vmem>>, vector<16x16x36xf32>
    %133 = vector.shape_cast %132 : vector<16x16x36xf32> to vector<256x36xf32>
    %134 = arith.truncf %133 : vector<256x36xf32> to vector<256x36xbf16>
    %cst_259 = arith.constant dense<0.000000e+00> : vector<256x4xf32>
    %135 = tpu.matmul %134, %110, %cst_259 {dimension_numbers = #tpu.dot_dimension_numbers<[1], [0], [0], [1], [0, 0, 1, 1], [], []>} : vector<256x36xbf16>, vector<36x4xbf16>, vector<256x4xf32> -> vector<256x4xf32>
    %136 = vector.broadcast %111 : vector<1x4xf32> to vector<256x4xf32>
    %137 = arith.addf %135, %136 : vector<256x4xf32>
    %cst_260 = arith.constant 0.000000e+00 : f32
    %138 = vector.broadcast %cst_260 : f32 to vector<256x4xf32>
    %139 = arith.cmpf oge, %137, %138 : vector<256x4xf32>
    %140 = vector.broadcast %112 : vector<1x4xf32> to vector<256x4xf32>
    %141 = arith.mulf %140, %137 : vector<256x4xf32>
    %142 = arith.select %139, %137, %141 : vector<256x4xi1>, vector<256x4xf32>
    %143 = vector.shape_cast %142 : vector<256x4xf32> to vector<16x16x4xf32>
    %144 = arith.select %6, %143, %109 : vector<16x16x4xi1>, vector<16x16x4xf32>
    %145 = arith.addf %3, %144 : vector<16x16x4xf32>
    %c1_261 = arith.constant 1 : index
    %c1_262 = arith.constant 1 : index
    %c0_263 = arith.constant 0 : index
    %146 = vector.load %arg8[%c1_261, %c1_262, %c0_263] : memref<18x18x4xf32, #tpu.memory_space<vmem>>, vector<16x16x4xf32>
    tpu.vector_store %arg8[%c1_261, %c1_262, %c0_263], %145 {strides = array<i32>} : memref<18x18x4xf32, #tpu.memory_space<vmem>>, vector<16x16x4xf32>,
    %c0_264 = arith.constant 0 : index
    %c0_265 = arith.constant 0 : index
    %c0_266 = arith.constant 0 : index
    %147 = vector.load %arg8[%c0_264, %c0_265, %c0_266] : memref<18x18x4xf32, #tpu.memory_space<vmem>>, vector<16x16x4xf32>
    %c0_267 = arith.constant 0 : index
    %c0_268 = arith.constant 0 : index
    %c0_269 = arith.constant 0 : index
    %148 = vector.load %arg9[%c0_267, %c0_268, %c0_269] : memref<16x16x36xf32, #tpu.memory_space<vmem>>, vector<16x16x4xf32>
    tpu.vector_store %arg9[%c0_267, %c0_268, %c0_269], %147 {strides = array<i32>} : memref<16x16x36xf32, #tpu.memory_space<vmem>>, vector<16x16x4xf32>,
    %c0_270 = arith.constant 0 : index
    %c1_271 = arith.constant 1 : index
    %c0_272 = arith.constant 0 : index
    %149 = vector.load %arg8[%c0_270, %c1_271, %c0_272] : memref<18x18x4xf32, #tpu.memory_space<vmem>>, vector<16x16x4xf32>
    %c0_273 = arith.constant 0 : index
    %c0_274 = arith.constant 0 : index
    %c4_275 = arith.constant 4 : index
    %150 = vector.load %arg9[%c0_273, %c0_274, %c4_275] : memref<16x16x36xf32, #tpu.memory_space<vmem>>, vector<16x16x4xf32>
    tpu.vector_store %arg9[%c0_273, %c0_274, %c4_275], %149 {strides = array<i32>} : memref<16x16x36xf32, #tpu.memory_space<vmem>>, vector<16x16x4xf32>,
    %c0_276 = arith.constant 0 : index
    %c2_277 = arith.constant 2 : index
    %c0_278 = arith.constant 0 : index
    %151 = vector.load %arg8[%c0_276, %c2_277, %c0_278] : memref<18x18x4xf32, #tpu.memory_space<vmem>>, vector<16x16x4xf32>
    %c0_279 = arith.constant 0 : index
    %c0_280 = arith.constant 0 : index
    %c8_281 = arith.constant 8 : index
    %152 = vector.load %arg9[%c0_279, %c0_280, %c8_281] : memref<16x16x36xf32, #tpu.memory_space<vmem>>, vector<16x16x4xf32>
    tpu.vector_store %arg9[%c0_279, %c0_280, %c8_281], %151 {strides = array<i32>} : memref<16x16x36xf32, #tpu.memory_space<vmem>>, vector<16x16x4xf32>,
    %c1_282 = arith.constant 1 : index
    %c0_283 = arith.constant 0 : index
    %c0_284 = arith.constant 0 : index
    %153 = vector.load %arg8[%c1_282, %c0_283, %c0_284] : memref<18x18x4xf32, #tpu.memory_space<vmem>>, vector<16x16x4xf32>
    %c0_285 = arith.constant 0 : index
    %c0_286 = arith.constant 0 : index
    %c12_287 = arith.constant 12 : index
    %154 = vector.load %arg9[%c0_285, %c0_286, %c12_287] : memref<16x16x36xf32, #tpu.memory_space<vmem>>, vector<16x16x4xf32>
    tpu.vector_store %arg9[%c0_285, %c0_286, %c12_287], %153 {strides = array<i32>} : memref<16x16x36xf32, #tpu.memory_space<vmem>>, vector<16x16x4xf32>,
    %c1_288 = arith.constant 1 : index
    %c1_289 = arith.constant 1 : index
    %c0_290 = arith.constant 0 : index
    %155 = vector.load %arg8[%c1_288, %c1_289, %c0_290] : memref<18x18x4xf32, #tpu.memory_space<vmem>>, vector<16x16x4xf32>
    %c0_291 = arith.constant 0 : index
    %c0_292 = arith.constant 0 : index
    %c16_293 = arith.constant 16 : index
    %156 = vector.load %arg9[%c0_291, %c0_292, %c16_293] : memref<16x16x36xf32, #tpu.memory_space<vmem>>, vector<16x16x4xf32>
    tpu.vector_store %arg9[%c0_291, %c0_292, %c16_293], %155 {strides = array<i32>} : memref<16x16x36xf32, #tpu.memory_space<vmem>>, vector<16x16x4xf32>,
    %c1_294 = arith.constant 1 : index
    %c2_295 = arith.constant 2 : index
    %c0_296 = arith.constant 0 : index
    %157 = vector.load %arg8[%c1_294, %c2_295, %c0_296] : memref<18x18x4xf32, #tpu.memory_space<vmem>>, vector<16x16x4xf32>
    %c0_297 = arith.constant 0 : index
    %c0_298 = arith.constant 0 : index
    %c20_299 = arith.constant 20 : index
    %158 = vector.load %arg9[%c0_297, %c0_298, %c20_299] : memref<16x16x36xf32, #tpu.memory_space<vmem>>, vector<16x16x4xf32>
    tpu.vector_store %arg9[%c0_297, %c0_298, %c20_299], %157 {strides = array<i32>} : memref<16x16x36xf32, #tpu.memory_space<vmem>>, vector<16x16x4xf32>,
    %c2_300 = arith.constant 2 : index
    %c0_301 = arith.constant 0 : index
    %c0_302 = arith.constant 0 : index
    %159 = vector.load %arg8[%c2_300, %c0_301, %c0_302] : memref<18x18x4xf32, #tpu.memory_space<vmem>>, vector<16x16x4xf32>
    %c0_303 = arith.constant 0 : index
    %c0_304 = arith.constant 0 : index
    %c24_305 = arith.constant 24 : index
    %160 = vector.load %arg9[%c0_303, %c0_304, %c24_305] : memref<16x16x36xf32, #tpu.memory_space<vmem>>, vector<16x16x4xf32>
    tpu.vector_store %arg9[%c0_303, %c0_304, %c24_305], %159 {strides = array<i32>} : memref<16x16x36xf32, #tpu.memory_space<vmem>>, vector<16x16x4xf32>,
    %c2_306 = arith.constant 2 : index
    %c1_307 = arith.constant 1 : index
    %c0_308 = arith.constant 0 : index
    %161 = vector.load %arg8[%c2_306, %c1_307, %c0_308] : memref<18x18x4xf32, #tpu.memory_space<vmem>>, vector<16x16x4xf32>
    %c0_309 = arith.constant 0 : index
    %c0_310 = arith.constant 0 : index
    %c28_311 = arith.constant 28 : index
    %162 = vector.load %arg9[%c0_309, %c0_310, %c28_311] : memref<16x16x36xf32, #tpu.memory_space<vmem>>, vector<16x16x4xf32>
    tpu.vector_store %arg9[%c0_309, %c0_310, %c28_311], %161 {strides = array<i32>} : memref<16x16x36xf32, #tpu.memory_space<vmem>>, vector<16x16x4xf32>,
    %c2_312 = arith.constant 2 : index
    %c2_313 = arith.constant 2 : index
    %c0_314 = arith.constant 0 : index
    %163 = vector.load %arg8[%c2_312, %c2_313, %c0_314] : memref<18x18x4xf32, #tpu.memory_space<vmem>>, vector<16x16x4xf32>
    %c0_315 = arith.constant 0 : index
    %c0_316 = arith.constant 0 : index
    %c32_317 = arith.constant 32 : index
    %164 = vector.load %arg9[%c0_315, %c0_316, %c32_317] : memref<16x16x36xf32, #tpu.memory_space<vmem>>, vector<16x16x4xf32>
    tpu.vector_store %arg9[%c0_315, %c0_316, %c32_317], %163 {strides = array<i32>} : memref<16x16x36xf32, #tpu.memory_space<vmem>>, vector<16x16x4xf32>,
    %c0_318 = arith.constant 0 : index
    %c0_319 = arith.constant 0 : index
    %c0_320 = arith.constant 0 : index
    %165 = vector.load %arg9[%c0_318, %c0_319, %c0_320] : memref<16x16x36xf32, #tpu.memory_space<vmem>>, vector<16x16x36xf32>
    %166 = vector.shape_cast %165 : vector<16x16x36xf32> to vector<256x36xf32>
    %167 = arith.truncf %166 : vector<256x36xf32> to vector<256x36xbf16>
    %c0_321 = arith.constant 0 : index
    %c0_322 = arith.constant 0 : index
    %168 = vector.load %arg4[%c0_321, %c0_322] : memref<36x8xbf16, #tpu.memory_space<vmem>>, vector<36x8xbf16>
    %cst_323 = arith.constant dense<0.000000e+00> : vector<256x8xf32>
    %169 = tpu.matmul %167, %168, %cst_323 {dimension_numbers = #tpu.dot_dimension_numbers<[1], [0], [0], [1], [0, 0, 1, 1], [], []>} : vector<256x36xbf16>, vector<36x8xbf16>, vector<256x8xf32> -> vector<256x8xf32>
    %c0_324 = arith.constant 0 : index
    %c0_325 = arith.constant 0 : index
    %170 = vector.load %arg6[%c0_324, %c0_325] : memref<64x256xf32, #tpu.memory_space<vmem>>, vector<64x256xf32>
    %cst_326 = arith.constant dense<0.000000e+00> : vector<64x8xf32>
    %171 = tpu.matmul %170, %169, %cst_326 {dimension_numbers = #tpu.dot_dimension_numbers<[1], [0], [0], [1], [0, 0, 1, 1], [], []>} : vector<64x256xf32>, vector<256x8xf32>, vector<64x8xf32> -> vector<64x8xf32>
    %c0_327 = arith.constant 0 : index
    %c0_328 = arith.constant 0 : index
    %172 = vector.load %arg5[%c0_327, %c0_328] : memref<2x8xf32, #tpu.memory_space<vmem>>, vector<1x8xf32>
    %c1_329 = arith.constant 1 : index
    %c0_330 = arith.constant 0 : index
    %173 = vector.load %arg5[%c1_329, %c0_330] : memref<2x8xf32, #tpu.memory_space<vmem>>, vector<1x8xf32>
    %174 = vector.broadcast %172 : vector<1x8xf32> to vector<64x8xf32>
    %175 = arith.addf %171, %174 : vector<64x8xf32>
    %cst_331 = arith.constant 0.000000e+00 : f32
    %176 = vector.broadcast %cst_331 : f32 to vector<64x8xf32>
    %177 = arith.cmpf oge, %175, %176 : vector<64x8xf32>
    %178 = vector.broadcast %173 : vector<1x8xf32> to vector<64x8xf32>
    %179 = arith.mulf %178, %175 : vector<64x8xf32>
    %180 = arith.select %177, %175, %179 : vector<64x8xi1>, vector<64x8xf32>
    %c0_332 = arith.constant 0 : index
    %c0_333 = arith.constant 0 : index
    %c0_334 = arith.constant 0 : index
    %181 = vector.load %arg7[%c0_332, %c0_333, %c0_334] : memref<1x64x8xf32, #tpu.memory_space<vmem>>, vector<1x64x8xf32>
    %182 = vector.shape_cast %181 : vector<1x64x8xf32> to vector<64x8xf32>
    %183 = vector.shape_cast %180 : vector<64x8xf32> to vector<1x64x8xf32>
    tpu.vector_store %arg7[%c0_332, %c0_333, %c0_334], %183 {strides = array<i32>} : memref<1x64x8xf32, #tpu.memory_space<vmem>>, vector<1x64x8xf32>,
    return
  }
  func.func @transform_0(%arg0: i32) -> (i32, i32, i32, i32) {
    %c0_i32 = arith.constant 0 : i32
    %c0_i32_0 = arith.constant 0 : i32
    %c0_i32_1 = arith.constant 0 : i32
    %c0_i32_2 = arith.constant 0 : i32
    return %arg0, %c0_i32, %c0_i32_0, %c0_i32_1 : i32, i32, i32, i32
  }
  func.func @transform_1(%arg0: i32) -> (i32, i32) {
    %c0_i32 = arith.constant 0 : i32
    %c0_i32_0 = arith.constant 0 : i32
    %c0_i32_1 = arith.constant 0 : i32
    return %c0_i32, %c0_i32_0 : i32, i32
  }
  func.func @transform_2(%arg0: i32) -> (i32, i32) {
    %c0_i32 = arith.constant 0 : i32
    %c0_i32_0 = arith.constant 0 : i32
    %c0_i32_1 = arith.constant 0 : i32
    return %c0_i32, %c0_i32_0 : i32, i32
  }
  func.func @transform_3(%arg0: i32) -> (i32, i32) {
    %c0_i32 = arith.constant 0 : i32
    %c0_i32_0 = arith.constant 0 : i32
    %c0_i32_1 = arith.constant 0 : i32
    return %c0_i32, %c0_i32_0 : i32, i32
  }
  func.func @transform_4(%arg0: i32) -> (i32, i32) {
    %c0_i32 = arith.constant 0 : i32
    %c0_i32_0 = arith.constant 0 : i32
    %c0_i32_1 = arith.constant 0 : i32
    return %c0_i32, %c0_i32_0 : i32, i32
  }
  func.func @transform_5(%arg0: i32) -> (i32, i32) {
    %c0_i32 = arith.constant 0 : i32
    %c0_i32_0 = arith.constant 0 : i32
    %c0_i32_1 = arith.constant 0 : i32
    return %c0_i32, %c0_i32_0 : i32, i32
  }
  func.func @transform_6(%arg0: i32) -> (i32, i32, i32) {
    %c0_i32 = arith.constant 0 : i32
    %c0_i32_0 = arith.constant 0 : i32
    %c0_i32_1 = arith.constant 0 : i32
    return %arg0, %c0_i32, %c0_i32_0 : i32, i32, i32
  }
}

</mosaic_0001>

<llo_original>
// kernel: tpu_custom_call.1
$region0: #{tpu_custom_call.1}
  #allocation0 [shape = 'u32[]', space=smem, size = 0x4, offset = 0x4, fixed_abs, tag = 'smem constant byte address 0x4 - core index']
  #allocation1 [shape = 'u32[144,128]{1,0:T(1,128)}', space=vmem, size = 0x12000, scoped, tag = 'internal scratch']
  #allocation2 [shape = 'f32[18,18,4]{2,1,0:T(8,128)}', space=vmem, size = 0x36000, scoped, tag = 'scratch operand']
  #allocation3 [shape = 'f32[16,16,36]{2,1,0:T(8,128)}', space=vmem, size = 0x20000, scoped, tag = 'scratch operand']
  %s0 = inlined_call_operand.vmem [shape: f32[2,16,16,4], index: 0, kind: input, shape index: {}]
  %s1 = inlined_call_operand.vmem [shape: bf16[144,4], index: 1, kind: input, shape index: {}]
  %s2 = inlined_call_operand.vmem [shape: f32[8,4], index: 2, kind: input, shape index: {}]
  %s3 = inlined_call_operand.vmem [shape: bf16[36,8], index: 3, kind: input, shape index: {}]
  %s4 = inlined_call_operand.vmem [shape: f32[2,8], index: 4, kind: input, shape index: {}]
  %s5 = inlined_call_operand.vmem [shape: f32[64,256], index: 5, kind: input, shape index: {}]
  %s6 = inlined_call_operand.vmem [shape: f32[2,64,8], index: 6, kind: output, shape index: {}]
  %s7 = sld [smem:[#allocation0]]
  $region57: #{tpu_custom_call.1} parent=0
    _
  %s9 = ssub.s32 1, %s7
  %s10 = scalar_select 0, %s9, %s7
  loop: start=0, step=1, limit=4
  $region2: #{tpu_custom_call.1} parent=0 // loop_pre_header
    _
  $region3: #{tpu_custom_call.1} parent=0 // loop_header
    %s12 = sphi 0, %s16
    %p13 = scmp.ge.s32.totalorder %s12, 4
    %s22 = sphi 0, %s24
    %s25 = sphi 0, %s22
    %s26 = sphi 0, %s25
    %s42 = sphi 0, %s26
    %s46 = sphi 0, %s46
    %s48 = sphi 0, %s46
    %s49 = sphi 0, %s48
    %s63 = sphi 0, %s49
    %s67 = sphi 0, %s67
    %s69 = sphi 0, %s67
    %s70 = sphi 0, %s69
    %s84 = sphi 0, %s70
    %s88 = sphi 0, %s88
    %s90 = sphi 0, %s88
    %s91 = sphi 0, %s90
    %s105 = sphi 0, %s91
    %s109 = sphi 0, %s109
    %s111 = sphi 0, %s109
    %s112 = sphi 0, %s111
    %s126 = sphi 0, %s112
    %s130 = sphi 0, %s130
    %s132 = sphi 0, %s130
    %s133 = sphi 0, %s132
    %s147 = sphi 0, %s133
    %s153 = sphi 0, %s155
    %s156 = sphi 0, %s153
    %s157 = sphi 0, %s156
    %s173 = sphi 0, %s157
  $region4: #{tpu_custom_call.1} parent=0 // loop_header_branch
    %15 = sbr.rel (%p13) target = $region8
  $region5: #{tpu_custom_call.1} parent=0 // loop_body
    %s17 = ssub.s32 %s12, 1
    %s18 = ssub.s32 %s12, 2
    %s19 = sadd.s32 %s12, 1
    %s20 = ssub.s32 %s12, %s19
    %p21 = scmp.eq.s32.totalorder %s20, 0
    %s23 = sadd.s32 %s22, 1
    %s24 = scalar_select %p21, %s22, %s23
    %p27 = pneg %p21
    %p28 = scmp.eq.s32.totalorder %s12, 1
    %p29 = por %p27, %p28
    %p30 = scmp.ne.s32.totalorder %s22, %s25
    %p31 = scmp.eq.s32.totalorder %s12, 0
    %p32 = por %p30, %p31
    %p33 = scmp.ne.s32.totalorder %s22, %s25
    %p34 = scmp.eq.s32.totalorder %s17, 1
    %p35 = por %p33, %p34
    %p36 = scmp.ne.s32.totalorder %s25, %s26
    %p37 = scmp.eq.s32.totalorder %s17, 0
    %p38 = por %p36, %p37
    %p39 = scmp.ne.s32.totalorder %s25, %s26
    %p40 = scmp.eq.s32.totalorder %s18, 1
    %p41 = por %p39, %p40
    %p43 = scmp.ne.s32.totalorder %s26, %s42
    %p44 = scmp.eq.s32.totalorder %s18, 0
    %p45 = por %p43, %p44
    %s47 = sadd.s32 %s46, 1
    %p50 = scmp.eq.s32.totalorder %s12, 1
    %p51 = scmp.ne.s32.totalorder %s46, %s48
    %p52 = scmp.eq.s32.totalorder %s12, 0
    %p53 = por %p51, %p52
    %p54 = scmp.ne.s32.totalorder %s46, %s48
    %p55 = scmp.eq.s32.totalorder %s17, 1
    %p56 = por %p54, %p55
    %p57 = scmp.ne.s32.totalorder %s48, %s49
    %p58 = scmp.eq.s32.totalorder %s17, 0
    %p59 = por %p57, %p58
    %p60 = scmp.ne.s32.totalorder %s48, %s49
    %p61 = scmp.eq.s32.totalorder %s18, 1
    %p62 = por %p60, %p61
    %p64 = scmp.ne.s32.totalorder %s49, %s63
    %p65 = scmp.eq.s32.totalorder %s18, 0
    %p66 = por %p64, %p65
    %s68 = sadd.s32 %s67, 1
    %p71 = scmp.eq.s32.totalorder %s12, 1
    %p72 = scmp.ne.s32.totalorder %s67, %s69
    %p73 = scmp.eq.s32.totalorder %s12, 0
    %p74 = por %p72, %p73
    %p75 = scmp.ne.s32.totalorder %s67, %s69
    %p76 = scmp.eq.s32.totalorder %s17, 1
    %p77 = por %p75, %p76
    %p78 = scmp.ne.s32.totalorder %s69, %s70
    %p79 = scmp.eq.s32.totalorder %s17, 0
    %p80 = por %p78, %p79
    %p81 = scmp.ne.s32.totalorder %s69, %s70
    %p82 = scmp.eq.s32.totalorder %s18, 1
    %p83 = por %p81, %p82
    %p85 = scmp.ne.s32.totalorder %s70, %s84
    %p86 = scmp.eq.s32.totalorder %s18, 0
    %p87 = por %p85, %p86
    %s89 = sadd.s32 %s88, 1
    %p92 = scmp.eq.s32.totalorder %s12, 1
    %p93 = scmp.ne.s32.totalorder %s88, %s90
    %p94 = scmp.eq.s32.totalorder %s12, 0
    %p95 = por %p93, %p94
    %p96 = scmp.ne.s32.totalorder %s88, %s90
    %p97 = scmp.eq.s32.totalorder %s17, 1
    %p98 = por %p96, %p97
    %p99 = scmp.ne.s32.totalorder %s90, %s91
    %p100 = scmp.eq.s32.totalorder %s17, 0
    %p101 = por %p99, %p100
    %p102 = scmp.ne.s32.totalorder %s90, %s91
    %p103 = scmp.eq.s32.totalorder %s18, 1
    %p104 = por %p102, %p103
    %p106 = scmp.ne.s32.totalorder %s91, %s105
    %p107 = scmp.eq.s32.totalorder %s18, 0
    %p108 = por %p106, %p107
    %s110 = sadd.s32 %s109, 1
    %p113 = scmp.eq.s32.totalorder %s12, 1
    %p114 = scmp.ne.s32.totalorder %s109, %s111
    %p115 = scmp.eq.s32.totalorder %s12, 0
    %p116 = por %p114, %p115
    %p117 = scmp.ne.s32.totalorder %s109, %s111
    %p118 = scmp.eq.s32.totalorder %s17, 1
    %p119 = por %p117, %p118
    %p120 = scmp.ne.s32.totalorder %s111, %s112
    %p121 = scmp.eq.s32.totalorder %s17, 0
    %p122 = por %p120, %p121
    %p123 = scmp.ne.s32.totalorder %s111, %s112
    %p124 = scmp.eq.s32.totalorder %s18, 1
    %p125 = por %p123, %p124
    %p127 = scmp.ne.s32.totalorder %s112, %s126
    %p128 = scmp.eq.s32.totalorder %s18, 0
    %p129 = por %p127, %p128
    %s131 = sadd.s32 %s130, 1
    %p134 = scmp.eq.s32.totalorder %s12, 1
    %p135 = scmp.ne.s32.totalorder %s130, %s132
    %p136 = scmp.eq.s32.totalorder %s12, 0
    %p137 = por %p135, %p136
    %p138 = scmp.ne.s32.totalorder %s130, %s132
    %p139 = scmp.eq.s32.totalorder %s17, 1
    %p140 = por %p138, %p139
    %p141 = scmp.ne.s32.totalorder %s132, %s133
    %p142 = scmp.eq.s32.totalorder %s17, 0
    %p143 = por %p141, %p142
    %p144 = scmp.ne.s32.totalorder %s132, %s133
    %p145 = scmp.eq.s32.totalorder %s18, 1
    %p146 = por %p144, %p145
    %p148 = scmp.ne.s32.totalorder %s133, %s147
    %p149 = scmp.eq.s32.totalorder %s18, 0
    %p150 = por %p148, %p149
    %s151 = ssub.s32 %s12, %s19
    %p152 = scmp.eq.s32.totalorder %s151, 0
    %s154 = sadd.s32 %s153, 1
    %s155 = scalar_select %p152, %s153, %s154
    %p158 = pneg %p152
    %p159 = scmp.eq.s32.totalorder %s12, 1
    %p160 = por %p158, %p159
    %p161 = scmp.ne.s32.totalorder %s153, %s156
    %p162 = scmp.eq.s32.totalorder %s12, 0
    %p163 = por %p161, %p162
    %p164 = scmp.ne.s32.totalorder %s153, %s156
    %p165 = scmp.eq.s32.totalorder %s17, 1
    %p166 = por %p164, %p165
    %p167 = scmp.ne.s32.totalorder %s156, %s157
    %p168 = scmp.eq.s32.totalorder %s17, 0
    %p169 = por %p167, %p168
    %p170 = scmp.ne.s32.totalorder %s156, %s157
    %p171 = scmp.eq.s32.totalorder %s18, 1
    %p172 = por %p170, %p171
    %p174 = scmp.ne.s32.totalorder %s157, %s173
    %p175 = scmp.eq.s32.totalorder %s18, 0
    %p176 = por %p174, %p175
    %p177 = scmp.le.s32.totalorder 1, %s12
    %p178 = scmp.lt.s32.totalorder %s12, 3
    %p179 = pnand %p177, %p178
    %p180 = pneg %p179
    // Predicated region
    $region9: #{tpu_custom_call.1} parent=5 // pred_check
      _
    $region10: #{tpu_custom_call.1} parent=5 // pred_check_branch
      %182 = sbr.rel (%p179) target = $region12
    $region11: #{tpu_custom_call.1} parent=5 // pred_region
      %s183 = ssub.s32 %s12, 1
      // Predicated region
      $region13: #{tpu_custom_call.1} parent=11 // pred_check
        %p184 = pneg %p59
      $region14: #{tpu_custom_call.1} parent=11 // pred_check_branch
        %186 = sbr.rel (%p184) target = $region16
      $region15: #{tpu_custom_call.1} parent=11 // pred_region
        _
      $region16: #{tpu_custom_call.1} parent=11 // pred_fallthru
        _
      // Predicated region
      $region17: #{tpu_custom_call.1} parent=11 // pred_check
        %p187 = pneg %p80
      $region18: #{tpu_custom_call.1} parent=11 // pred_check_branch
        %189 = sbr.rel (%p187) target = $region20
      $region19: #{tpu_custom_call.1} parent=11 // pred_region
        _
      $region20: #{tpu_custom_call.1} parent=11 // pred_fallthru
        _
      // Predicated region
      $region21: #{tpu_custom_call.1} parent=11 // pred_check
        %p190 = pneg %p101
      $region22: #{tpu_custom_call.1} parent=11 // pred_check_branch
        %192 = sbr.rel (%p190) target = $region24
      $region23: #{tpu_custom_call.1} parent=11 // pred_region
        _
      $region24: #{tpu_custom_call.1} parent=11 // pred_fallthru
        _
      // Predicated region
      $region25: #{tpu_custom_call.1} parent=11 // pred_check
        %p193 = pneg %p122
      $region26: #{tpu_custom_call.1} parent=11 // pred_check_branch
        %195 = sbr.rel (%p193) target = $region28
      $region27: #{tpu_custom_call.1} parent=11 // pred_region
        _
      $region28: #{tpu_custom_call.1} parent=11 // pred_fallthru
        _
      // Predicated region
      $region29: #{tpu_custom_call.1} parent=11 // pred_check
        %p196 = pneg %p143
      $region30: #{tpu_custom_call.1} parent=11 // pred_check_branch
        %198 = sbr.rel (%p196) target = $region32
      $region31: #{tpu_custom_call.1} parent=11 // pred_region
        _
      $region32: #{tpu_custom_call.1} parent=11 // pred_fallthru
        _
    $region12: #{tpu_custom_call.1} parent=5 // pred_fallthru
      _
    %p199 = scmp.lt.s32.totalorder %s12, 2
    // Predicated region
    $region33: #{tpu_custom_call.1} parent=5 // pred_check
      %p200 = pneg %p199
    $region34: #{tpu_custom_call.1} parent=5 // pred_check_branch
      %202 = sbr.rel (%p200) target = $region36
    $region35: #{tpu_custom_call.1} parent=5 // pred_region
      // Predicated region
      $region37: #{tpu_custom_call.1} parent=35 // pred_check
        %p203 = pneg %p32
      $region38: #{tpu_custom_call.1} parent=35 // pred_check_branch
        %205 = sbr.rel (%p203) target = $region40
      $region39: #{tpu_custom_call.1} parent=35 // pred_region
        %p206 = scmp.lt.s32.totalorder %s12, 1
        %s207 = scalar_select %p206, %s12, 1
        %s208 = smul.addr %s207, 32
        %s209 = smul.addr %s208, 8
        %s210 = scalar_lea.vmem %s0, %s209
      $region40: #{tpu_custom_call.1} parent=35 // pred_fallthru
        _
    $region36: #{tpu_custom_call.1} parent=5 // pred_fallthru
      _
    %p211 = scmp.le.s32.totalorder 1, %s12
    %p212 = scmp.lt.s32.totalorder %s12, 3
    %p213 = pnand %p211, %p212
    %p214 = pneg %p213
    // Predicated region
    $region41: #{tpu_custom_call.1} parent=5 // pred_check
      _
    $region42: #{tpu_custom_call.1} parent=5 // pred_check_branch
      %216 = sbr.rel (%p213) target = $region44
    $region43: #{tpu_custom_call.1} parent=5 // pred_region
      %s217 = ssub.s32 %s12, 1
      %p218 = scmp.lt.s32.totalorder %s17, 1
      %s219 = scalar_select %p218, %s17, 1
      %s220 = smul.addr %s219, 32
      %s221 = smul.addr %s220, 8
      %s222 = scalar_lea.vmem %s0, %s221
      %p223 = pneg %p38
      %p224 = pneg %p35
      %p225 = pneg %p59
      %p226 = pneg %p56
      %p227 = pneg %p80
      %p228 = pneg %p77
      %p229 = pneg %p101
      %p230 = pneg %p98
      %p231 = pneg %p122
      %p232 = pneg %p119
      %p233 = pneg %p143
      %p234 = pneg %p140
      %p235 = pneg %p169
      %p236 = pneg %p166
      %p237 = scmp.lt.s32.totalorder %s17, 1
      %s238 = scalar_select %p237, %s17, 1
      %s239 = smul.addr %s238, 8
      %s240 = smul.addr %s239, 8
      %s241 = scalar_lea.vmem %s6, %s240
      %p242 = scmp.lt.s32.totalorder %s17, 1
      %s243 = scalar_select %p242, %s17, 1
      %s244 = smul.addr %s243, 32
      %s245 = smul.addr %s244, 8
      %s246 = scalar_lea.vmem %s0, %s245
      %p247 = scmp.lt.s32.totalorder %s17, 1
      %s248 = scalar_select %p247, %s17, 1
      %s249 = smul.addr %s248, 8
      %s250 = smul.addr %s249, 8
      %s251 = scalar_lea.vmem %s6, %s250
      %vm253 = vcmask 31744
      %254 = vst.msk [vmem:[#allocation2] sm:$0xff] %vm253, 0.0
      %255 = vst.msk [vmem:[#allocation2 + $0x8] sm:$0xff] %vm253, 0.0
      %vm256 = vcmask 25600
      %257 = vst.msk [vmem:[#allocation2 + $0x10] sm:$0x3] %vm256, 0.0
      %258 = vst.msk [vmem:[#allocation2 + $0x18] sm:$0xff] %vm253, 0.0
      %259 = vst.msk [vmem:[#allocation2 + $0x20] sm:$0xff] %vm253, 0.0
      %260 = vst.msk [vmem:[#allocation2 + $0x28] sm:$0x3] %vm256, 0.0
      %261 = vst.msk [vmem:[#allocation2 + $0x30] sm:$0xff] %vm253, 0.0
      %262 = vst.msk [vmem:[#allocation2 + $0x38] sm:$0xff] %vm253, 0.0
      %263 = vst.msk [vmem:[#allocation2 + $0x40] sm:$0x3] %vm256, 0.0
      %264 = vst.msk [vmem:[#allocation2 + $0x48] sm:$0xff] %vm253, 0.0
      %265 = vst.msk [vmem:[#allocation2 + $0x50] sm:$0xff] %vm253, 0.0
      %266 = vst.msk [vmem:[#allocation2 + $0x58] sm:$0x3] %vm256, 0.0
      %267 = vst.msk [vmem:[#allocation2 + $0x60] sm:$0xff] %vm253, 0.0
      %268 = vst.msk [vmem:[#allocation2 + $0x68] sm:$0xff] %vm253, 0.0
      %269 = vst.msk [vmem:[#allocation2 + $0x70] sm:$0x3] %vm256, 0.0
      %270 = vst.msk [vmem:[#allocation2 + $0x78] sm:$0xff] %vm253, 0.0
      %271 = vst.msk [vmem:[#allocation2 + $0x80] sm:$0xff] %vm253, 0.0
      %272 = vst.msk [vmem:[#allocation2 + $0x88] sm:$0x3] %vm256, 0.0
      %273 = vst.msk [vmem:[#allocation2 + $0x90] sm:$0xff] %vm253, 0.0
      %274 = vst.msk [vmem:[#allocation2 + $0x98] sm:$0xff] %vm253, 0.0
      %275 = vst.msk [vmem:[#allocation2 + $0xa0] sm:$0x3] %vm256, 0.0
      %276 = vst.msk [vmem:[#allocation2 + $0xa8] sm:$0xff] %vm253, 0.0
      %277 = vst.msk [vmem:[#allocation2 + $0xb0] sm:$0xff] %vm253, 0.0
      %278 = vst.msk [vmem:[#allocation2 + $0xb8] sm:$0x3] %vm256, 0.0
      %279 = vst.msk [vmem:[#allocation2 + $0xc0] sm:$0xff] %vm253, 0.0
      %280 = vst.msk [vmem:[#allocation2 + $0xc8] sm:$0xff] %vm253, 0.0
      %281 = vst.msk [vmem:[#allocation2 + $0xd0] sm:$0x3] %vm256, 0.0
      %282 = vst.msk [vmem:[#allocation2 + $0xd8] sm:$0xff] %vm253, 0.0
      %283 = vst.msk [vmem:[#allocation2 + $0xe0] sm:$0xff] %vm253, 0.0
      %284 = vst.msk [vmem:[#allocation2 + $0xe8] sm:$0x3] %vm256, 0.0
      %285 = vst.msk [vmem:[#allocation2 + $0xf0] sm:$0xff] %vm253, 0.0
      %286 = vst.msk [vmem:[#allocation2 + $0xf8] sm:$0xff] %vm253, 0.0
      %287 = vst.msk [vmem:[#allocation2 + $0x100] sm:$0x3] %vm256, 0.0
      %288 = vst.msk [vmem:[#allocation2 + $0x108] sm:$0xff] %vm253, 0.0
      %289 = vst.msk [vmem:[#allocation2 + $0x110] sm:$0xff] %vm253, 0.0
      %290 = vst.msk [vmem:[#allocation2 + $0x118] sm:$0x3] %vm256, 0.0
      %291 = vst.msk [vmem:[#allocation2 + $0x120] sm:$0xff] %vm253, 0.0
      %292 = vst.msk [vmem:[#allocation2 + $0x128] sm:$0xff] %vm253, 0.0
      %293 = vst.msk [vmem:[#allocation2 + $0x130] sm:$0x3] %vm256, 0.0
      %294 = vst.msk [vmem:[#allocation2 + $0x138] sm:$0xff] %vm253, 0.0
      %295 = vst.msk [vmem:[#allocation2 + $0x140] sm:$0xff] %vm253, 0.0
      %296 = vst.msk [vmem:[#allocation2 + $0x148] sm:$0x3] %vm256, 0.0
      %297 = vst.msk [vmem:[#allocation2 + $0x150] sm:$0xff] %vm253, 0.0
      %298 = vst.msk [vmem:[#allocation2 + $0x158] sm:$0xff] %vm253, 0.0
      %299 = vst.msk [vmem:[#allocation2 + $0x160] sm:$0x3] %vm256, 0.0
      %300 = vst.msk [vmem:[#allocation2 + $0x168] sm:$0xff] %vm253, 0.0
      %301 = vst.msk [vmem:[#allocation2 + $0x170] sm:$0xff] %vm253, 0.0
      %302 = vst.msk [vmem:[#allocation2 + $0x178] sm:$0x3] %vm256, 0.0
      %303 = vst.msk [vmem:[#allocation2 + $0x180] sm:$0xff] %vm253, 0.0
      %304 = vst.msk [vmem:[#allocation2 + $0x188] sm:$0xff] %vm253, 0.0
      %305 = vst.msk [vmem:[#allocation2 + $0x190] sm:$0x3] %vm256, 0.0
      %306 = vst.msk [vmem:[#allocation2 + $0x198] sm:$0xff] %vm253, 0.0
      %307 = vst.msk [vmem:[#allocation2 + $0x1a0] sm:$0xff] %vm253, 0.0
      %308 = vst.msk [vmem:[#allocation2 + $0x1a8] sm:$0x3] %vm256, 0.0
      %v309 = vld [vmem:[%s246] sm:$0xff]
      %v310 = vld [vmem:[%s246 + $0x8] sm:$0xff]
      %v311 = vld [vmem:[%s246 + $0x10] sm:$0xff]
      %v312 = vld [vmem:[%s246 + $0x18] sm:$0xff]
      %v313 = vld [vmem:[%s246 + $0x20] sm:$0xff]
      %v314 = vld [vmem:[%s246 + $0x28] sm:$0xff]
      %v315 = vld [vmem:[%s246 + $0x30] sm:$0xff]
      %v316 = vld [vmem:[%s246 + $0x38] sm:$0xff]
      %v317 = vld [vmem:[%s246 + $0x40] sm:$0xff]
      %v318 = vld [vmem:[%s246 + $0x48] sm:$0xff]
      %v319 = vld [vmem:[%s246 + $0x50] sm:$0xff]
      %v320 = vld [vmem:[%s246 + $0x58] sm:$0xff]
      %v321 = vld [vmem:[%s246 + $0x60] sm:$0xff]
      %v322 = vld [vmem:[%s246 + $0x68] sm:$0xff]
      %v323 = vld [vmem:[%s246 + $0x70] sm:$0xff]
      %v324 = vld [vmem:[%s246 + $0x78] sm:$0xff]
      %v325 = vld [vmem:[%s246 + $0x80] sm:$0xff]
      %v326 = vld [vmem:[%s246 + $0x88] sm:$0xff]
      %v327 = vld [vmem:[%s246 + $0x90] sm:$0xff]
      %v328 = vld [vmem:[%s246 + $0x98] sm:$0xff]
      %v329 = vld [vmem:[%s246 + $0xa0] sm:$0xff]
      %v330 = vld [vmem:[%s246 + $0xa8] sm:$0xff]
      %v331 = vld [vmem:[%s246 + $0xb0] sm:$0xff]
      %v332 = vld [vmem:[%s246 + $0xb8] sm:$0xff]
      %v333 = vld [vmem:[%s246 + $0xc0] sm:$0xff]
      %v334 = vld [vmem:[%s246 + $0xc8] sm:$0xff]
      %v335 = vld [vmem:[%s246 + $0xd0] sm:$0xff]
      %v336 = vld [vmem:[%s246 + $0xd8] sm:$0xff]
      %v337 = vld [vmem:[%s246 + $0xe0] sm:$0xff]
      %v338 = vld [vmem:[%s246 + $0xe8] sm:$0xff]
      %v339 = vld [vmem:[%s246 + $0xf0] sm:$0xff]
      %v340 = vld [vmem:[%s246 + $0xf8] sm:$0xff]
      %v341 = vlaneseq
      %v342 = vand.u32 %v341, 127
      %vm343 = vcmp.ge.s32.totalorder %v342, 2
      %v344 = vld [vmem:[%s1] sm:$0xf]
      %v345 = vld [vmem:[%s1 + $0x4] sm:$0xf]
      %v346 = vld [vmem:[%s1 + $0x8] sm:$0xf]
      %v347 = vld [vmem:[%s1 + $0xc] sm:$0xf]
      %v348 = vld [vmem:[%s1 + $0x10] sm:$0x3]
      %v349 = vld [vmem:[%s2] sm:$0x1]
      %v350 = vld [vmem:[%s2 + $0x1] sm:$0x1]
      %s351 = scalar_lea.vmem [#allocation2], 24
      %352 = vst.msk [vmem:[%s351 + $0x1] sm:$0xff] %vm253, %v309
      %353 = vst.msk [vmem:[%s351 + $0x9] sm:$0xff] %vm253, %v310
      %354 = vst.msk [vmem:[%s351 + $0x19] sm:$0xff] %vm253, %v311
      %355 = vst.msk [vmem:[%s351 + $0x21] sm:$0xff] %vm253, %v312
      %356 = vst.msk [vmem:[%s351 + $0x31] sm:$0xff] %vm253, %v313
      %357 = vst.msk [vmem:[%s351 + $0x39] sm:$0xff] %vm253, %v314
      %358 = vst.msk [vmem:[%s351 + $0x49] sm:$0xff] %vm253, %v315
      %359 = vst.msk [vmem:[%s351 + $0x51] sm:$0xff] %vm253, %v316
      %360 = vst.msk [vmem:[%s351 + $0x61] sm:$0xff] %vm253, %v317
      %361 = vst.msk [vmem:[%s351 + $0x69] sm:$0xff] %vm253, %v318
      %362 = vst.msk [vmem:[%s351 + $0x79] sm:$0xff] %vm253, %v319
      %363 = vst.msk [vmem:[%s351 + $0x81] sm:$0xff] %vm253, %v320
      %364 = vst.msk [vmem:[%s351 + $0x91] sm:$0xff] %vm253, %v321
      %365 = vst.msk [vmem:[%s351 + $0x99] sm:$0xff] %vm253, %v322
      %366 = vst.msk [vmem:[%s351 + $0xa9] sm:$0xff] %vm253, %v323
      %367 = vst.msk [vmem:[%s351 + $0xb1] sm:$0xff] %vm253, %v324
      %368 = vst.msk [vmem:[%s351 + $0xc1] sm:$0xff] %vm253, %v325
      %369 = vst.msk [vmem:[%s351 + $0xc9] sm:$0xff] %vm253, %v326
      %370 = vst.msk [vmem:[%s351 + $0xd9] sm:$0xff] %vm253, %v327
      %371 = vst.msk [vmem:[%s351 + $0xe1] sm:$0xff] %vm253, %v328
      %372 = vst.msk [vmem:[%s351 + $0xf1] sm:$0xff] %vm253, %v329
      %373 = vst.msk [vmem:[%s351 + $0xf9] sm:$0xff] %vm253, %v330
      %374 = vst.msk [vmem:[%s351 + $0x109] sm:$0xff] %vm253, %v331
      %375 = vst.msk [vmem:[%s351 + $0x111] sm:$0xff] %vm253, %v332
      %376 = vst.msk [vmem:[%s351 + $0x121] sm:$0xff] %vm253, %v333
      %377 = vst.msk [vmem:[%s351 + $0x129] sm:$0xff] %vm253, %v334
      %378 = vst.msk [vmem:[%s351 + $0x139] sm:$0xff] %vm253, %v335
      %379 = vst.msk [vmem:[%s351 + $0x141] sm:$0xff] %vm253, %v336
      %380 = vst.msk [vmem:[%s351 + $0x151] sm:$0xff] %vm253, %v337
      %381 = vst.msk [vmem:[%s351 + $0x159] sm:$0xff] %vm253, %v338
      %382 = vst.msk [vmem:[%s351 + $0x169] sm:$0xff] %vm253, %v339
      %383 = vst.msk [vmem:[%s351 + $0x171] sm:$0xff] %vm253, %v340
      %v384 = vld [vmem:[#allocation2] sm:$0xff]
      %v385 = vld [vmem:[#allocation2 + $0x8] sm:$0xff]
      %v386 = vld [vmem:[#allocation2 + $0x18] sm:$0xff]
      %v387 = vld [vmem:[#allocation2 + $0x20] sm:$0xff]
      %v388 = vld [vmem:[#allocation2 + $0x30] sm:$0xff]
      %v389 = vld [vmem:[#allocation2 + $0x38] sm:$0xff]
      %v390 = vld [vmem:[#allocation2 + $0x48] sm:$0xff]
      %v391 = vld [vmem:[#allocation2 + $0x50] sm:$0xff]
      %v392 = vld [vmem:[#allocation2 + $0x60] sm:$0xff]
      %v393 = vld [vmem:[#allocation2 + $0x68] sm:$0xff]
      %v394 = vld [vmem:[#allocation2 + $0x78] sm:$0xff]
      %v395 = vld [vmem:[#allocation2 + $0x80] sm:$0xff]
      %v396 = vld [vmem:[#allocation2 + $0x90] sm:$0xff]
      %v397 = vld [vmem:[#allocation2 + $0x98] sm:$0xff]
      %v398 = vld [vmem:[#allocation2 + $0xa8] sm:$0xff]
      %v399 = vld [vmem:[#allocation2 + $0xb0] sm:$0xff]
      %v400 = vld [vmem:[#allocation2 + $0xc0] sm:$0xff]
      %v401 = vld [vmem:[#allocation2 + $0xc8] sm:$0xff]
      %v402 = vld [vmem:[#allocation2 + $0xd8] sm:$0xff]
      %v403 = vld [vmem:[#allocation2 + $0xe0] sm:$0xff]
      %v404 = vld [vmem:[#allocation2 + $0xf0] sm:$0xff]
      %v405 = vld [vmem:[#allocation2 + $0xf8] sm:$0xff]
      %v406 = vld [vmem:[#allocation2 + $0x108] sm:$0xff]
      %v407 = vld [vmem:[#allocation2 + $0x110] sm:$0xff]
      %v408 = vld [vmem:[#allocation2 + $0x120] sm:$0xff]
      %v409 = vld [vmem:[#allocation2 + $0x128] sm:$0xff]
      %v410 = vld [vmem:[#allocation2 + $0x138] sm:$0xff]
      %v411 = vld [vmem:[#allocation2 + $0x140] sm:$0xff]
      %v412 = vld [vmem:[#allocation2 + $0x150] sm:$0xff]
      %v413 = vld [vmem:[#allocation2 + $0x158] sm:$0xff]
      %v414 = vld [vmem:[#allocation2 + $0x168] sm:$0xff]
      %v415 = vld [vmem:[#allocation2 + $0x170] sm:$0xff]
      %416 = vst.msk [vmem:[#allocation3] sm:$0xff] %vm253, %v384
      %417 = vst.msk [vmem:[#allocation3 + $0x8] sm:$0xff] %vm253, %v385
      %418 = vst.msk [vmem:[#allocation3 + $0x10] sm:$0xff] %vm253, %v386
      %419 = vst.msk [vmem:[#allocation3 + $0x18] sm:$0xff] %vm253, %v387
      %420 = vst.msk [vmem:[#allocation3 + $0x20] sm:$0xff] %vm253, %v388
      %421 = vst.msk [vmem:[#allocation3 + $0x28] sm:$0xff] %vm253, %v389
      %422 = vst.msk [vmem:[#allocation3 + $0x30] sm:$0xff] %vm253, %v390
      %423 = vst.msk [vmem:[#allocation3 + $0x38] sm:$0xff] %vm253, %v391
      %424 = vst.msk [vmem:[#allocation3 + $0x40] sm:$0xff] %vm253, %v392
      %425 = vst.msk [vmem:[#allocation3 + $0x48] sm:$0xff] %vm253, %v393
      %426 = vst.msk [vmem:[#allocation3 + $0x50] sm:$0xff] %vm253, %v394
      %427 = vst.msk [vmem:[#allocation3 + $0x58] sm:$0xff] %vm253, %v395
      %428 = vst.msk [vmem:[#allocation3 + $0x60] sm:$0xff] %vm253, %v396
      %429 = vst.msk [vmem:[#allocation3 + $0x68] sm:$0xff] %vm253, %v397
      %430 = vst.msk [vmem:[#allocation3 + $0x70] sm:$0xff] %vm253, %v398
      %431 = vst.msk [vmem:[#allocation3 + $0x78] sm:$0xff] %vm253, %v399
      %432 = vst.msk [vmem:[#allocation3 + $0x80] sm:$0xff] %vm253, %v400
      %433 = vst.msk [vmem:[#allocation3 + $0x88] sm:$0xff] %vm253, %v401
      %434 = vst.msk [vmem:[#allocation3 + $0x90] sm:$0xff] %vm253, %v402
      %435 = vst.msk [vmem:[#allocation3 + $0x98] sm:$0xff] %vm253, %v403
      %436 = vst.msk [vmem:[#allocation3 + $0xa0] sm:$0xff] %vm253, %v404
      %437 = vst.msk [vmem:[#allocation3 + $0xa8] sm:$0xff] %vm253, %v405
      %438 = vst.msk [vmem:[#allocation3 + $0xb0] sm:$0xff] %vm253, %v406
      %439 = vst.msk [vmem:[#allocation3 + $0xb8] sm:$0xff] %vm253, %v407
      %440 = vst.msk [vmem:[#allocation3 + $0xc0] sm:$0xff] %vm253, %v408
      %441 = vst.msk [vmem:[#allocation3 + $0xc8] sm:$0xff] %vm253, %v409
      %442 = vst.msk [vmem:[#allocation3 + $0xd0] sm:$0xff] %vm253, %v410
      %443 = vst.msk [vmem:[#allocation3 + $0xd8] sm:$0xff] %vm253, %v411
      %444 = vst.msk [vmem:[#allocation3 + $0xe0] sm:$0xff] %vm253, %v412
      %445 = vst.msk [vmem:[#allocation3 + $0xe8] sm:$0xff] %vm253, %v413
      %446 = vst.msk [vmem:[#allocation3 + $0xf0] sm:$0xff] %vm253, %v414
      %447 = vst.msk [vmem:[#allocation3 + $0xf8] sm:$0xff] %vm253, %v415
      %v448 = vld [vmem:[#allocation2 + $0x1] sm:$0xff]
      %v449 = vld [vmem:[#allocation2 + $0x9] sm:$0xff]
      %v450 = vld [vmem:[#allocation2 + $0x19] sm:$0xff]
      %v451 = vld [vmem:[#allocation2 + $0x21] sm:$0xff]
      %v452 = vld [vmem:[#allocation2 + $0x31] sm:$0xff]
      %v453 = vld [vmem:[#allocation2 + $0x39] sm:$0xff]
      %v454 = vld [vmem:[#allocation2 + $0x49] sm:$0xff]
      %v455 = vld [vmem:[#allocation2 + $0x51] sm:$0xff]
      %v456 = vld [vmem:[#allocation2 + $0x61] sm:$0xff]
      %v457 = vld [vmem:[#allocation2 + $0x69] sm:$0xff]
      %v458 = vld [vmem:[#allocation2 + $0x79] sm:$0xff]
      %v459 = vld [vmem:[#allocation2 + $0x81] sm:$0xff]
      %v460 = vld [vmem:[#allocation2 + $0x91] sm:$0xff]
      %v461 = vld [vmem:[#allocation2 + $0x99] sm:$0xff]
      %v462 = vld [vmem:[#allocation2 + $0xa9] sm:$0xff]
      %v463 = vld [vmem:[#allocation2 + $0xb1] sm:$0xff]
      %v464 = vld [vmem:[#allocation2 + $0xc1] sm:$0xff]
      %v465 = vld [vmem:[#allocation2 + $0xc9] sm:$0xff]
      %v466 = vld [vmem:[#allocation2 + $0xd9] sm:$0xff]
      %v467 = vld [vmem:[#allocation2 + $0xe1] sm:$0xff]
      %v468 = vld [vmem:[#allocation2 + $0xf1] sm:$0xff]
      %v469 = vld [vmem:[#allocation2 + $0xf9] sm:$0xff]
      %v470 = vld [vmem:[#allocation2 + $0x109] sm:$0xff]
      %v471 = vld [vmem:[#allocation2 + $0x111] sm:$0xff]
      %v472 = vld [vmem:[#allocation2 + $0x121] sm:$0xff]
      %v473 = vld [vmem:[#allocation2 + $0x129] sm:$0xff]
      %v474 = vld [vmem:[#allocation2 + $0x139] sm:$0xff]
      %v475 = vld [vmem:[#allocation2 + $0x141] sm:$0xff]
      %v476 = vld [vmem:[#allocation2 + $0x151] sm:$0xff]
      %v477 = vld [vmem:[#allocation2 + $0x159] sm:$0xff]
      %v478 = vld [vmem:[#allocation2 + $0x169] sm:$0xff]
      %v479 = vld [vmem:[#allocation2 + $0x171] sm:$0xff]
      %512 = vrot.lane.b32.xlu0 %v448, 4
      %v513 = vpop.permute.xlu0 %512
      %514 = vrot.lane.b32.xlu0 %v449, 4
      %v515 = vpop.permute.xlu0 %514
      %516 = vrot.lane.b32.xlu0 %v450, 4
      %v517 = vpop.permute.xlu0 %516
      %518 = vrot.lane.b32.xlu0 %v451, 4
      %v519 = vpop.permute.xlu0 %518
      %520 = vrot.lane.b32.xlu0 %v452, 4
      %v521 = vpop.permute.xlu0 %520
      %522 = vrot.lane.b32.xlu0 %v453, 4
      %v523 = vpop.permute.xlu0 %522
      %524 = vrot.lane.b32.xlu0 %v454, 4
      %v525 = vpop.permute.xlu0 %524
      %526 = vrot.lane.b32.xlu0 %v455, 4
      %v527 = vpop.permute.xlu0 %526
      %528 = vrot.lane.b32.xlu0 %v456, 4
      %v529 = vpop.permute.xlu0 %528
      %530 = vrot.lane.b32.xlu0 %v457, 4
      %v531 = vpop.permute.xlu0 %530
      %532 = vrot.lane.b32.xlu0 %v458, 4
      %v533 = vpop.permute.xlu0 %532
      %534 = vrot.lane.b32.xlu0 %v459, 4
      %v535 = vpop.permute.xlu0 %534
      %536 = vrot.lane.b32.xlu0 %v460, 4
      %v537 = vpop.permute.xlu0 %536
      %538 = vrot.lane.b32.xlu0 %v461, 4
      %v539 = vpop.permute.xlu0 %538
      %540 = vrot.lane.b32.xlu0 %v462, 4
      %v541 = vpop.permute.xlu0 %540
      %542 = vrot.lane.b32.xlu0 %v463, 4
      %v543 = vpop.permute.xlu0 %542
      %544 = vrot.lane.b32.xlu0 %v464, 4
      %v545 = vpop.permute.xlu0 %544
      %546 = vrot.lane.b32.xlu0 %v465, 4
      %v547 = vpop.permute.xlu0 %546
      %548 = vrot.lane.b32.xlu0 %v466, 4
      %v549 = vpop.permute.xlu0 %548
      %550 = vrot.lane.b32.xlu0 %v467, 4
      %v551 = vpop.permute.xlu0 %550
      %552 = vrot.lane.b32.xlu0 %v468, 4
      %v553 = vpop.permute.xlu0 %552
      %554 = vrot.lane.b32.xlu0 %v469, 4
      %v555 = vpop.permute.xlu0 %554
      %556 = vrot.lane.b32.xlu0 %v470, 4
      %v557 = vpop.permute.xlu0 %556
      %558 = vrot.lane.b32.xlu0 %v471, 4
      %v559 = vpop.permute.xlu0 %558
      %560 = vrot.lane.b32.xlu0 %v472, 4
      %v561 = vpop.permute.xlu0 %560
      %562 = vrot.lane.b32.xlu0 %v473, 4
      %v563 = vpop.permute.xlu0 %562
      %564 = vrot.lane.b32.xlu0 %v474, 4
      %v565 = vpop.permute.xlu0 %564
      %566 = vrot.lane.b32.xlu0 %v475, 4
      %v567 = vpop.permute.xlu0 %566
      %568 = vrot.lane.b32.xlu0 %v476, 4
      %v569 = vpop.permute.xlu0 %568
      %570 = vrot.lane.b32.xlu0 %v477, 4
      %v571 = vpop.permute.xlu0 %570
      %572 = vrot.lane.b32.xlu0 %v478, 4
      %v573 = vpop.permute.xlu0 %572
      %574 = vrot.lane.b32.xlu0 %v479, 4
      %v575 = vpop.permute.xlu0 %574
      %vm608 = vcmask 64544
      %609 = vst.msk [vmem:[#allocation3] sm:$0xff] %vm608, %v513
      %610 = vst.msk [vmem:[#allocation3 + $0x8] sm:$0xff] %vm608, %v515
      %611 = vst.msk [vmem:[#allocation3 + $0x10] sm:$0xff] %vm608, %v517
      %612 = vst.msk [vmem:[#allocation3 + $0x18] sm:$0xff] %vm608, %v519
      %613 = vst.msk [vmem:[#allocation3 + $0x20] sm:$0xff] %vm608, %v521
      %614 = vst.msk [vmem:[#allocation3 + $0x28] sm:$0xff] %vm608, %v523
      %615 = vst.msk [vmem:[#allocation3 + $0x30] sm:$0xff] %vm608, %v525
      %616 = vst.msk [vmem:[#allocation3 + $0x38] sm:$0xff] %vm608, %v527
      %617 = vst.msk [vmem:[#allocation3 + $0x40] sm:$0xff] %vm608, %v529
      %618 = vst.msk [vmem:[#allocation3 + $0x48] sm:$0xff] %vm608, %v531
      %619 = vst.msk [vmem:[#allocation3 + $0x50] sm:$0xff] %vm608, %v533
      %620 = vst.msk [vmem:[#allocation3 + $0x58] sm:$0xff] %vm608, %v535
      %621 = vst.msk [vmem:[#allocation3 + $0x60] sm:$0xff] %vm608, %v537
      %622 = vst.msk [vmem:[#allocation3 + $0x68] sm:$0xff] %vm608, %v539
      %623 = vst.msk [vmem:[#allocation3 + $0x70] sm:$0xff] %vm608, %v541
      %624 = vst.msk [vmem:[#allocation3 + $0x78] sm:$0xff] %vm608, %v543
      %625 = vst.msk [vmem:[#allocation3 + $0x80] sm:$0xff] %vm608, %v545
      %626 = vst.msk [vmem:[#allocation3 + $0x88] sm:$0xff] %vm608, %v547
      %627 = vst.msk [vmem:[#allocation3 + $0x90] sm:$0xff] %vm608, %v549
      %628 = vst.msk [vmem:[#allocation3 + $0x98] sm:$0xff] %vm608, %v551
      %629 = vst.msk [vmem:[#allocation3 + $0xa0] sm:$0xff] %vm608, %v553
      %630 = vst.msk [vmem:[#allocation3 + $0xa8] sm:$0xff] %vm608, %v555
      %631 = vst.msk [vmem:[#allocation3 + $0xb0] sm:$0xff] %vm608, %v557
      %632 = vst.msk [vmem:[#allocation3 + $0xb8] sm:$0xff] %vm608, %v559
      %633 = vst.msk [vmem:[#allocation3 + $0xc0] sm:$0xff] %vm608, %v561
      %634 = vst.msk [vmem:[#allocation3 + $0xc8] sm:$0xff] %vm608, %v563
      %635 = vst.msk [vmem:[#allocation3 + $0xd0] sm:$0xff] %vm608, %v565
      %636 = vst.msk [vmem:[#allocation3 + $0xd8] sm:$0xff] %vm608, %v567
      %637 = vst.msk [vmem:[#allocation3 + $0xe0] sm:$0xff] %vm608, %v569
      %638 = vst.msk [vmem:[#allocation3 + $0xe8] sm:$0xff] %vm608, %v571
      %639 = vst.msk [vmem:[#allocation3 + $0xf0] sm:$0xff] %vm608, %v573
      %640 = vst.msk [vmem:[#allocation3 + $0xf8] sm:$0xff] %vm608, %v575
      %v641 = vld [vmem:[#allocation2 + $0x2] sm:$0xff]
      %v642 = vld [vmem:[#allocation2 + $0xa] sm:$0xff]
      %v643 = vld [vmem:[#allocation2 + $0x1a] sm:$0xff]
      %v644 = vld [vmem:[#allocation2 + $0x22] sm:$0xff]
      %v645 = vld [vmem:[#allocation2 + $0x32] sm:$0xff]
      %v646 = vld [vmem:[#allocation2 + $0x3a] sm:$0xff]
      %v647 = vld [vmem:[#allocation2 + $0x4a] sm:$0xff]
      %v648 = vld [vmem:[#allocation2 + $0x52] sm:$0xff]
      %v649 = vld [vmem:[#allocation2 + $0x62] sm:$0xff]
      %v650 = vld [vmem:[#allocation2 + $0x6a] sm:$0xff]
      %v651 = vld [vmem:[#allocation2 + $0x7a] sm:$0xff]
      %v652 = vld [vmem:[#allocation2 + $0x82] sm:$0xff]
      %v653 = vld [vmem:[#allocation2 + $0x92] sm:$0xff]
      %v654 = vld [vmem:[#allocation2 + $0x9a] sm:$0xff]
      %v655 = vld [vmem:[#allocation2 + $0xaa] sm:$0xff]
      %v656 = vld [vmem:[#allocation2 + $0xb2] sm:$0xff]
      %v657 = vld [vmem:[#allocation2 + $0xc2] sm:$0xff]
      %v658 = vld [vmem:[#allocation2 + $0xca] sm:$0xff]
      %v659 = vld [vmem:[#allocation2 + $0xda] sm:$0xff]
      %v660 = vld [vmem:[#allocation2 + $0xe2] sm:$0xff]
      %v661 = vld [vmem:[#allocation2 + $0xf2] sm:$0xff]
      %v662 = vld [vmem:[#allocation2 + $0xfa] sm:$0xff]
      %v663 = vld [vmem:[#allocation2 + $0x10a] sm:$0xff]
      %v664 = vld [vmem:[#allocation2 + $0x112] sm:$0xff]
      %v665 = vld [vmem:[#allocation2 + $0x122] sm:$0xff]
      %v666 = vld [vmem:[#allocation2 + $0x12a] sm:$0xff]
      %v667 = vld [vmem:[#allocation2 + $0x13a] sm:$0xff]
      %v668 = vld [vmem:[#allocation2 + $0x142] sm:$0xff]
      %v669 = vld [vmem:[#allocation2 + $0x152] sm:$0xff]
      %v670 = vld [vmem:[#allocation2 + $0x15a] sm:$0xff]
      %v671 = vld [vmem:[#allocation2 + $0x16a] sm:$0xff]
      %v672 = vld [vmem:[#allocation2 + $0x172] sm:$0xff]
      %705 = vrot.lane.b32.xlu0 %v641, 8
      %v706 = vpop.permute.xlu0 %705
      %707 = vrot.lane.b32.xlu0 %v642, 8
      %v708 = vpop.permute.xlu0 %707
      %709 = vrot.lane.b32.xlu0 %v643, 8
      %v710 = vpop.permute.xlu0 %709
      %711 = vrot.lane.b32.xlu0 %v644, 8
      %v712 = vpop.permute.xlu0 %711
      %713 = vrot.lane.b32.xlu0 %v645, 8
      %v714 = vpop.permute.xlu0 %713
      %715 = vrot.lane.b32.xlu0 %v646, 8
      %v716 = vpop.permute.xlu0 %715
      %717 = vrot.lane.b32.xlu0 %v647, 8
      %v718 = vpop.permute.xlu0 %717
      %719 = vrot.lane.b32.xlu0 %v648, 8
      %v720 = vpop.permute.xlu0 %719
      %721 = vrot.lane.b32.xlu0 %v649, 8
      %v722 = vpop.permute.xlu0 %721
      %723 = vrot.lane.b32.xlu0 %v650, 8
      %v724 = vpop.permute.xlu0 %723
      %725 = vrot.lane.b32.xlu0 %v651, 8
      %v726 = vpop.permute.xlu0 %725
      %727 = vrot.lane.b32.xlu0 %v652, 8
      %v728 = vpop.permute.xlu0 %727
      %729 = vrot.lane.b32.xlu0 %v653, 8
      %v730 = vpop.permute.xlu0 %729
      %731 = vrot.lane.b32.xlu0 %v654, 8
      %v732 = vpop.permute.xlu0 %731
      %733 = vrot.lane.b32.xlu0 %v655, 8
      %v734 = vpop.permute.xlu0 %733
      %735 = vrot.lane.b32.xlu0 %v656, 8
      %v736 = vpop.permute.xlu0 %735
      %737 = vrot.lane.b32.xlu0 %v657, 8
      %v738 = vpop.permute.xlu0 %737
      %739 = vrot.lane.b32.xlu0 %v658, 8
      %v740 = vpop.permute.xlu0 %739
      %741 = vrot.lane.b32.xlu0 %v659, 8
      %v742 = vpop.permute.xlu0 %741
      %743 = vrot.lane.b32.xlu0 %v660, 8
      %v744 = vpop.permute.xlu0 %743
      %745 = vrot.lane.b32.xlu0 %v661, 8
      %v746 = vpop.permute.xlu0 %745
      %747 = vrot.lane.b32.xlu0 %v662, 8
      %v748 = vpop.permute.xlu0 %747
      %749 = vrot.lane.b32.xlu0 %v663, 8
      %v750 = vpop.permute.xlu0 %749
      %751 = vrot.lane.b32.xlu0 %v664, 8
      %v752 = vpop.permute.xlu0 %751
      %753 = vrot.lane.b32.xlu0 %v665, 8
      %v754 = vpop.permute.xlu0 %753
      %755 = vrot.lane.b32.xlu0 %v666, 8
      %v756 = vpop.permute.xlu0 %755
      %757 = vrot.lane.b32.xlu0 %v667, 8
      %v758 = vpop.permute.xlu0 %757
      %759 = vrot.lane.b32.xlu0 %v668, 8
      %v760 = vpop.permute.xlu0 %759
      %761 = vrot.lane.b32.xlu0 %v669, 8
      %v762 = vpop.permute.xlu0 %761
      %763 = vrot.lane.b32.xlu0 %v670, 8
      %v764 = vpop.permute.xlu0 %763
      %765 = vrot.lane.b32.xlu0 %v671, 8
      %v766 = vpop.permute.xlu0 %765
      %767 = vrot.lane.b32.xlu0 %v672, 8
      %v768 = vpop.permute.xlu0 %767
      %vm801 = vcmask 97344
      %802 = vst.msk [vmem:[#allocation3] sm:$0xff] %vm801, %v706
      %803 = vst.msk [vmem:[#allocation3 + $0x8] sm:$0xff] %vm801, %v708
      %804 = vst.msk [vmem:[#allocation3 + $0x10] sm:$0xff] %vm801, %v710
      %805 = vst.msk [vmem:[#allocation3 + $0x18] sm:$0xff] %vm801, %v712
      %806 = vst.msk [vmem:[#allocation3 + $0x20] sm:$0xff] %vm801, %v714
      %807 = vst.msk [vmem:[#allocation3 + $0x28] sm:$0xff] %vm801, %v716
      %808 = vst.msk [vmem:[#allocation3 + $0x30] sm:$0xff] %vm801, %v718
      %809 = vst.msk [vmem:[#allocation3 + $0x38] sm:$0xff] %vm801, %v720
      %810 = vst.msk [vmem:[#allocation3 + $0x40] sm:$0xff] %vm801, %v722
      %811 = vst.msk [vmem:[#allocation3 + $0x48] sm:$0xff] %vm801, %v724
      %812 = vst.msk [vmem:[#allocation3 + $0x50] sm:$0xff] %vm801, %v726
      %813 = vst.msk [vmem:[#allocation3 + $0x58] sm:$0xff] %vm801, %v728
      %814 = vst.msk [vmem:[#allocation3 + $0x60] sm:$0xff] %vm801, %v730
      %815 = vst.msk [vmem:[#allocation3 + $0x68] sm:$0xff] %vm801, %v732
      %816 = vst.msk [vmem:[#allocation3 + $0x70] sm:$0xff] %vm801, %v734
      %817 = vst.msk [vmem:[#allocation3 + $0x78] sm:$0xff] %vm801, %v736
      %818 = vst.msk [vmem:[#allocation3 + $0x80] sm:$0xff] %vm801, %v738
      %819 = vst.msk [vmem:[#allocation3 + $0x88] sm:$0xff] %vm801, %v740
      %820 = vst.msk [vmem:[#allocation3 + $0x90] sm:$0xff] %vm801, %v742
      %821 = vst.msk [vmem:[#allocation3 + $0x98] sm:$0xff] %vm801, %v744
      %822 = vst.msk [vmem:[#allocation3 + $0xa0] sm:$0xff] %vm801, %v746
      %823 = vst.msk [vmem:[#allocation3 + $0xa8] sm:$0xff] %vm801, %v748
      %824 = vst.msk [vmem:[#allocation3 + $0xb0] sm:$0xff] %vm801, %v750
      %825 = vst.msk [vmem:[#allocation3 + $0xb8] sm:$0xff] %vm801, %v752
      %826 = vst.msk [vmem:[#allocation3 + $0xc0] sm:$0xff] %vm801, %v754
      %827 = vst.msk [vmem:[#allocation3 + $0xc8] sm:$0xff] %vm801, %v756
      %828 = vst.msk [vmem:[#allocation3 + $0xd0] sm:$0xff] %vm801, %v758
      %829 = vst.msk [vmem:[#allocation3 + $0xd8] sm:$0xff] %vm801, %v760
      %830 = vst.msk [vmem:[#allocation3 + $0xe0] sm:$0xff] %vm801, %v762
      %831 = vst.msk [vmem:[#allocation3 + $0xe8] sm:$0xff] %vm801, %v764
      %832 = vst.msk [vmem:[#allocation3 + $0xf0] sm:$0xff] %vm801, %v766
      %833 = vst.msk [vmem:[#allocation3 + $0xf8] sm:$0xff] %vm801, %v768
      %v834 = vld [vmem:[%s351] sm:$0xff]
      %v835 = vld [vmem:[%s351 + $0x8] sm:$0xff]
      %v836 = vld [vmem:[%s351 + $0x18] sm:$0xff]
      %v837 = vld [vmem:[%s351 + $0x20] sm:$0xff]
      %v838 = vld [vmem:[%s351 + $0x30] sm:$0xff]
      %v839 = vld [vmem:[%s351 + $0x38] sm:$0xff]
      %v840 = vld [vmem:[%s351 + $0x48] sm:$0xff]
      %v841 = vld [vmem:[%s351 + $0x50] sm:$0xff]
      %v842 = vld [vmem:[%s351 + $0x60] sm:$0xff]
      %v843 = vld [vmem:[%s351 + $0x68] sm:$0xff]
      %v844 = vld [vmem:[%s351 + $0x78] sm:$0xff]
      %v845 = vld [vmem:[%s351 + $0x80] sm:$0xff]
      %v846 = vld [vmem:[%s351 + $0x90] sm:$0xff]
      %v847 = vld [vmem:[%s351 + $0x98] sm:$0xff]
      %v848 = vld [vmem:[%s351 + $0xa8] sm:$0xff]
      %v849 = vld [vmem:[%s351 + $0xb0] sm:$0xff]
      %v850 = vld [vmem:[%s351 + $0xc0] sm:$0xff]
      %v851 = vld [vmem:[%s351 + $0xc8] sm:$0xff]
      %v852 = vld [vmem:[%s351 + $0xd8] sm:$0xff]
      %v853 = vld [vmem:[%s351 + $0xe0] sm:$0xff]
      %v854 = vld [vmem:[%s351 + $0xf0] sm:$0xff]
      %v855 = vld [vmem:[%s351 + $0xf8] sm:$0xff]
      %v856 = vld [vmem:[%s351 + $0x108] sm:$0xff]
      %v857 = vld [vmem:[%s351 + $0x110] sm:$0xff]
      %v858 = vld [vmem:[%s351 + $0x120] sm:$0xff]
      %v859 = vld [vmem:[%s351 + $0x128] sm:$0xff]
      %v860 = vld [vmem:[%s351 + $0x138] sm:$0xff]
      %v861 = vld [vmem:[%s351 + $0x140] sm:$0xff]
      %v862 = vld [vmem:[%s351 + $0x150] sm:$0xff]
      %v863 = vld [vmem:[%s351 + $0x158] sm:$0xff]
      %v864 = vld [vmem:[%s351 + $0x168] sm:$0xff]
      %v865 = vld [vmem:[%s351 + $0x170] sm:$0xff]
      %898 = vrot.lane.b32.xlu0 %v834, 12
      %v899 = vpop.permute.xlu0 %898
      %900 = vrot.lane.b32.xlu0 %v835, 12
      %v901 = vpop.permute.xlu0 %900
      %902 = vrot.lane.b32.xlu0 %v836, 12
      %v903 = vpop.permute.xlu0 %902
      %904 = vrot.lane.b32.xlu0 %v837, 12
      %v905 = vpop.permute.xlu0 %904
      %906 = vrot.lane.b32.xlu0 %v838, 12
      %v907 = vpop.permute.xlu0 %906
      %908 = vrot.lane.b32.xlu0 %v839, 12
      %v909 = vpop.permute.xlu0 %908
      %910 = vrot.lane.b32.xlu0 %v840, 12
      %v911 = vpop.permute.xlu0 %910
      %912 = vrot.lane.b32.xlu0 %v841, 12
      %v913 = vpop.permute.xlu0 %912
      %914 = vrot.lane.b32.xlu0 %v842, 12
      %v915 = vpop.permute.xlu0 %914
      %916 = vrot.lane.b32.xlu0 %v843, 12
      %v917 = vpop.permute.xlu0 %916
      %918 = vrot.lane.b32.xlu0 %v844, 12
      %v919 = vpop.permute.xlu0 %918
      %920 = vrot.lane.b32.xlu0 %v845, 12
      %v921 = vpop.permute.xlu0 %920
      %922 = vrot.lane.b32.xlu0 %v846, 12
      %v923 = vpop.permute.xlu0 %922
      %924 = vrot.lane.b32.xlu0 %v847, 12
      %v925 = vpop.permute.xlu0 %924
      %926 = vrot.lane.b32.xlu0 %v848, 12
      %v927 = vpop.permute.xlu0 %926
      %928 = vrot.lane.b32.xlu0 %v849, 12
      %v929 = vpop.permute.xlu0 %928
      %930 = vrot.lane.b32.xlu0 %v850, 12
      %v931 = vpop.permute.xlu0 %930
      %932 = vrot.lane.b32.xlu0 %v851, 12
      %v933 = vpop.permute.xlu0 %932
      %934 = vrot.lane.b32.xlu0 %v852, 12
      %v935 = vpop.permute.xlu0 %934
      %936 = vrot.lane.b32.xlu0 %v853, 12
      %v937 = vpop.permute.xlu0 %936
      %938 = vrot.lane.b32.xlu0 %v854, 12
      %v939 = vpop.permute.xlu0 %938
      %940 = vrot.lane.b32.xlu0 %v855, 12
      %v941 = vpop.permute.xlu0 %940
      %942 = vrot.lane.b32.xlu0 %v856, 12
      %v943 = vpop.permute.xlu0 %942
      %944 = vrot.lane.b32.xlu0 %v857, 12
      %v945 = vpop.permute.xlu0 %944
      %946 = vrot.lane.b32.xlu0 %v858, 12
      %v947 = vpop.permute.xlu0 %946
      %948 = vrot.lane.b32.xlu0 %v859, 12
      %v949 = vpop.permute.xlu0 %948
      %950 = vrot.lane.b32.xlu0 %v860, 12
      %v951 = vpop.permute.xlu0 %950
      %952 = vrot.lane.b32.xlu0 %v861, 12
      %v953 = vpop.permute.xlu0 %952
      %954 = vrot.lane.b32.xlu0 %v862, 12
      %v955 = vpop.permute.xlu0 %954
      %956 = vrot.lane.b32.xlu0 %v863, 12
      %v957 = vpop.permute.xlu0 %956
      %958 = vrot.lane.b32.xlu0 %v864, 12
      %v959 = vpop.permute.xlu0 %958
      %960 = vrot.lane.b32.xlu0 %v865, 12
      %v961 = vpop.permute.xlu0 %960
      %vm994 = vcmask 130144
      %995 = vst.msk [vmem:[#allocation3] sm:$0xff] %vm994, %v899
      %996 = vst.msk [vmem:[#allocation3 + $0x8] sm:$0xff] %vm994, %v901
      %997 = vst.msk [vmem:[#allocation3 + $0x10] sm:$0xff] %vm994, %v903
      %998 = vst.msk [vmem:[#allocation3 + $0x18] sm:$0xff] %vm994, %v905
      %999 = vst.msk [vmem:[#allocation3 + $0x20] sm:$0xff] %vm994, %v907
      %1000 = vst.msk [vmem:[#allocation3 + $0x28] sm:$0xff] %vm994, %v909
      %1001 = vst.msk [vmem:[#allocation3 + $0x30] sm:$0xff] %vm994, %v911
      %1002 = vst.msk [vmem:[#allocation3 + $0x38] sm:$0xff] %vm994, %v913
      %1003 = vst.msk [vmem:[#allocation3 + $0x40] sm:$0xff] %vm994, %v915
      %1004 = vst.msk [vmem:[#allocation3 + $0x48] sm:$0xff] %vm994, %v917
      %1005 = vst.msk [vmem:[#allocation3 + $0x50] sm:$0xff] %vm994, %v919
      %1006 = vst.msk [vmem:[#allocation3 + $0x58] sm:$0xff] %vm994, %v921
      %1007 = vst.msk [vmem:[#allocation3 + $0x60] sm:$0xff] %vm994, %v923
      %1008 = vst.msk [vmem:[#allocation3 + $0x68] sm:$0xff] %vm994, %v925
      %1009 = vst.msk [vmem:[#allocation3 + $0x70] sm:$0xff] %vm994, %v927
      %1010 = vst.msk [vmem:[#allocation3 + $0x78] sm:$0xff] %vm994, %v929
      %1011 = vst.msk [vmem:[#allocation3 + $0x80] sm:$0xff] %vm994, %v931
      %1012 = vst.msk [vmem:[#allocation3 + $0x88] sm:$0xff] %vm994, %v933
      %1013 = vst.msk [vmem:[#allocation3 + $0x90] sm:$0xff] %vm994, %v935
      %1014 = vst.msk [vmem:[#allocation3 + $0x98] sm:$0xff] %vm994, %v937
      %1015 = vst.msk [vmem:[#allocation3 + $0xa0] sm:$0xff] %vm994, %v939
      %1016 = vst.msk [vmem:[#allocation3 + $0xa8] sm:$0xff] %vm994, %v941
      %1017 = vst.msk [vmem:[#allocation3 + $0xb0] sm:$0xff] %vm994, %v943
      %1018 = vst.msk [vmem:[#allocation3 + $0xb8] sm:$0xff] %vm994, %v945
      %1019 = vst.msk [vmem:[#allocation3 + $0xc0] sm:$0xff] %vm994, %v947
      %1020 = vst.msk [vmem:[#allocation3 + $0xc8] sm:$0xff] %vm994, %v949
      %1021 = vst.msk [vmem:[#allocation3 + $0xd0] sm:$0xff] %vm994, %v951
      %1022 = vst.msk [vmem:[#allocation3 + $0xd8] sm:$0xff] %vm994, %v953
      %1023 = vst.msk [vmem:[#allocation3 + $0xe0] sm:$0xff] %vm994, %v955
      %1024 = vst.msk [vmem:[#allocation3 + $0xe8] sm:$0xff] %vm994, %v957
      %1025 = vst.msk [vmem:[#allocation3 + $0xf0] sm:$0xff] %vm994, %v959
      %1026 = vst.msk [vmem:[#allocation3 + $0xf8] sm:$0xff] %vm994, %v961
      %v1027 = vld [vmem:[%s351 + $0x1] sm:$0xff]
      %v1028 = vld [vmem:[%s351 + $0x9] sm:$0xff]
      %v1029 = vld [vmem:[%s351 + $0x19] sm:$0xff]
      %v1030 = vld [vmem:[%s351 + $0x21] sm:$0xff]
      %v1031 = vld [vmem:[%s351 + $0x31] sm:$0xff]
      %v1032 = vld [vmem:[%s351 + $0x39] sm:$0xff]
      %v1033 = vld [vmem:[%s351 + $0x49] sm:$0xff]
      %v1034 = vld [vmem:[%s351 + $0x51] sm:$0xff]
      %v1035 = vld [vmem:[%s351 + $0x61] sm:$0xff]
      %v1036 = vld [vmem:[%s351 + $0x69] sm:$0xff]
      %v1037 = vld [vmem:[%s351 + $0x79] sm:$0xff]
      %v1038 = vld [vmem:[%s351 + $0x81] sm:$0xff]
      %v1039 = vld [vmem:[%s351 + $0x91] sm:$0xff]
      %v1040 = vld [vmem:[%s351 + $0x99] sm:$0xff]
      %v1041 = vld [vmem:[%s351 + $0xa9] sm:$0xff]
      %v1042 = vld [vmem:[%s351 + $0xb1] sm:$0xff]
      %v1043 = vld [vmem:[%s351 + $0xc1] sm:$0xff]
      %v1044 = vld [vmem:[%s351 + $0xc9] sm:$0xff]
      %v1045 = vld [vmem:[%s351 + $0xd9] sm:$0xff]
      %v1046 = vld [vmem:[%s351 + $0xe1] sm:$0xff]
      %v1047 = vld [vmem:[%s351 + $0xf1] sm:$0xff]
      %v1048 = vld [vmem:[%s351 + $0xf9] sm:$0xff]
      %v1049 = vld [vmem:[%s351 + $0x109] sm:$0xff]
      %v1050 = vld [vmem:[%s351 + $0x111] sm:$0xff]
      %v1051 = vld [vmem:[%s351 + $0x121] sm:$0xff]
      %v1052 = vld [vmem:[%s351 + $0x129] sm:$0xff]
      %v1053 = vld [vmem:[%s351 + $0x139] sm:$0xff]
      %v1054 = vld [vmem:[%s351 + $0x141] sm:$0xff]
      %v1055 = vld [vmem:[%s351 + $0x151] sm:$0xff]
      %v1056 = vld [vmem:[%s351 + $0x159] sm:$0xff]
      %v1057 = vld [vmem:[%s351 + $0x169] sm:$0xff]
      %v1058 = vld [vmem:[%s351 + $0x171] sm:$0xff]
      %1091 = vrot.lane.b32.xlu0 %v1027, 16
      %v1092 = vpop.permute.xlu0 %1091
      %1093 = vrot.lane.b32.xlu0 %v1028, 16
      %v1094 = vpop.permute.xlu0 %1093
      %1095 = vrot.lane.b32.xlu0 %v1029, 16
      %v1096 = vpop.permute.xlu0 %1095
      %1097 = vrot.lane.b32.xlu0 %v1030, 16
      %v1098 = vpop.permute.xlu0 %1097
      %1099 = vrot.lane.b32.xlu0 %v1031, 16
      %v1100 = vpop.permute.xlu0 %1099
      %1101 = vrot.lane.b32.xlu0 %v1032, 16
      %v1102 = vpop.permute.xlu0 %1101
      %1103 = vrot.lane.b32.xlu0 %v1033, 16
      %v1104 = vpop.permute.xlu0 %1103
      %1105 = vrot.lane.b32.xlu0 %v1034, 16
      %v1106 = vpop.permute.xlu0 %1105
      %1107 = vrot.lane.b32.xlu0 %v1035, 16
      %v1108 = vpop.permute.xlu0 %1107
      %1109 = vrot.lane.b32.xlu0 %v1036, 16
      %v1110 = vpop.permute.xlu0 %1109
      %1111 = vrot.lane.b32.xlu0 %v1037, 16
      %v1112 = vpop.permute.xlu0 %1111
      %1113 = vrot.lane.b32.xlu0 %v1038, 16
      %v1114 = vpop.permute.xlu0 %1113
      %1115 = vrot.lane.b32.xlu0 %v1039, 16
      %v1116 = vpop.permute.xlu0 %1115
      %1117 = vrot.lane.b32.xlu0 %v1040, 16
      %v1118 = vpop.permute.xlu0 %1117
      %1119 = vrot.lane.b32.xlu0 %v1041, 16
      %v1120 = vpop.permute.xlu0 %1119
      %1121 = vrot.lane.b32.xlu0 %v1042, 16
      %v1122 = vpop.permute.xlu0 %1121
      %1123 = vrot.lane.b32.xlu0 %v1043, 16
      %v1124 = vpop.permute.xlu0 %1123
      %1125 = vrot.lane.b32.xlu0 %v1044, 16
      %v1126 = vpop.permute.xlu0 %1125
      %1127 = vrot.lane.b32.xlu0 %v1045, 16
      %v1128 = vpop.permute.xlu0 %1127
      %1129 = vrot.lane.b32.xlu0 %v1046, 16
      %v1130 = vpop.permute.xlu0 %1129
      %1131 = vrot.lane.b32.xlu0 %v1047, 16
      %v1132 = vpop.permute.xlu0 %1131
      %1133 = vrot.lane.b32.xlu0 %v1048, 16
      %v1134 = vpop.permute.xlu0 %1133
      %1135 = vrot.lane.b32.xlu0 %v1049, 16
      %v1136 = vpop.permute.xlu0 %1135
      %1137 = vrot.lane.b32.xlu0 %v1050, 16
      %v1138 = vpop.permute.xlu0 %1137
      %1139 = vrot.lane.b32.xlu0 %v1051, 16
      %v1140 = vpop.permute.xlu0 %1139
      %1141 = vrot.lane.b32.xlu0 %v1052, 16
      %v1142 = vpop.permute.xlu0 %1141
      %1143 = vrot.lane.b32.xlu0 %v1053, 16
      %v1144 = vpop.permute.xlu0 %1143
      %1145 = vrot.lane.b32.xlu0 %v1054, 16
      %v1146 = vpop.permute.xlu0 %1145
      %1147 = vrot.lane.b32.xlu0 %v1055, 16
      %v1148 = vpop.permute.xlu0 %1147
      %1149 = vrot.lane.b32.xlu0 %v1056, 16
      %v1150 = vpop.permute.xlu0 %1149
      %1151 = vrot.lane.b32.xlu0 %v1057, 16
      %v1152 = vpop.permute.xlu0 %1151
      %1153 = vrot.lane.b32.xlu0 %v1058, 16
      %v1154 = vpop.permute.xlu0 %1153
      %vm1187 = vcmask 162944
      %1188 = vst.msk [vmem:[#allocation3] sm:$0xff] %vm1187, %v1092
      %1189 = vst.msk [vmem:[#allocation3 + $0x8] sm:$0xff] %vm1187, %v1094
      %1190 = vst.msk [vmem:[#allocation3 + $0x10] sm:$0xff] %vm1187, %v1096
      %1191 = vst.msk [vmem:[#allocation3 + $0x18] sm:$0xff] %vm1187, %v1098
      %1192 = vst.msk [vmem:[#allocation3 + $0x20] sm:$0xff] %vm1187, %v1100
      %1193 = vst.msk [vmem:[#allocation3 + $0x28] sm:$0xff] %vm1187, %v1102
      %1194 = vst.msk [vmem:[#allocation3 + $0x30] sm:$0xff] %vm1187, %v1104
      %1195 = vst.msk [vmem:[#allocation3 + $0x38] sm:$0xff] %vm1187, %v1106
      %1196 = vst.msk [vmem:[#allocation3 + $0x40] sm:$0xff] %vm1187, %v1108
      %1197 = vst.msk [vmem:[#allocation3 + $0x48] sm:$0xff] %vm1187, %v1110
      %1198 = vst.msk [vmem:[#allocation3 + $0x50] sm:$0xff] %vm1187, %v1112
      %1199 = vst.msk [vmem:[#allocation3 + $0x58] sm:$0xff] %vm1187, %v1114
      %1200 = vst.msk [vmem:[#allocation3 + $0x60] sm:$0xff] %vm1187, %v1116
      %1201 = vst.msk [vmem:[#allocation3 + $0x68] sm:$0xff] %vm1187, %v1118
      %1202 = vst.msk [vmem:[#allocation3 + $0x70] sm:$0xff] %vm1187, %v1120
      %1203 = vst.msk [vmem:[#allocation3 + $0x78] sm:$0xff] %vm1187, %v1122
      %1204 = vst.msk [vmem:[#allocation3 + $0x80] sm:$0xff] %vm1187, %v1124
      %1205 = vst.msk [vmem:[#allocation3 + $0x88] sm:$0xff] %vm1187, %v1126
      %1206 = vst.msk [vmem:[#allocation3 + $0x90] sm:$0xff] %vm1187, %v1128
      %1207 = vst.msk [vmem:[#allocation3 + $0x98] sm:$0xff] %vm1187, %v1130
      %1208 = vst.msk [vmem:[#allocation3 + $0xa0] sm:$0xff] %vm1187, %v1132
      %1209 = vst.msk [vmem:[#allocation3 + $0xa8] sm:$0xff] %vm1187, %v1134
      %1210 = vst.msk [vmem:[#allocation3 + $0xb0] sm:$0xff] %vm1187, %v1136
      %1211 = vst.msk [vmem:[#allocation3 + $0xb8] sm:$0xff] %vm1187, %v1138
      %1212 = vst.msk [vmem:[#allocation3 + $0xc0] sm:$0xff] %vm1187, %v1140
      %1213 = vst.msk [vmem:[#allocation3 + $0xc8] sm:$0xff] %vm1187, %v1142
      %1214 = vst.msk [vmem:[#allocation3 + $0xd0] sm:$0xff] %vm1187, %v1144
      %1215 = vst.msk [vmem:[#allocation3 + $0xd8] sm:$0xff] %vm1187, %v1146
      %1216 = vst.msk [vmem:[#allocation3 + $0xe0] sm:$0xff] %vm1187, %v1148
      %1217 = vst.msk [vmem:[#allocation3 + $0xe8] sm:$0xff] %vm1187, %v1150
      %1218 = vst.msk [vmem:[#allocation3 + $0xf0] sm:$0xff] %vm1187, %v1152
      %1219 = vst.msk [vmem:[#allocation3 + $0xf8] sm:$0xff] %vm1187, %v1154
      %v1220 = vld [vmem:[%s351 + $0x2] sm:$0xff]
      %v1221 = vld [vmem:[%s351 + $0xa] sm:$0xff]
      %v1222 = vld [vmem:[%s351 + $0x1a] sm:$0xff]
      %v1223 = vld [vmem:[%s351 + $0x22] sm:$0xff]
      %v1224 = vld [vmem:[%s351 + $0x32] sm:$0xff]
      %v1225 = vld [vmem:[%s351 + $0x3a] sm:$0xff]
      %v1226 = vld [vmem:[%s351 + $0x4a] sm:$0xff]
      %v1227 = vld [vmem:[%s351 + $0x52] sm:$0xff]
      %v1228 = vld [vmem:[%s351 + $0x62] sm:$0xff]
      %v1229 = vld [vmem:[%s351 + $0x6a] sm:$0xff]
      %v1230 = vld [vmem:[%s351 + $0x7a] sm:$0xff]
      %v1231 = vld [vmem:[%s351 + $0x82] sm:$0xff]
      %v1232 = vld [vmem:[%s351 + $0x92] sm:$0xff]
      %v1233 = vld [vmem:[%s351 + $0x9a] sm:$0xff]
      %v1234 = vld [vmem:[%s351 + $0xaa] sm:$0xff]
      %v1235 = vld [vmem:[%s351 + $0xb2] sm:$0xff]
      %v1236 = vld [vmem:[%s351 + $0xc2] sm:$0xff]
      %v1237 = vld [vmem:[%s351 + $0xca] sm:$0xff]
      %v1238 = vld [vmem:[%s351 + $0xda] sm:$0xff]
      %v1239 = vld [vmem:[%s351 + $0xe2] sm:$0xff]
      %v1240 = vld [vmem:[%s351 + $0xf2] sm:$0xff]
      %v1241 = vld [vmem:[%s351 + $0xfa] sm:$0xff]
      %v1242 = vld [vmem:[%s351 + $0x10a] sm:$0xff]
      %v1243 = vld [vmem:[%s351 + $0x112] sm:$0xff]
      %v1244 = vld [vmem:[%s351 + $0x122] sm:$0xff]
      %v1245 = vld [vmem:[%s351 + $0x12a] sm:$0xff]
      %v1246 = vld [vmem:[%s351 + $0x13a] sm:$0xff]
      %v1247 = vld [vmem:[%s351 + $0x142] sm:$0xff]
      %v1248 = vld [vmem:[%s351 + $0x152] sm:$0xff]
      %v1249 = vld [vmem:[%s351 + $0x15a] sm:$0xff]
      %v1250 = vld [vmem:[%s351 + $0x16a] sm:$0xff]
      %v1251 = vld [vmem:[%s351 + $0x172] sm:$0xff]
      %1284 = vrot.lane.b32.xlu0 %v1220, 20
      %v1285 = vpop.permute.xlu0 %1284
      %1286 = vrot.lane.b32.xlu0 %v1221, 20
      %v1287 = vpop.permute.xlu0 %1286
      %1288 = vrot.lane.b32.xlu0 %v1222, 20
      %v1289 = vpop.permute.xlu0 %1288
      %1290 = vrot.lane.b32.xlu0 %v1223, 20
      %v1291 = vpop.permute.xlu0 %1290
      %1292 = vrot.lane.b32.xlu0 %v1224, 20
      %v1293 = vpop.permute.xlu0 %1292
      %1294 = vrot.lane.b32.xlu0 %v1225, 20
      %v1295 = vpop.permute.xlu0 %1294
      %1296 = vrot.lane.b32.xlu0 %v1226, 20
      %v1297 = vpop.permute.xlu0 %1296
      %1298 = vrot.lane.b32.xlu0 %v1227, 20
      %v1299 = vpop.permute.xlu0 %1298
      %1300 = vrot.lane.b32.xlu0 %v1228, 20
      %v1301 = vpop.permute.xlu0 %1300
      %1302 = vrot.lane.b32.xlu0 %v1229, 20
      %v1303 = vpop.permute.xlu0 %1302
      %1304 = vrot.lane.b32.xlu0 %v1230, 20
      %v1305 = vpop.permute.xlu0 %1304
      %1306 = vrot.lane.b32.xlu0 %v1231, 20
      %v1307 = vpop.permute.xlu0 %1306
      %1308 = vrot.lane.b32.xlu0 %v1232, 20
      %v1309 = vpop.permute.xlu0 %1308
      %1310 = vrot.lane.b32.xlu0 %v1233, 20
      %v1311 = vpop.permute.xlu0 %1310
      %1312 = vrot.lane.b32.xlu0 %v1234, 20
      %v1313 = vpop.permute.xlu0 %1312
      %1314 = vrot.lane.b32.xlu0 %v1235, 20
      %v1315 = vpop.permute.xlu0 %1314
      %1316 = vrot.lane.b32.xlu0 %v1236, 20
      %v1317 = vpop.permute.xlu0 %1316
      %1318 = vrot.lane.b32.xlu0 %v1237, 20
      %v1319 = vpop.permute.xlu0 %1318
      %1320 = vrot.lane.b32.xlu0 %v1238, 20
      %v1321 = vpop.permute.xlu0 %1320
      %1322 = vrot.lane.b32.xlu0 %v1239, 20
      %v1323 = vpop.permute.xlu0 %1322
      %1324 = vrot.lane.b32.xlu0 %v1240, 20
      %v1325 = vpop.permute.xlu0 %1324
      %1326 = vrot.lane.b32.xlu0 %v1241, 20
      %v1327 = vpop.permute.xlu0 %1326
      %1328 = vrot.lane.b32.xlu0 %v1242, 20
      %v1329 = vpop.permute.xlu0 %1328
      %1330 = vrot.lane.b32.xlu0 %v1243, 20
      %v1331 = vpop.permute.xlu0 %1330
      %1332 = vrot.lane.b32.xlu0 %v1244, 20
      %v1333 = vpop.permute.xlu0 %1332
      %1334 = vrot.lane.b32.xlu0 %v1245, 20
      %v1335 = vpop.permute.xlu0 %1334
      %1336 = vrot.lane.b32.xlu0 %v1246, 20
      %v1337 = vpop.permute.xlu0 %1336
      %1338 = vrot.lane.b32.xlu0 %v1247, 20
      %v1339 = vpop.permute.xlu0 %1338
      %1340 = vrot.lane.b32.xlu0 %v1248, 20
      %v1341 = vpop.permute.xlu0 %1340
      %1342 = vrot.lane.b32.xlu0 %v1249, 20
      %v1343 = vpop.permute.xlu0 %1342
      %1344 = vrot.lane.b32.xlu0 %v1250, 20
      %v1345 = vpop.permute.xlu0 %1344
      %1346 = vrot.lane.b32.xlu0 %v1251, 20
      %v1347 = vpop.permute.xlu0 %1346
      %vm1380 = vcmask 195744
      %1381 = vst.msk [vmem:[#allocation3] sm:$0xff] %vm1380, %v1285
      %1382 = vst.msk [vmem:[#allocation3 + $0x8] sm:$0xff] %vm1380, %v1287
      %1383 = vst.msk [vmem:[#allocation3 + $0x10] sm:$0xff] %vm1380, %v1289
      %1384 = vst.msk [vmem:[#allocation3 + $0x18] sm:$0xff] %vm1380, %v1291
      %1385 = vst.msk [vmem:[#allocation3 + $0x20] sm:$0xff] %vm1380, %v1293
      %1386 = vst.msk [vmem:[#allocation3 + $0x28] sm:$0xff] %vm1380, %v1295
      %1387 = vst.msk [vmem:[#allocation3 + $0x30] sm:$0xff] %vm1380, %v1297
      %1388 = vst.msk [vmem:[#allocation3 + $0x38] sm:$0xff] %vm1380, %v1299
      %1389 = vst.msk [vmem:[#allocation3 + $0x40] sm:$0xff] %vm1380, %v1301
      %1390 = vst.msk [vmem:[#allocation3 + $0x48] sm:$0xff] %vm1380, %v1303
      %1391 = vst.msk [vmem:[#allocation3 + $0x50] sm:$0xff] %vm1380, %v1305
      %1392 = vst.msk [vmem:[#allocation3 + $0x58] sm:$0xff] %vm1380, %v1307
      %1393 = vst.msk [vmem:[#allocation3 + $0x60] sm:$0xff] %vm1380, %v1309
      %1394 = vst.msk [vmem:[#allocation3 + $0x68] sm:$0xff] %vm1380, %v1311
      %1395 = vst.msk [vmem:[#allocation3 + $0x70] sm:$0xff] %vm1380, %v1313
      %1396 = vst.msk [vmem:[#allocation3 + $0x78] sm:$0xff] %vm1380, %v1315
      %1397 = vst.msk [vmem:[#allocation3 + $0x80] sm:$0xff] %vm1380, %v1317
      %1398 = vst.msk [vmem:[#allocation3 + $0x88] sm:$0xff] %vm1380, %v1319
      %1399 = vst.msk [vmem:[#allocation3 + $0x90] sm:$0xff] %vm1380, %v1321
      %1400 = vst.msk [vmem:[#allocation3 + $0x98] sm:$0xff] %vm1380, %v1323
      %1401 = vst.msk [vmem:[#allocation3 + $0xa0] sm:$0xff] %vm1380, %v1325
      %1402 = vst.msk [vmem:[#allocation3 + $0xa8] sm:$0xff] %vm1380, %v1327
      %1403 = vst.msk [vmem:[#allocation3 + $0xb0] sm:$0xff] %vm1380, %v1329
      %1404 = vst.msk [vmem:[#allocation3 + $0xb8] sm:$0xff] %vm1380, %v1331
      %1405 = vst.msk [vmem:[#allocation3 + $0xc0] sm:$0xff] %vm1380, %v1333
      %1406 = vst.msk [vmem:[#allocation3 + $0xc8] sm:$0xff] %vm1380, %v1335
      %1407 = vst.msk [vmem:[#allocation3 + $0xd0] sm:$0xff] %vm1380, %v1337
      %1408 = vst.msk [vmem:[#allocation3 + $0xd8] sm:$0xff] %vm1380, %v1339
      %1409 = vst.msk [vmem:[#allocation3 + $0xe0] sm:$0xff] %vm1380, %v1341
      %1410 = vst.msk [vmem:[#allocation3 + $0xe8] sm:$0xff] %vm1380, %v1343
      %1411 = vst.msk [vmem:[#allocation3 + $0xf0] sm:$0xff] %vm1380, %v1345
      %1412 = vst.msk [vmem:[#allocation3 + $0xf8] sm:$0xff] %vm1380, %v1347
      %s1413 = scalar_lea.vmem [#allocation2], 48
      %v1414 = vld [vmem:[%s1413] sm:$0xff]
      %v1415 = vld [vmem:[%s1413 + $0x8] sm:$0xff]
      %v1416 = vld [vmem:[%s1413 + $0x18] sm:$0xff]
      %v1417 = vld [vmem:[%s1413 + $0x20] sm:$0xff]
      %v1418 = vld [vmem:[%s1413 + $0x30] sm:$0xff]
      %v1419 = vld [vmem:[%s1413 + $0x38] sm:$0xff]
      %v1420 = vld [vmem:[%s1413 + $0x48] sm:$0xff]
      %v1421 = vld [vmem:[%s1413 + $0x50] sm:$0xff]
      %v1422 = vld [vmem:[%s1413 + $0x60] sm:$0xff]
      %v1423 = vld [vmem:[%s1413 + $0x68] sm:$0xff]
      %v1424 = vld [vmem:[%s1413 + $0x78] sm:$0xff]
      %v1425 = vld [vmem:[%s1413 + $0x80] sm:$0xff]
      %v1426 = vld [vmem:[%s1413 + $0x90] sm:$0xff]
      %v1427 = vld [vmem:[%s1413 + $0x98] sm:$0xff]
      %v1428 = vld [vmem:[%s1413 + $0xa8] sm:$0xff]
      %v1429 = vld [vmem:[%s1413 + $0xb0] sm:$0xff]
      %v1430 = vld [vmem:[%s1413 + $0xc0] sm:$0xff]
      %v1431 = vld [vmem:[%s1413 + $0xc8] sm:$0xff]
      %v1432 = vld [vmem:[%s1413 + $0xd8] sm:$0xff]
      %v1433 = vld [vmem:[%s1413 + $0xe0] sm:$0xff]
      %v1434 = vld [vmem:[%s1413 + $0xf0] sm:$0xff]
      %v1435 = vld [vmem:[%s1413 + $0xf8] sm:$0xff]
      %v1436 = vld [vmem:[%s1413 + $0x108] sm:$0xff]
      %v1437 = vld [vmem:[%s1413 + $0x110] sm:$0xff]
      %v1438 = vld [vmem:[%s1413 + $0x120] sm:$0xff]
      %v1439 = vld [vmem:[%s1413 + $0x128] sm:$0xff]
      %v1440 = vld [vmem:[%s1413 + $0x138] sm:$0xff]
      %v1441 = vld [vmem:[%s1413 + $0x140] sm:$0xff]
      %v1442 = vld [vmem:[%s1413 + $0x150] sm:$0xff]
      %v1443 = vld [vmem:[%s1413 + $0x158] sm:$0xff]
      %v1444 = vld [vmem:[%s1413 + $0x168] sm:$0xff]
      %v1445 = vld [vmem:[%s1413 + $0x170] sm:$0xff]
      %1478 = vrot.lane.b32.xlu0 %v1414, 24
      %v1479 = vpop.permute.xlu0 %1478
      %1480 = vrot.lane.b32.xlu0 %v1415, 24
      %v1481 = vpop.permute.xlu0 %1480
      %1482 = vrot.lane.b32.xlu0 %v1416, 24
      %v1483 = vpop.permute.xlu0 %1482
      %1484 = vrot.lane.b32.xlu0 %v1417, 24
      %v1485 = vpop.permute.xlu0 %1484
      %1486 = vrot.lane.b32.xlu0 %v1418, 24
      %v1487 = vpop.permute.xlu0 %1486
      %1488 = vrot.lane.b32.xlu0 %v1419, 24
      %v1489 = vpop.permute.xlu0 %1488
      %1490 = vrot.lane.b32.xlu0 %v1420, 24
      %v1491 = vpop.permute.xlu0 %1490
      %1492 = vrot.lane.b32.xlu0 %v1421, 24
      %v1493 = vpop.permute.xlu0 %1492
      %1494 = vrot.lane.b32.xlu0 %v1422, 24
      %v1495 = vpop.permute.xlu0 %1494
      %1496 = vrot.lane.b32.xlu0 %v1423, 24
      %v1497 = vpop.permute.xlu0 %1496
      %1498 = vrot.lane.b32.xlu0 %v1424, 24
      %v1499 = vpop.permute.xlu0 %1498
      %1500 = vrot.lane.b32.xlu0 %v1425, 24
      %v1501 = vpop.permute.xlu0 %1500
      %1502 = vrot.lane.b32.xlu0 %v1426, 24
      %v1503 = vpop.permute.xlu0 %1502
      %1504 = vrot.lane.b32.xlu0 %v1427, 24
      %v1505 = vpop.permute.xlu0 %1504
      %1506 = vrot.lane.b32.xlu0 %v1428, 24
      %v1507 = vpop.permute.xlu0 %1506
      %1508 = vrot.lane.b32.xlu0 %v1429, 24
      %v1509 = vpop.permute.xlu0 %1508
      %1510 = vrot.lane.b32.xlu0 %v1430, 24
      %v1511 = vpop.permute.xlu0 %1510
      %1512 = vrot.lane.b32.xlu0 %v1431, 24
      %v1513 = vpop.permute.xlu0 %1512
      %1514 = vrot.lane.b32.xlu0 %v1432, 24
      %v1515 = vpop.permute.xlu0 %1514
      %1516 = vrot.lane.b32.xlu0 %v1433, 24
      %v1517 = vpop.permute.xlu0 %1516
      %1518 = vrot.lane.b32.xlu0 %v1434, 24
      %v1519 = vpop.permute.xlu0 %1518
      %1520 = vrot.lane.b32.xlu0 %v1435, 24
      %v1521 = vpop.permute.xlu0 %1520
      %1522 = vrot.lane.b32.xlu0 %v1436, 24
      %v1523 = vpop.permute.xlu0 %1522
      %1524 = vrot.lane.b32.xlu0 %v1437, 24
      %v1525 = vpop.permute.xlu0 %1524
      %1526 = vrot.lane.b32.xlu0 %v1438, 24
      %v1527 = vpop.permute.xlu0 %1526
      %1528 = vrot.lane.b32.xlu0 %v1439, 24
      %v1529 = vpop.permute.xlu0 %1528
      %1530 = vrot.lane.b32.xlu0 %v1440, 24
      %v1531 = vpop.permute.xlu0 %1530
      %1532 = vrot.lane.b32.xlu0 %v1441, 24
      %v1533 = vpop.permute.xlu0 %1532
      %1534 = vrot.lane.b32.xlu0 %v1442, 24
      %v1535 = vpop.permute.xlu0 %1534
      %1536 = vrot.lane.b32.xlu0 %v1443, 24
      %v1537 = vpop.permute.xlu0 %1536
      %1538 = vrot.lane.b32.xlu0 %v1444, 24
      %v1539 = vpop.permute.xlu0 %1538
      %1540 = vrot.lane.b32.xlu0 %v1445, 24
      %v1541 = vpop.permute.xlu0 %1540
      %vm1574 = vcmask 228544
      %1575 = vst.msk [vmem:[#allocation3] sm:$0xff] %vm1574, %v1479
      %1576 = vst.msk [vmem:[#allocation3 + $0x8] sm:$0xff] %vm1574, %v1481
      %1577 = vst.msk [vmem:[#allocation3 + $0x10] sm:$0xff] %vm1574, %v1483
      %1578 = vst.msk [vmem:[#allocation3 + $0x18] sm:$0xff] %vm1574, %v1485
      %1579 = vst.msk [vmem:[#allocation3 + $0x20] sm:$0xff] %vm1574, %v1487
      %1580 = vst.msk [vmem:[#allocation3 + $0x28] sm:$0xff] %vm1574, %v1489
      %1581 = vst.msk [vmem:[#allocation3 + $0x30] sm:$0xff] %vm1574, %v1491
      %1582 = vst.msk [vmem:[#allocation3 + $0x38] sm:$0xff] %vm1574, %v1493
      %1583 = vst.msk [vmem:[#allocation3 + $0x40] sm:$0xff] %vm1574, %v1495
      %1584 = vst.msk [vmem:[#allocation3 + $0x48] sm:$0xff] %vm1574, %v1497
      %1585 = vst.msk [vmem:[#allocation3 + $0x50] sm:$0xff] %vm1574, %v1499
      %1586 = vst.msk [vmem:[#allocation3 + $0x58] sm:$0xff] %vm1574, %v1501
      %1587 = vst.msk [vmem:[#allocation3 + $0x60] sm:$0xff] %vm1574, %v1503
      %1588 = vst.msk [vmem:[#allocation3 + $0x68] sm:$0xff] %vm1574, %v1505
      %1589 = vst.msk [vmem:[#allocation3 + $0x70] sm:$0xff] %vm1574, %v1507
      %1590 = vst.msk [vmem:[#allocation3 + $0x78] sm:$0xff] %vm1574, %v1509
      %1591 = vst.msk [vmem:[#allocation3 + $0x80] sm:$0xff] %vm1574, %v1511
      %1592 = vst.msk [vmem:[#allocation3 + $0x88] sm:$0xff] %vm1574, %v1513
      %1593 = vst.msk [vmem:[#allocation3 + $0x90] sm:$0xff] %vm1574, %v1515
      %1594 = vst.msk [vmem:[#allocation3 + $0x98] sm:$0xff] %vm1574, %v1517
      %1595 = vst.msk [vmem:[#allocation3 + $0xa0] sm:$0xff] %vm1574, %v1519
      %1596 = vst.msk [vmem:[#allocation3 + $0xa8] sm:$0xff] %vm1574, %v1521
      %1597 = vst.msk [vmem:[#allocation3 + $0xb0] sm:$0xff] %vm1574, %v1523
      %1598 = vst.msk [vmem:[#allocation3 + $0xb8] sm:$0xff] %vm1574, %v1525
      %1599 = vst.msk [vmem:[#allocation3 + $0xc0] sm:$0xff] %vm1574, %v1527
      %1600 = vst.msk [vmem:[#allocation3 + $0xc8] sm:$0xff] %vm1574, %v1529
      %1601 = vst.msk [vmem:[#allocation3 + $0xd0] sm:$0xff] %vm1574, %v1531
      %1602 = vst.msk [vmem:[#allocation3 + $0xd8] sm:$0xff] %vm1574, %v1533
      %1603 = vst.msk [vmem:[#allocation3 + $0xe0] sm:$0xff] %vm1574, %v1535
      %1604 = vst.msk [vmem:[#allocation3 + $0xe8] sm:$0xff] %vm1574, %v1537
      %1605 = vst.msk [vmem:[#allocation3 + $0xf0] sm:$0xff] %vm1574, %v1539
      %1606 = vst.msk [vmem:[#allocation3 + $0xf8] sm:$0xff] %vm1574, %v1541
      %v1607 = vld [vmem:[%s1413 + $0x1] sm:$0xff]
      %v1608 = vld [vmem:[%s1413 + $0x9] sm:$0xff]
      %v1609 = vld [vmem:[%s1413 + $0x19] sm:$0xff]
      %v1610 = vld [vmem:[%s1413 + $0x21] sm:$0xff]
      %v1611 = vld [vmem:[%s1413 + $0x31] sm:$0xff]
      %v1612 = vld [vmem:[%s1413 + $0x39] sm:$0xff]
      %v1613 = vld [vmem:[%s1413 + $0x49] sm:$0xff]
      %v1614 = vld [vmem:[%s1413 + $0x51] sm:$0xff]
      %v1615 = vld [vmem:[%s1413 + $0x61] sm:$0xff]
      %v1616 = vld [vmem:[%s1413 + $0x69] sm:$0xff]
      %v1617 = vld [vmem:[%s1413 + $0x79] sm:$0xff]
      %v1618 = vld [vmem:[%s1413 + $0x81] sm:$0xff]
      %v1619 = vld [vmem:[%s1413 + $0x91] sm:$0xff]
      %v1620 = vld [vmem:[%s1413 + $0x99] sm:$0xff]
      %v1621 = vld [vmem:[%s1413 + $0xa9] sm:$0xff]
      %v1622 = vld [vmem:[%s1413 + $0xb1] sm:$0xff]
      %v1623 = vld [vmem:[%s1413 + $0xc1] sm:$0xff]
      %v1624 = vld [vmem:[%s1413 + $0xc9] sm:$0xff]
      %v1625 = vld [vmem:[%s1413 + $0xd9] sm:$0xff]
      %v1626 = vld [vmem:[%s1413 + $0xe1] sm:$0xff]
      %v1627 = vld [vmem:[%s1413 + $0xf1] sm:$0xff]
      %v1628 = vld [vmem:[%s1413 + $0xf9] sm:$0xff]
      %v1629 = vld [vmem:[%s1413 + $0x109] sm:$0xff]
      %v1630 = vld [vmem:[%s1413 + $0x111] sm:$0xff]
      %v1631 = vld [vmem:[%s1413 + $0x121] sm:$0xff]
      %v1632 = vld [vmem:[%s1413 + $0x129] sm:$0xff]
      %v1633 = vld [vmem:[%s1413 + $0x139] sm:$0xff]
      %v1634 = vld [vmem:[%s1413 + $0x141] sm:$0xff]
      %v1635 = vld [vmem:[%s1413 + $0x151] sm:$0xff]
      %v1636 = vld [vmem:[%s1413 + $0x159] sm:$0xff]
      %v1637 = vld [vmem:[%s1413 + $0x169] sm:$0xff]
      %v1638 = vld [vmem:[%s1413 + $0x171] sm:$0xff]
      %1671 = vrot.lane.b32.xlu0 %v1607, 28
      %v1672 = vpop.permute.xlu0 %1671
      %1673 = vrot.lane.b32.xlu0 %v1608, 28
      %v1674 = vpop.permute.xlu0 %1673
      %1675 = vrot.lane.b32.xlu0 %v1609, 28
      %v1676 = vpop.permute.xlu0 %1675
      %1677 = vrot.lane.b32.xlu0 %v1610, 28
      %v1678 = vpop.permute.xlu0 %1677
      %1679 = vrot.lane.b32.xlu0 %v1611, 28
      %v1680 = vpop.permute.xlu0 %1679
      %1681 = vrot.lane.b32.xlu0 %v1612, 28
      %v1682 = vpop.permute.xlu0 %1681
      %1683 = vrot.lane.b32.xlu0 %v1613, 28
      %v1684 = vpop.permute.xlu0 %1683
      %1685 = vrot.lane.b32.xlu0 %v1614, 28
      %v1686 = vpop.permute.xlu0 %1685
      %1687 = vrot.lane.b32.xlu0 %v1615, 28
      %v1688 = vpop.permute.xlu0 %1687
      %1689 = vrot.lane.b32.xlu0 %v1616, 28
      %v1690 = vpop.permute.xlu0 %1689
      %1691 = vrot.lane.b32.xlu0 %v1617, 28
      %v1692 = vpop.permute.xlu0 %1691
      %1693 = vrot.lane.b32.xlu0 %v1618, 28
      %v1694 = vpop.permute.xlu0 %1693
      %1695 = vrot.lane.b32.xlu0 %v1619, 28
      %v1696 = vpop.permute.xlu0 %1695
      %1697 = vrot.lane.b32.xlu0 %v1620, 28
      %v1698 = vpop.permute.xlu0 %1697
      %1699 = vrot.lane.b32.xlu0 %v1621, 28
      %v1700 = vpop.permute.xlu0 %1699
      %1701 = vrot.lane.b32.xlu0 %v1622, 28
      %v1702 = vpop.permute.xlu0 %1701
      %1703 = vrot.lane.b32.xlu0 %v1623, 28
      %v1704 = vpop.permute.xlu0 %1703
      %1705 = vrot.lane.b32.xlu0 %v1624, 28
      %v1706 = vpop.permute.xlu0 %1705
      %1707 = vrot.lane.b32.xlu0 %v1625, 28
      %v1708 = vpop.permute.xlu0 %1707
      %1709 = vrot.lane.b32.xlu0 %v1626, 28
      %v1710 = vpop.permute.xlu0 %1709
      %1711 = vrot.lane.b32.xlu0 %v1627, 28
      %v1712 = vpop.permute.xlu0 %1711
      %1713 = vrot.lane.b32.xlu0 %v1628, 28
      %v1714 = vpop.permute.xlu0 %1713
      %1715 = vrot.lane.b32.xlu0 %v1629, 28
      %v1716 = vpop.permute.xlu0 %1715
      %1717 = vrot.lane.b32.xlu0 %v1630, 28
      %v1718 = vpop.permute.xlu0 %1717
      %1719 = vrot.lane.b32.xlu0 %v1631, 28
      %v1720 = vpop.permute.xlu0 %1719
      %1721 = vrot.lane.b32.xlu0 %v1632, 28
      %v1722 = vpop.permute.xlu0 %1721
      %1723 = vrot.lane.b32.xlu0 %v1633, 28
      %v1724 = vpop.permute.xlu0 %1723
      %1725 = vrot.lane.b32.xlu0 %v1634, 28
      %v1726 = vpop.permute.xlu0 %1725
      %1727 = vrot.lane.b32.xlu0 %v1635, 28
      %v1728 = vpop.permute.xlu0 %1727
      %1729 = vrot.lane.b32.xlu0 %v1636, 28
      %v1730 = vpop.permute.xlu0 %1729
      %1731 = vrot.lane.b32.xlu0 %v1637, 28
      %v1732 = vpop.permute.xlu0 %1731
      %1733 = vrot.lane.b32.xlu0 %v1638, 28
      %v1734 = vpop.permute.xlu0 %1733
      %vm1767 = vcmask 261344
      %1768 = vst.msk [vmem:[#allocation3] sm:$0xff] %vm1767, %v1672
      %1769 = vst.msk [vmem:[#allocation3 + $0x8] sm:$0xff] %vm1767, %v1674
      %1770 = vst.msk [vmem:[#allocation3 + $0x10] sm:$0xff] %vm1767, %v1676
      %1771 = vst.msk [vmem:[#allocation3 + $0x18] sm:$0xff] %vm1767, %v1678
      %1772 = vst.msk [vmem:[#allocation3 + $0x20] sm:$0xff] %vm1767, %v1680
      %1773 = vst.msk [vmem:[#allocation3 + $0x28] sm:$0xff] %vm1767, %v1682
      %1774 = vst.msk [vmem:[#allocation3 + $0x30] sm:$0xff] %vm1767, %v1684
      %1775 = vst.msk [vmem:[#allocation3 + $0x38] sm:$0xff] %vm1767, %v1686
      %1776 = vst.msk [vmem:[#allocation3 + $0x40] sm:$0xff] %vm1767, %v1688
      %1777 = vst.msk [vmem:[#allocation3 + $0x48] sm:$0xff] %vm1767, %v1690
      %1778 = vst.msk [vmem:[#allocation3 + $0x50] sm:$0xff] %vm1767, %v1692
      %1779 = vst.msk [vmem:[#allocation3 + $0x58] sm:$0xff] %vm1767, %v1694
      %1780 = vst.msk [vmem:[#allocation3 + $0x60] sm:$0xff] %vm1767, %v1696
      %1781 = vst.msk [vmem:[#allocation3 + $0x68] sm:$0xff] %vm1767, %v1698
      %1782 = vst.msk [vmem:[#allocation3 + $0x70] sm:$0xff] %vm1767, %v1700
      %1783 = vst.msk [vmem:[#allocation3 + $0x78] sm:$0xff] %vm1767, %v1702
      %1784 = vst.msk [vmem:[#allocation3 + $0x80] sm:$0xff] %vm1767, %v1704
      %1785 = vst.msk [vmem:[#allocation3 + $0x88] sm:$0xff] %vm1767, %v1706
      %1786 = vst.msk [vmem:[#allocation3 + $0x90] sm:$0xff] %vm1767, %v1708
      %1787 = vst.msk [vmem:[#allocation3 + $0x98] sm:$0xff] %vm1767, %v1710
      %1788 = vst.msk [vmem:[#allocation3 + $0xa0] sm:$0xff] %vm1767, %v1712
      %1789 = vst.msk [vmem:[#allocation3 + $0xa8] sm:$0xff] %vm1767, %v1714
      %1790 = vst.msk [vmem:[#allocation3 + $0xb0] sm:$0xff] %vm1767, %v1716
      %1791 = vst.msk [vmem:[#allocation3 + $0xb8] sm:$0xff] %vm1767, %v1718
      %1792 = vst.msk [vmem:[#allocation3 + $0xc0] sm:$0xff] %vm1767, %v1720
      %1793 = vst.msk [vmem:[#allocation3 + $0xc8] sm:$0xff] %vm1767, %v1722
      %1794 = vst.msk [vmem:[#allocation3 + $0xd0] sm:$0xff] %vm1767, %v1724
      %1795 = vst.msk [vmem:[#allocation3 + $0xd8] sm:$0xff] %vm1767, %v1726
      %1796 = vst.msk [vmem:[#allocation3 + $0xe0] sm:$0xff] %vm1767, %v1728
      %1797 = vst.msk [vmem:[#allocation3 + $0xe8] sm:$0xff] %vm1767, %v1730
      %1798 = vst.msk [vmem:[#allocation3 + $0xf0] sm:$0xff] %vm1767, %v1732
      %1799 = vst.msk [vmem:[#allocation3 + $0xf8] sm:$0xff] %vm1767, %v1734
      %v1800 = vld [vmem:[%s1413 + $0x2] sm:$0xff]
      %v1801 = vld [vmem:[%s1413 + $0xa] sm:$0xff]
      %v1802 = vld [vmem:[%s1413 + $0x1a] sm:$0xff]
      %v1803 = vld [vmem:[%s1413 + $0x22] sm:$0xff]
      %v1804 = vld [vmem:[%s1413 + $0x32] sm:$0xff]
      %v1805 = vld [vmem:[%s1413 + $0x3a] sm:$0xff]
      %v1806 = vld [vmem:[%s1413 + $0x4a] sm:$0xff]
      %v1807 = vld [vmem:[%s1413 + $0x52] sm:$0xff]
      %v1808 = vld [vmem:[%s1413 + $0x62] sm:$0xff]
      %v1809 = vld [vmem:[%s1413 + $0x6a] sm:$0xff]
      %v1810 = vld [vmem:[%s1413 + $0x7a] sm:$0xff]
      %v1811 = vld [vmem:[%s1413 + $0x82] sm:$0xff]
      %v1812 = vld [vmem:[%s1413 + $0x92] sm:$0xff]
      %v1813 = vld [vmem:[%s1413 + $0x9a] sm:$0xff]
      %v1814 = vld [vmem:[%s1413 + $0xaa] sm:$0xff]
      %v1815 = vld [vmem:[%s1413 + $0xb2] sm:$0xff]
      %v1816 = vld [vmem:[%s1413 + $0xc2] sm:$0xff]
      %v1817 = vld [vmem:[%s1413 + $0xca] sm:$0xff]
      %v1818 = vld [vmem:[%s1413 + $0xda] sm:$0xff]
      %v1819 = vld [vmem:[%s1413 + $0xe2] sm:$0xff]
      %v1820 = vld [vmem:[%s1413 + $0xf2] sm:$0xff]
      %v1821 = vld [vmem:[%s1413 + $0xfa] sm:$0xff]
      %v1822 = vld [vmem:[%s1413 + $0x10a] sm:$0xff]
      %v1823 = vld [vmem:[%s1413 + $0x112] sm:$0xff]
      %v1824 = vld [vmem:[%s1413 + $0x122] sm:$0xff]
      %v1825 = vld [vmem:[%s1413 + $0x12a] sm:$0xff]
      %v1826 = vld [vmem:[%s1413 + $0x13a] sm:$0xff]
      %v1827 = vld [vmem:[%s1413 + $0x142] sm:$0xff]
      %v1828 = vld [vmem:[%s1413 + $0x152] sm:$0xff]
      %v1829 = vld [vmem:[%s1413 + $0x15a] sm:$0xff]
      %v1830 = vld [vmem:[%s1413 + $0x16a] sm:$0xff]
      %v1831 = vld [vmem:[%s1413 + $0x172] sm:$0xff]
      %1864 = vrot.lane.b32.xlu0 %v1800, 32
      %v1865 = vpop.permute.xlu0 %1864
      %1866 = vrot.lane.b32.xlu0 %v1801, 32
      %v1867 = vpop.permute.xlu0 %1866
      %1868 = vrot.lane.b32.xlu0 %v1802, 32
      %v1869 = vpop.permute.xlu0 %1868
      %1870 = vrot.lane.b32.xlu0 %v1803, 32
      %v1871 = vpop.permute.xlu0 %1870
      %1872 = vrot.lane.b32.xlu0 %v1804, 32
      %v1873 = vpop.permute.xlu0 %1872
      %1874 = vrot.lane.b32.xlu0 %v1805, 32
      %v1875 = vpop.permute.xlu0 %1874
      %1876 = vrot.lane.b32.xlu0 %v1806, 32
      %v1877 = vpop.permute.xlu0 %1876
      %1878 = vrot.lane.b32.xlu0 %v1807, 32
      %v1879 = vpop.permute.xlu0 %1878
      %1880 = vrot.lane.b32.xlu0 %v1808, 32
      %v1881 = vpop.permute.xlu0 %1880
      %1882 = vrot.lane.b32.xlu0 %v1809, 32
      %v1883 = vpop.permute.xlu0 %1882
      %1884 = vrot.lane.b32.xlu0 %v1810, 32
      %v1885 = vpop.permute.xlu0 %1884
      %1886 = vrot.lane.b32.xlu0 %v1811, 32
      %v1887 = vpop.permute.xlu0 %1886
      %1888 = vrot.lane.b32.xlu0 %v1812, 32
      %v1889 = vpop.permute.xlu0 %1888
      %1890 = vrot.lane.b32.xlu0 %v1813, 32
      %v1891 = vpop.permute.xlu0 %1890
      %1892 = vrot.lane.b32.xlu0 %v1814, 32
      %v1893 = vpop.permute.xlu0 %1892
      %1894 = vrot.lane.b32.xlu0 %v1815, 32
      %v1895 = vpop.permute.xlu0 %1894
      %1896 = vrot.lane.b32.xlu0 %v1816, 32
      %v1897 = vpop.permute.xlu0 %1896
      %1898 = vrot.lane.b32.xlu0 %v1817, 32
      %v1899 = vpop.permute.xlu0 %1898
      %1900 = vrot.lane.b32.xlu0 %v1818, 32
      %v1901 = vpop.permute.xlu0 %1900
      %1902 = vrot.lane.b32.xlu0 %v1819, 32
      %v1903 = vpop.permute.xlu0 %1902
      %1904 = vrot.lane.b32.xlu0 %v1820, 32
      %v1905 = vpop.permute.xlu0 %1904
      %1906 = vrot.lane.b32.xlu0 %v1821, 32
      %v1907 = vpop.permute.xlu0 %1906
      %1908 = vrot.lane.b32.xlu0 %v1822, 32
      %v1909 = vpop.permute.xlu0 %1908
      %1910 = vrot.lane.b32.xlu0 %v1823, 32
      %v1911 = vpop.permute.xlu0 %1910
      %1912 = vrot.lane.b32.xlu0 %v1824, 32
      %v1913 = vpop.permute.xlu0 %1912
      %1914 = vrot.lane.b32.xlu0 %v1825, 32
      %v1915 = vpop.permute.xlu0 %1914
      %1916 = vrot.lane.b32.xlu0 %v1826, 32
      %v1917 = vpop.permute.xlu0 %1916
      %1918 = vrot.lane.b32.xlu0 %v1827, 32
      %v1919 = vpop.permute.xlu0 %1918
      %1920 = vrot.lane.b32.xlu0 %v1828, 32
      %v1921 = vpop.permute.xlu0 %1920
      %1922 = vrot.lane.b32.xlu0 %v1829, 32
      %v1923 = vpop.permute.xlu0 %1922
      %1924 = vrot.lane.b32.xlu0 %v1830, 32
      %v1925 = vpop.permute.xlu0 %1924
      %1926 = vrot.lane.b32.xlu0 %v1831, 32
      %v1927 = vpop.permute.xlu0 %1926
      %vm1960 = vcmask 294144
      %1961 = vst.msk [vmem:[#allocation3] sm:$0xff] %vm1960, %v1865
      %1962 = vst.msk [vmem:[#allocation3 + $0x8] sm:$0xff] %vm1960, %v1867
      %1963 = vst.msk [vmem:[#allocation3 + $0x10] sm:$0xff] %vm1960, %v1869
      %1964 = vst.msk [vmem:[#allocation3 + $0x18] sm:$0xff] %vm1960, %v1871
      %1965 = vst.msk [vmem:[#allocation3 + $0x20] sm:$0xff] %vm1960, %v1873
      %1966 = vst.msk [vmem:[#allocation3 + $0x28] sm:$0xff] %vm1960, %v1875
      %1967 = vst.msk [vmem:[#allocation3 + $0x30] sm:$0xff] %vm1960, %v1877
      %1968 = vst.msk [vmem:[#allocation3 + $0x38] sm:$0xff] %vm1960, %v1879
      %1969 = vst.msk [vmem:[#allocation3 + $0x40] sm:$0xff] %vm1960, %v1881
      %1970 = vst.msk [vmem:[#allocation3 + $0x48] sm:$0xff] %vm1960, %v1883
      %1971 = vst.msk [vmem:[#allocation3 + $0x50] sm:$0xff] %vm1960, %v1885
      %1972 = vst.msk [vmem:[#allocation3 + $0x58] sm:$0xff] %vm1960, %v1887
      %1973 = vst.msk [vmem:[#allocation3 + $0x60] sm:$0xff] %vm1960, %v1889
      %1974 = vst.msk [vmem:[#allocation3 + $0x68] sm:$0xff] %vm1960, %v1891
      %1975 = vst.msk [vmem:[#allocation3 + $0x70] sm:$0xff] %vm1960, %v1893
      %1976 = vst.msk [vmem:[#allocation3 + $0x78] sm:$0xff] %vm1960, %v1895
      %1977 = vst.msk [vmem:[#allocation3 + $0x80] sm:$0xff] %vm1960, %v1897
      %1978 = vst.msk [vmem:[#allocation3 + $0x88] sm:$0xff] %vm1960, %v1899
      %1979 = vst.msk [vmem:[#allocation3 + $0x90] sm:$0xff] %vm1960, %v1901
      %1980 = vst.msk [vmem:[#allocation3 + $0x98] sm:$0xff] %vm1960, %v1903
      %1981 = vst.msk [vmem:[#allocation3 + $0xa0] sm:$0xff] %vm1960, %v1905
      %1982 = vst.msk [vmem:[#allocation3 + $0xa8] sm:$0xff] %vm1960, %v1907
      %1983 = vst.msk [vmem:[#allocation3 + $0xb0] sm:$0xff] %vm1960, %v1909
      %1984 = vst.msk [vmem:[#allocation3 + $0xb8] sm:$0xff] %vm1960, %v1911
      %1985 = vst.msk [vmem:[#allocation3 + $0xc0] sm:$0xff] %vm1960, %v1913
      %1986 = vst.msk [vmem:[#allocation3 + $0xc8] sm:$0xff] %vm1960, %v1915
      %1987 = vst.msk [vmem:[#allocation3 + $0xd0] sm:$0xff] %vm1960, %v1917
      %1988 = vst.msk [vmem:[#allocation3 + $0xd8] sm:$0xff] %vm1960, %v1919
      %1989 = vst.msk [vmem:[#allocation3 + $0xe0] sm:$0xff] %vm1960, %v1921
      %1990 = vst.msk [vmem:[#allocation3 + $0xe8] sm:$0xff] %vm1960, %v1923
      %1991 = vst.msk [vmem:[#allocation3 + $0xf0] sm:$0xff] %vm1960, %v1925
      %1992 = vst.msk [vmem:[#allocation3 + $0xf8] sm:$0xff] %vm1960, %v1927
      %v1993 = vld [vmem:[#allocation3] sm:$0xff]
      %v1994 = vld [vmem:[#allocation3 + $0x8] sm:$0xff]
      %v1995 = vld [vmem:[#allocation3 + $0x10] sm:$0xff]
      %v1996 = vld [vmem:[#allocation3 + $0x18] sm:$0xff]
      %v1997 = vld [vmem:[#allocation3 + $0x20] sm:$0xff]
      %v1998 = vld [vmem:[#allocation3 + $0x28] sm:$0xff]
      %v1999 = vld [vmem:[#allocation3 + $0x30] sm:$0xff]
      %v2000 = vld [vmem:[#allocation3 + $0x38] sm:$0xff]
      %v2001 = vld [vmem:[#allocation3 + $0x40] sm:$0xff]
      %v2002 = vld [vmem:[#allocation3 + $0x48] sm:$0xff]
      %v2003 = vld [vmem:[#allocation3 + $0x50] sm:$0xff]
      %v2004 = vld [vmem:[#allocation3 + $0x58] sm:$0xff]
      %v2005 = vld [vmem:[#allocation3 + $0x60] sm:$0xff]
      %v2006 = vld [vmem:[#allocation3 + $0x68] sm:$0xff]
      %v2007 = vld [vmem:[#allocation3 + $0x70] sm:$0xff]
      %v2008 = vld [vmem:[#allocation3 + $0x78] sm:$0xff]
      %v2009 = vld [vmem:[#allocation3 + $0x80] sm:$0xff]
      %v2010 = vld [vmem:[#allocation3 + $0x88] sm:$0xff]
      %v2011 = vld [vmem:[#allocation3 + $0x90] sm:$0xff]
      %v2012 = vld [vmem:[#allocation3 + $0x98] sm:$0xff]
      %v2013 = vld [vmem:[#allocation3 + $0xa0] sm:$0xff]
      %v2014 = vld [vmem:[#allocation3 + $0xa8] sm:$0xff]
      %v2015 = vld [vmem:[#allocation3 + $0xb0] sm:$0xff]
      %v2016 = vld [vmem:[#allocation3 + $0xb8] sm:$0xff]
      %v2017 = vld [vmem:[#allocation3 + $0xc0] sm:$0xff]
      %v2018 = vld [vmem:[#allocation3 + $0xc8] sm:$0xff]
      %v2019 = vld [vmem:[#allocation3 + $0xd0] sm:$0xff]
      %v2020 = vld [vmem:[#allocation3 + $0xd8] sm:$0xff]
      %v2021 = vld [vmem:[#allocation3 + $0xe0] sm:$0xff]
      %v2022 = vld [vmem:[#allocation3 + $0xe8] sm:$0xff]
      %v2023 = vld [vmem:[#allocation3 + $0xf0] sm:$0xff]
      %v2024 = vld [vmem:[#allocation3 + $0xf8] sm:$0xff]
      %v2025 = vpack.c.bf16 %v1994, %v1993
      %v2026 = vpack.c.bf16 %v1996, %v1995
      %v2027 = vpack.c.bf16 %v1998, %v1997
      %v2028 = vpack.c.bf16 %v2000, %v1999
      %v2029 = vpack.c.bf16 %v2002, %v2001
      %v2030 = vpack.c.bf16 %v2004, %v2003
      %v2031 = vpack.c.bf16 %v2006, %v2005
      %v2032 = vpack.c.bf16 %v2008, %v2007
      %v2033 = vpack.c.bf16 %v2010, %v2009
      %v2034 = vpack.c.bf16 %v2012, %v2011
      %v2035 = vpack.c.bf16 %v2014, %v2013
      %v2036 = vpack.c.bf16 %v2016, %v2015
      %v2037 = vpack.c.bf16 %v2018, %v2017
      %v2038 = vpack.c.bf16 %v2020, %v2019
      %v2039 = vpack.c.bf16 %v2022, %v2021
      %v2040 = vpack.c.bf16 %v2024, %v2023
      %v2041 = vlaneseq
      %v2042 = vshrl.u32 %v2041, 7
      %v2043 = vsub.s32 0, %v2042
      %v2044 = vrot.slane %v349, %v2043
      %v2050 = vunpack.c.l.b16 %v344
      %v2051 = vunpack.c.l.b16 %v345
      %v2052 = vunpack.c.l.b16 %v346
      %v2053 = vunpack.c.l.b16 %v347
      %v2054 = vunpack.c.l.b16 %v348
      %v2055 = vpack.c.b16 %v2051, %v2050
      %v2056 = vpack.c.b16 %v2053, %v2052
      %v2057 = vpack.c.b16 %v2054, %v2054
      %vm2060 = vcmask 293888
      %v2062 = vsel %vm2060, %v2025, 0
      %v2065 = vsel %vm2060, %v2026, 0
      %v2068 = vsel %vm2060, %v2027, 0
      %v2071 = vsel %vm2060, %v2028, 0
      %v2074 = vsel %vm2060, %v2029, 0
      %v2077 = vsel %vm2060, %v2030, 0
      %v2080 = vsel %vm2060, %v2031, 0
      %v2083 = vsel %vm2060, %v2032, 0
      %v2086 = vsel %vm2060, %v2033, 0
      %v2089 = vsel %vm2060, %v2034, 0
      %v2092 = vsel %vm2060, %v2035, 0
      %v2095 = vsel %vm2060, %v2036, 0
      %v2098 = vsel %vm2060, %v2037, 0
      %v2101 = vsel %vm2060, %v2038, 0
      %v2104 = vsel %vm2060, %v2039, 0
      %v2107 = vsel %vm2060, %v2040, 0
      %vm2109 = vcmask 1041408
      %v2111 = vsel %vm2109, %v2057, 0
      %2113 = vmatprep.subr.bf16.mxu0 0
      %2114 = vmatpush1.bf16.msra.mxu0 %v2055
      %2115 = vmatprep.subr.bf16.mxu0 0
      %2116 = vmatpush1.bf16.msra.mxu0 %v2056
      %2117 = vmatprep.subr.bf16.mxu0 0
      %2118 = vmatpush1.bf16.msra.mxu0 %v2111
      %2119 = vmatprep.subr.bf16.mxu0 0
      %2120 = vmatpush1.bf16.msra.mxu0 0
      %2121 = vmatprep.subr.bf16.mxu0 0
      %2122 = vmatpush1.bf16.msra.mxu0 0
      %2123 = vmatprep.subr.bf16.mxu0 0
      %2124 = vmatpush1.bf16.msra.mxu0 0
      %2125 = vmatprep.subr.bf16.mxu0 0
      %2126 = vmatpush1.bf16.msra.mxu0 0
      %2127 = vmatprep.subr.bf16.mxu0 0
      %2128 = vmatpush1.bf16.msra.mxu0 0
      %2129 = vmatprep.subr.bf16.mxu0 0
      %2130 = vmatpush1.bf16.msra.mxu0 0
      %2131 = vmatprep.subr.bf16.mxu0 0
      %2132 = vmatpush1.bf16.msra.mxu0 0
      %2133 = vmatprep.subr.bf16.mxu0 0
      %2134 = vmatpush1.bf16.msra.mxu0 0
      %2135 = vmatprep.subr.bf16.mxu0 0
      %2136 = vmatpush1.bf16.msra.mxu0 0
      %2137 = vmatprep.subr.bf16.mxu0 0
      %2138 = vmatpush1.bf16.msra.mxu0 0
      %2139 = vmatprep.subr.bf16.mxu0 0
      %2140 = vmatpush1.bf16.msra.mxu0 0
      %2141 = vmatprep.subr.bf16.mxu0 0
      %2142 = vmatpush1.bf16.msra.mxu0 0
      %2143 = vmatprep.subr.bf16.mxu0 0
      %2144 = vmatpush1.bf16.msra.mxu0 0
      %2145 = vmatprep.mubr.bf16.mxu0 0
      %2146 = vmatmul.mubr.bf16.gmra.mrb[0].mxu0 %v2062
      %v2147 = vpop.f32.mrb[0].mxu0
      %v2148 = vadd.f32 %v2044, %v2147
      %v2149 = vpop.f32.mrb[0].mxu0
      %v2150 = vpop.f32.mrb[0].mxu0
      %v2151 = vadd.f32 %v2044, %v2150
      %v2152 = vpop.f32.mrb[0].mxu0
      %2153 = vmatprep.mubr.bf16.mxu0 0
      %2154 = vmatmul.mubr.bf16.gmra.mrb[0].mxu0 %v2065
      %v2155 = vpop.f32.mrb[0].mxu0
      %v2156 = vadd.f32 %v2044, %v2155
      %v2157 = vpop.f32.mrb[0].mxu0
      %v2158 = vpop.f32.mrb[0].mxu0
      %v2159 = vadd.f32 %v2044, %v2158
      %v2160 = vpop.f32.mrb[0].mxu0
      %2161 = vmatprep.mubr.bf16.mxu0 0
      %2162 = vmatmul.mubr.bf16.gmra.mrb[0].mxu0 %v2068
      %v2163 = vpop.f32.mrb[0].mxu0
      %v2164 = vadd.f32 %v2044, %v2163
      %v2165 = vpop.f32.mrb[0].mxu0
      %v2166 = vpop.f32.mrb[0].mxu0
      %v2167 = vadd.f32 %v2044, %v2166
      %v2168 = vpop.f32.mrb[0].mxu0
      %2169 = vmatprep.mubr.bf16.mxu0 0
      %2170 = vmatmul.mubr.bf16.gmra.mrb[0].mxu0 %v2071
      %v2171 = vpop.f32.mrb[0].mxu0
      %v2172 = vadd.f32 %v2044, %v2171
      %v2173 = vpop.f32.mrb[0].mxu0
      %v2174 = vpop.f32.mrb[0].mxu0
      %v2175 = vadd.f32 %v2044, %v2174
      %v2176 = vpop.f32.mrb[0].mxu0
      %2177 = vmatprep.mubr.bf16.mxu0 0
      %2178 = vmatmul.mubr.bf16.gmra.mrb[0].mxu0 %v2074
      %v2179 = vpop.f32.mrb[0].mxu0
      %v2180 = vadd.f32 %v2044, %v2179
      %v2181 = vpop.f32.mrb[0].mxu0
      %v2182 = vpop.f32.mrb[0].mxu0
      %v2183 = vadd.f32 %v2044, %v2182
      %v2184 = vpop.f32.mrb[0].mxu0
      %2185 = vmatprep.mubr.bf16.mxu0 0
      %2186 = vmatmul.mubr.bf16.gmra.mrb[0].mxu0 %v2077
      %v2187 = vpop.f32.mrb[0].mxu0
      %v2188 = vadd.f32 %v2044, %v2187
      %v2189 = vpop.f32.mrb[0].mxu0
      %v2190 = vpop.f32.mrb[0].mxu0
      %v2191 = vadd.f32 %v2044, %v2190
      %v2192 = vpop.f32.mrb[0].mxu0
      %2193 = vmatprep.mubr.bf16.mxu0 0
      %2194 = vmatmul.mubr.bf16.gmra.mrb[0].mxu0 %v2080
      %v2195 = vpop.f32.mrb[0].mxu0
      %v2196 = vadd.f32 %v2044, %v2195
      %v2197 = vpop.f32.mrb[0].mxu0
      %v2198 = vpop.f32.mrb[0].mxu0
      %v2199 = vadd.f32 %v2044, %v2198
      %v2200 = vpop.f32.mrb[0].mxu0
      %2201 = vmatprep.mubr.bf16.mxu0 0
      %2202 = vmatmul.mubr.bf16.gmra.mrb[0].mxu0 %v2083
      %v2203 = vpop.f32.mrb[0].mxu0
      %v2204 = vadd.f32 %v2044, %v2203
      %v2205 = vpop.f32.mrb[0].mxu0
      %v2206 = vpop.f32.mrb[0].mxu0
      %v2207 = vadd.f32 %v2044, %v2206
      %v2208 = vpop.f32.mrb[0].mxu0
      %2209 = vmatprep.mubr.bf16.mxu0 0
      %2210 = vmatmul.mubr.bf16.gmra.mrb[0].mxu0 %v2086
      %v2211 = vpop.f32.mrb[0].mxu0
      %v2212 = vadd.f32 %v2044, %v2211
      %v2213 = vpop.f32.mrb[0].mxu0
      %v2214 = vpop.f32.mrb[0].mxu0
      %v2215 = vadd.f32 %v2044, %v2214
      %v2216 = vpop.f32.mrb[0].mxu0
      %2217 = vmatprep.mubr.bf16.mxu0 0
      %2218 = vmatmul.mubr.bf16.gmra.mrb[0].mxu0 %v2089
      %v2219 = vpop.f32.mrb[0].mxu0
      %v2220 = vadd.f32 %v2044, %v2219
      %v2221 = vpop.f32.mrb[0].mxu0
      %v2222 = vpop.f32.mrb[0].mxu0
      %v2223 = vadd.f32 %v2044, %v2222
      %v2224 = vpop.f32.mrb[0].mxu0
      %2225 = vmatprep.mubr.bf16.mxu0 0
      %2226 = vmatmul.mubr.bf16.gmra.mrb[0].mxu0 %v2092
      %v2227 = vpop.f32.mrb[0].mxu0
      %v2228 = vadd.f32 %v2044, %v2227
      %v2229 = vpop.f32.mrb[0].mxu0
      %v2230 = vpop.f32.mrb[0].mxu0
      %v2231 = vadd.f32 %v2044, %v2230
      %v2232 = vpop.f32.mrb[0].mxu0
      %2233 = vmatprep.mubr.bf16.mxu0 0
      %2234 = vmatmul.mubr.bf16.gmra.mrb[0].mxu0 %v2095
      %v2235 = vpop.f32.mrb[0].mxu0
      %v2236 = vadd.f32 %v2044, %v2235
      %v2237 = vpop.f32.mrb[0].mxu0
      %v2238 = vpop.f32.mrb[0].mxu0
      %v2239 = vadd.f32 %v2044, %v2238
      %v2240 = vpop.f32.mrb[0].mxu0
      %2241 = vmatprep.mubr.bf16.mxu0 0
      %2242 = vmatmul.mubr.bf16.gmra.mrb[0].mxu0 %v2098
      %v2243 = vpop.f32.mrb[0].mxu0
      %v2244 = vadd.f32 %v2044, %v2243
      %v2245 = vpop.f32.mrb[0].mxu0
      %v2246 = vpop.f32.mrb[0].mxu0
      %v2247 = vadd.f32 %v2044, %v2246
      %v2248 = vpop.f32.mrb[0].mxu0
      %2249 = vmatprep.mubr.bf16.mxu0 0
      %2250 = vmatmul.mubr.bf16.gmra.mrb[0].mxu0 %v2101
      %v2251 = vpop.f32.mrb[0].mxu0
      %v2252 = vadd.f32 %v2044, %v2251
      %v2253 = vpop.f32.mrb[0].mxu0
      %v2254 = vpop.f32.mrb[0].mxu0
      %v2255 = vadd.f32 %v2044, %v2254
      %v2256 = vpop.f32.mrb[0].mxu0
      %2257 = vmatprep.mubr.bf16.mxu0 0
      %2258 = vmatmul.mubr.bf16.gmra.mrb[0].mxu0 %v2104
      %v2259 = vpop.f32.mrb[0].mxu0
      %v2260 = vadd.f32 %v2044, %v2259
      %v2261 = vpop.f32.mrb[0].mxu0
      %v2262 = vpop.f32.mrb[0].mxu0
      %v2263 = vadd.f32 %v2044, %v2262
      %v2264 = vpop.f32.mrb[0].mxu0
      %2265 = vmatprep.mubr.bf16.mxu0 0
      %2266 = vmatmul.mubr.bf16.gmra.mrb[0].mxu0 %v2107
      %v2267 = vpop.f32.mrb[0].mxu0
      %v2268 = vadd.f32 %v2044, %v2267
      %v2269 = vpop.f32.mrb[0].mxu0
      %v2270 = vpop.f32.mrb[0].mxu0
      %v2271 = vadd.f32 %v2044, %v2270
      %v2272 = vpop.f32.mrb[0].mxu0
      %2273 = vdwg.mxu0
      %vm2274 = vcmp.ge.f32.partialorder %v2148, 0.0
      %vm2275 = vcmp.ge.f32.partialorder %v2151, 0.0
      %vm2276 = vcmp.ge.f32.partialorder %v2156, 0.0
      %vm2277 = vcmp.ge.f32.partialorder %v2159, 0.0
      %vm2278 = vcmp.ge.f32.partialorder %v2164, 0.0
      %vm2279 = vcmp.ge.f32.partialorder %v2167, 0.0
      %vm2280 = vcmp.ge.f32.partialorder %v2172, 0.0
      %vm2281 = vcmp.ge.f32.partialorder %v2175, 0.0
      %vm2282 = vcmp.ge.f32.partialorder %v2180, 0.0
      %vm2283 = vcmp.ge.f32.partialorder %v2183, 0.0
      %vm2284 = vcmp.ge.f32.partialorder %v2188, 0.0
      %vm2285 = vcmp.ge.f32.partialorder %v2191, 0.0
      %vm2286 = vcmp.ge.f32.partialorder %v2196, 0.0
      %vm2287 = vcmp.ge.f32.partialorder %v2199, 0.0
      %vm2288 = vcmp.ge.f32.partialorder %v2204, 0.0
      %vm2289 = vcmp.ge.f32.partialorder %v2207, 0.0
      %vm2290 = vcmp.ge.f32.partialorder %v2212, 0.0
      %vm2291 = vcmp.ge.f32.partialorder %v2215, 0.0
      %vm2292 = vcmp.ge.f32.partialorder %v2220, 0.0
      %vm2293 = vcmp.ge.f32.partialorder %v2223, 0.0
      %vm2294 = vcmp.ge.f32.partialorder %v2228, 0.0
      %vm2295 = vcmp.ge.f32.partialorder %v2231, 0.0
      %vm2296 = vcmp.ge.f32.partialorder %v2236, 0.0
      %vm2297 = vcmp.ge.f32.partialorder %v2239, 0.0
      %vm2298 = vcmp.ge.f32.partialorder %v2244, 0.0
      %vm2299 = vcmp.ge.f32.partialorder %v2247, 0.0
      %vm2300 = vcmp.ge.f32.partialorder %v2252, 0.0
      %vm2301 = vcmp.ge.f32.partialorder %v2255, 0.0
      %vm2302 = vcmp.ge.f32.partialorder %v2260, 0.0
      %vm2303 = vcmp.ge.f32.partialorder %v2263, 0.0
      %vm2304 = vcmp.ge.f32.partialorder %v2268, 0.0
      %vm2305 = vcmp.ge.f32.partialorder %v2271, 0.0
      %v2306 = vlaneseq
      %v2307 = vshrl.u32 %v2306, 7
      %v2308 = vsub.s32 0, %v2307
      %v2309 = vrot.slane %v350, %v2308
      %v2310 = vmul.f32 %v2309, %v2148
      %v2311 = vmul.f32 %v2309, %v2151
      %v2312 = vmul.f32 %v2309, %v2156
      %v2313 = vmul.f32 %v2309, %v2159
      %v2314 = vmul.f32 %v2309, %v2164
      %v2315 = vmul.f32 %v2309, %v2167
      %v2316 = vmul.f32 %v2309, %v2172
      %v2317 = vmul.f32 %v2309, %v2175
      %v2318 = vmul.f32 %v2309, %v2180
      %v2319 = vmul.f32 %v2309, %v2183
      %v2320 = vmul.f32 %v2309, %v2188
      %v2321 = vmul.f32 %v2309, %v2191
      %v2322 = vmul.f32 %v2309, %v2196
      %v2323 = vmul.f32 %v2309, %v2199
      %v2324 = vmul.f32 %v2309, %v2204
      %v2325 = vmul.f32 %v2309, %v2207
      %v2326 = vmul.f32 %v2309, %v2212
      %v2327 = vmul.f32 %v2309, %v2215
      %v2328 = vmul.f32 %v2309, %v2220
      %v2329 = vmul.f32 %v2309, %v2223
      %v2330 = vmul.f32 %v2309, %v2228
      %v2331 = vmul.f32 %v2309, %v2231
      %v2332 = vmul.f32 %v2309, %v2236
      %v2333 = vmul.f32 %v2309, %v2239
      %v2334 = vmul.f32 %v2309, %v2244
      %v2335 = vmul.f32 %v2309, %v2247
      %v2336 = vmul.f32 %v2309, %v2252
      %v2337 = vmul.f32 %v2309, %v2255
      %v2338 = vmul.f32 %v2309, %v2260
      %v2339 = vmul.f32 %v2309, %v2263
      %v2340 = vmul.f32 %v2309, %v2268
      %v2341 = vmul.f32 %v2309, %v2271
      %v2342 = vsel %vm2274, %v2148, %v2310
      %v2343 = vsel %vm2275, %v2151, %v2311
      %v2344 = vsel %vm2276, %v2156, %v2312
      %v2345 = vsel %vm2277, %v2159, %v2313
      %v2346 = vsel %vm2278, %v2164, %v2314
      %v2347 = vsel %vm2279, %v2167, %v2315
      %v2348 = vsel %vm2280, %v2172, %v2316
      %v2349 = vsel %vm2281, %v2175, %v2317
      %v2350 = vsel %vm2282, %v2180, %v2318
      %v2351 = vsel %vm2283, %v2183, %v2319
      %v2352 = vsel %vm2284, %v2188, %v2320
      %v2353 = vsel %vm2285, %v2191, %v2321
      %v2354 = vsel %vm2286, %v2196, %v2322
      %v2355 = vsel %vm2287, %v2199, %v2323
      %v2356 = vsel %vm2288, %v2204, %v2324
      %v2357 = vsel %vm2289, %v2207, %v2325
      %v2358 = vsel %vm2290, %v2212, %v2326
      %v2359 = vsel %vm2291, %v2215, %v2327
      %v2360 = vsel %vm2292, %v2220, %v2328
      %v2361 = vsel %vm2293, %v2223, %v2329
      %v2362 = vsel %vm2294, %v2228, %v2330
      %v2363 = vsel %vm2295, %v2231, %v2331
      %v2364 = vsel %vm2296, %v2236, %v2332
      %v2365 = vsel %vm2297, %v2239, %v2333
      %v2366 = vsel %vm2298, %v2244, %v2334
      %v2367 = vsel %vm2299, %v2247, %v2335
      %v2368 = vsel %vm2300, %v2252, %v2336
      %v2369 = vsel %vm2301, %v2255, %v2337
      %v2370 = vsel %vm2302, %v2260, %v2338
      %v2371 = vsel %vm2303, %v2263, %v2339
      %v2372 = vsel %vm2304, %v2268, %v2340
      %v2373 = vsel %vm2305, %v2271, %v2341
      %v2374 = vld [vmem:[%s1 + $0x10] sm:$0xc]
      %v2375 = vld [vmem:[%s1 + $0x14] sm:$0xf]
      %v2376 = vld [vmem:[%s1 + $0x18] sm:$0xf]
      %v2377 = vld [vmem:[%s1 + $0x1c] sm:$0xf]
      %v2378 = vld [vmem:[%s1 + $0x20] sm:$0xf]
      %v2379 = vld [vmem:[%s2 + $0x2] sm:$0x1]
      %v2380 = vld [vmem:[%s2 + $0x3] sm:$0x1]
      %2381 = vst.msk [vmem:[%s351 + $0x1] sm:$0xff] %vm253, %v2342
      %2382 = vst.msk [vmem:[%s351 + $0x9] sm:$0xff] %vm253, %v2343
      %2383 = vst.msk [vmem:[%s351 + $0x19] sm:$0xff] %vm253, %v2344
      %2384 = vst.msk [vmem:[%s351 + $0x21] sm:$0xff] %vm253, %v2345
      %2385 = vst.msk [vmem:[%s351 + $0x31] sm:$0xff] %vm253, %v2346
      %2386 = vst.msk [vmem:[%s351 + $0x39] sm:$0xff] %vm253, %v2347
      %2387 = vst.msk [vmem:[%s351 + $0x49] sm:$0xff] %vm253, %v2348
      %2388 = vst.msk [vmem:[%s351 + $0x51] sm:$0xff] %vm253, %v2349
      %2389 = vst.msk [vmem:[%s351 + $0x61] sm:$0xff] %vm253, %v2350
      %2390 = vst.msk [vmem:[%s351 + $0x69] sm:$0xff] %vm253, %v2351
      %2391 = vst.msk [vmem:[%s351 + $0x79] sm:$0xff] %vm253, %v2352
      %2392 = vst.msk [vmem:[%s351 + $0x81] sm:$0xff] %vm253, %v2353
      %2393 = vst.msk [vmem:[%s351 + $0x91] sm:$0xff] %vm253, %v2354
      %2394 = vst.msk [vmem:[%s351 + $0x99] sm:$0xff] %vm253, %v2355
      %2395 = vst.msk [vmem:[%s351 + $0xa9] sm:$0xff] %vm253, %v2356
      %2396 = vst.msk [vmem:[%s351 + $0xb1] sm:$0xff] %vm253, %v2357
      %2397 = vst.msk [vmem:[%s351 + $0xc1] sm:$0xff] %vm253, %v2358
      %2398 = vst.msk [vmem:[%s351 + $0xc9] sm:$0xff] %vm253, %v2359
      %2399 = vst.msk [vmem:[%s351 + $0xd9] sm:$0xff] %vm253, %v2360
      %2400 = vst.msk [vmem:[%s351 + $0xe1] sm:$0xff] %vm253, %v2361
      %2401 = vst.msk [vmem:[%s351 + $0xf1] sm:$0xff] %vm253, %v2362
      %2402 = vst.msk [vmem:[%s351 + $0xf9] sm:$0xff] %vm253, %v2363
      %2403 = vst.msk [vmem:[%s351 + $0x109] sm:$0xff] %vm253, %v2364
      %2404 = vst.msk [vmem:[%s351 + $0x111] sm:$0xff] %vm253, %v2365
      %2405 = vst.msk [vmem:[%s351 + $0x121] sm:$0xff] %vm253, %v2366
      %2406 = vst.msk [vmem:[%s351 + $0x129] sm:$0xff] %vm253, %v2367
      %2407 = vst.msk [vmem:[%s351 + $0x139] sm:$0xff] %vm253, %v2368
      %2408 = vst.msk [vmem:[%s351 + $0x141] sm:$0xff] %vm253, %v2369
      %2409 = vst.msk [vmem:[%s351 + $0x151] sm:$0xff] %vm253, %v2370
      %2410 = vst.msk [vmem:[%s351 + $0x159] sm:$0xff] %vm253, %v2371
      %2411 = vst.msk [vmem:[%s351 + $0x169] sm:$0xff] %vm253, %v2372
      %2412 = vst.msk [vmem:[%s351 + $0x171] sm:$0xff] %vm253, %v2373
      %v2413 = vld [vmem:[#allocation2] sm:$0xff]
      %v2414 = vld [vmem:[#allocation2 + $0x8] sm:$0xff]
      %v2415 = vld [vmem:[#allocation2 + $0x18] sm:$0xff]
      %v2416 = vld [vmem:[#allocation2 + $0x20] sm:$0xff]
      %v2417 = vld [vmem:[#allocation2 + $0x30] sm:$0xff]
      %v2418 = vld [vmem:[#allocation2 + $0x38] sm:$0xff]
      %v2419 = vld [vmem:[#allocation2 + $0x48] sm:$0xff]
      %v2420 = vld [vmem:[#allocation2 + $0x50] sm:$0xff]
      %v2421 = vld [vmem:[#allocation2 + $0x60] sm:$0xff]
      %v2422 = vld [vmem:[#allocation2 + $0x68] sm:$0xff]
      %v2423 = vld [vmem:[#allocation2 + $0x78] sm:$0xff]
      %v2424 = vld [vmem:[#allocation2 + $0x80] sm:$0xff]
      %v2425 = vld [vmem:[#allocation2 + $0x90] sm:$0xff]
      %v2426 = vld [vmem:[#allocation2 + $0x98] sm:$0xff]
      %v2427 = vld [vmem:[#allocation2 + $0xa8] sm:$0xff]
      %v2428 = vld [vmem:[#allocation2 + $0xb0] sm:$0xff]
      %v2429 = vld [vmem:[#allocation2 + $0xc0] sm:$0xff]
      %v2430 = vld [vmem:[#allocation2 + $0xc8] sm:$0xff]
      %v2431 = vld [vmem:[#allocation2 + $0xd8] sm:$0xff]
      %v2432 = vld [vmem:[#allocation2 + $0xe0] sm:$0xff]
      %v2433 = vld [vmem:[#allocation2 + $0xf0] sm:$0xff]
      %v2434 = vld [vmem:[#allocation2 + $0xf8] sm:$0xff]
      %v2435 = vld [vmem:[#allocation2 + $0x108] sm:$0xff]
      %v2436 = vld [vmem:[#allocation2 + $0x110] sm:$0xff]
      %v2437 = vld [vmem:[#allocation2 + $0x120] sm:$0xff]
      %v2438 = vld [vmem:[#allocation2 + $0x128] sm:$0xff]
      %v2439 = vld [vmem:[#allocation2 + $0x138] sm:$0xff]
      %v2440 = vld [vmem:[#allocation2 + $0x140] sm:$0xff]
      %v2441 = vld [vmem:[#allocation2 + $0x150] sm:$0xff]
      %v2442 = vld [vmem:[#allocation2 + $0x158] sm:$0xff]
      %v2443 = vld [vmem:[#allocation2 + $0x168] sm:$0xff]
      %v2444 = vld [vmem:[#allocation2 + $0x170] sm:$0xff]
      %2445 = vst.msk [vmem:[#allocation3] sm:$0xff] %vm253, %v2413
      %2446 = vst.msk [vmem:[#allocation3 + $0x8] sm:$0xff] %vm253, %v2414
      %2447 = vst.msk [vmem:[#allocation3 + $0x10] sm:$0xff] %vm253, %v2415
      %2448 = vst.msk [vmem:[#allocation3 + $0x18] sm:$0xff] %vm253, %v2416
      %2449 = vst.msk [vmem:[#allocation3 + $0x20] sm:$0xff] %vm253, %v2417
      %2450 = vst.msk [vmem:[#allocation3 + $0x28] sm:$0xff] %vm253, %v2418
      %2451 = vst.msk [vmem:[#allocation3 + $0x30] sm:$0xff] %vm253, %v2419
      %2452 = vst.msk [vmem:[#allocation3 + $0x38] sm:$0xff] %vm253, %v2420
      %2453 = vst.msk [vmem:[#allocation3 + $0x40] sm:$0xff] %vm253, %v2421
      %2454 = vst.msk [vmem:[#allocation3 + $0x48] sm:$0xff] %vm253, %v2422
      %2455 = vst.msk [vmem:[#allocation3 + $0x50] sm:$0xff] %vm253, %v2423
      %2456 = vst.msk [vmem:[#allocation3 + $0x58] sm:$0xff] %vm253, %v2424
      %2457 = vst.msk [vmem:[#allocation3 + $0x60] sm:$0xff] %vm253, %v2425
      %2458 = vst.msk [vmem:[#allocation3 + $0x68] sm:$0xff] %vm253, %v2426
      %2459 = vst.msk [vmem:[#allocation3 + $0x70] sm:$0xff] %vm253, %v2427
      %2460 = vst.msk [vmem:[#allocation3 + $0x78] sm:$0xff] %vm253, %v2428
      %2461 = vst.msk [vmem:[#allocation3 + $0x80] sm:$0xff] %vm253, %v2429
      %2462 = vst.msk [vmem:[#allocation3 + $0x88] sm:$0xff] %vm253, %v2430
      %2463 = vst.msk [vmem:[#allocation3 + $0x90] sm:$0xff] %vm253, %v2431
      %2464 = vst.msk [vmem:[#allocation3 + $0x98] sm:$0xff] %vm253, %v2432
      %2465 = vst.msk [vmem:[#allocation3 + $0xa0] sm:$0xff] %vm253, %v2433
      %2466 = vst.msk [vmem:[#allocation3 + $0xa8] sm:$0xff] %vm253, %v2434
      %2467 = vst.msk [vmem:[#allocation3 + $0xb0] sm:$0xff] %vm253, %v2435
      %2468 = vst.msk [vmem:[#allocation3 + $0xb8] sm:$0xff] %vm253, %v2436
      %2469 = vst.msk [vmem:[#allocation3 + $0xc0] sm:$0xff] %vm253, %v2437
      %2470 = vst.msk [vmem:[#allocation3 + $0xc8] sm:$0xff] %vm253, %v2438
      %2471 = vst.msk [vmem:[#allocation3 + $0xd0] sm:$0xff] %vm253, %v2439
      %2472 = vst.msk [vmem:[#allocation3 + $0xd8] sm:$0xff] %vm253, %v2440
      %2473 = vst.msk [vmem:[#allocation3 + $0xe0] sm:$0xff] %vm253, %v2441
      %2474 = vst.msk [vmem:[#allocation3 + $0xe8] sm:$0xff] %vm253, %v2442
      %2475 = vst.msk [vmem:[#allocation3 + $0xf0] sm:$0xff] %vm253, %v2443
      %2476 = vst.msk [vmem:[#allocation3 + $0xf8] sm:$0xff] %vm253, %v2444
      %v2477 = vld [vmem:[#allocation2 + $0x1] sm:$0xff]
      %v2478 = vld [vmem:[#allocation2 + $0x9] sm:$0xff]
      %v2479 = vld [vmem:[#allocation2 + $0x19] sm:$0xff]
      %v2480 = vld [vmem:[#allocation2 + $0x21] sm:$0xff]
      %v2481 = vld [vmem:[#allocation2 + $0x31] sm:$0xff]
      %v2482 = vld [vmem:[#allocation2 + $0x39] sm:$0xff]
      %v2483 = vld [vmem:[#allocation2 + $0x49] sm:$0xff]
      %v2484 = vld [vmem:[#allocation2 + $0x51] sm:$0xff]
      %v2485 = vld [vmem:[#allocation2 + $0x61] sm:$0xff]
      %v2486 = vld [vmem:[#allocation2 + $0x69] sm:$0xff]
      %v2487 = vld [vmem:[#allocation2 + $0x79] sm:$0xff]
      %v2488 = vld [vmem:[#allocation2 + $0x81] sm:$0xff]
      %v2489 = vld [vmem:[#allocation2 + $0x91] sm:$0xff]
      %v2490 = vld [vmem:[#allocation2 + $0x99] sm:$0xff]
      %v2491 = vld [vmem:[#allocation2 + $0xa9] sm:$0xff]
      %v2492 = vld [vmem:[#allocation2 + $0xb1] sm:$0xff]
      %v2493 = vld [vmem:[#allocation2 + $0xc1] sm:$0xff]
      %v2494 = vld [vmem:[#allocation2 + $0xc9] sm:$0xff]
      %v2495 = vld [vmem:[#allocation2 + $0xd9] sm:$0xff]
      %v2496 = vld [vmem:[#allocation2 + $0xe1] sm:$0xff]
      %v2497 = vld [vmem:[#allocation2 + $0xf1] sm:$0xff]
      %v2498 = vld [vmem:[#allocation2 + $0xf9] sm:$0xff]
      %v2499 = vld [vmem:[#allocation2 + $0x109] sm:$0xff]
      %v2500 = vld [vmem:[#allocation2 + $0x111] sm:$0xff]
      %v2501 = vld [vmem:[#allocation2 + $0x121] sm:$0xff]
      %v2502 = vld [vmem:[#allocation2 + $0x129] sm:$0xff]
      %v2503 = vld [vmem:[#allocation2 + $0x139] sm:$0xff]
      %v2504 = vld [vmem:[#allocation2 + $0x141] sm:$0xff]
      %v2505 = vld [vmem:[#allocation2 + $0x151] sm:$0xff]
      %v2506 = vld [vmem:[#allocation2 + $0x159] sm:$0xff]
      %v2507 = vld [vmem:[#allocation2 + $0x169] sm:$0xff]
      %v2508 = vld [vmem:[#allocation2 + $0x171] sm:$0xff]
      %2541 = vrot.lane.b32.xlu0 %v2477, 4
      %v2542 = vpop.permute.xlu0 %2541
      %2543 = vrot.lane.b32.xlu0 %v2478, 4
      %v2544 = vpop.permute.xlu0 %2543
      %2545 = vrot.lane.b32.xlu0 %v2479, 4
      %v2546 = vpop.permute.xlu0 %2545
      %2547 = vrot.lane.b32.xlu0 %v2480, 4
      %v2548 = vpop.permute.xlu0 %2547
      %2549 = vrot.lane.b32.xlu0 %v2481, 4
      %v2550 = vpop.permute.xlu0 %2549
      %2551 = vrot.lane.b32.xlu0 %v2482, 4
      %v2552 = vpop.permute.xlu0 %2551
      %2553 = vrot.lane.b32.xlu0 %v2483, 4
      %v2554 = vpop.permute.xlu0 %2553
      %2555 = vrot.lane.b32.xlu0 %v2484, 4
      %v2556 = vpop.permute.xlu0 %2555
      %2557 = vrot.lane.b32.xlu0 %v2485, 4
      %v2558 = vpop.permute.xlu0 %2557
      %2559 = vrot.lane.b32.xlu0 %v2486, 4
      %v2560 = vpop.permute.xlu0 %2559
      %2561 = vrot.lane.b32.xlu0 %v2487, 4
      %v2562 = vpop.permute.xlu0 %2561
      %2563 = vrot.lane.b32.xlu0 %v2488, 4
      %v2564 = vpop.permute.xlu0 %2563
      %2565 = vrot.lane.b32.xlu0 %v2489, 4
      %v2566 = vpop.permute.xlu0 %2565
      %2567 = vrot.lane.b32.xlu0 %v2490, 4
      %v2568 = vpop.permute.xlu0 %2567
      %2569 = vrot.lane.b32.xlu0 %v2491, 4
      %v2570 = vpop.permute.xlu0 %2569
      %2571 = vrot.lane.b32.xlu0 %v2492, 4
      %v2572 = vpop.permute.xlu0 %2571
      %2573 = vrot.lane.b32.xlu0 %v2493, 4
      %v2574 = vpop.permute.xlu0 %2573
      %2575 = vrot.lane.b32.xlu0 %v2494, 4
      %v2576 = vpop.permute.xlu0 %2575
      %2577 = vrot.lane.b32.xlu0 %v2495, 4
      %v2578 = vpop.permute.xlu0 %2577
      %2579 = vrot.lane.b32.xlu0 %v2496, 4
      %v2580 = vpop.permute.xlu0 %2579
      %2581 = vrot.lane.b32.xlu0 %v2497, 4
      %v2582 = vpop.permute.xlu0 %2581
      %2583 = vrot.lane.b32.xlu0 %v2498, 4
      %v2584 = vpop.permute.xlu0 %2583
      %2585 = vrot.lane.b32.xlu0 %v2499, 4
      %v2586 = vpop.permute.xlu0 %2585
      %2587 = vrot.lane.b32.xlu0 %v2500, 4
      %v2588 = vpop.permute.xlu0 %2587
      %2589 = vrot.lane.b32.xlu0 %v2501, 4
      %v2590 = vpop.permute.xlu0 %2589
      %2591 = vrot.lane.b32.xlu0 %v2502, 4
      %v2592 = vpop.permute.xlu0 %2591
      %2593 = vrot.lane.b32.xlu0 %v2503, 4
      %v2594 = vpop.permute.xlu0 %2593
      %2595 = vrot.lane.b32.xlu0 %v2504, 4
      %v2596 = vpop.permute.xlu0 %2595
      %2597 = vrot.lane.b32.xlu0 %v2505, 4
      %v2598 = vpop.permute.xlu0 %2597
      %2599 = vrot.lane.b32.xlu0 %v2506, 4
      %v2600 = vpop.permute.xlu0 %2599
      %2601 = vrot.lane.b32.xlu0 %v2507, 4
      %v2602 = vpop.permute.xlu0 %2601
      %2603 = vrot.lane.b32.xlu0 %v2508, 4
      %v2604 = vpop.permute.xlu0 %2603
      %2637 = vst.msk [vmem:[#allocation3] sm:$0xff] %vm608, %v2542
      %2638 = vst.msk [vmem:[#allocation3 + $0x8] sm:$0xff] %vm608, %v2544
      %2639 = vst.msk [vmem:[#allocation3 + $0x10] sm:$0xff] %vm608, %v2546
      %2640 = vst.msk [vmem:[#allocation3 + $0x18] sm:$0xff] %vm608, %v2548
      %2641 = vst.msk [vmem:[#allocation3 + $0x20] sm:$0xff] %vm608, %v2550
      %2642 = vst.msk [vmem:[#allocation3 + $0x28] sm:$0xff] %vm608, %v2552
      %2643 = vst.msk [vmem:[#allocation3 + $0x30] sm:$0xff] %vm608, %v2554
      %2644 = vst.msk [vmem:[#allocation3 + $0x38] sm:$0xff] %vm608, %v2556
      %2645 = vst.msk [vmem:[#allocation3 + $0x40] sm:$0xff] %vm608, %v2558
      %2646 = vst.msk [vmem:[#allocation3 + $0x48] sm:$0xff] %vm608, %v2560
      %2647 = vst.msk [vmem:[#allocation3 + $0x50] sm:$0xff] %vm608, %v2562
      %2648 = vst.msk [vmem:[#allocation3 + $0x58] sm:$0xff] %vm608, %v2564
      %2649 = vst.msk [vmem:[#allocation3 + $0x60] sm:$0xff] %vm608, %v2566
      %2650 = vst.msk [vmem:[#allocation3 + $0x68] sm:$0xff] %vm608, %v2568
      %2651 = vst.msk [vmem:[#allocation3 + $0x70] sm:$0xff] %vm608, %v2570
      %2652 = vst.msk [vmem:[#allocation3 + $0x78] sm:$0xff] %vm608, %v2572
      %2653 = vst.msk [vmem:[#allocation3 + $0x80] sm:$0xff] %vm608, %v2574
      %2654 = vst.msk [vmem:[#allocation3 + $0x88] sm:$0xff] %vm608, %v2576
      %2655 = vst.msk [vmem:[#allocation3 + $0x90] sm:$0xff] %vm608, %v2578
      %2656 = vst.msk [vmem:[#allocation3 + $0x98] sm:$0xff] %vm608, %v2580
      %2657 = vst.msk [vmem:[#allocation3 + $0xa0] sm:$0xff] %vm608, %v2582
      %2658 = vst.msk [vmem:[#allocation3 + $0xa8] sm:$0xff] %vm608, %v2584
      %2659 = vst.msk [vmem:[#allocation3 + $0xb0] sm:$0xff] %vm608, %v2586
      %2660 = vst.msk [vmem:[#allocation3 + $0xb8] sm:$0xff] %vm608, %v2588
      %2661 = vst.msk [vmem:[#allocation3 + $0xc0] sm:$0xff] %vm608, %v2590
      %2662 = vst.msk [vmem:[#allocation3 + $0xc8] sm:$0xff] %vm608, %v2592
      %2663 = vst.msk [vmem:[#allocation3 + $0xd0] sm:$0xff] %vm608, %v2594
      %2664 = vst.msk [vmem:[#allocation3 + $0xd8] sm:$0xff] %vm608, %v2596
      %2665 = vst.msk [vmem:[#allocation3 + $0xe0] sm:$0xff] %vm608, %v2598
      %2666 = vst.msk [vmem:[#allocation3 + $0xe8] sm:$0xff] %vm608, %v2600
      %2667 = vst.msk [vmem:[#allocation3 + $0xf0] sm:$0xff] %vm608, %v2602
      %2668 = vst.msk [vmem:[#allocation3 + $0xf8] sm:$0xff] %vm608, %v2604
      %v2669 = vld [vmem:[#allocation2 + $0x2] sm:$0xff]
      %v2670 = vld [vmem:[#allocation2 + $0xa] sm:$0xff]
      %v2671 = vld [vmem:[#allocation2 + $0x1a] sm:$0xff]
      %v2672 = vld [vmem:[#allocation2 + $0x22] sm:$0xff]
      %v2673 = vld [vmem:[#allocation2 + $0x32] sm:$0xff]
      %v2674 = vld [vmem:[#allocation2 + $0x3a] sm:$0xff]
      %v2675 = vld [vmem:[#allocation2 + $0x4a] sm:$0xff]
      %v2676 = vld [vmem:[#allocation2 + $0x52] sm:$0xff]
      %v2677 = vld [vmem:[#allocation2 + $0x62] sm:$0xff]
      %v2678 = vld [vmem:[#allocation2 + $0x6a] sm:$0xff]
      %v2679 = vld [vmem:[#allocation2 + $0x7a] sm:$0xff]
      %v2680 = vld [vmem:[#allocation2 + $0x82] sm:$0xff]
      %v2681 = vld [vmem:[#allocation2 + $0x92] sm:$0xff]
      %v2682 = vld [vmem:[#allocation2 + $0x9a] sm:$0xff]
      %v2683 = vld [vmem:[#allocation2 + $0xaa] sm:$0xff]
      %v2684 = vld [vmem:[#allocation2 + $0xb2] sm:$0xff]
      %v2685 = vld [vmem:[#allocation2 + $0xc2] sm:$0xff]
      %v2686 = vld [vmem:[#allocation2 + $0xca] sm:$0xff]
      %v2687 = vld [vmem:[#allocation2 + $0xda] sm:$0xff]
      %v2688 = vld [vmem:[#allocation2 + $0xe2] sm:$0xff]
      %v2689 = vld [vmem:[#allocation2 + $0xf2] sm:$0xff]
      %v2690 = vld [vmem:[#allocation2 + $0xfa] sm:$0xff]
      %v2691 = vld [vmem:[#allocation2 + $0x10a] sm:$0xff]
      %v2692 = vld [vmem:[#allocation2 + $0x112] sm:$0xff]
      %v2693 = vld [vmem:[#allocation2 + $0x122] sm:$0xff]
      %v2694 = vld [vmem:[#allocation2 + $0x12a] sm:$0xff]
      %v2695 = vld [vmem:[#allocation2 + $0x13a] sm:$0xff]
      %v2696 = vld [vmem:[#allocation2 + $0x142] sm:$0xff]
      %v2697 = vld [vmem:[#allocation2 + $0x152] sm:$0xff]
      %v2698 = vld [vmem:[#allocation2 + $0x15a] sm:$0xff]
      %v2699 = vld [vmem:[#allocation2 + $0x16a] sm:$0xff]
      %v2700 = vld [vmem:[#allocation2 + $0x172] sm:$0xff]
      %2733 = vrot.lane.b32.xlu0 %v2669, 8
      %v2734 = vpop.permute.xlu0 %2733
      %2735 = vrot.lane.b32.xlu0 %v2670, 8
      %v2736 = vpop.permute.xlu0 %2735
      %2737 = vrot.lane.b32.xlu0 %v2671, 8
      %v2738 = vpop.permute.xlu0 %2737
      %2739 = vrot.lane.b32.xlu0 %v2672, 8
      %v2740 = vpop.permute.xlu0 %2739
      %2741 = vrot.lane.b32.xlu0 %v2673, 8
      %v2742 = vpop.permute.xlu0 %2741
      %2743 = vrot.lane.b32.xlu0 %v2674, 8
      %v2744 = vpop.permute.xlu0 %2743
      %2745 = vrot.lane.b32.xlu0 %v2675, 8
      %v2746 = vpop.permute.xlu0 %2745
      %2747 = vrot.lane.b32.xlu0 %v2676, 8
      %v2748 = vpop.permute.xlu0 %2747
      %2749 = vrot.lane.b32.xlu0 %v2677, 8
      %v2750 = vpop.permute.xlu0 %2749
      %2751 = vrot.lane.b32.xlu0 %v2678, 8
      %v2752 = vpop.permute.xlu0 %2751
      %2753 = vrot.lane.b32.xlu0 %v2679, 8
      %v2754 = vpop.permute.xlu0 %2753
      %2755 = vrot.lane.b32.xlu0 %v2680, 8
      %v2756 = vpop.permute.xlu0 %2755
      %2757 = vrot.lane.b32.xlu0 %v2681, 8
      %v2758 = vpop.permute.xlu0 %2757
      %2759 = vrot.lane.b32.xlu0 %v2682, 8
      %v2760 = vpop.permute.xlu0 %2759
      %2761 = vrot.lane.b32.xlu0 %v2683, 8
      %v2762 = vpop.permute.xlu0 %2761
      %2763 = vrot.lane.b32.xlu0 %v2684, 8
      %v2764 = vpop.permute.xlu0 %2763
      %2765 = vrot.lane.b32.xlu0 %v2685, 8
      %v2766 = vpop.permute.xlu0 %2765
      %2767 = vrot.lane.b32.xlu0 %v2686, 8
      %v2768 = vpop.permute.xlu0 %2767
      %2769 = vrot.lane.b32.xlu0 %v2687, 8
      %v2770 = vpop.permute.xlu0 %2769
      %2771 = vrot.lane.b32.xlu0 %v2688, 8
      %v2772 = vpop.permute.xlu0 %2771
      %2773 = vrot.lane.b32.xlu0 %v2689, 8
      %v2774 = vpop.permute.xlu0 %2773
      %2775 = vrot.lane.b32.xlu0 %v2690, 8
      %v2776 = vpop.permute.xlu0 %2775
      %2777 = vrot.lane.b32.xlu0 %v2691, 8
      %v2778 = vpop.permute.xlu0 %2777
      %2779 = vrot.lane.b32.xlu0 %v2692, 8
      %v2780 = vpop.permute.xlu0 %2779
      %2781 = vrot.lane.b32.xlu0 %v2693, 8
      %v2782 = vpop.permute.xlu0 %2781
      %2783 = vrot.lane.b32.xlu0 %v2694, 8
      %v2784 = vpop.permute.xlu0 %2783
      %2785 = vrot.lane.b32.xlu0 %v2695, 8
      %v2786 = vpop.permute.xlu0 %2785
      %2787 = vrot.lane.b32.xlu0 %v2696, 8
      %v2788 = vpop.permute.xlu0 %2787
      %2789 = vrot.lane.b32.xlu0 %v2697, 8
      %v2790 = vpop.permute.xlu0 %2789
      %2791 = vrot.lane.b32.xlu0 %v2698, 8
      %v2792 = vpop.permute.xlu0 %2791
      %2793 = vrot.lane.b32.xlu0 %v2699, 8
      %v2794 = vpop.permute.xlu0 %2793
      %2795 = vrot.lane.b32.xlu0 %v2700, 8
      %v2796 = vpop.permute.xlu0 %2795
      %2829 = vst.msk [vmem:[#allocation3] sm:$0xff] %vm801, %v2734
      %2830 = vst.msk [vmem:[#allocation3 + $0x8] sm:$0xff] %vm801, %v2736
      %2831 = vst.msk [vmem:[#allocation3 + $0x10] sm:$0xff] %vm801, %v2738
      %2832 = vst.msk [vmem:[#allocation3 + $0x18] sm:$0xff] %vm801, %v2740
      %2833 = vst.msk [vmem:[#allocation3 + $0x20] sm:$0xff] %vm801, %v2742
      %2834 = vst.msk [vmem:[#allocation3 + $0x28] sm:$0xff] %vm801, %v2744
      %2835 = vst.msk [vmem:[#allocation3 + $0x30] sm:$0xff] %vm801, %v2746
      %2836 = vst.msk [vmem:[#allocation3 + $0x38] sm:$0xff] %vm801, %v2748
      %2837 = vst.msk [vmem:[#allocation3 + $0x40] sm:$0xff] %vm801, %v2750
      %2838 = vst.msk [vmem:[#allocation3 + $0x48] sm:$0xff] %vm801, %v2752
      %2839 = vst.msk [vmem:[#allocation3 + $0x50] sm:$0xff] %vm801, %v2754
      %2840 = vst.msk [vmem:[#allocation3 + $0x58] sm:$0xff] %vm801, %v2756
      %2841 = vst.msk [vmem:[#allocation3 + $0x60] sm:$0xff] %vm801, %v2758
      %2842 = vst.msk [vmem:[#allocation3 + $0x68] sm:$0xff] %vm801, %v2760
      %2843 = vst.msk [vmem:[#allocation3 + $0x70] sm:$0xff] %vm801, %v2762
      %2844 = vst.msk [vmem:[#allocation3 + $0x78] sm:$0xff] %vm801, %v2764
      %2845 = vst.msk [vmem:[#allocation3 + $0x80] sm:$0xff] %vm801, %v2766
      %2846 = vst.msk [vmem:[#allocation3 + $0x88] sm:$0xff] %vm801, %v2768
      %2847 = vst.msk [vmem:[#allocation3 + $0x90] sm:$0xff] %vm801, %v2770
      %2848 = vst.msk [vmem:[#allocation3 + $0x98] sm:$0xff] %vm801, %v2772
      %2849 = vst.msk [vmem:[#allocation3 + $0xa0] sm:$0xff] %vm801, %v2774
      %2850 = vst.msk [vmem:[#allocation3 + $0xa8] sm:$0xff] %vm801, %v2776
      %2851 = vst.msk [vmem:[#allocation3 + $0xb0] sm:$0xff] %vm801, %v2778
      %2852 = vst.msk [vmem:[#allocation3 + $0xb8] sm:$0xff] %vm801, %v2780
      %2853 = vst.msk [vmem:[#allocation3 + $0xc0] sm:$0xff] %vm801, %v2782
      %2854 = vst.msk [vmem:[#allocation3 + $0xc8] sm:$0xff] %vm801, %v2784
      %2855 = vst.msk [vmem:[#allocation3 + $0xd0] sm:$0xff] %vm801, %v2786
      %2856 = vst.msk [vmem:[#allocation3 + $0xd8] sm:$0xff] %vm801, %v2788
      %2857 = vst.msk [vmem:[#allocation3 + $0xe0] sm:$0xff] %vm801, %v2790
      %2858 = vst.msk [vmem:[#allocation3 + $0xe8] sm:$0xff] %vm801, %v2792
      %2859 = vst.msk [vmem:[#allocation3 + $0xf0] sm:$0xff] %vm801, %v2794
      %2860 = vst.msk [vmem:[#allocation3 + $0xf8] sm:$0xff] %vm801, %v2796
      %v2861 = vld [vmem:[%s351] sm:$0xff]
      %v2862 = vld [vmem:[%s351 + $0x8] sm:$0xff]
      %v2863 = vld [vmem:[%s351 + $0x18] sm:$0xff]
      %v2864 = vld [vmem:[%s351 + $0x20] sm:$0xff]
      %v2865 = vld [vmem:[%s351 + $0x30] sm:$0xff]
      %v2866 = vld [vmem:[%s351 + $0x38] sm:$0xff]
      %v2867 = vld [vmem:[%s351 + $0x48] sm:$0xff]
      %v2868 = vld [vmem:[%s351 + $0x50] sm:$0xff]
      %v2869 = vld [vmem:[%s351 + $0x60] sm:$0xff]
      %v2870 = vld [vmem:[%s351 + $0x68] sm:$0xff]
      %v2871 = vld [vmem:[%s351 + $0x78] sm:$0xff]
      %v2872 = vld [vmem:[%s351 + $0x80] sm:$0xff]
      %v2873 = vld [vmem:[%s351 + $0x90] sm:$0xff]
      %v2874 = vld [vmem:[%s351 + $0x98] sm:$0xff]
      %v2875 = vld [vmem:[%s351 + $0xa8] sm:$0xff]
      %v2876 = vld [vmem:[%s351 + $0xb0] sm:$0xff]
      %v2877 = vld [vmem:[%s351 + $0xc0] sm:$0xff]
      %v2878 = vld [vmem:[%s351 + $0xc8] sm:$0xff]
      %v2879 = vld [vmem:[%s351 + $0xd8] sm:$0xff]
      %v2880 = vld [vmem:[%s351 + $0xe0] sm:$0xff]
      %v2881 = vld [vmem:[%s351 + $0xf0] sm:$0xff]
      %v2882 = vld [vmem:[%s351 + $0xf8] sm:$0xff]
      %v2883 = vld [vmem:[%s351 + $0x108] sm:$0xff]
      %v2884 = vld [vmem:[%s351 + $0x110] sm:$0xff]
      %v2885 = vld [vmem:[%s351 + $0x120] sm:$0xff]
      %v2886 = vld [vmem:[%s351 + $0x128] sm:$0xff]
      %v2887 = vld [vmem:[%s351 + $0x138] sm:$0xff]
      %v2888 = vld [vmem:[%s351 + $0x140] sm:$0xff]
      %v2889 = vld [vmem:[%s351 + $0x150] sm:$0xff]
      %v2890 = vld [vmem:[%s351 + $0x158] sm:$0xff]
      %v2891 = vld [vmem:[%s351 + $0x168] sm:$0xff]
      %v2892 = vld [vmem:[%s351 + $0x170] sm:$0xff]
      %2925 = vrot.lane.b32.xlu0 %v2861, 12
      %v2926 = vpop.permute.xlu0 %2925
      %2927 = vrot.lane.b32.xlu0 %v2862, 12
      %v2928 = vpop.permute.xlu0 %2927
      %2929 = vrot.lane.b32.xlu0 %v2863, 12
      %v2930 = vpop.permute.xlu0 %2929
      %2931 = vrot.lane.b32.xlu0 %v2864, 12
      %v2932 = vpop.permute.xlu0 %2931
      %2933 = vrot.lane.b32.xlu0 %v2865, 12
      %v2934 = vpop.permute.xlu0 %2933
      %2935 = vrot.lane.b32.xlu0 %v2866, 12
      %v2936 = vpop.permute.xlu0 %2935
      %2937 = vrot.lane.b32.xlu0 %v2867, 12
      %v2938 = vpop.permute.xlu0 %2937
      %2939 = vrot.lane.b32.xlu0 %v2868, 12
      %v2940 = vpop.permute.xlu0 %2939
      %2941 = vrot.lane.b32.xlu0 %v2869, 12
      %v2942 = vpop.permute.xlu0 %2941
      %2943 = vrot.lane.b32.xlu0 %v2870, 12
      %v2944 = vpop.permute.xlu0 %2943
      %2945 = vrot.lane.b32.xlu0 %v2871, 12
      %v2946 = vpop.permute.xlu0 %2945
      %2947 = vrot.lane.b32.xlu0 %v2872, 12
      %v2948 = vpop.permute.xlu0 %2947
      %2949 = vrot.lane.b32.xlu0 %v2873, 12
      %v2950 = vpop.permute.xlu0 %2949
      %2951 = vrot.lane.b32.xlu0 %v2874, 12
      %v2952 = vpop.permute.xlu0 %2951
      %2953 = vrot.lane.b32.xlu0 %v2875, 12
      %v2954 = vpop.permute.xlu0 %2953
      %2955 = vrot.lane.b32.xlu0 %v2876, 12
      %v2956 = vpop.permute.xlu0 %2955
      %2957 = vrot.lane.b32.xlu0 %v2877, 12
      %v2958 = vpop.permute.xlu0 %2957
      %2959 = vrot.lane.b32.xlu0 %v2878, 12
      %v2960 = vpop.permute.xlu0 %2959
      %2961 = vrot.lane.b32.xlu0 %v2879, 12
      %v2962 = vpop.permute.xlu0 %2961
      %2963 = vrot.lane.b32.xlu0 %v2880, 12
      %v2964 = vpop.permute.xlu0 %2963
      %2965 = vrot.lane.b32.xlu0 %v2881, 12
      %v2966 = vpop.permute.xlu0 %2965
      %2967 = vrot.lane.b32.xlu0 %v2882, 12
      %v2968 = vpop.permute.xlu0 %2967
      %2969 = vrot.lane.b32.xlu0 %v2883, 12
      %v2970 = vpop.permute.xlu0 %2969
      %2971 = vrot.lane.b32.xlu0 %v2884, 12
      %v2972 = vpop.permute.xlu0 %2971
      %2973 = vrot.lane.b32.xlu0 %v2885, 12
      %v2974 = vpop.permute.xlu0 %2973
      %2975 = vrot.lane.b32.xlu0 %v2886, 12
      %v2976 = vpop.permute.xlu0 %2975
      %2977 = vrot.lane.b32.xlu0 %v2887, 12
      %v2978 = vpop.permute.xlu0 %2977
      %2979 = vrot.lane.b32.xlu0 %v2888, 12
      %v2980 = vpop.permute.xlu0 %2979
      %2981 = vrot.lane.b32.xlu0 %v2889, 12
      %v2982 = vpop.permute.xlu0 %2981
      %2983 = vrot.lane.b32.xlu0 %v2890, 12
      %v2984 = vpop.permute.xlu0 %2983
      %2985 = vrot.lane.b32.xlu0 %v2891, 12
      %v2986 = vpop.permute.xlu0 %2985
      %2987 = vrot.lane.b32.xlu0 %v2892, 12
      %v2988 = vpop.permute.xlu0 %2987
      %3021 = vst.msk [vmem:[#allocation3] sm:$0xff] %vm994, %v2926
      %3022 = vst.msk [vmem:[#allocation3 + $0x8] sm:$0xff] %vm994, %v2928
      %3023 = vst.msk [vmem:[#allocation3 + $0x10] sm:$0xff] %vm994, %v2930
      %3024 = vst.msk [vmem:[#allocation3 + $0x18] sm:$0xff] %vm994, %v2932
      %3025 = vst.msk [vmem:[#allocation3 + $0x20] sm:$0xff] %vm994, %v2934
      %3026 = vst.msk [vmem:[#allocation3 + $0x28] sm:$0xff] %vm994, %v2936
      %3027 = vst.msk [vmem:[#allocation3 + $0x30] sm:$0xff] %vm994, %v2938
      %3028 = vst.msk [vmem:[#allocation3 + $0x38] sm:$0xff] %vm994, %v2940
      %3029 = vst.msk [vmem:[#allocation3 + $0x40] sm:$0xff] %vm994, %v2942
      %3030 = vst.msk [vmem:[#allocation3 + $0x48] sm:$0xff] %vm994, %v2944
      %3031 = vst.msk [vmem:[#allocation3 + $0x50] sm:$0xff] %vm994, %v2946
      %3032 = vst.msk [vmem:[#allocation3 + $0x58] sm:$0xff] %vm994, %v2948
      %3033 = vst.msk [vmem:[#allocation3 + $0x60] sm:$0xff] %vm994, %v2950
      %3034 = vst.msk [vmem:[#allocation3 + $0x68] sm:$0xff] %vm994, %v2952
      %3035 = vst.msk [vmem:[#allocation3 + $0x70] sm:$0xff] %vm994, %v2954
      %3036 = vst.msk [vmem:[#allocation3 + $0x78] sm:$0xff] %vm994, %v2956
      %3037 = vst.msk [vmem:[#allocation3 + $0x80] sm:$0xff] %vm994, %v2958
      %3038 = vst.msk [vmem:[#allocation3 + $0x88] sm:$0xff] %vm994, %v2960
      %3039 = vst.msk [vmem:[#allocation3 + $0x90] sm:$0xff] %vm994, %v2962
      %3040 = vst.msk [vmem:[#allocation3 + $0x98] sm:$0xff] %vm994, %v2964
      %3041 = vst.msk [vmem:[#allocation3 + $0xa0] sm:$0xff] %vm994, %v2966
      %3042 = vst.msk [vmem:[#allocation3 + $0xa8] sm:$0xff] %vm994, %v2968
      %3043 = vst.msk [vmem:[#allocation3 + $0xb0] sm:$0xff] %vm994, %v2970
      %3044 = vst.msk [vmem:[#allocation3 + $0xb8] sm:$0xff] %vm994, %v2972
      %3045 = vst.msk [vmem:[#allocation3 + $0xc0] sm:$0xff] %vm994, %v2974
      %3046 = vst.msk [vmem:[#allocation3 + $0xc8] sm:$0xff] %vm994, %v2976
      %3047 = vst.msk [vmem:[#allocation3 + $0xd0] sm:$0xff] %vm994, %v2978
      %3048 = vst.msk [vmem:[#allocation3 + $0xd8] sm:$0xff] %vm994, %v2980
      %3049 = vst.msk [vmem:[#allocation3 + $0xe0] sm:$0xff] %vm994, %v2982
      %3050 = vst.msk [vmem:[#allocation3 + $0xe8] sm:$0xff] %vm994, %v2984
      %3051 = vst.msk [vmem:[#allocation3 + $0xf0] sm:$0xff] %vm994, %v2986
      %3052 = vst.msk [vmem:[#allocation3 + $0xf8] sm:$0xff] %vm994, %v2988
      %v3053 = vld [vmem:[%s351 + $0x1] sm:$0xff]
      %v3054 = vld [vmem:[%s351 + $0x9] sm:$0xff]
      %v3055 = vld [vmem:[%s351 + $0x19] sm:$0xff]
      %v3056 = vld [vmem:[%s351 + $0x21] sm:$0xff]
      %v3057 = vld [vmem:[%s351 + $0x31] sm:$0xff]
      %v3058 = vld [vmem:[%s351 + $0x39] sm:$0xff]
      %v3059 = vld [vmem:[%s351 + $0x49] sm:$0xff]
      %v3060 = vld [vmem:[%s351 + $0x51] sm:$0xff]
      %v3061 = vld [vmem:[%s351 + $0x61] sm:$0xff]
      %v3062 = vld [vmem:[%s351 + $0x69] sm:$0xff]
      %v3063 = vld [vmem:[%s351 + $0x79] sm:$0xff]
      %v3064 = vld [vmem:[%s351 + $0x81] sm:$0xff]
      %v3065 = vld [vmem:[%s351 + $0x91] sm:$0xff]
      %v3066 = vld [vmem:[%s351 + $0x99] sm:$0xff]
      %v3067 = vld [vmem:[%s351 + $0xa9] sm:$0xff]
      %v3068 = vld [vmem:[%s351 + $0xb1] sm:$0xff]
      %v3069 = vld [vmem:[%s351 + $0xc1] sm:$0xff]
      %v3070 = vld [vmem:[%s351 + $0xc9] sm:$0xff]
      %v3071 = vld [vmem:[%s351 + $0xd9] sm:$0xff]
      %v3072 = vld [vmem:[%s351 + $0xe1] sm:$0xff]
      %v3073 = vld [vmem:[%s351 + $0xf1] sm:$0xff]
      %v3074 = vld [vmem:[%s351 + $0xf9] sm:$0xff]
      %v3075 = vld [vmem:[%s351 + $0x109] sm:$0xff]
      %v3076 = vld [vmem:[%s351 + $0x111] sm:$0xff]
      %v3077 = vld [vmem:[%s351 + $0x121] sm:$0xff]
      %v3078 = vld [vmem:[%s351 + $0x129] sm:$0xff]
      %v3079 = vld [vmem:[%s351 + $0x139] sm:$0xff]
      %v3080 = vld [vmem:[%s351 + $0x141] sm:$0xff]
      %v3081 = vld [vmem:[%s351 + $0x151] sm:$0xff]
      %v3082 = vld [vmem:[%s351 + $0x159] sm:$0xff]
      %v3083 = vld [vmem:[%s351 + $0x169] sm:$0xff]
      %v3084 = vld [vmem:[%s351 + $0x171] sm:$0xff]
      %3117 = vrot.lane.b32.xlu0 %v3053, 16
      %v3118 = vpop.permute.xlu0 %3117
      %3119 = vrot.lane.b32.xlu0 %v3054, 16
      %v3120 = vpop.permute.xlu0 %3119
      %3121 = vrot.lane.b32.xlu0 %v3055, 16
      %v3122 = vpop.permute.xlu0 %3121
      %3123 = vrot.lane.b32.xlu0 %v3056, 16
      %v3124 = vpop.permute.xlu0 %3123
      %3125 = vrot.lane.b32.xlu0 %v3057, 16
      %v3126 = vpop.permute.xlu0 %3125
      %3127 = vrot.lane.b32.xlu0 %v3058, 16
      %v3128 = vpop.permute.xlu0 %3127
      %3129 = vrot.lane.b32.xlu0 %v3059, 16
      %v3130 = vpop.permute.xlu0 %3129
      %3131 = vrot.lane.b32.xlu0 %v3060, 16
      %v3132 = vpop.permute.xlu0 %3131
      %3133 = vrot.lane.b32.xlu0 %v3061, 16
      %v3134 = vpop.permute.xlu0 %3133
      %3135 = vrot.lane.b32.xlu0 %v3062, 16
      %v3136 = vpop.permute.xlu0 %3135
      %3137 = vrot.lane.b32.xlu0 %v3063, 16
      %v3138 = vpop.permute.xlu0 %3137
      %3139 = vrot.lane.b32.xlu0 %v3064, 16
      %v3140 = vpop.permute.xlu0 %3139
      %3141 = vrot.lane.b32.xlu0 %v3065, 16
      %v3142 = vpop.permute.xlu0 %3141
      %3143 = vrot.lane.b32.xlu0 %v3066, 16
      %v3144 = vpop.permute.xlu0 %3143
      %3145 = vrot.lane.b32.xlu0 %v3067, 16
      %v3146 = vpop.permute.xlu0 %3145
      %3147 = vrot.lane.b32.xlu0 %v3068, 16
      %v3148 = vpop.permute.xlu0 %3147
      %3149 = vrot.lane.b32.xlu0 %v3069, 16
      %v3150 = vpop.permute.xlu0 %3149
      %3151 = vrot.lane.b32.xlu0 %v3070, 16
      %v3152 = vpop.permute.xlu0 %3151
      %3153 = vrot.lane.b32.xlu0 %v3071, 16
      %v3154 = vpop.permute.xlu0 %3153
      %3155 = vrot.lane.b32.xlu0 %v3072, 16
      %v3156 = vpop.permute.xlu0 %3155
      %3157 = vrot.lane.b32.xlu0 %v3073, 16
      %v3158 = vpop.permute.xlu0 %3157
      %3159 = vrot.lane.b32.xlu0 %v3074, 16
      %v3160 = vpop.permute.xlu0 %3159
      %3161 = vrot.lane.b32.xlu0 %v3075, 16
      %v3162 = vpop.permute.xlu0 %3161
      %3163 = vrot.lane.b32.xlu0 %v3076, 16
      %v3164 = vpop.permute.xlu0 %3163
      %3165 = vrot.lane.b32.xlu0 %v3077, 16
      %v3166 = vpop.permute.xlu0 %3165
      %3167 = vrot.lane.b32.xlu0 %v3078, 16
      %v3168 = vpop.permute.xlu0 %3167
      %3169 = vrot.lane.b32.xlu0 %v3079, 16
      %v3170 = vpop.permute.xlu0 %3169
      %3171 = vrot.lane.b32.xlu0 %v3080, 16
      %v3172 = vpop.permute.xlu0 %3171
      %3173 = vrot.lane.b32.xlu0 %v3081, 16
      %v3174 = vpop.permute.xlu0 %3173
      %3175 = vrot.lane.b32.xlu0 %v3082, 16
      %v3176 = vpop.permute.xlu0 %3175
      %3177 = vrot.lane.b32.xlu0 %v3083, 16
      %v3178 = vpop.permute.xlu0 %3177
      %3179 = vrot.lane.b32.xlu0 %v3084, 16
      %v3180 = vpop.permute.xlu0 %3179
      %3213 = vst.msk [vmem:[#allocation3] sm:$0xff] %vm1187, %v3118
      %3214 = vst.msk [vmem:[#allocation3 + $0x8] sm:$0xff] %vm1187, %v3120
      %3215 = vst.msk [vmem:[#allocation3 + $0x10] sm:$0xff] %vm1187, %v3122
      %3216 = vst.msk [vmem:[#allocation3 + $0x18] sm:$0xff] %vm1187, %v3124
      %3217 = vst.msk [vmem:[#allocation3 + $0x20] sm:$0xff] %vm1187, %v3126
      %3218 = vst.msk [vmem:[#allocation3 + $0x28] sm:$0xff] %vm1187, %v3128
      %3219 = vst.msk [vmem:[#allocation3 + $0x30] sm:$0xff] %vm1187, %v3130
      %3220 = vst.msk [vmem:[#allocation3 + $0x38] sm:$0xff] %vm1187, %v3132
      %3221 = vst.msk [vmem:[#allocation3 + $0x40] sm:$0xff] %vm1187, %v3134
      %3222 = vst.msk [vmem:[#allocation3 + $0x48] sm:$0xff] %vm1187, %v3136
      %3223 = vst.msk [vmem:[#allocation3 + $0x50] sm:$0xff] %vm1187, %v3138
      %3224 = vst.msk [vmem:[#allocation3 + $0x58] sm:$0xff] %vm1187, %v3140
      %3225 = vst.msk [vmem:[#allocation3 + $0x60] sm:$0xff] %vm1187, %v3142
      %3226 = vst.msk [vmem:[#allocation3 + $0x68] sm:$0xff] %vm1187, %v3144
      %3227 = vst.msk [vmem:[#allocation3 + $0x70] sm:$0xff] %vm1187, %v3146
      %3228 = vst.msk [vmem:[#allocation3 + $0x78] sm:$0xff] %vm1187, %v3148
      %3229 = vst.msk [vmem:[#allocation3 + $0x80] sm:$0xff] %vm1187, %v3150
      %3230 = vst.msk [vmem:[#allocation3 + $0x88] sm:$0xff] %vm1187, %v3152
      %3231 = vst.msk [vmem:[#allocation3 + $0x90] sm:$0xff] %vm1187, %v3154
      %3232 = vst.msk [vmem:[#allocation3 + $0x98] sm:$0xff] %vm1187, %v3156
      %3233 = vst.msk [vmem:[#allocation3 + $0xa0] sm:$0xff] %vm1187, %v3158
      %3234 = vst.msk [vmem:[#allocation3 + $0xa8] sm:$0xff] %vm1187, %v3160
      %3235 = vst.msk [vmem:[#allocation3 + $0xb0] sm:$0xff] %vm1187, %v3162
      %3236 = vst.msk [vmem:[#allocation3 + $0xb8] sm:$0xff] %vm1187, %v3164
      %3237 = vst.msk [vmem:[#allocation3 + $0xc0] sm:$0xff] %vm1187, %v3166
      %3238 = vst.msk [vmem:[#allocation3 + $0xc8] sm:$0xff] %vm1187, %v3168
      %3239 = vst.msk [vmem:[#allocation3 + $0xd0] sm:$0xff] %vm1187, %v3170
      %3240 = vst.msk [vmem:[#allocation3 + $0xd8] sm:$0xff] %vm1187, %v3172
      %3241 = vst.msk [vmem:[#allocation3 + $0xe0] sm:$0xff] %vm1187, %v3174
      %3242 = vst.msk [vmem:[#allocation3 + $0xe8] sm:$0xff] %vm1187, %v3176
      %3243 = vst.msk [vmem:[#allocation3 + $0xf0] sm:$0xff] %vm1187, %v3178
      %3244 = vst.msk [vmem:[#allocation3 + $0xf8] sm:$0xff] %vm1187, %v3180
      %v3245 = vld [vmem:[%s351 + $0x2] sm:$0xff]
      %v3246 = vld [vmem:[%s351 + $0xa] sm:$0xff]
      %v3247 = vld [vmem:[%s351 + $0x1a] sm:$0xff]
      %v3248 = vld [vmem:[%s351 + $0x22] sm:$0xff]
      %v3249 = vld [vmem:[%s351 + $0x32] sm:$0xff]
      %v3250 = vld [vmem:[%s351 + $0x3a] sm:$0xff]
      %v3251 = vld [vmem:[%s351 + $0x4a] sm:$0xff]
      %v3252 = vld [vmem:[%s351 + $0x52] sm:$0xff]
      %v3253 = vld [vmem:[%s351 + $0x62] sm:$0xff]
      %v3254 = vld [vmem:[%s351 + $0x6a] sm:$0xff]
      %v3255 = vld [vmem:[%s351 + $0x7a] sm:$0xff]
      %v3256 = vld [vmem:[%s351 + $0x82] sm:$0xff]
      %v3257 = vld [vmem:[%s351 + $0x92] sm:$0xff]
      %v3258 = vld [vmem:[%s351 + $0x9a] sm:$0xff]
      %v3259 = vld [vmem:[%s351 + $0xaa] sm:$0xff]
      %v3260 = vld [vmem:[%s351 + $0xb2] sm:$0xff]
      %v3261 = vld [vmem:[%s351 + $0xc2] sm:$0xff]
      %v3262 = vld [vmem:[%s351 + $0xca] sm:$0xff]
      %v3263 = vld [vmem:[%s351 + $0xda] sm:$0xff]
      %v3264 = vld [vmem:[%s351 + $0xe2] sm:$0xff]
      %v3265 = vld [vmem:[%s351 + $0xf2] sm:$0xff]
      %v3266 = vld [vmem:[%s351 + $0xfa] sm:$0xff]
      %v3267 = vld [vmem:[%s351 + $0x10a] sm:$0xff]
      %v3268 = vld [vmem:[%s351 + $0x112] sm:$0xff]
      %v3269 = vld [vmem:[%s351 + $0x122] sm:$0xff]
      %v3270 = vld [vmem:[%s351 + $0x12a] sm:$0xff]
      %v3271 = vld [vmem:[%s351 + $0x13a] sm:$0xff]
      %v3272 = vld [vmem:[%s351 + $0x142] sm:$0xff]
      %v3273 = vld [vmem:[%s351 + $0x152] sm:$0xff]
      %v3274 = vld [vmem:[%s351 + $0x15a] sm:$0xff]
      %v3275 = vld [vmem:[%s351 + $0x16a] sm:$0xff]
      %v3276 = vld [vmem:[%s351 + $0x172] sm:$0xff]
      %3309 = vrot.lane.b32.xlu0 %v3245, 20
      %v3310 = vpop.permute.xlu0 %3309
      %3311 = vrot.lane.b32.xlu0 %v3246, 20
      %v3312 = vpop.permute.xlu0 %3311
      %3313 = vrot.lane.b32.xlu0 %v3247, 20
      %v3314 = vpop.permute.xlu0 %3313
      %3315 = vrot.lane.b32.xlu0 %v3248, 20
      %v3316 = vpop.permute.xlu0 %3315
      %3317 = vrot.lane.b32.xlu0 %v3249, 20
      %v3318 = vpop.permute.xlu0 %3317
      %3319 = vrot.lane.b32.xlu0 %v3250, 20
      %v3320 = vpop.permute.xlu0 %3319
      %3321 = vrot.lane.b32.xlu0 %v3251, 20
      %v3322 = vpop.permute.xlu0 %3321
      %3323 = vrot.lane.b32.xlu0 %v3252, 20
      %v3324 = vpop.permute.xlu0 %3323
      %3325 = vrot.lane.b32.xlu0 %v3253, 20
      %v3326 = vpop.permute.xlu0 %3325
      %3327 = vrot.lane.b32.xlu0 %v3254, 20
      %v3328 = vpop.permute.xlu0 %3327
      %3329 = vrot.lane.b32.xlu0 %v3255, 20
      %v3330 = vpop.permute.xlu0 %3329
      %3331 = vrot.lane.b32.xlu0 %v3256, 20
      %v3332 = vpop.permute.xlu0 %3331
      %3333 = vrot.lane.b32.xlu0 %v3257, 20
      %v3334 = vpop.permute.xlu0 %3333
      %3335 = vrot.lane.b32.xlu0 %v3258, 20
      %v3336 = vpop.permute.xlu0 %3335
      %3337 = vrot.lane.b32.xlu0 %v3259, 20
      %v3338 = vpop.permute.xlu0 %3337
      %3339 = vrot.lane.b32.xlu0 %v3260, 20
      %v3340 = vpop.permute.xlu0 %3339
      %3341 = vrot.lane.b32.xlu0 %v3261, 20
      %v3342 = vpop.permute.xlu0 %3341
      %3343 = vrot.lane.b32.xlu0 %v3262, 20
      %v3344 = vpop.permute.xlu0 %3343
      %3345 = vrot.lane.b32.xlu0 %v3263, 20
      %v3346 = vpop.permute.xlu0 %3345
      %3347 = vrot.lane.b32.xlu0 %v3264, 20
      %v3348 = vpop.permute.xlu0 %3347
      %3349 = vrot.lane.b32.xlu0 %v3265, 20
      %v3350 = vpop.permute.xlu0 %3349
      %3351 = vrot.lane.b32.xlu0 %v3266, 20
      %v3352 = vpop.permute.xlu0 %3351
      %3353 = vrot.lane.b32.xlu0 %v3267, 20
      %v3354 = vpop.permute.xlu0 %3353
      %3355 = vrot.lane.b32.xlu0 %v3268, 20
      %v3356 = vpop.permute.xlu0 %3355
      %3357 = vrot.lane.b32.xlu0 %v3269, 20
      %v3358 = vpop.permute.xlu0 %3357
      %3359 = vrot.lane.b32.xlu0 %v3270, 20
      %v3360 = vpop.permute.xlu0 %3359
      %3361 = vrot.lane.b32.xlu0 %v3271, 20
      %v3362 = vpop.permute.xlu0 %3361
      %3363 = vrot.lane.b32.xlu0 %v3272, 20
      %v3364 = vpop.permute.xlu0 %3363
      %3365 = vrot.lane.b32.xlu0 %v3273, 20
      %v3366 = vpop.permute.xlu0 %3365
      %3367 = vrot.lane.b32.xlu0 %v3274, 20
      %v3368 = vpop.permute.xlu0 %3367
      %3369 = vrot.lane.b32.xlu0 %v3275, 20
      %v3370 = vpop.permute.xlu0 %3369
      %3371 = vrot.lane.b32.xlu0 %v3276, 20
      %v3372 = vpop.permute.xlu0 %3371
      %3405 = vst.msk [vmem:[#allocation3] sm:$0xff] %vm1380, %v3310
      %3406 = vst.msk [vmem:[#allocation3 + $0x8] sm:$0xff] %vm1380, %v3312
      %3407 = vst.msk [vmem:[#allocation3 + $0x10] sm:$0xff] %vm1380, %v3314
      %3408 = vst.msk [vmem:[#allocation3 + $0x18] sm:$0xff] %vm1380, %v3316
      %3409 = vst.msk [vmem:[#allocation3 + $0x20] sm:$0xff] %vm1380, %v3318
      %3410 = vst.msk [vmem:[#allocation3 + $0x28] sm:$0xff] %vm1380, %v3320
      %3411 = vst.msk [vmem:[#allocation3 + $0x30] sm:$0xff] %vm1380, %v3322
      %3412 = vst.msk [vmem:[#allocation3 + $0x38] sm:$0xff] %vm1380, %v3324
      %3413 = vst.msk [vmem:[#allocation3 + $0x40] sm:$0xff] %vm1380, %v3326
      %3414 = vst.msk [vmem:[#allocation3 + $0x48] sm:$0xff] %vm1380, %v3328
      %3415 = vst.msk [vmem:[#allocation3 + $0x50] sm:$0xff] %vm1380, %v3330
      %3416 = vst.msk [vmem:[#allocation3 + $0x58] sm:$0xff] %vm1380, %v3332
      %3417 = vst.msk [vmem:[#allocation3 + $0x60] sm:$0xff] %vm1380, %v3334
      %3418 = vst.msk [vmem:[#allocation3 + $0x68] sm:$0xff] %vm1380, %v3336
      %3419 = vst.msk [vmem:[#allocation3 + $0x70] sm:$0xff] %vm1380, %v3338
      %3420 = vst.msk [vmem:[#allocation3 + $0x78] sm:$0xff] %vm1380, %v3340
      %3421 = vst.msk [vmem:[#allocation3 + $0x80] sm:$0xff] %vm1380, %v3342
      %3422 = vst.msk [vmem:[#allocation3 + $0x88] sm:$0xff] %vm1380, %v3344
      %3423 = vst.msk [vmem:[#allocation3 + $0x90] sm:$0xff] %vm1380, %v3346
      %3424 = vst.msk [vmem:[#allocation3 + $0x98] sm:$0xff] %vm1380, %v3348
      %3425 = vst.msk [vmem:[#allocation3 + $0xa0] sm:$0xff] %vm1380, %v3350
      %3426 = vst.msk [vmem:[#allocation3 + $0xa8] sm:$0xff] %vm1380, %v3352
      %3427 = vst.msk [vmem:[#allocation3 + $0xb0] sm:$0xff] %vm1380, %v3354
      %3428 = vst.msk [vmem:[#allocation3 + $0xb8] sm:$0xff] %vm1380, %v3356
      %3429 = vst.msk [vmem:[#allocation3 + $0xc0] sm:$0xff] %vm1380, %v3358
      %3430 = vst.msk [vmem:[#allocation3 + $0xc8] sm:$0xff] %vm1380, %v3360
      %3431 = vst.msk [vmem:[#allocation3 + $0xd0] sm:$0xff] %vm1380, %v3362
      %3432 = vst.msk [vmem:[#allocation3 + $0xd8] sm:$0xff] %vm1380, %v3364
      %3433 = vst.msk [vmem:[#allocation3 + $0xe0] sm:$0xff] %vm1380, %v3366
      %3434 = vst.msk [vmem:[#allocation3 + $0xe8] sm:$0xff] %vm1380, %v3368
      %3435 = vst.msk [vmem:[#allocation3 + $0xf0] sm:$0xff] %vm1380, %v3370
      %3436 = vst.msk [vmem:[#allocation3 + $0xf8] sm:$0xff] %vm1380, %v3372
      %v3437 = vld [vmem:[%s1413] sm:$0xff]
      %v3438 = vld [vmem:[%s1413 + $0x8] sm:$0xff]
      %v3439 = vld [vmem:[%s1413 + $0x18] sm:$0xff]
      %v3440 = vld [vmem:[%s1413 + $0x20] sm:$0xff]
      %v3441 = vld [vmem:[%s1413 + $0x30] sm:$0xff]
      %v3442 = vld [vmem:[%s1413 + $0x38] sm:$0xff]
      %v3443 = vld [vmem:[%s1413 + $0x48] sm:$0xff]
      %v3444 = vld [vmem:[%s1413 + $0x50] sm:$0xff]
      %v3445 = vld [vmem:[%s1413 + $0x60] sm:$0xff]
      %v3446 = vld [vmem:[%s1413 + $0x68] sm:$0xff]
      %v3447 = vld [vmem:[%s1413 + $0x78] sm:$0xff]
      %v3448 = vld [vmem:[%s1413 + $0x80] sm:$0xff]
      %v3449 = vld [vmem:[%s1413 + $0x90] sm:$0xff]
      %v3450 = vld [vmem:[%s1413 + $0x98] sm:$0xff]
      %v3451 = vld [vmem:[%s1413 + $0xa8] sm:$0xff]
      %v3452 = vld [vmem:[%s1413 + $0xb0] sm:$0xff]
      %v3453 = vld [vmem:[%s1413 + $0xc0] sm:$0xff]
      %v3454 = vld [vmem:[%s1413 + $0xc8] sm:$0xff]
      %v3455 = vld [vmem:[%s1413 + $0xd8] sm:$0xff]
      %v3456 = vld [vmem:[%s1413 + $0xe0] sm:$0xff]
      %v3457 = vld [vmem:[%s1413 + $0xf0] sm:$0xff]
      %v3458 = vld [vmem:[%s1413 + $0xf8] sm:$0xff]
      %v3459 = vld [vmem:[%s1413 + $0x108] sm:$0xff]
      %v3460 = vld [vmem:[%s1413 + $0x110] sm:$0xff]
      %v3461 = vld [vmem:[%s1413 + $0x120] sm:$0xff]
      %v3462 = vld [vmem:[%s1413 + $0x128] sm:$0xff]
      %v3463 = vld [vmem:[%s1413 + $0x138] sm:$0xff]
      %v3464 = vld [vmem:[%s1413 + $0x140] sm:$0xff]
      %v3465 = vld [vmem:[%s1413 + $0x150] sm:$0xff]
      %v3466 = vld [vmem:[%s1413 + $0x158] sm:$0xff]
      %v3467 = vld [vmem:[%s1413 + $0x168] sm:$0xff]
      %v3468 = vld [vmem:[%s1413 + $0x170] sm:$0xff]
      %3501 = vrot.lane.b32.xlu0 %v3437, 24
      %v3502 = vpop.permute.xlu0 %3501
      %3503 = vrot.lane.b32.xlu0 %v3438, 24
      %v3504 = vpop.permute.xlu0 %3503
      %3505 = vrot.lane.b32.xlu0 %v3439, 24
      %v3506 = vpop.permute.xlu0 %3505
      %3507 = vrot.lane.b32.xlu0 %v3440, 24
      %v3508 = vpop.permute.xlu0 %3507
      %3509 = vrot.lane.b32.xlu0 %v3441, 24
      %v3510 = vpop.permute.xlu0 %3509
      %3511 = vrot.lane.b32.xlu0 %v3442, 24
      %v3512 = vpop.permute.xlu0 %3511
      %3513 = vrot.lane.b32.xlu0 %v3443, 24
      %v3514 = vpop.permute.xlu0 %3513
      %3515 = vrot.lane.b32.xlu0 %v3444, 24
      %v3516 = vpop.permute.xlu0 %3515
      %3517 = vrot.lane.b32.xlu0 %v3445, 24
      %v3518 = vpop.permute.xlu0 %3517
      %3519 = vrot.lane.b32.xlu0 %v3446, 24
      %v3520 = vpop.permute.xlu0 %3519
      %3521 = vrot.lane.b32.xlu0 %v3447, 24
      %v3522 = vpop.permute.xlu0 %3521
      %3523 = vrot.lane.b32.xlu0 %v3448, 24
      %v3524 = vpop.permute.xlu0 %3523
      %3525 = vrot.lane.b32.xlu0 %v3449, 24
      %v3526 = vpop.permute.xlu0 %3525
      %3527 = vrot.lane.b32.xlu0 %v3450, 24
      %v3528 = vpop.permute.xlu0 %3527
      %3529 = vrot.lane.b32.xlu0 %v3451, 24
      %v3530 = vpop.permute.xlu0 %3529
      %3531 = vrot.lane.b32.xlu0 %v3452, 24
      %v3532 = vpop.permute.xlu0 %3531
      %3533 = vrot.lane.b32.xlu0 %v3453, 24
      %v3534 = vpop.permute.xlu0 %3533
      %3535 = vrot.lane.b32.xlu0 %v3454, 24
      %v3536 = vpop.permute.xlu0 %3535
      %3537 = vrot.lane.b32.xlu0 %v3455, 24
      %v3538 = vpop.permute.xlu0 %3537
      %3539 = vrot.lane.b32.xlu0 %v3456, 24
      %v3540 = vpop.permute.xlu0 %3539
      %3541 = vrot.lane.b32.xlu0 %v3457, 24
      %v3542 = vpop.permute.xlu0 %3541
      %3543 = vrot.lane.b32.xlu0 %v3458, 24
      %v3544 = vpop.permute.xlu0 %3543
      %3545 = vrot.lane.b32.xlu0 %v3459, 24
      %v3546 = vpop.permute.xlu0 %3545
      %3547 = vrot.lane.b32.xlu0 %v3460, 24
      %v3548 = vpop.permute.xlu0 %3547
      %3549 = vrot.lane.b32.xlu0 %v3461, 24
      %v3550 = vpop.permute.xlu0 %3549
      %3551 = vrot.lane.b32.xlu0 %v3462, 24
      %v3552 = vpop.permute.xlu0 %3551
      %3553 = vrot.lane.b32.xlu0 %v3463, 24
      %v3554 = vpop.permute.xlu0 %3553
      %3555 = vrot.lane.b32.xlu0 %v3464, 24
      %v3556 = vpop.permute.xlu0 %3555
      %3557 = vrot.lane.b32.xlu0 %v3465, 24
      %v3558 = vpop.permute.xlu0 %3557
      %3559 = vrot.lane.b32.xlu0 %v3466, 24
      %v3560 = vpop.permute.xlu0 %3559
      %3561 = vrot.lane.b32.xlu0 %v3467, 24
      %v3562 = vpop.permute.xlu0 %3561
      %3563 = vrot.lane.b32.xlu0 %v3468, 24
      %v3564 = vpop.permute.xlu0 %3563
      %3597 = vst.msk [vmem:[#allocation3] sm:$0xff] %vm1574, %v3502
      %3598 = vst.msk [vmem:[#allocation3 + $0x8] sm:$0xff] %vm1574, %v3504
      %3599 = vst.msk [vmem:[#allocation3 + $0x10] sm:$0xff] %vm1574, %v3506
      %3600 = vst.msk [vmem:[#allocation3 + $0x18] sm:$0xff] %vm1574, %v3508
      %3601 = vst.msk [vmem:[#allocation3 + $0x20] sm:$0xff] %vm1574, %v3510
      %3602 = vst.msk [vmem:[#allocation3 + $0x28] sm:$0xff] %vm1574, %v3512
      %3603 = vst.msk [vmem:[#allocation3 + $0x30] sm:$0xff] %vm1574, %v3514
      %3604 = vst.msk [vmem:[#allocation3 + $0x38] sm:$0xff] %vm1574, %v3516
      %3605 = vst.msk [vmem:[#allocation3 + $0x40] sm:$0xff] %vm1574, %v3518
      %3606 = vst.msk [vmem:[#allocation3 + $0x48] sm:$0xff] %vm1574, %v3520
      %3607 = vst.msk [vmem:[#allocation3 + $0x50] sm:$0xff] %vm1574, %v3522
      %3608 = vst.msk [vmem:[#allocation3 + $0x58] sm:$0xff] %vm1574, %v3524
      %3609 = vst.msk [vmem:[#allocation3 + $0x60] sm:$0xff] %vm1574, %v3526
      %3610 = vst.msk [vmem:[#allocation3 + $0x68] sm:$0xff] %vm1574, %v3528
      %3611 = vst.msk [vmem:[#allocation3 + $0x70] sm:$0xff] %vm1574, %v3530
      %3612 = vst.msk [vmem:[#allocation3 + $0x78] sm:$0xff] %vm1574, %v3532
      %3613 = vst.msk [vmem:[#allocation3 + $0x80] sm:$0xff] %vm1574, %v3534
      %3614 = vst.msk [vmem:[#allocation3 + $0x88] sm:$0xff] %vm1574, %v3536
      %3615 = vst.msk [vmem:[#allocation3 + $0x90] sm:$0xff] %vm1574, %v3538
      %3616 = vst.msk [vmem:[#allocation3 + $0x98] sm:$0xff] %vm1574, %v3540
      %3617 = vst.msk [vmem:[#allocation3 + $0xa0] sm:$0xff] %vm1574, %v3542
      %3618 = vst.msk [vmem:[#allocation3 + $0xa8] sm:$0xff] %vm1574, %v3544
      %3619 = vst.msk [vmem:[#allocation3 + $0xb0] sm:$0xff] %vm1574, %v3546
      %3620 = vst.msk [vmem:[#allocation3 + $0xb8] sm:$0xff] %vm1574, %v3548
      %3621 = vst.msk [vmem:[#allocation3 + $0xc0] sm:$0xff] %vm1574, %v3550
      %3622 = vst.msk [vmem:[#allocation3 + $0xc8] sm:$0xff] %vm1574, %v3552
      %3623 = vst.msk [vmem:[#allocation3 + $0xd0] sm:$0xff] %vm1574, %v3554
      %3624 = vst.msk [vmem:[#allocation3 + $0xd8] sm:$0xff] %vm1574, %v3556
      %3625 = vst.msk [vmem:[#allocation3 + $0xe0] sm:$0xff] %vm1574, %v3558
      %3626 = vst.msk [vmem:[#allocation3 + $0xe8] sm:$0xff] %vm1574, %v3560
      %3627 = vst.msk [vmem:[#allocation3 + $0xf0] sm:$0xff] %vm1574, %v3562
      %3628 = vst.msk [vmem:[#allocation3 + $0xf8] sm:$0xff] %vm1574, %v3564
      %v3629 = vld [vmem:[%s1413 + $0x1] sm:$0xff]
      %v3630 = vld [vmem:[%s1413 + $0x9] sm:$0xff]
      %v3631 = vld [vmem:[%s1413 + $0x19] sm:$0xff]
      %v3632 = vld [vmem:[%s1413 + $0x21] sm:$0xff]
      %v3633 = vld [vmem:[%s1413 + $0x31] sm:$0xff]
      %v3634 = vld [vmem:[%s1413 + $0x39] sm:$0xff]
      %v3635 = vld [vmem:[%s1413 + $0x49] sm:$0xff]
      %v3636 = vld [vmem:[%s1413 + $0x51] sm:$0xff]
      %v3637 = vld [vmem:[%s1413 + $0x61] sm:$0xff]
      %v3638 = vld [vmem:[%s1413 + $0x69] sm:$0xff]
      %v3639 = vld [vmem:[%s1413 + $0x79] sm:$0xff]
      %v3640 = vld [vmem:[%s1413 + $0x81] sm:$0xff]
      %v3641 = vld [vmem:[%s1413 + $0x91] sm:$0xff]
      %v3642 = vld [vmem:[%s1413 + $0x99] sm:$0xff]
      %v3643 = vld [vmem:[%s1413 + $0xa9] sm:$0xff]
      %v3644 = vld [vmem:[%s1413 + $0xb1] sm:$0xff]
      %v3645 = vld [vmem:[%s1413 + $0xc1] sm:$0xff]
      %v3646 = vld [vmem:[%s1413 + $0xc9] sm:$0xff]
      %v3647 = vld [vmem:[%s1413 + $0xd9] sm:$0xff]
      %v3648 = vld [vmem:[%s1413 + $0xe1] sm:$0xff]
      %v3649 = vld [vmem:[%s1413 + $0xf1] sm:$0xff]
      %v3650 = vld [vmem:[%s1413 + $0xf9] sm:$0xff]
      %v3651 = vld [vmem:[%s1413 + $0x109] sm:$0xff]
      %v3652 = vld [vmem:[%s1413 + $0x111] sm:$0xff]
      %v3653 = vld [vmem:[%s1413 + $0x121] sm:$0xff]
      %v3654 = vld [vmem:[%s1413 + $0x129] sm:$0xff]
      %v3655 = vld [vmem:[%s1413 + $0x139] sm:$0xff]
      %v3656 = vld [vmem:[%s1413 + $0x141] sm:$0xff]
      %v3657 = vld [vmem:[%s1413 + $0x151] sm:$0xff]
      %v3658 = vld [vmem:[%s1413 + $0x159] sm:$0xff]
      %v3659 = vld [vmem:[%s1413 + $0x169] sm:$0xff]
      %v3660 = vld [vmem:[%s1413 + $0x171] sm:$0xff]
      %3693 = vrot.lane.b32.xlu0 %v3629, 28
      %v3694 = vpop.permute.xlu0 %3693
      %3695 = vrot.lane.b32.xlu0 %v3630, 28
      %v3696 = vpop.permute.xlu0 %3695
      %3697 = vrot.lane.b32.xlu0 %v3631, 28
      %v3698 = vpop.permute.xlu0 %3697
      %3699 = vrot.lane.b32.xlu0 %v3632, 28
      %v3700 = vpop.permute.xlu0 %3699
      %3701 = vrot.lane.b32.xlu0 %v3633, 28
      %v3702 = vpop.permute.xlu0 %3701
      %3703 = vrot.lane.b32.xlu0 %v3634, 28
      %v3704 = vpop.permute.xlu0 %3703
      %3705 = vrot.lane.b32.xlu0 %v3635, 28
      %v3706 = vpop.permute.xlu0 %3705
      %3707 = vrot.lane.b32.xlu0 %v3636, 28
      %v3708 = vpop.permute.xlu0 %3707
      %3709 = vrot.lane.b32.xlu0 %v3637, 28
      %v3710 = vpop.permute.xlu0 %3709
      %3711 = vrot.lane.b32.xlu0 %v3638, 28
      %v3712 = vpop.permute.xlu0 %3711
      %3713 = vrot.lane.b32.xlu0 %v3639, 28
      %v3714 = vpop.permute.xlu0 %3713
      %3715 = vrot.lane.b32.xlu0 %v3640, 28
      %v3716 = vpop.permute.xlu0 %3715
      %3717 = vrot.lane.b32.xlu0 %v3641, 28
      %v3718 = vpop.permute.xlu0 %3717
      %3719 = vrot.lane.b32.xlu0 %v3642, 28
      %v3720 = vpop.permute.xlu0 %3719
      %3721 = vrot.lane.b32.xlu0 %v3643, 28
      %v3722 = vpop.permute.xlu0 %3721
      %3723 = vrot.lane.b32.xlu0 %v3644, 28
      %v3724 = vpop.permute.xlu0 %3723
      %3725 = vrot.lane.b32.xlu0 %v3645, 28
      %v3726 = vpop.permute.xlu0 %3725
      %3727 = vrot.lane.b32.xlu0 %v3646, 28
      %v3728 = vpop.permute.xlu0 %3727
      %3729 = vrot.lane.b32.xlu0 %v3647, 28
      %v3730 = vpop.permute.xlu0 %3729
      %3731 = vrot.lane.b32.xlu0 %v3648, 28
      %v3732 = vpop.permute.xlu0 %3731
      %3733 = vrot.lane.b32.xlu0 %v3649, 28
      %v3734 = vpop.permute.xlu0 %3733
      %3735 = vrot.lane.b32.xlu0 %v3650, 28
      %v3736 = vpop.permute.xlu0 %3735
      %3737 = vrot.lane.b32.xlu0 %v3651, 28
      %v3738 = vpop.permute.xlu0 %3737
      %3739 = vrot.lane.b32.xlu0 %v3652, 28
      %v3740 = vpop.permute.xlu0 %3739
      %3741 = vrot.lane.b32.xlu0 %v3653, 28
      %v3742 = vpop.permute.xlu0 %3741
      %3743 = vrot.lane.b32.xlu0 %v3654, 28
      %v3744 = vpop.permute.xlu0 %3743
      %3745 = vrot.lane.b32.xlu0 %v3655, 28
      %v3746 = vpop.permute.xlu0 %3745
      %3747 = vrot.lane.b32.xlu0 %v3656, 28
      %v3748 = vpop.permute.xlu0 %3747
      %3749 = vrot.lane.b32.xlu0 %v3657, 28
      %v3750 = vpop.permute.xlu0 %3749
      %3751 = vrot.lane.b32.xlu0 %v3658, 28
      %v3752 = vpop.permute.xlu0 %3751
      %3753 = vrot.lane.b32.xlu0 %v3659, 28
      %v3754 = vpop.permute.xlu0 %3753
      %3755 = vrot.lane.b32.xlu0 %v3660, 28
      %v3756 = vpop.permute.xlu0 %3755
      %3789 = vst.msk [vmem:[#allocation3] sm:$0xff] %vm1767, %v3694
      %3790 = vst.msk [vmem:[#allocation3 + $0x8] sm:$0xff] %vm1767, %v3696
      %3791 = vst.msk [vmem:[#allocation3 + $0x10] sm:$0xff] %vm1767, %v3698
      %3792 = vst.msk [vmem:[#allocation3 + $0x18] sm:$0xff] %vm1767, %v3700
      %3793 = vst.msk [vmem:[#allocation3 + $0x20] sm:$0xff] %vm1767, %v3702
      %3794 = vst.msk [vmem:[#allocation3 + $0x28] sm:$0xff] %vm1767, %v3704
      %3795 = vst.msk [vmem:[#allocation3 + $0x30] sm:$0xff] %vm1767, %v3706
      %3796 = vst.msk [vmem:[#allocation3 + $0x38] sm:$0xff] %vm1767, %v3708
      %3797 = vst.msk [vmem:[#allocation3 + $0x40] sm:$0xff] %vm1767, %v3710
      %3798 = vst.msk [vmem:[#allocation3 + $0x48] sm:$0xff] %vm1767, %v3712
      %3799 = vst.msk [vmem:[#allocation3 + $0x50] sm:$0xff] %vm1767, %v3714
      %3800 = vst.msk [vmem:[#allocation3 + $0x58] sm:$0xff] %vm1767, %v3716
      %3801 = vst.msk [vmem:[#allocation3 + $0x60] sm:$0xff] %vm1767, %v3718
      %3802 = vst.msk [vmem:[#allocation3 + $0x68] sm:$0xff] %vm1767, %v3720
      %3803 = vst.msk [vmem:[#allocation3 + $0x70] sm:$0xff] %vm1767, %v3722
      %3804 = vst.msk [vmem:[#allocation3 + $0x78] sm:$0xff] %vm1767, %v3724
      %3805 = vst.msk [vmem:[#allocation3 + $0x80] sm:$0xff] %vm1767, %v3726
      %3806 = vst.msk [vmem:[#allocation3 + $0x88] sm:$0xff] %vm1767, %v3728
      %3807 = vst.msk [vmem:[#allocation3 + $0x90] sm:$0xff] %vm1767, %v3730
      %3808 = vst.msk [vmem:[#allocation3 + $0x98] sm:$0xff] %vm1767, %v3732
      %3809 = vst.msk [vmem:[#allocation3 + $0xa0] sm:$0xff] %vm1767, %v3734
      %3810 = vst.msk [vmem:[#allocation3 + $0xa8] sm:$0xff] %vm1767, %v3736
      %3811 = vst.msk [vmem:[#allocation3 + $0xb0] sm:$0xff] %vm1767, %v3738
      %3812 = vst.msk [vmem:[#allocation3 + $0xb8] sm:$0xff] %vm1767, %v3740
      %3813 = vst.msk [vmem:[#allocation3 + $0xc0] sm:$0xff] %vm1767, %v3742
      %3814 = vst.msk [vmem:[#allocation3 + $0xc8] sm:$0xff] %vm1767, %v3744
      %3815 = vst.msk [vmem:[#allocation3 + $0xd0] sm:$0xff] %vm1767, %v3746
      %3816 = vst.msk [vmem:[#allocation3 + $0xd8] sm:$0xff] %vm1767, %v3748
      %3817 = vst.msk [vmem:[#allocation3 + $0xe0] sm:$0xff] %vm1767, %v3750
      %3818 = vst.msk [vmem:[#allocation3 + $0xe8] sm:$0xff] %vm1767, %v3752
      %3819 = vst.msk [vmem:[#allocation3 + $0xf0] sm:$0xff] %vm1767, %v3754
      %3820 = vst.msk [vmem:[#allocation3 + $0xf8] sm:$0xff] %vm1767, %v3756
      %v3821 = vld [vmem:[%s1413 + $0x2] sm:$0xff]
      %v3822 = vld [vmem:[%s1413 + $0xa] sm:$0xff]
      %v3823 = vld [vmem:[%s1413 + $0x1a] sm:$0xff]
      %v3824 = vld [vmem:[%s1413 + $0x22] sm:$0xff]
      %v3825 = vld [vmem:[%s1413 + $0x32] sm:$0xff]
      %v3826 = vld [vmem:[%s1413 + $0x3a] sm:$0xff]
      %v3827 = vld [vmem:[%s1413 + $0x4a] sm:$0xff]
      %v3828 = vld [vmem:[%s1413 + $0x52] sm:$0xff]
      %v3829 = vld [vmem:[%s1413 + $0x62] sm:$0xff]
      %v3830 = vld [vmem:[%s1413 + $0x6a] sm:$0xff]
      %v3831 = vld [vmem:[%s1413 + $0x7a] sm:$0xff]
      %v3832 = vld [vmem:[%s1413 + $0x82] sm:$0xff]
      %v3833 = vld [vmem:[%s1413 + $0x92] sm:$0xff]
      %v3834 = vld [vmem:[%s1413 + $0x9a] sm:$0xff]
      %v3835 = vld [vmem:[%s1413 + $0xaa] sm:$0xff]
      %v3836 = vld [vmem:[%s1413 + $0xb2] sm:$0xff]
      %v3837 = vld [vmem:[%s1413 + $0xc2] sm:$0xff]
      %v3838 = vld [vmem:[%s1413 + $0xca] sm:$0xff]
      %v3839 = vld [vmem:[%s1413 + $0xda] sm:$0xff]
      %v3840 = vld [vmem:[%s1413 + $0xe2] sm:$0xff]
      %v3841 = vld [vmem:[%s1413 + $0xf2] sm:$0xff]
      %v3842 = vld [vmem:[%s1413 + $0xfa] sm:$0xff]
      %v3843 = vld [vmem:[%s1413 + $0x10a] sm:$0xff]
      %v3844 = vld [vmem:[%s1413 + $0x112] sm:$0xff]
      %v3845 = vld [vmem:[%s1413 + $0x122] sm:$0xff]
      %v3846 = vld [vmem:[%s1413 + $0x12a] sm:$0xff]
      %v3847 = vld [vmem:[%s1413 + $0x13a] sm:$0xff]
      %v3848 = vld [vmem:[%s1413 + $0x142] sm:$0xff]
      %v3849 = vld [vmem:[%s1413 + $0x152] sm:$0xff]
      %v3850 = vld [vmem:[%s1413 + $0x15a] sm:$0xff]
      %v3851 = vld [vmem:[%s1413 + $0x16a] sm:$0xff]
      %v3852 = vld [vmem:[%s1413 + $0x172] sm:$0xff]
      %3885 = vrot.lane.b32.xlu0 %v3821, 32
      %v3886 = vpop.permute.xlu0 %3885
      %3887 = vrot.lane.b32.xlu0 %v3822, 32
      %v3888 = vpop.permute.xlu0 %3887
      %3889 = vrot.lane.b32.xlu0 %v3823, 32
      %v3890 = vpop.permute.xlu0 %3889
      %3891 = vrot.lane.b32.xlu0 %v3824, 32
      %v3892 = vpop.permute.xlu0 %3891
      %3893 = vrot.lane.b32.xlu0 %v3825, 32
      %v3894 = vpop.permute.xlu0 %3893
      %3895 = vrot.lane.b32.xlu0 %v3826, 32
      %v3896 = vpop.permute.xlu0 %3895
      %3897 = vrot.lane.b32.xlu0 %v3827, 32
      %v3898 = vpop.permute.xlu0 %3897
      %3899 = vrot.lane.b32.xlu0 %v3828, 32
      %v3900 = vpop.permute.xlu0 %3899
      %3901 = vrot.lane.b32.xlu0 %v3829, 32
      %v3902 = vpop.permute.xlu0 %3901
      %3903 = vrot.lane.b32.xlu0 %v3830, 32
      %v3904 = vpop.permute.xlu0 %3903
      %3905 = vrot.lane.b32.xlu0 %v3831, 32
      %v3906 = vpop.permute.xlu0 %3905
      %3907 = vrot.lane.b32.xlu0 %v3832, 32
      %v3908 = vpop.permute.xlu0 %3907
      %3909 = vrot.lane.b32.xlu0 %v3833, 32
      %v3910 = vpop.permute.xlu0 %3909
      %3911 = vrot.lane.b32.xlu0 %v3834, 32
      %v3912 = vpop.permute.xlu0 %3911
      %3913 = vrot.lane.b32.xlu0 %v3835, 32
      %v3914 = vpop.permute.xlu0 %3913
      %3915 = vrot.lane.b32.xlu0 %v3836, 32
      %v3916 = vpop.permute.xlu0 %3915
      %3917 = vrot.lane.b32.xlu0 %v3837, 32
      %v3918 = vpop.permute.xlu0 %3917
      %3919 = vrot.lane.b32.xlu0 %v3838, 32
      %v3920 = vpop.permute.xlu0 %3919
      %3921 = vrot.lane.b32.xlu0 %v3839, 32
      %v3922 = vpop.permute.xlu0 %3921
      %3923 = vrot.lane.b32.xlu0 %v3840, 32
      %v3924 = vpop.permute.xlu0 %3923
      %3925 = vrot.lane.b32.xlu0 %v3841, 32
      %v3926 = vpop.permute.xlu0 %3925
      %3927 = vrot.lane.b32.xlu0 %v3842, 32
      %v3928 = vpop.permute.xlu0 %3927
      %3929 = vrot.lane.b32.xlu0 %v3843, 32
      %v3930 = vpop.permute.xlu0 %3929
      %3931 = vrot.lane.b32.xlu0 %v3844, 32
      %v3932 = vpop.permute.xlu0 %3931
      %3933 = vrot.lane.b32.xlu0 %v3845, 32
      %v3934 = vpop.permute.xlu0 %3933
      %3935 = vrot.lane.b32.xlu0 %v3846, 32
      %v3936 = vpop.permute.xlu0 %3935
      %3937 = vrot.lane.b32.xlu0 %v3847, 32
      %v3938 = vpop.permute.xlu0 %3937
      %3939 = vrot.lane.b32.xlu0 %v3848, 32
      %v3940 = vpop.permute.xlu0 %3939
      %3941 = vrot.lane.b32.xlu0 %v3849, 32
      %v3942 = vpop.permute.xlu0 %3941
      %3943 = vrot.lane.b32.xlu0 %v3850, 32
      %v3944 = vpop.permute.xlu0 %3943
      %3945 = vrot.lane.b32.xlu0 %v3851, 32
      %v3946 = vpop.permute.xlu0 %3945
      %3947 = vrot.lane.b32.xlu0 %v3852, 32
      %v3948 = vpop.permute.xlu0 %3947
      %3981 = vst.msk [vmem:[#allocation3] sm:$0xff] %vm1960, %v3886
      %3982 = vst.msk [vmem:[#allocation3 + $0x8] sm:$0xff] %vm1960, %v3888
      %3983 = vst.msk [vmem:[#allocation3 + $0x10] sm:$0xff] %vm1960, %v3890
      %3984 = vst.msk [vmem:[#allocation3 + $0x18] sm:$0xff] %vm1960, %v3892
      %3985 = vst.msk [vmem:[#allocation3 + $0x20] sm:$0xff] %vm1960, %v3894
      %3986 = vst.msk [vmem:[#allocation3 + $0x28] sm:$0xff] %vm1960, %v3896
      %3987 = vst.msk [vmem:[#allocation3 + $0x30] sm:$0xff] %vm1960, %v3898
      %3988 = vst.msk [vmem:[#allocation3 + $0x38] sm:$0xff] %vm1960, %v3900
      %3989 = vst.msk [vmem:[#allocation3 + $0x40] sm:$0xff] %vm1960, %v3902
      %3990 = vst.msk [vmem:[#allocation3 + $0x48] sm:$0xff] %vm1960, %v3904
      %3991 = vst.msk [vmem:[#allocation3 + $0x50] sm:$0xff] %vm1960, %v3906
      %3992 = vst.msk [vmem:[#allocation3 + $0x58] sm:$0xff] %vm1960, %v3908
      %3993 = vst.msk [vmem:[#allocation3 + $0x60] sm:$0xff] %vm1960, %v3910
      %3994 = vst.msk [vmem:[#allocation3 + $0x68] sm:$0xff] %vm1960, %v3912
      %3995 = vst.msk [vmem:[#allocation3 + $0x70] sm:$0xff] %vm1960, %v3914
      %3996 = vst.msk [vmem:[#allocation3 + $0x78] sm:$0xff] %vm1960, %v3916
      %3997 = vst.msk [vmem:[#allocation3 + $0x80] sm:$0xff] %vm1960, %v3918
      %3998 = vst.msk [vmem:[#allocation3 + $0x88] sm:$0xff] %vm1960, %v3920
      %3999 = vst.msk [vmem:[#allocation3 + $0x90] sm:$0xff] %vm1960, %v3922
      %4000 = vst.msk [vmem:[#allocation3 + $0x98] sm:$0xff] %vm1960, %v3924
      %4001 = vst.msk [vmem:[#allocation3 + $0xa0] sm:$0xff] %vm1960, %v3926
      %4002 = vst.msk [vmem:[#allocation3 + $0xa8] sm:$0xff] %vm1960, %v3928
      %4003 = vst.msk [vmem:[#allocation3 + $0xb0] sm:$0xff] %vm1960, %v3930
      %4004 = vst.msk [vmem:[#allocation3 + $0xb8] sm:$0xff] %vm1960, %v3932
      %4005 = vst.msk [vmem:[#allocation3 + $0xc0] sm:$0xff] %vm1960, %v3934
      %4006 = vst.msk [vmem:[#allocation3 + $0xc8] sm:$0xff] %vm1960, %v3936
      %4007 = vst.msk [vmem:[#allocation3 + $0xd0] sm:$0xff] %vm1960, %v3938
      %4008 = vst.msk [vmem:[#allocation3 + $0xd8] sm:$0xff] %vm1960, %v3940
      %4009 = vst.msk [vmem:[#allocation3 + $0xe0] sm:$0xff] %vm1960, %v3942
      %4010 = vst.msk [vmem:[#allocation3 + $0xe8] sm:$0xff] %vm1960, %v3944
      %4011 = vst.msk [vmem:[#allocation3 + $0xf0] sm:$0xff] %vm1960, %v3946
      %4012 = vst.msk [vmem:[#allocation3 + $0xf8] sm:$0xff] %vm1960, %v3948
      %v4013 = vld [vmem:[#allocation3] sm:$0xff]
      %v4014 = vld [vmem:[#allocation3 + $0x8] sm:$0xff]
      %v4015 = vld [vmem:[#allocation3 + $0x10] sm:$0xff]
      %v4016 = vld [vmem:[#allocation3 + $0x18] sm:$0xff]
      %v4017 = vld [vmem:[#allocation3 + $0x20] sm:$0xff]
      %v4018 = vld [vmem:[#allocation3 + $0x28] sm:$0xff]
      %v4019 = vld [vmem:[#allocation3 + $0x30] sm:$0xff]
      %v4020 = vld [vmem:[#allocation3 + $0x38] sm:$0xff]
      %v4021 = vld [vmem:[#allocation3 + $0x40] sm:$0xff]
      %v4022 = vld [vmem:[#allocation3 + $0x48] sm:$0xff]
      %v4023 = vld [vmem:[#allocation3 + $0x50] sm:$0xff]
      %v4024 = vld [vmem:[#allocation3 + $0x58] sm:$0xff]
      %v4025 = vld [vmem:[#allocation3 + $0x60] sm:$0xff]
      %v4026 = vld [vmem:[#allocation3 + $0x68] sm:$0xff]
      %v4027 = vld [vmem:[#allocation3 + $0x70] sm:$0xff]
      %v4028 = vld [vmem:[#allocation3 + $0x78] sm:$0xff]
      %v4029 = vld [vmem:[#allocation3 + $0x80] sm:$0xff]
      %v4030 = vld [vmem:[#allocation3 + $0x88] sm:$0xff]
      %v4031 = vld [vmem:[#allocation3 + $0x90] sm:$0xff]
      %v4032 = vld [vmem:[#allocation3 + $0x98] sm:$0xff]
      %v4033 = vld [vmem:[#allocation3 + $0xa0] sm:$0xff]
      %v4034 = vld [vmem:[#allocation3 + $0xa8] sm:$0xff]
      %v4035 = vld [vmem:[#allocation3 + $0xb0] sm:$0xff]
      %v4036 = vld [vmem:[#allocation3 + $0xb8] sm:$0xff]
      %v4037 = vld [vmem:[#allocation3 + $0xc0] sm:$0xff]
      %v4038 = vld [vmem:[#allocation3 + $0xc8] sm:$0xff]
      %v4039 = vld [vmem:[#allocation3 + $0xd0] sm:$0xff]
      %v4040 = vld [vmem:[#allocation3 + $0xd8] sm:$0xff]
      %v4041 = vld [vmem:[#allocation3 + $0xe0] sm:$0xff]
      %v4042 = vld [vmem:[#allocation3 + $0xe8] sm:$0xff]
      %v4043 = vld [vmem:[#allocation3 + $0xf0] sm:$0xff]
      %v4044 = vld [vmem:[#allocation3 + $0xf8] sm:$0xff]
      %v4045 = vpack.c.bf16 %v4014, %v4013
      %v4046 = vpack.c.bf16 %v4016, %v4015
      %v4047 = vpack.c.bf16 %v4018, %v4017
      %v4048 = vpack.c.bf16 %v4020, %v4019
      %v4049 = vpack.c.bf16 %v4022, %v4021
      %v4050 = vpack.c.bf16 %v4024, %v4023
      %v4051 = vpack.c.bf16 %v4026, %v4025
      %v4052 = vpack.c.bf16 %v4028, %v4027
      %v4053 = vpack.c.bf16 %v4030, %v4029
      %v4054 = vpack.c.bf16 %v4032, %v4031
      %v4055 = vpack.c.bf16 %v4034, %v4033
      %v4056 = vpack.c.bf16 %v4036, %v4035
      %v4057 = vpack.c.bf16 %v4038, %v4037
      %v4058 = vpack.c.bf16 %v4040, %v4039
      %v4059 = vpack.c.bf16 %v4042, %v4041
      %v4060 = vpack.c.bf16 %v4044, %v4043
      %v4061 = vlaneseq
      %v4062 = vshrl.u32 %v4061, 7
      %v4063 = vsub.s32 0, %v4062
      %v4064 = vrot.slane %v2379, %v4063
      %v4070 = vunpack.c.l.b16 %v2374
      %v4071 = vunpack.c.l.b16 %v2375
      %v4072 = vunpack.c.l.b16 %v2376
      %v4073 = vunpack.c.l.b16 %v2377
      %v4074 = vunpack.c.l.b16 %v2378
      %v4075 = vpack.c.b16 %v4071, %v4070
      %v4076 = vpack.c.b16 %v4073, %v4072
      %v4077 = vpack.c.b16 %v4074, %v4074
      %vm4078 = vcmask 1045504
      %v4079 = vrot.slane %v4075, 2
      %v4080 = vrot.slane %v4076, 2
      %v4081 = vsel %vm4078, %v4079, %v4080
      %v4082 = vrot.slane %v4077, 2
      %v4083 = vsel %vm4078, %v4080, %v4082
      %v4087 = vsel %vm2060, %v4045, 0
      %v4090 = vsel %vm2060, %v4046, 0
      %v4093 = vsel %vm2060, %v4047, 0
      %v4096 = vsel %vm2060, %v4048, 0
      %v4099 = vsel %vm2060, %v4049, 0
      %v4102 = vsel %vm2060, %v4050, 0
      %v4105 = vsel %vm2060, %v4051, 0
      %v4108 = vsel %vm2060, %v4052, 0
      %v4111 = vsel %vm2060, %v4053, 0
      %v4114 = vsel %vm2060, %v4054, 0
      %v4117 = vsel %vm2060, %v4055, 0
      %v4120 = vsel %vm2060, %v4056, 0
      %v4123 = vsel %vm2060, %v4057, 0
      %v4126 = vsel %vm2060, %v4058, 0
      %v4129 = vsel %vm2060, %v4059, 0
      %v4132 = vsel %vm2060, %v4060, 0
      %v4135 = vsel %vm2109, %v4082, 0
      %4137 = vmatprep.subr.bf16.mxu0 0
      %4138 = vmatpush1.bf16.msra.mxu0 %v4081
      %4139 = vmatprep.subr.bf16.mxu0 0
      %4140 = vmatpush1.bf16.msra.mxu0 %v4083
      %4141 = vmatprep.subr.bf16.mxu0 0
      %4142 = vmatpush1.bf16.msra.mxu0 %v4135
      %4143 = vmatprep.subr.bf16.mxu0 0
      %4144 = vmatpush1.bf16.msra.mxu0 0
      %4145 = vmatprep.subr.bf16.mxu0 0
      %4146 = vmatpush1.bf16.msra.mxu0 0
      %4147 = vmatprep.subr.bf16.mxu0 0
      %4148 = vmatpush1.bf16.msra.mxu0 0
      %4149 = vmatprep.subr.bf16.mxu0 0
      %4150 = vmatpush1.bf16.msra.mxu0 0
      %4151 = vmatprep.subr.bf16.mxu0 0
      %4152 = vmatpush1.bf16.msra.mxu0 0
      %4153 = vmatprep.subr.bf16.mxu0 0
      %4154 = vmatpush1.bf16.msra.mxu0 0
      %4155 = vmatprep.subr.bf16.mxu0 0
      %4156 = vmatpush1.bf16.msra.mxu0 0
      %4157 = vmatprep.subr.bf16.mxu0 0
      %4158 = vmatpush1.bf16.msra.mxu0 0
      %4159 = vmatprep.subr.bf16.mxu0 0
      %4160 = vmatpush1.bf16.msra.mxu0 0
      %4161 = vmatprep.subr.bf16.mxu0 0
      %4162 = vmatpush1.bf16.msra.mxu0 0
      %4163 = vmatprep.subr.bf16.mxu0 0
      %4164 = vmatpush1.bf16.msra.mxu0 0
      %4165 = vmatprep.subr.bf16.mxu0 0
      %4166 = vmatpush1.bf16.msra.mxu0 0
      %4167 = vmatprep.subr.bf16.mxu0 0
      %4168 = vmatpush1.bf16.msra.mxu0 0
      %4169 = vmatprep.mubr.bf16.mxu0 0
      %4170 = vmatmul.mubr.bf16.gmra.mrb[0].mxu0 %v4087
      %v4171 = vpop.f32.mrb[0].mxu0
      %v4172 = vadd.f32 %v4064, %v4171
      %v4173 = vpop.f32.mrb[0].mxu0
      %v4174 = vpop.f32.mrb[0].mxu0
      %v4175 = vadd.f32 %v4064, %v4174
      %v4176 = vpop.f32.mrb[0].mxu0
      %4177 = vmatprep.mubr.bf16.mxu0 0
      %4178 = vmatmul.mubr.bf16.gmra.mrb[0].mxu0 %v4090
      %v4179 = vpop.f32.mrb[0].mxu0
      %v4180 = vadd.f32 %v4064, %v4179
      %v4181 = vpop.f32.mrb[0].mxu0
      %v4182 = vpop.f32.mrb[0].mxu0
      %v4183 = vadd.f32 %v4064, %v4182
      %v4184 = vpop.f32.mrb[0].mxu0
      %4185 = vmatprep.mubr.bf16.mxu0 0
      %4186 = vmatmul.mubr.bf16.gmra.mrb[0].mxu0 %v4093
      %v4187 = vpop.f32.mrb[0].mxu0
      %v4188 = vadd.f32 %v4064, %v4187
      %v4189 = vpop.f32.mrb[0].mxu0
      %v4190 = vpop.f32.mrb[0].mxu0
      %v4191 = vadd.f32 %v4064, %v4190
      %v4192 = vpop.f32.mrb[0].mxu0
      %4193 = vmatprep.mubr.bf16.mxu0 0
      %4194 = vmatmul.mubr.bf16.gmra.mrb[0].mxu0 %v4096
      %v4195 = vpop.f32.mrb[0].mxu0
      %v4196 = vadd.f32 %v4064, %v4195
      %v4197 = vpop.f32.mrb[0].mxu0
      %v4198 = vpop.f32.mrb[0].mxu0
      %v4199 = vadd.f32 %v4064, %v4198
      %v4200 = vpop.f32.mrb[0].mxu0
      %4201 = vmatprep.mubr.bf16.mxu0 0
      %4202 = vmatmul.mubr.bf16.gmra.mrb[0].mxu0 %v4099
      %v4203 = vpop.f32.mrb[0].mxu0
      %v4204 = vadd.f32 %v4064, %v4203
      %v4205 = vpop.f32.mrb[0].mxu0
      %v4206 = vpop.f32.mrb[0].mxu0
      %v4207 = vadd.f32 %v4064, %v4206
      %v4208 = vpop.f32.mrb[0].mxu0
      %4209 = vmatprep.mubr.bf16.mxu0 0
      %4210 = vmatmul.mubr.bf16.gmra.mrb[0].mxu0 %v4102
      %v4211 = vpop.f32.mrb[0].mxu0
      %v4212 = vadd.f32 %v4064, %v4211
      %v4213 = vpop.f32.mrb[0].mxu0
      %v4214 = vpop.f32.mrb[0].mxu0
      %v4215 = vadd.f32 %v4064, %v4214
      %v4216 = vpop.f32.mrb[0].mxu0
      %4217 = vmatprep.mubr.bf16.mxu0 0
      %4218 = vmatmul.mubr.bf16.gmra.mrb[0].mxu0 %v4105
      %v4219 = vpop.f32.mrb[0].mxu0
      %v4220 = vadd.f32 %v4064, %v4219
      %v4221 = vpop.f32.mrb[0].mxu0
      %v4222 = vpop.f32.mrb[0].mxu0
      %v4223 = vadd.f32 %v4064, %v4222
      %v4224 = vpop.f32.mrb[0].mxu0
      %4225 = vmatprep.mubr.bf16.mxu0 0
      %4226 = vmatmul.mubr.bf16.gmra.mrb[0].mxu0 %v4108
      %v4227 = vpop.f32.mrb[0].mxu0
      %v4228 = vadd.f32 %v4064, %v4227
      %v4229 = vpop.f32.mrb[0].mxu0
      %v4230 = vpop.f32.mrb[0].mxu0
      %v4231 = vadd.f32 %v4064, %v4230
      %v4232 = vpop.f32.mrb[0].mxu0
      %4233 = vmatprep.mubr.bf16.mxu0 0
      %4234 = vmatmul.mubr.bf16.gmra.mrb[0].mxu0 %v4111
      %v4235 = vpop.f32.mrb[0].mxu0
      %v4236 = vadd.f32 %v4064, %v4235
      %v4237 = vpop.f32.mrb[0].mxu0
      %v4238 = vpop.f32.mrb[0].mxu0
      %v4239 = vadd.f32 %v4064, %v4238
      %v4240 = vpop.f32.mrb[0].mxu0
      %4241 = vmatprep.mubr.bf16.mxu0 0
      %4242 = vmatmul.mubr.bf16.gmra.mrb[0].mxu0 %v4114
      %v4243 = vpop.f32.mrb[0].mxu0
      %v4244 = vadd.f32 %v4064, %v4243
      %v4245 = vpop.f32.mrb[0].mxu0
      %v4246 = vpop.f32.mrb[0].mxu0
      %v4247 = vadd.f32 %v4064, %v4246
      %v4248 = vpop.f32.mrb[0].mxu0
      %4249 = vmatprep.mubr.bf16.mxu0 0
      %4250 = vmatmul.mubr.bf16.gmra.mrb[0].mxu0 %v4117
      %v4251 = vpop.f32.mrb[0].mxu0
      %v4252 = vadd.f32 %v4064, %v4251
      %v4253 = vpop.f32.mrb[0].mxu0
      %v4254 = vpop.f32.mrb[0].mxu0
      %v4255 = vadd.f32 %v4064, %v4254
      %v4256 = vpop.f32.mrb[0].mxu0
      %4257 = vmatprep.mubr.bf16.mxu0 0
      %4258 = vmatmul.mubr.bf16.gmra.mrb[0].mxu0 %v4120
      %v4259 = vpop.f32.mrb[0].mxu0
      %v4260 = vadd.f32 %v4064, %v4259
      %v4261 = vpop.f32.mrb[0].mxu0
      %v4262 = vpop.f32.mrb[0].mxu0
      %v4263 = vadd.f32 %v4064, %v4262
      %v4264 = vpop.f32.mrb[0].mxu0
      %4265 = vmatprep.mubr.bf16.mxu0 0
      %4266 = vmatmul.mubr.bf16.gmra.mrb[0].mxu0 %v4123
      %v4267 = vpop.f32.mrb[0].mxu0
      %v4268 = vadd.f32 %v4064, %v4267
      %v4269 = vpop.f32.mrb[0].mxu0
      %v4270 = vpop.f32.mrb[0].mxu0
      %v4271 = vadd.f32 %v4064, %v4270
      %v4272 = vpop.f32.mrb[0].mxu0
      %4273 = vmatprep.mubr.bf16.mxu0 0
      %4274 = vmatmul.mubr.bf16.gmra.mrb[0].mxu0 %v4126
      %v4275 = vpop.f32.mrb[0].mxu0
      %v4276 = vadd.f32 %v4064, %v4275
      %v4277 = vpop.f32.mrb[0].mxu0
      %v4278 = vpop.f32.mrb[0].mxu0
      %v4279 = vadd.f32 %v4064, %v4278
      %v4280 = vpop.f32.mrb[0].mxu0
      %4281 = vmatprep.mubr.bf16.mxu0 0
      %4282 = vmatmul.mubr.bf16.gmra.mrb[0].mxu0 %v4129
      %v4283 = vpop.f32.mrb[0].mxu0
      %v4284 = vadd.f32 %v4064, %v4283
      %v4285 = vpop.f32.mrb[0].mxu0
      %v4286 = vpop.f32.mrb[0].mxu0
      %v4287 = vadd.f32 %v4064, %v4286
      %v4288 = vpop.f32.mrb[0].mxu0
      %4289 = vmatprep.mubr.bf16.mxu0 0
      %4290 = vmatmul.mubr.bf16.gmra.mrb[0].mxu0 %v4132
      %v4291 = vpop.f32.mrb[0].mxu0
      %v4292 = vadd.f32 %v4064, %v4291
      %v4293 = vpop.f32.mrb[0].mxu0
      %v4294 = vpop.f32.mrb[0].mxu0
      %v4295 = vadd.f32 %v4064, %v4294
      %v4296 = vpop.f32.mrb[0].mxu0
      %4297 = vdwg.mxu0
      %vm4298 = vcmp.ge.f32.partialorder %v4172, 0.0
      %vm4299 = vcmp.ge.f32.partialorder %v4175, 0.0
      %vm4300 = vcmp.ge.f32.partialorder %v4180, 0.0
      %vm4301 = vcmp.ge.f32.partialorder %v4183, 0.0
      %vm4302 = vcmp.ge.f32.partialorder %v4188, 0.0
      %vm4303 = vcmp.ge.f32.partialorder %v4191, 0.0
      %vm4304 = vcmp.ge.f32.partialorder %v4196, 0.0
      %vm4305 = vcmp.ge.f32.partialorder %v4199, 0.0
      %vm4306 = vcmp.ge.f32.partialorder %v4204, 0.0
      %vm4307 = vcmp.ge.f32.partialorder %v4207, 0.0
      %vm4308 = vcmp.ge.f32.partialorder %v4212, 0.0
      %vm4309 = vcmp.ge.f32.partialorder %v4215, 0.0
      %vm4310 = vcmp.ge.f32.partialorder %v4220, 0.0
      %vm4311 = vcmp.ge.f32.partialorder %v4223, 0.0
      %vm4312 = vcmp.ge.f32.partialorder %v4228, 0.0
      %vm4313 = vcmp.ge.f32.partialorder %v4231, 0.0
      %vm4314 = vcmp.ge.f32.partialorder %v4236, 0.0
      %vm4315 = vcmp.ge.f32.partialorder %v4239, 0.0
      %vm4316 = vcmp.ge.f32.partialorder %v4244, 0.0
      %vm4317 = vcmp.ge.f32.partialorder %v4247, 0.0
      %vm4318 = vcmp.ge.f32.partialorder %v4252, 0.0
      %vm4319 = vcmp.ge.f32.partialorder %v4255, 0.0
      %vm4320 = vcmp.ge.f32.partialorder %v4260, 0.0
      %vm4321 = vcmp.ge.f32.partialorder %v4263, 0.0
      %vm4322 = vcmp.ge.f32.partialorder %v4268, 0.0
      %vm4323 = vcmp.ge.f32.partialorder %v4271, 0.0
      %vm4324 = vcmp.ge.f32.partialorder %v4276, 0.0
      %vm4325 = vcmp.ge.f32.partialorder %v4279, 0.0
      %vm4326 = vcmp.ge.f32.partialorder %v4284, 0.0
      %vm4327 = vcmp.ge.f32.partialorder %v4287, 0.0
      %vm4328 = vcmp.ge.f32.partialorder %v4292, 0.0
      %vm4329 = vcmp.ge.f32.partialorder %v4295, 0.0
      %v4330 = vlaneseq
      %v4331 = vshrl.u32 %v4330, 7
      %v4332 = vsub.s32 0, %v4331
      %v4333 = vrot.slane %v2380, %v4332
      %v4334 = vmul.f32 %v4333, %v4172
      %v4335 = vmul.f32 %v4333, %v4175
      %v4336 = vmul.f32 %v4333, %v4180
      %v4337 = vmul.f32 %v4333, %v4183
      %v4338 = vmul.f32 %v4333, %v4188
      %v4339 = vmul.f32 %v4333, %v4191
      %v4340 = vmul.f32 %v4333, %v4196
      %v4341 = vmul.f32 %v4333, %v4199
      %v4342 = vmul.f32 %v4333, %v4204
      %v4343 = vmul.f32 %v4333, %v4207
      %v4344 = vmul.f32 %v4333, %v4212
      %v4345 = vmul.f32 %v4333, %v4215
      %v4346 = vmul.f32 %v4333, %v4220
      %v4347 = vmul.f32 %v4333, %v4223
      %v4348 = vmul.f32 %v4333, %v4228
      %v4349 = vmul.f32 %v4333, %v4231
      %v4350 = vmul.f32 %v4333, %v4236
      %v4351 = vmul.f32 %v4333, %v4239
      %v4352 = vmul.f32 %v4333, %v4244
      %v4353 = vmul.f32 %v4333, %v4247
      %v4354 = vmul.f32 %v4333, %v4252
      %v4355 = vmul.f32 %v4333, %v4255
      %v4356 = vmul.f32 %v4333, %v4260
      %v4357 = vmul.f32 %v4333, %v4263
      %v4358 = vmul.f32 %v4333, %v4268
      %v4359 = vmul.f32 %v4333, %v4271
      %v4360 = vmul.f32 %v4333, %v4276
      %v4361 = vmul.f32 %v4333, %v4279
      %v4362 = vmul.f32 %v4333, %v4284
      %v4363 = vmul.f32 %v4333, %v4287
      %v4364 = vmul.f32 %v4333, %v4292
      %v4365 = vmul.f32 %v4333, %v4295
      %v4366 = vsel %vm4298, %v4172, %v4334
      %v4367 = vsel %vm4299, %v4175, %v4335
      %v4368 = vsel %vm4300, %v4180, %v4336
      %v4369 = vsel %vm4301, %v4183, %v4337
      %v4370 = vsel %vm4302, %v4188, %v4338
      %v4371 = vsel %vm4303, %v4191, %v4339
      %v4372 = vsel %vm4304, %v4196, %v4340
      %v4373 = vsel %vm4305, %v4199, %v4341
      %v4374 = vsel %vm4306, %v4204, %v4342
      %v4375 = vsel %vm4307, %v4207, %v4343
      %v4376 = vsel %vm4308, %v4212, %v4344
      %v4377 = vsel %vm4309, %v4215, %v4345
      %v4378 = vsel %vm4310, %v4220, %v4346
      %v4379 = vsel %vm4311, %v4223, %v4347
      %v4380 = vsel %vm4312, %v4228, %v4348
      %v4381 = vsel %vm4313, %v4231, %v4349
      %v4382 = vsel %vm4314, %v4236, %v4350
      %v4383 = vsel %vm4315, %v4239, %v4351
      %v4384 = vsel %vm4316, %v4244, %v4352
      %v4385 = vsel %vm4317, %v4247, %v4353
      %v4386 = vsel %vm4318, %v4252, %v4354
      %v4387 = vsel %vm4319, %v4255, %v4355
      %v4388 = vsel %vm4320, %v4260, %v4356
      %v4389 = vsel %vm4321, %v4263, %v4357
      %v4390 = vsel %vm4322, %v4268, %v4358
      %v4391 = vsel %vm4323, %v4271, %v4359
      %v4392 = vsel %vm4324, %v4276, %v4360
      %v4393 = vsel %vm4325, %v4279, %v4361
      %v4394 = vsel %vm4326, %v4284, %v4362
      %v4395 = vsel %vm4327, %v4287, %v4363
      %v4396 = vsel %vm4328, %v4292, %v4364
      %v4397 = vsel %vm4329, %v4295, %v4365
      %v4398 = vsel %vm343, %v4366, %v2342
      %v4399 = vsel %vm343, %v4367, %v2343
      %v4400 = vsel %vm343, %v4368, %v2344
      %v4401 = vsel %vm343, %v4369, %v2345
      %v4402 = vsel %vm343, %v4370, %v2346
      %v4403 = vsel %vm343, %v4371, %v2347
      %v4404 = vsel %vm343, %v4372, %v2348
      %v4405 = vsel %vm343, %v4373, %v2349
      %v4406 = vsel %vm343, %v4374, %v2350
      %v4407 = vsel %vm343, %v4375, %v2351
      %v4408 = vsel %vm343, %v4376, %v2352
      %v4409 = vsel %vm343, %v4377, %v2353
      %v4410 = vsel %vm343, %v4378, %v2354
      %v4411 = vsel %vm343, %v4379, %v2355
      %v4412 = vsel %vm343, %v4380, %v2356
      %v4413 = vsel %vm343, %v4381, %v2357
      %v4414 = vsel %vm343, %v4382, %v2358
      %v4415 = vsel %vm343, %v4383, %v2359
      %v4416 = vsel %vm343, %v4384, %v2360
      %v4417 = vsel %vm343, %v4385, %v2361
      %v4418 = vsel %vm343, %v4386, %v2362
      %v4419 = vsel %vm343, %v4387, %v2363
      %v4420 = vsel %vm343, %v4388, %v2364
      %v4421 = vsel %vm343, %v4389, %v2365
      %v4422 = vsel %vm343, %v4390, %v2366
      %v4423 = vsel %vm343, %v4391, %v2367
      %v4424 = vsel %vm343, %v4392, %v2368
      %v4425 = vsel %vm343, %v4393, %v2369
      %v4426 = vsel %vm343, %v4394, %v2370
      %v4427 = vsel %vm343, %v4395, %v2371
      %v4428 = vsel %vm343, %v4396, %v2372
      %v4429 = vsel %vm343, %v4397, %v2373
      %v4430 = vld [vmem:[%s1 + $0x24] sm:$0xf]
      %v4431 = vld [vmem:[%s1 + $0x28] sm:$0xf]
      %v4432 = vld [vmem:[%s1 + $0x2c] sm:$0xf]
      %v4433 = vld [vmem:[%s1 + $0x30] sm:$0xf]
      %v4434 = vld [vmem:[%s1 + $0x34] sm:$0x3]
      %v4435 = vld [vmem:[%s2 + $0x4] sm:$0x1]
      %v4436 = vld [vmem:[%s2 + $0x5] sm:$0x1]
      %4437 = vst.msk [vmem:[%s351 + $0x1] sm:$0xff] %vm253, %v4398
      %4438 = vst.msk [vmem:[%s351 + $0x9] sm:$0xff] %vm253, %v4399
      %4439 = vst.msk [vmem:[%s351 + $0x19] sm:$0xff] %vm253, %v4400
      %4440 = vst.msk [vmem:[%s351 + $0x21] sm:$0xff] %vm253, %v4401
      %4441 = vst.msk [vmem:[%s351 + $0x31] sm:$0xff] %vm253, %v4402
      %4442 = vst.msk [vmem:[%s351 + $0x39] sm:$0xff] %vm253, %v4403
      %4443 = vst.msk [vmem:[%s351 + $0x49] sm:$0xff] %vm253, %v4404
      %4444 = vst.msk [vmem:[%s351 + $0x51] sm:$0xff] %vm253, %v4405
      %4445 = vst.msk [vmem:[%s351 + $0x61] sm:$0xff] %vm253, %v4406
      %4446 = vst.msk [vmem:[%s351 + $0x69] sm:$0xff] %vm253, %v4407
      %4447 = vst.msk [vmem:[%s351 + $0x79] sm:$0xff] %vm253, %v4408
      %4448 = vst.msk [vmem:[%s351 + $0x81] sm:$0xff] %vm253, %v4409
      %4449 = vst.msk [vmem:[%s351 + $0x91] sm:$0xff] %vm253, %v4410
      %4450 = vst.msk [vmem:[%s351 + $0x99] sm:$0xff] %vm253, %v4411
      %4451 = vst.msk [vmem:[%s351 + $0xa9] sm:$0xff] %vm253, %v4412
      %4452 = vst.msk [vmem:[%s351 + $0xb1] sm:$0xff] %vm253, %v4413
      %4453 = vst.msk [vmem:[%s351 + $0xc1] sm:$0xff] %vm253, %v4414
      %4454 = vst.msk [vmem:[%s351 + $0xc9] sm:$0xff] %vm253, %v4415
      %4455 = vst.msk [vmem:[%s351 + $0xd9] sm:$0xff] %vm253, %v4416
      %4456 = vst.msk [vmem:[%s351 + $0xe1] sm:$0xff] %vm253, %v4417
      %4457 = vst.msk [vmem:[%s351 + $0xf1] sm:$0xff] %vm253, %v4418
      %4458 = vst.msk [vmem:[%s351 + $0xf9] sm:$0xff] %vm253, %v4419
      %4459 = vst.msk [vmem:[%s351 + $0x109] sm:$0xff] %vm253, %v4420
      %4460 = vst.msk [vmem:[%s351 + $0x111] sm:$0xff] %vm253, %v4421
      %4461 = vst.msk [vmem:[%s351 + $0x121] sm:$0xff] %vm253, %v4422
      %4462 = vst.msk [vmem:[%s351 + $0x129] sm:$0xff] %vm253, %v4423
      %4463 = vst.msk [vmem:[%s351 + $0x139] sm:$0xff] %vm253, %v4424
      %4464 = vst.msk [vmem:[%s351 + $0x141] sm:$0xff] %vm253, %v4425
      %4465 = vst.msk [vmem:[%s351 + $0x151] sm:$0xff] %vm253, %v4426
      %4466 = vst.msk [vmem:[%s351 + $0x159] sm:$0xff] %vm253, %v4427
      %4467 = vst.msk [vmem:[%s351 + $0x169] sm:$0xff] %vm253, %v4428
      %4468 = vst.msk [vmem:[%s351 + $0x171] sm:$0xff] %vm253, %v4429
      %v4469 = vld [vmem:[#allocation2] sm:$0xff]
      %v4470 = vld [vmem:[#allocation2 + $0x8] sm:$0xff]
      %v4471 = vld [vmem:[#allocation2 + $0x18] sm:$0xff]
      %v4472 = vld [vmem:[#allocation2 + $0x20] sm:$0xff]
      %v4473 = vld [vmem:[#allocation2 + $0x30] sm:$0xff]
      %v4474 = vld [vmem:[#allocation2 + $0x38] sm:$0xff]
      %v4475 = vld [vmem:[#allocation2 + $0x48] sm:$0xff]
      %v4476 = vld [vmem:[#allocation2 + $0x50] sm:$0xff]
      %v4477 = vld [vmem:[#allocation2 + $0x60] sm:$0xff]
      %v4478 = vld [vmem:[#allocation2 + $0x68] sm:$0xff]
      %v4479 = vld [vmem:[#allocation2 + $0x78] sm:$0xff]
      %v4480 = vld [vmem:[#allocation2 + $0x80] sm:$0xff]
      %v4481 = vld [vmem:[#allocation2 + $0x90] sm:$0xff]
      %v4482 = vld [vmem:[#allocation2 + $0x98] sm:$0xff]
      %v4483 = vld [vmem:[#allocation2 + $0xa8] sm:$0xff]
      %v4484 = vld [vmem:[#allocation2 + $0xb0] sm:$0xff]
      %v4485 = vld [vmem:[#allocation2 + $0xc0] sm:$0xff]
      %v4486 = vld [vmem:[#allocation2 + $0xc8] sm:$0xff]
      %v4487 = vld [vmem:[#allocation2 + $0xd8] sm:$0xff]
      %v4488 = vld [vmem:[#allocation2 + $0xe0] sm:$0xff]
      %v4489 = vld [vmem:[#allocation2 + $0xf0] sm:$0xff]
      %v4490 = vld [vmem:[#allocation2 + $0xf8] sm:$0xff]
      %v4491 = vld [vmem:[#allocation2 + $0x108] sm:$0xff]
      %v4492 = vld [vmem:[#allocation2 + $0x110] sm:$0xff]
      %v4493 = vld [vmem:[#allocation2 + $0x120] sm:$0xff]
      %v4494 = vld [vmem:[#allocation2 + $0x128] sm:$0xff]
      %v4495 = vld [vmem:[#allocation2 + $0x138] sm:$0xff]
      %v4496 = vld [vmem:[#allocation2 + $0x140] sm:$0xff]
      %v4497 = vld [vmem:[#allocation2 + $0x150] sm:$0xff]
      %v4498 = vld [vmem:[#allocation2 + $0x158] sm:$0xff]
      %v4499 = vld [vmem:[#allocation2 + $0x168] sm:$0xff]
      %v4500 = vld [vmem:[#allocation2 + $0x170] sm:$0xff]
      %4501 = vst.msk [vmem:[#allocation3] sm:$0xff] %vm253, %v4469
      %4502 = vst.msk [vmem:[#allocation3 + $0x8] sm:$0xff] %vm253, %v4470
      %4503 = vst.msk [vmem:[#allocation3 + $0x10] sm:$0xff] %vm253, %v4471
      %4504 = vst.msk [vmem:[#allocation3 + $0x18] sm:$0xff] %vm253, %v4472
      %4505 = vst.msk [vmem:[#allocation3 + $0x20] sm:$0xff] %vm253, %v4473
      %4506 = vst.msk [vmem:[#allocation3 + $0x28] sm:$0xff] %vm253, %v4474
      %4507 = vst.msk [vmem:[#allocation3 + $0x30] sm:$0xff] %vm253, %v4475
      %4508 = vst.msk [vmem:[#allocation3 + $0x38] sm:$0xff] %vm253, %v4476
      %4509 = vst.msk [vmem:[#allocation3 + $0x40] sm:$0xff] %vm253, %v4477
      %4510 = vst.msk [vmem:[#allocation3 + $0x48] sm:$0xff] %vm253, %v4478
      %4511 = vst.msk [vmem:[#allocation3 + $0x50] sm:$0xff] %vm253, %v4479
      %4512 = vst.msk [vmem:[#allocation3 + $0x58] sm:$0xff] %vm253, %v4480
      %4513 = vst.msk [vmem:[#allocation3 + $0x60] sm:$0xff] %vm253, %v4481
      %4514 = vst.msk [vmem:[#allocation3 + $0x68] sm:$0xff] %vm253, %v4482
      %4515 = vst.msk [vmem:[#allocation3 + $0x70] sm:$0xff] %vm253, %v4483
      %4516 = vst.msk [vmem:[#allocation3 + $0x78] sm:$0xff] %vm253, %v4484
      %4517 = vst.msk [vmem:[#allocation3 + $0x80] sm:$0xff] %vm253, %v4485
      %4518 = vst.msk [vmem:[#allocation3 + $0x88] sm:$0xff] %vm253, %v4486
      %4519 = vst.msk [vmem:[#allocation3 + $0x90] sm:$0xff] %vm253, %v4487
      %4520 = vst.msk [vmem:[#allocation3 + $0x98] sm:$0xff] %vm253, %v4488
      %4521 = vst.msk [vmem:[#allocation3 + $0xa0] sm:$0xff] %vm253, %v4489
      %4522 = vst.msk [vmem:[#allocation3 + $0xa8] sm:$0xff] %vm253, %v4490
      %4523 = vst.msk [vmem:[#allocation3 + $0xb0] sm:$0xff] %vm253, %v4491
      %4524 = vst.msk [vmem:[#allocation3 + $0xb8] sm:$0xff] %vm253, %v4492
      %4525 = vst.msk [vmem:[#allocation3 + $0xc0] sm:$0xff] %vm253, %v4493
      %4526 = vst.msk [vmem:[#allocation3 + $0xc8] sm:$0xff] %vm253, %v4494
      %4527 = vst.msk [vmem:[#allocation3 + $0xd0] sm:$0xff] %vm253, %v4495
      %4528 = vst.msk [vmem:[#allocation3 + $0xd8] sm:$0xff] %vm253, %v4496
      %4529 = vst.msk [vmem:[#allocation3 + $0xe0] sm:$0xff] %vm253, %v4497
      %4530 = vst.msk [vmem:[#allocation3 + $0xe8] sm:$0xff] %vm253, %v4498
      %4531 = vst.msk [vmem:[#allocation3 + $0xf0] sm:$0xff] %vm253, %v4499
      %4532 = vst.msk [vmem:[#allocation3 + $0xf8] sm:$0xff] %vm253, %v4500
      %v4533 = vld [vmem:[#allocation2 + $0x1] sm:$0xff]
      %v4534 = vld [vmem:[#allocation2 + $0x9] sm:$0xff]
      %v4535 = vld [vmem:[#allocation2 + $0x19] sm:$0xff]
      %v4536 = vld [vmem:[#allocation2 + $0x21] sm:$0xff]
      %v4537 = vld [vmem:[#allocation2 + $0x31] sm:$0xff]
      %v4538 = vld [vmem:[#allocation2 + $0x39] sm:$0xff]
      %v4539 = vld [vmem:[#allocation2 + $0x49] sm:$0xff]
      %v4540 = vld [vmem:[#allocation2 + $0x51] sm:$0xff]
      %v4541 = vld [vmem:[#allocation2 + $0x61] sm:$0xff]
      %v4542 = vld [vmem:[#allocation2 + $0x69] sm:$0xff]
      %v4543 = vld [vmem:[#allocation2 + $0x79] sm:$0xff]
      %v4544 = vld [vmem:[#allocation2 + $0x81] sm:$0xff]
      %v4545 = vld [vmem:[#allocation2 + $0x91] sm:$0xff]
      %v4546 = vld [vmem:[#allocation2 + $0x99] sm:$0xff]
      %v4547 = vld [vmem:[#allocation2 + $0xa9] sm:$0xff]
      %v4548 = vld [vmem:[#allocation2 + $0xb1] sm:$0xff]
      %v4549 = vld [vmem:[#allocation2 + $0xc1] sm:$0xff]
      %v4550 = vld [vmem:[#allocation2 + $0xc9] sm:$0xff]
      %v4551 = vld [vmem:[#allocation2 + $0xd9] sm:$0xff]
      %v4552 = vld [vmem:[#allocation2 + $0xe1] sm:$0xff]
      %v4553 = vld [vmem:[#allocation2 + $0xf1] sm:$0xff]
      %v4554 = vld [vmem:[#allocation2 + $0xf9] sm:$0xff]
      %v4555 = vld [vmem:[#allocation2 + $0x109] sm:$0xff]
      %v4556 = vld [vmem:[#allocation2 + $0x111] sm:$0xff]
      %v4557 = vld [vmem:[#allocation2 + $0x121] sm:$0xff]
      %v4558 = vld [vmem:[#allocation2 + $0x129] sm:$0xff]
      %v4559 = vld [vmem:[#allocation2 + $0x139] sm:$0xff]
      %v4560 = vld [vmem:[#allocation2 + $0x141] sm:$0xff]
      %v4561 = vld [vmem:[#allocation2 + $0x151] sm:$0xff]
      %v4562 = vld [vmem:[#allocation2 + $0x159] sm:$0xff]
      %v4563 = vld [vmem:[#allocation2 + $0x169] sm:$0xff]
      %v4564 = vld [vmem:[#allocation2 + $0x171] sm:$0xff]
      %4597 = vrot.lane.b32.xlu0 %v4533, 4
      %v4598 = vpop.permute.xlu0 %4597
      %4599 = vrot.lane.b32.xlu0 %v4534, 4
      %v4600 = vpop.permute.xlu0 %4599
      %4601 = vrot.lane.b32.xlu0 %v4535, 4
      %v4602 = vpop.permute.xlu0 %4601
      %4603 = vrot.lane.b32.xlu0 %v4536, 4
      %v4604 = vpop.permute.xlu0 %4603
      %4605 = vrot.lane.b32.xlu0 %v4537, 4
      %v4606 = vpop.permute.xlu0 %4605
      %4607 = vrot.lane.b32.xlu0 %v4538, 4
      %v4608 = vpop.permute.xlu0 %4607
      %4609 = vrot.lane.b32.xlu0 %v4539, 4
      %v4610 = vpop.permute.xlu0 %4609
      %4611 = vrot.lane.b32.xlu0 %v4540, 4
      %v4612 = vpop.permute.xlu0 %4611
      %4613 = vrot.lane.b32.xlu0 %v4541, 4
      %v4614 = vpop.permute.xlu0 %4613
      %4615 = vrot.lane.b32.xlu0 %v4542, 4
      %v4616 = vpop.permute.xlu0 %4615
      %4617 = vrot.lane.b32.xlu0 %v4543, 4
      %v4618 = vpop.permute.xlu0 %4617
      %4619 = vrot.lane.b32.xlu0 %v4544, 4
      %v4620 = vpop.permute.xlu0 %4619
      %4621 = vrot.lane.b32.xlu0 %v4545, 4
      %v4622 = vpop.permute.xlu0 %4621
      %4623 = vrot.lane.b32.xlu0 %v4546, 4
      %v4624 = vpop.permute.xlu0 %4623
      %4625 = vrot.lane.b32.xlu0 %v4547, 4
      %v4626 = vpop.permute.xlu0 %4625
      %4627 = vrot.lane.b32.xlu0 %v4548, 4
      %v4628 = vpop.permute.xlu0 %4627
      %4629 = vrot.lane.b32.xlu0 %v4549, 4
      %v4630 = vpop.permute.xlu0 %4629
      %4631 = vrot.lane.b32.xlu0 %v4550, 4
      %v4632 = vpop.permute.xlu0 %4631
      %4633 = vrot.lane.b32.xlu0 %v4551, 4
      %v4634 = vpop.permute.xlu0 %4633
      %4635 = vrot.lane.b32.xlu0 %v4552, 4
      %v4636 = vpop.permute.xlu0 %4635
      %4637 = vrot.lane.b32.xlu0 %v4553, 4
      %v4638 = vpop.permute.xlu0 %4637
      %4639 = vrot.lane.b32.xlu0 %v4554, 4
      %v4640 = vpop.permute.xlu0 %4639
      %4641 = vrot.lane.b32.xlu0 %v4555, 4
      %v4642 = vpop.permute.xlu0 %4641
      %4643 = vrot.lane.b32.xlu0 %v4556, 4
      %v4644 = vpop.permute.xlu0 %4643
      %4645 = vrot.lane.b32.xlu0 %v4557, 4
      %v4646 = vpop.permute.xlu0 %4645
      %4647 = vrot.lane.b32.xlu0 %v4558, 4
      %v4648 = vpop.permute.xlu0 %4647
      %4649 = vrot.lane.b32.xlu0 %v4559, 4
      %v4650 = vpop.permute.xlu0 %4649
      %4651 = vrot.lane.b32.xlu0 %v4560, 4
      %v4652 = vpop.permute.xlu0 %4651
      %4653 = vrot.lane.b32.xlu0 %v4561, 4
      %v4654 = vpop.permute.xlu0 %4653
      %4655 = vrot.lane.b32.xlu0 %v4562, 4
      %v4656 = vpop.permute.xlu0 %4655
      %4657 = vrot.lane.b32.xlu0 %v4563, 4
      %v4658 = vpop.permute.xlu0 %4657
      %4659 = vrot.lane.b32.xlu0 %v4564, 4
      %v4660 = vpop.permute.xlu0 %4659
      %4693 = vst.msk [vmem:[#allocation3] sm:$0xff] %vm608, %v4598
      %4694 = vst.msk [vmem:[#allocation3 + $0x8] sm:$0xff] %vm608, %v4600
      %4695 = vst.msk [vmem:[#allocation3 + $0x10] sm:$0xff] %vm608, %v4602
      %4696 = vst.msk [vmem:[#allocation3 + $0x18] sm:$0xff] %vm608, %v4604
      %4697 = vst.msk [vmem:[#allocation3 + $0x20] sm:$0xff] %vm608, %v4606
      %4698 = vst.msk [vmem:[#allocation3 + $0x28] sm:$0xff] %vm608, %v4608
      %4699 = vst.msk [vmem:[#allocation3 + $0x30] sm:$0xff] %vm608, %v4610
      %4700 = vst.msk [vmem:[#allocation3 + $0x38] sm:$0xff] %vm608, %v4612
      %4701 = vst.msk [vmem:[#allocation3 + $0x40] sm:$0xff] %vm608, %v4614
      %4702 = vst.msk [vmem:[#allocation3 + $0x48] sm:$0xff] %vm608, %v4616
      %4703 = vst.msk [vmem:[#allocation3 + $0x50] sm:$0xff] %vm608, %v4618
      %4704 = vst.msk [vmem:[#allocation3 + $0x58] sm:$0xff] %vm608, %v4620
      %4705 = vst.msk [vmem:[#allocation3 + $0x60] sm:$0xff] %vm608, %v4622
      %4706 = vst.msk [vmem:[#allocation3 + $0x68] sm:$0xff] %vm608, %v4624
      %4707 = vst.msk [vmem:[#allocation3 + $0x70] sm:$0xff] %vm608, %v4626
      %4708 = vst.msk [vmem:[#allocation3 + $0x78] sm:$0xff] %vm608, %v4628
      %4709 = vst.msk [vmem:[#allocation3 + $0x80] sm:$0xff] %vm608, %v4630
      %4710 = vst.msk [vmem:[#allocation3 + $0x88] sm:$0xff] %vm608, %v4632
      %4711 = vst.msk [vmem:[#allocation3 + $0x90] sm:$0xff] %vm608, %v4634
      %4712 = vst.msk [vmem:[#allocation3 + $0x98] sm:$0xff] %vm608, %v4636
      %4713 = vst.msk [vmem:[#allocation3 + $0xa0] sm:$0xff] %vm608, %v4638
      %4714 = vst.msk [vmem:[#allocation3 + $0xa8] sm:$0xff] %vm608, %v4640
      %4715 = vst.msk [vmem:[#allocation3 + $0xb0] sm:$0xff] %vm608, %v4642
      %4716 = vst.msk [vmem:[#allocation3 + $0xb8] sm:$0xff] %vm608, %v4644
      %4717 = vst.msk [vmem:[#allocation3 + $0xc0] sm:$0xff] %vm608, %v4646
      %4718 = vst.msk [vmem:[#allocation3 + $0xc8] sm:$0xff] %vm608, %v4648
      %4719 = vst.msk [vmem:[#allocation3 + $0xd0] sm:$0xff] %vm608, %v4650
      %4720 = vst.msk [vmem:[#allocation3 + $0xd8] sm:$0xff] %vm608, %v4652
      %4721 = vst.msk [vmem:[#allocation3 + $0xe0] sm:$0xff] %vm608, %v4654
      %4722 = vst.msk [vmem:[#allocation3 + $0xe8] sm:$0xff] %vm608, %v4656
      %4723 = vst.msk [vmem:[#allocation3 + $0xf0] sm:$0xff] %vm608, %v4658
      %4724 = vst.msk [vmem:[#allocation3 + $0xf8] sm:$0xff] %vm608, %v4660
      %v4725 = vld [vmem:[#allocation2 + $0x2] sm:$0xff]
      %v4726 = vld [vmem:[#allocation2 + $0xa] sm:$0xff]
      %v4727 = vld [vmem:[#allocation2 + $0x1a] sm:$0xff]
      %v4728 = vld [vmem:[#allocation2 + $0x22] sm:$0xff]
      %v4729 = vld [vmem:[#allocation2 + $0x32] sm:$0xff]
      %v4730 = vld [vmem:[#allocation2 + $0x3a] sm:$0xff]
      %v4731 = vld [vmem:[#allocation2 + $0x4a] sm:$0xff]
      %v4732 = vld [vmem:[#allocation2 + $0x52] sm:$0xff]
      %v4733 = vld [vmem:[#allocation2 + $0x62] sm:$0xff]
      %v4734 = vld [vmem:[#allocation2 + $0x6a] sm:$0xff]
      %v4735 = vld [vmem:[#allocation2 + $0x7a] sm:$0xff]
      %v4736 = vld [vmem:[#allocation2 + $0x82] sm:$0xff]
      %v4737 = vld [vmem:[#allocation2 + $0x92] sm:$0xff]
      %v4738 = vld [vmem:[#allocation2 + $0x9a] sm:$0xff]
      %v4739 = vld [vmem:[#allocation2 + $0xaa] sm:$0xff]
      %v4740 = vld [vmem:[#allocation2 + $0xb2] sm:$0xff]
      %v4741 = vld [vmem:[#allocation2 + $0xc2] sm:$0xff]
      %v4742 = vld [vmem:[#allocation2 + $0xca] sm:$0xff]
      %v4743 = vld [vmem:[#allocation2 + $0xda] sm:$0xff]
      %v4744 = vld [vmem:[#allocation2 + $0xe2] sm:$0xff]
      %v4745 = vld [vmem:[#allocation2 + $0xf2] sm:$0xff]
      %v4746 = vld [vmem:[#allocation2 + $0xfa] sm:$0xff]
      %v4747 = vld [vmem:[#allocation2 + $0x10a] sm:$0xff]
      %v4748 = vld [vmem:[#allocation2 + $0x112] sm:$0xff]
      %v4749 = vld [vmem:[#allocation2 + $0x122] sm:$0xff]
      %v4750 = vld [vmem:[#allocation2 + $0x12a] sm:$0xff]
      %v4751 = vld [vmem:[#allocation2 + $0x13a] sm:$0xff]
      %v4752 = vld [vmem:[#allocation2 + $0x142] sm:$0xff]
      %v4753 = vld [vmem:[#allocation2 + $0x152] sm:$0xff]
      %v4754 = vld [vmem:[#allocation2 + $0x15a] sm:$0xff]
      %v4755 = vld [vmem:[#allocation2 + $0x16a] sm:$0xff]
      %v4756 = vld [vmem:[#allocation2 + $0x172] sm:$0xff]
      %4789 = vrot.lane.b32.xlu0 %v4725, 8
      %v4790 = vpop.permute.xlu0 %4789
      %4791 = vrot.lane.b32.xlu0 %v4726, 8
      %v4792 = vpop.permute.xlu0 %4791
      %4793 = vrot.lane.b32.xlu0 %v4727, 8
      %v4794 = vpop.permute.xlu0 %4793
      %4795 = vrot.lane.b32.xlu0 %v4728, 8
      %v4796 = vpop.permute.xlu0 %4795
      %4797 = vrot.lane.b32.xlu0 %v4729, 8
      %v4798 = vpop.permute.xlu0 %4797
      %4799 = vrot.lane.b32.xlu0 %v4730, 8
      %v4800 = vpop.permute.xlu0 %4799
      %4801 = vrot.lane.b32.xlu0 %v4731, 8
      %v4802 = vpop.permute.xlu0 %4801
      %4803 = vrot.lane.b32.xlu0 %v4732, 8
      %v4804 = vpop.permute.xlu0 %4803
      %4805 = vrot.lane.b32.xlu0 %v4733, 8
      %v4806 = vpop.permute.xlu0 %4805
      %4807 = vrot.lane.b32.xlu0 %v4734, 8
      %v4808 = vpop.permute.xlu0 %4807
      %4809 = vrot.lane.b32.xlu0 %v4735, 8
      %v4810 = vpop.permute.xlu0 %4809
      %4811 = vrot.lane.b32.xlu0 %v4736, 8
      %v4812 = vpop.permute.xlu0 %4811
      %4813 = vrot.lane.b32.xlu0 %v4737, 8
      %v4814 = vpop.permute.xlu0 %4813
      %4815 = vrot.lane.b32.xlu0 %v4738, 8
      %v4816 = vpop.permute.xlu0 %4815
      %4817 = vrot.lane.b32.xlu0 %v4739, 8
      %v4818 = vpop.permute.xlu0 %4817
      %4819 = vrot.lane.b32.xlu0 %v4740, 8
      %v4820 = vpop.permute.xlu0 %4819
      %4821 = vrot.lane.b32.xlu0 %v4741, 8
      %v4822 = vpop.permute.xlu0 %4821
      %4823 = vrot.lane.b32.xlu0 %v4742, 8
      %v4824 = vpop.permute.xlu0 %4823
      %4825 = vrot.lane.b32.xlu0 %v4743, 8
      %v4826 = vpop.permute.xlu0 %4825
      %4827 = vrot.lane.b32.xlu0 %v4744, 8
      %v4828 = vpop.permute.xlu0 %4827
      %4829 = vrot.lane.b32.xlu0 %v4745, 8
      %v4830 = vpop.permute.xlu0 %4829
      %4831 = vrot.lane.b32.xlu0 %v4746, 8
      %v4832 = vpop.permute.xlu0 %4831
      %4833 = vrot.lane.b32.xlu0 %v4747, 8
      %v4834 = vpop.permute.xlu0 %4833
      %4835 = vrot.lane.b32.xlu0 %v4748, 8
      %v4836 = vpop.permute.xlu0 %4835
      %4837 = vrot.lane.b32.xlu0 %v4749, 8
      %v4838 = vpop.permute.xlu0 %4837
      %4839 = vrot.lane.b32.xlu0 %v4750, 8
      %v4840 = vpop.permute.xlu0 %4839
      %4841 = vrot.lane.b32.xlu0 %v4751, 8
      %v4842 = vpop.permute.xlu0 %4841
      %4843 = vrot.lane.b32.xlu0 %v4752, 8
      %v4844 = vpop.permute.xlu0 %4843
      %4845 = vrot.lane.b32.xlu0 %v4753, 8
      %v4846 = vpop.permute.xlu0 %4845
      %4847 = vrot.lane.b32.xlu0 %v4754, 8
      %v4848 = vpop.permute.xlu0 %4847
      %4849 = vrot.lane.b32.xlu0 %v4755, 8
      %v4850 = vpop.permute.xlu0 %4849
      %4851 = vrot.lane.b32.xlu0 %v4756, 8
      %v4852 = vpop.permute.xlu0 %4851
      %4885 = vst.msk [vmem:[#allocation3] sm:$0xff] %vm801, %v4790
      %4886 = vst.msk [vmem:[#allocation3 + $0x8] sm:$0xff] %vm801, %v4792
      %4887 = vst.msk [vmem:[#allocation3 + $0x10] sm:$0xff] %vm801, %v4794
      %4888 = vst.msk [vmem:[#allocation3 + $0x18] sm:$0xff] %vm801, %v4796
      %4889 = vst.msk [vmem:[#allocation3 + $0x20] sm:$0xff] %vm801, %v4798
      %4890 = vst.msk [vmem:[#allocation3 + $0x28] sm:$0xff] %vm801, %v4800
      %4891 = vst.msk [vmem:[#allocation3 + $0x30] sm:$0xff] %vm801, %v4802
      %4892 = vst.msk [vmem:[#allocation3 + $0x38] sm:$0xff] %vm801, %v4804
      %4893 = vst.msk [vmem:[#allocation3 + $0x40] sm:$0xff] %vm801, %v4806
      %4894 = vst.msk [vmem:[#allocation3 + $0x48] sm:$0xff] %vm801, %v4808
      %4895 = vst.msk [vmem:[#allocation3 + $0x50] sm:$0xff] %vm801, %v4810
      %4896 = vst.msk [vmem:[#allocation3 + $0x58] sm:$0xff] %vm801, %v4812
      %4897 = vst.msk [vmem:[#allocation3 + $0x60] sm:$0xff] %vm801, %v4814
      %4898 = vst.msk [vmem:[#allocation3 + $0x68] sm:$0xff] %vm801, %v4816
      %4899 = vst.msk [vmem:[#allocation3 + $0x70] sm:$0xff] %vm801, %v4818
      %4900 = vst.msk [vmem:[#allocation3 + $0x78] sm:$0xff] %vm801, %v4820
      %4901 = vst.msk [vmem:[#allocation3 + $0x80] sm:$0xff] %vm801, %v4822
      %4902 = vst.msk [vmem:[#allocation3 + $0x88] sm:$0xff] %vm801, %v4824
      %4903 = vst.msk [vmem:[#allocation3 + $0x90] sm:$0xff] %vm801, %v4826
      %4904 = vst.msk [vmem:[#allocation3 + $0x98] sm:$0xff] %vm801, %v4828
      %4905 = vst.msk [vmem:[#allocation3 + $0xa0] sm:$0xff] %vm801, %v4830
      %4906 = vst.msk [vmem:[#allocation3 + $0xa8] sm:$0xff] %vm801, %v4832
      %4907 = vst.msk [vmem:[#allocation3 + $0xb0] sm:$0xff] %vm801, %v4834
      %4908 = vst.msk [vmem:[#allocation3 + $0xb8] sm:$0xff] %vm801, %v4836
      %4909 = vst.msk [vmem:[#allocation3 + $0xc0] sm:$0xff] %vm801, %v4838
      %4910 = vst.msk [vmem:[#allocation3 + $0xc8] sm:$0xff] %vm801, %v4840
      %4911 = vst.msk [vmem:[#allocation3 + $0xd0] sm:$0xff] %vm801, %v4842
      %4912 = vst.msk [vmem:[#allocation3 + $0xd8] sm:$0xff] %vm801, %v4844
      %4913 = vst.msk [vmem:[#allocation3 + $0xe0] sm:$0xff] %vm801, %v4846
      %4914 = vst.msk [vmem:[#allocation3 + $0xe8] sm:$0xff] %vm801, %v4848
      %4915 = vst.msk [vmem:[#allocation3 + $0xf0] sm:$0xff] %vm801, %v4850
      %4916 = vst.msk [vmem:[#allocation3 + $0xf8] sm:$0xff] %vm801, %v4852
      %v4917 = vld [vmem:[%s351] sm:$0xff]
      %v4918 = vld [vmem:[%s351 + $0x8] sm:$0xff]
      %v4919 = vld [vmem:[%s351 + $0x18] sm:$0xff]
      %v4920 = vld [vmem:[%s351 + $0x20] sm:$0xff]
      %v4921 = vld [vmem:[%s351 + $0x30] sm:$0xff]
      %v4922 = vld [vmem:[%s351 + $0x38] sm:$0xff]
      %v4923 = vld [vmem:[%s351 + $0x48] sm:$0xff]
      %v4924 = vld [vmem:[%s351 + $0x50] sm:$0xff]
      %v4925 = vld [vmem:[%s351 + $0x60] sm:$0xff]
      %v4926 = vld [vmem:[%s351 + $0x68] sm:$0xff]
      %v4927 = vld [vmem:[%s351 + $0x78] sm:$0xff]
      %v4928 = vld [vmem:[%s351 + $0x80] sm:$0xff]
      %v4929 = vld [vmem:[%s351 + $0x90] sm:$0xff]
      %v4930 = vld [vmem:[%s351 + $0x98] sm:$0xff]
      %v4931 = vld [vmem:[%s351 + $0xa8] sm:$0xff]
      %v4932 = vld [vmem:[%s351 + $0xb0] sm:$0xff]
      %v4933 = vld [vmem:[%s351 + $0xc0] sm:$0xff]
      %v4934 = vld [vmem:[%s351 + $0xc8] sm:$0xff]
      %v4935 = vld [vmem:[%s351 + $0xd8] sm:$0xff]
      %v4936 = vld [vmem:[%s351 + $0xe0] sm:$0xff]
      %v4937 = vld [vmem:[%s351 + $0xf0] sm:$0xff]
      %v4938 = vld [vmem:[%s351 + $0xf8] sm:$0xff]
      %v4939 = vld [vmem:[%s351 + $0x108] sm:$0xff]
      %v4940 = vld [vmem:[%s351 + $0x110] sm:$0xff]
      %v4941 = vld [vmem:[%s351 + $0x120] sm:$0xff]
      %v4942 = vld [vmem:[%s351 + $0x128] sm:$0xff]
      %v4943 = vld [vmem:[%s351 + $0x138] sm:$0xff]
      %v4944 = vld [vmem:[%s351 + $0x140] sm:$0xff]
      %v4945 = vld [vmem:[%s351 + $0x150] sm:$0xff]
      %v4946 = vld [vmem:[%s351 + $0x158] sm:$0xff]
      %v4947 = vld [vmem:[%s351 + $0x168] sm:$0xff]
      %v4948 = vld [vmem:[%s351 + $0x170] sm:$0xff]
      %4981 = vrot.lane.b32.xlu0 %v4917, 12
      %v4982 = vpop.permute.xlu0 %4981
      %4983 = vrot.lane.b32.xlu0 %v4918, 12
      %v4984 = vpop.permute.xlu0 %4983
      %4985 = vrot.lane.b32.xlu0 %v4919, 12
      %v4986 = vpop.permute.xlu0 %4985
      %4987 = vrot.lane.b32.xlu0 %v4920, 12
      %v4988 = vpop.permute.xlu0 %4987
      %4989 = vrot.lane.b32.xlu0 %v4921, 12
      %v4990 = vpop.permute.xlu0 %4989
      %4991 = vrot.lane.b32.xlu0 %v4922, 12
      %v4992 = vpop.permute.xlu0 %4991
      %4993 = vrot.lane.b32.xlu0 %v4923, 12
      %v4994 = vpop.permute.xlu0 %4993
      %4995 = vrot.lane.b32.xlu0 %v4924, 12
      %v4996 = vpop.permute.xlu0 %4995
      %4997 = vrot.lane.b32.xlu0 %v4925, 12
      %v4998 = vpop.permute.xlu0 %4997
      %4999 = vrot.lane.b32.xlu0 %v4926, 12
      %v5000 = vpop.permute.xlu0 %4999
      %5001 = vrot.lane.b32.xlu0 %v4927, 12
      %v5002 = vpop.permute.xlu0 %5001
      %5003 = vrot.lane.b32.xlu0 %v4928, 12
      %v5004 = vpop.permute.xlu0 %5003
      %5005 = vrot.lane.b32.xlu0 %v4929, 12
      %v5006 = vpop.permute.xlu0 %5005
      %5007 = vrot.lane.b32.xlu0 %v4930, 12
      %v5008 = vpop.permute.xlu0 %5007
      %5009 = vrot.lane.b32.xlu0 %v4931, 12
      %v5010 = vpop.permute.xlu0 %5009
      %5011 = vrot.lane.b32.xlu0 %v4932, 12
      %v5012 = vpop.permute.xlu0 %5011
      %5013 = vrot.lane.b32.xlu0 %v4933, 12
      %v5014 = vpop.permute.xlu0 %5013
      %5015 = vrot.lane.b32.xlu0 %v4934, 12
      %v5016 = vpop.permute.xlu0 %5015
      %5017 = vrot.lane.b32.xlu0 %v4935, 12
      %v5018 = vpop.permute.xlu0 %5017
      %5019 = vrot.lane.b32.xlu0 %v4936, 12
      %v5020 = vpop.permute.xlu0 %5019
      %5021 = vrot.lane.b32.xlu0 %v4937, 12
      %v5022 = vpop.permute.xlu0 %5021
      %5023 = vrot.lane.b32.xlu0 %v4938, 12
      %v5024 = vpop.permute.xlu0 %5023
      %5025 = vrot.lane.b32.xlu0 %v4939, 12
      %v5026 = vpop.permute.xlu0 %5025
      %5027 = vrot.lane.b32.xlu0 %v4940, 12
      %v5028 = vpop.permute.xlu0 %5027
      %5029 = vrot.lane.b32.xlu0 %v4941, 12
      %v5030 = vpop.permute.xlu0 %5029
      %5031 = vrot.lane.b32.xlu0 %v4942, 12
      %v5032 = vpop.permute.xlu0 %5031
      %5033 = vrot.lane.b32.xlu0 %v4943, 12
      %v5034 = vpop.permute.xlu0 %5033
      %5035 = vrot.lane.b32.xlu0 %v4944, 12
      %v5036 = vpop.permute.xlu0 %5035
      %5037 = vrot.lane.b32.xlu0 %v4945, 12
      %v5038 = vpop.permute.xlu0 %5037
      %5039 = vrot.lane.b32.xlu0 %v4946, 12
      %v5040 = vpop.permute.xlu0 %5039
      %5041 = vrot.lane.b32.xlu0 %v4947, 12
      %v5042 = vpop.permute.xlu0 %5041
      %5043 = vrot.lane.b32.xlu0 %v4948, 12
      %v5044 = vpop.permute.xlu0 %5043
      %5077 = vst.msk [vmem:[#allocation3] sm:$0xff] %vm994, %v4982
      %5078 = vst.msk [vmem:[#allocation3 + $0x8] sm:$0xff] %vm994, %v4984
      %5079 = vst.msk [vmem:[#allocation3 + $0x10] sm:$0xff] %vm994, %v4986
      %5080 = vst.msk [vmem:[#allocation3 + $0x18] sm:$0xff] %vm994, %v4988
      %5081 = vst.msk [vmem:[#allocation3 + $0x20] sm:$0xff] %vm994, %v4990
      %5082 = vst.msk [vmem:[#allocation3 + $0x28] sm:$0xff] %vm994, %v4992
      %5083 = vst.msk [vmem:[#allocation3 + $0x30] sm:$0xff] %vm994, %v4994
      %5084 = vst.msk [vmem:[#allocation3 + $0x38] sm:$0xff] %vm994, %v4996
      %5085 = vst.msk [vmem:[#allocation3 + $0x40] sm:$0xff] %vm994, %v4998
      %5086 = vst.msk [vmem:[#allocation3 + $0x48] sm:$0xff] %vm994, %v5000
      %5087 = vst.msk [vmem:[#allocation3 + $0x50] sm:$0xff] %vm994, %v5002
      %5088 = vst.msk [vmem:[#allocation3 + $0x58] sm:$0xff] %vm994, %v5004
      %5089 = vst.msk [vmem:[#allocation3 + $0x60] sm:$0xff] %vm994, %v5006
      %5090 = vst.msk [vmem:[#allocation3 + $0x68] sm:$0xff] %vm994, %v5008
      %5091 = vst.msk [vmem:[#allocation3 + $0x70] sm:$0xff] %vm994, %v5010
      %5092 = vst.msk [vmem:[#allocation3 + $0x78] sm:$0xff] %vm994, %v5012
      %5093 = vst.msk [vmem:[#allocation3 + $0x80] sm:$0xff] %vm994, %v5014
      %5094 = vst.msk [vmem:[#allocation3 + $0x88] sm:$0xff] %vm994, %v5016
      %5095 = vst.msk [vmem:[#allocation3 + $0x90] sm:$0xff] %vm994, %v5018
      %5096 = vst.msk [vmem:[#allocation3 + $0x98] sm:$0xff] %vm994, %v5020
      %5097 = vst.msk [vmem:[#allocation3 + $0xa0] sm:$0xff] %vm994, %v5022
      %5098 = vst.msk [vmem:[#allocation3 + $0xa8] sm:$0xff] %vm994, %v5024
      %5099 = vst.msk [vmem:[#allocation3 + $0xb0] sm:$0xff] %vm994, %v5026
      %5100 = vst.msk [vmem:[#allocation3 + $0xb8] sm:$0xff] %vm994, %v5028
      %5101 = vst.msk [vmem:[#allocation3 + $0xc0] sm:$0xff] %vm994, %v5030
      %5102 = vst.msk [vmem:[#allocation3 + $0xc8] sm:$0xff] %vm994, %v5032
      %5103 = vst.msk [vmem:[#allocation3 + $0xd0] sm:$0xff] %vm994, %v5034
      %5104 = vst.msk [vmem:[#allocation3 + $0xd8] sm:$0xff] %vm994, %v5036
      %5105 = vst.msk [vmem:[#allocation3 + $0xe0] sm:$0xff] %vm994, %v5038
      %5106 = vst.msk [vmem:[#allocation3 + $0xe8] sm:$0xff] %vm994, %v5040
      %5107 = vst.msk [vmem:[#allocation3 + $0xf0] sm:$0xff] %vm994, %v5042
      %5108 = vst.msk [vmem:[#allocation3 + $0xf8] sm:$0xff] %vm994, %v5044
      %v5109 = vld [vmem:[%s351 + $0x1] sm:$0xff]
      %v5110 = vld [vmem:[%s351 + $0x9] sm:$0xff]
      %v5111 = vld [vmem:[%s351 + $0x19] sm:$0xff]
      %v5112 = vld [vmem:[%s351 + $0x21] sm:$0xff]
      %v5113 = vld [vmem:[%s351 + $0x31] sm:$0xff]
      %v5114 = vld [vmem:[%s351 + $0x39] sm:$0xff]
      %v5115 = vld [vmem:[%s351 + $0x49] sm:$0xff]
      %v5116 = vld [vmem:[%s351 + $0x51] sm:$0xff]
      %v5117 = vld [vmem:[%s351 + $0x61] sm:$0xff]
      %v5118 = vld [vmem:[%s351 + $0x69] sm:$0xff]
      %v5119 = vld [vmem:[%s351 + $0x79] sm:$0xff]
      %v5120 = vld [vmem:[%s351 + $0x81] sm:$0xff]
      %v5121 = vld [vmem:[%s351 + $0x91] sm:$0xff]
      %v5122 = vld [vmem:[%s351 + $0x99] sm:$0xff]
      %v5123 = vld [vmem:[%s351 + $0xa9] sm:$0xff]
      %v5124 = vld [vmem:[%s351 + $0xb1] sm:$0xff]
      %v5125 = vld [vmem:[%s351 + $0xc1] sm:$0xff]
      %v5126 = vld [vmem:[%s351 + $0xc9] sm:$0xff]
      %v5127 = vld [vmem:[%s351 + $0xd9] sm:$0xff]
      %v5128 = vld [vmem:[%s351 + $0xe1] sm:$0xff]
      %v5129 = vld [vmem:[%s351 + $0xf1] sm:$0xff]
      %v5130 = vld [vmem:[%s351 + $0xf9] sm:$0xff]
      %v5131 = vld [vmem:[%s351 + $0x109] sm:$0xff]
      %v5132 = vld [vmem:[%s351 + $0x111] sm:$0xff]
      %v5133 = vld [vmem:[%s351 + $0x121] sm:$0xff]
      %v5134 = vld [vmem:[%s351 + $0x129] sm:$0xff]
      %v5135 = vld [vmem:[%s351 + $0x139] sm:$0xff]
      %v5136 = vld [vmem:[%s351 + $0x141] sm:$0xff]
      %v5137 = vld [vmem:[%s351 + $0x151] sm:$0xff]
      %v5138 = vld [vmem:[%s351 + $0x159] sm:$0xff]
      %v5139 = vld [vmem:[%s351 + $0x169] sm:$0xff]
      %v5140 = vld [vmem:[%s351 + $0x171] sm:$0xff]
      %5173 = vrot.lane.b32.xlu0 %v5109, 16
      %v5174 = vpop.permute.xlu0 %5173
      %5175 = vrot.lane.b32.xlu0 %v5110, 16
      %v5176 = vpop.permute.xlu0 %5175
      %5177 = vrot.lane.b32.xlu0 %v5111, 16
      %v5178 = vpop.permute.xlu0 %5177
      %5179 = vrot.lane.b32.xlu0 %v5112, 16
      %v5180 = vpop.permute.xlu0 %5179
      %5181 = vrot.lane.b32.xlu0 %v5113, 16
      %v5182 = vpop.permute.xlu0 %5181
      %5183 = vrot.lane.b32.xlu0 %v5114, 16
      %v5184 = vpop.permute.xlu0 %5183
      %5185 = vrot.lane.b32.xlu0 %v5115, 16
      %v5186 = vpop.permute.xlu0 %5185
      %5187 = vrot.lane.b32.xlu0 %v5116, 16
      %v5188 = vpop.permute.xlu0 %5187
      %5189 = vrot.lane.b32.xlu0 %v5117, 16
      %v5190 = vpop.permute.xlu0 %5189
      %5191 = vrot.lane.b32.xlu0 %v5118, 16
      %v5192 = vpop.permute.xlu0 %5191
      %5193 = vrot.lane.b32.xlu0 %v5119, 16
      %v5194 = vpop.permute.xlu0 %5193
      %5195 = vrot.lane.b32.xlu0 %v5120, 16
      %v5196 = vpop.permute.xlu0 %5195
      %5197 = vrot.lane.b32.xlu0 %v5121, 16
      %v5198 = vpop.permute.xlu0 %5197
      %5199 = vrot.lane.b32.xlu0 %v5122, 16
      %v5200 = vpop.permute.xlu0 %5199
      %5201 = vrot.lane.b32.xlu0 %v5123, 16
      %v5202 = vpop.permute.xlu0 %5201
      %5203 = vrot.lane.b32.xlu0 %v5124, 16
      %v5204 = vpop.permute.xlu0 %5203
      %5205 = vrot.lane.b32.xlu0 %v5125, 16
      %v5206 = vpop.permute.xlu0 %5205
      %5207 = vrot.lane.b32.xlu0 %v5126, 16
      %v5208 = vpop.permute.xlu0 %5207
      %5209 = vrot.lane.b32.xlu0 %v5127, 16
      %v5210 = vpop.permute.xlu0 %5209
      %5211 = vrot.lane.b32.xlu0 %v5128, 16
      %v5212 = vpop.permute.xlu0 %5211
      %5213 = vrot.lane.b32.xlu0 %v5129, 16
      %v5214 = vpop.permute.xlu0 %5213
      %5215 = vrot.lane.b32.xlu0 %v5130, 16
      %v5216 = vpop.permute.xlu0 %5215
      %5217 = vrot.lane.b32.xlu0 %v5131, 16
      %v5218 = vpop.permute.xlu0 %5217
      %5219 = vrot.lane.b32.xlu0 %v5132, 16
      %v5220 = vpop.permute.xlu0 %5219
      %5221 = vrot.lane.b32.xlu0 %v5133, 16
      %v5222 = vpop.permute.xlu0 %5221
      %5223 = vrot.lane.b32.xlu0 %v5134, 16
      %v5224 = vpop.permute.xlu0 %5223
      %5225 = vrot.lane.b32.xlu0 %v5135, 16
      %v5226 = vpop.permute.xlu0 %5225
      %5227 = vrot.lane.b32.xlu0 %v5136, 16
      %v5228 = vpop.permute.xlu0 %5227
      %5229 = vrot.lane.b32.xlu0 %v5137, 16
      %v5230 = vpop.permute.xlu0 %5229
      %5231 = vrot.lane.b32.xlu0 %v5138, 16
      %v5232 = vpop.permute.xlu0 %5231
      %5233 = vrot.lane.b32.xlu0 %v5139, 16
      %v5234 = vpop.permute.xlu0 %5233
      %5235 = vrot.lane.b32.xlu0 %v5140, 16
      %v5236 = vpop.permute.xlu0 %5235
      %5269 = vst.msk [vmem:[#allocation3] sm:$0xff] %vm1187, %v5174
      %5270 = vst.msk [vmem:[#allocation3 + $0x8] sm:$0xff] %vm1187, %v5176
      %5271 = vst.msk [vmem:[#allocation3 + $0x10] sm:$0xff] %vm1187, %v5178
      %5272 = vst.msk [vmem:[#allocation3 + $0x18] sm:$0xff] %vm1187, %v5180
      %5273 = vst.msk [vmem:[#allocation3 + $0x20] sm:$0xff] %vm1187, %v5182
      %5274 = vst.msk [vmem:[#allocation3 + $0x28] sm:$0xff] %vm1187, %v5184
      %5275 = vst.msk [vmem:[#allocation3 + $0x30] sm:$0xff] %vm1187, %v5186
      %5276 = vst.msk [vmem:[#allocation3 + $0x38] sm:$0xff] %vm1187, %v5188
      %5277 = vst.msk [vmem:[#allocation3 + $0x40] sm:$0xff] %vm1187, %v5190
      %5278 = vst.msk [vmem:[#allocation3 + $0x48] sm:$0xff] %vm1187, %v5192
      %5279 = vst.msk [vmem:[#allocation3 + $0x50] sm:$0xff] %vm1187, %v5194
      %5280 = vst.msk [vmem:[#allocation3 + $0x58] sm:$0xff] %vm1187, %v5196
      %5281 = vst.msk [vmem:[#allocation3 + $0x60] sm:$0xff] %vm1187, %v5198
      %5282 = vst.msk [vmem:[#allocation3 + $0x68] sm:$0xff] %vm1187, %v5200
      %5283 = vst.msk [vmem:[#allocation3 + $0x70] sm:$0xff] %vm1187, %v5202
      %5284 = vst.msk [vmem:[#allocation3 + $0x78] sm:$0xff] %vm1187, %v5204
      %5285 = vst.msk [vmem:[#allocation3 + $0x80] sm:$0xff] %vm1187, %v5206
      %5286 = vst.msk [vmem:[#allocation3 + $0x88] sm:$0xff] %vm1187, %v5208
      %5287 = vst.msk [vmem:[#allocation3 + $0x90] sm:$0xff] %vm1187, %v5210
      %5288 = vst.msk [vmem:[#allocation3 + $0x98] sm:$0xff] %vm1187, %v5212
      %5289 = vst.msk [vmem:[#allocation3 + $0xa0] sm:$0xff] %vm1187, %v5214
      %5290 = vst.msk [vmem:[#allocation3 + $0xa8] sm:$0xff] %vm1187, %v5216
      %5291 = vst.msk [vmem:[#allocation3 + $0xb0] sm:$0xff] %vm1187, %v5218
      %5292 = vst.msk [vmem:[#allocation3 + $0xb8] sm:$0xff] %vm1187, %v5220
      %5293 = vst.msk [vmem:[#allocation3 + $0xc0] sm:$0xff] %vm1187, %v5222
      %5294 = vst.msk [vmem:[#allocation3 + $0xc8] sm:$0xff] %vm1187, %v5224
      %5295 = vst.msk [vmem:[#allocation3 + $0xd0] sm:$0xff] %vm1187, %v5226
      %5296 = vst.msk [vmem:[#allocation3 + $0xd8] sm:$0xff] %vm1187, %v5228
      %5297 = vst.msk [vmem:[#allocation3 + $0xe0] sm:$0xff] %vm1187, %v5230
      %5298 = vst.msk [vmem:[#allocation3 + $0xe8] sm:$0xff] %vm1187, %v5232
      %5299 = vst.msk [vmem:[#allocation3 + $0xf0] sm:$0xff] %vm1187, %v5234
      %5300 = vst.msk [vmem:[#allocation3 + $0xf8] sm:$0xff] %vm1187, %v5236
      %v5301 = vld [vmem:[%s351 + $0x2] sm:$0xff]
      %v5302 = vld [vmem:[%s351 + $0xa] sm:$0xff]
      %v5303 = vld [vmem:[%s351 + $0x1a] sm:$0xff]
      %v5304 = vld [vmem:[%s351 + $0x22] sm:$0xff]
      %v5305 = vld [vmem:[%s351 + $0x32] sm:$0xff]
      %v5306 = vld [vmem:[%s351 + $0x3a] sm:$0xff]
      %v5307 = vld [vmem:[%s351 + $0x4a] sm:$0xff]
      %v5308 = vld [vmem:[%s351 + $0x52] sm:$0xff]
      %v5309 = vld [vmem:[%s351 + $0x62] sm:$0xff]
      %v5310 = vld [vmem:[%s351 + $0x6a] sm:$0xff]
      %v5311 = vld [vmem:[%s351 + $0x7a] sm:$0xff]
      %v5312 = vld [vmem:[%s351 + $0x82] sm:$0xff]
      %v5313 = vld [vmem:[%s351 + $0x92] sm:$0xff]
      %v5314 = vld [vmem:[%s351 + $0x9a] sm:$0xff]
      %v5315 = vld [vmem:[%s351 + $0xaa] sm:$0xff]
      %v5316 = vld [vmem:[%s351 + $0xb2] sm:$0xff]
      %v5317 = vld [vmem:[%s351 + $0xc2] sm:$0xff]
      %v5318 = vld [vmem:[%s351 + $0xca] sm:$0xff]
      %v5319 = vld [vmem:[%s351 + $0xda] sm:$0xff]
      %v5320 = vld [vmem:[%s351 + $0xe2] sm:$0xff]
      %v5321 = vld [vmem:[%s351 + $0xf2] sm:$0xff]
      %v5322 = vld [vmem:[%s351 + $0xfa] sm:$0xff]
      %v5323 = vld [vmem:[%s351 + $0x10a] sm:$0xff]
      %v5324 = vld [vmem:[%s351 + $0x112] sm:$0xff]
      %v5325 = vld [vmem:[%s351 + $0x122] sm:$0xff]
      %v5326 = vld [vmem:[%s351 + $0x12a] sm:$0xff]
      %v5327 = vld [vmem:[%s351 + $0x13a] sm:$0xff]
      %v5328 = vld [vmem:[%s351 + $0x142] sm:$0xff]
      %v5329 = vld [vmem:[%s351 + $0x152] sm:$0xff]
      %v5330 = vld [vmem:[%s351 + $0x15a] sm:$0xff]
      %v5331 = vld [vmem:[%s351 + $0x16a] sm:$0xff]
      %v5332 = vld [vmem:[%s351 + $0x172] sm:$0xff]
      %5365 = vrot.lane.b32.xlu0 %v5301, 20
      %v5366 = vpop.permute.xlu0 %5365
      %5367 = vrot.lane.b32.xlu0 %v5302, 20
      %v5368 = vpop.permute.xlu0 %5367
      %5369 = vrot.lane.b32.xlu0 %v5303, 20
      %v5370 = vpop.permute.xlu0 %5369
      %5371 = vrot.lane.b32.xlu0 %v5304, 20
      %v5372 = vpop.permute.xlu0 %5371
      %5373 = vrot.lane.b32.xlu0 %v5305, 20
      %v5374 = vpop.permute.xlu0 %5373
      %5375 = vrot.lane.b32.xlu0 %v5306, 20
      %v5376 = vpop.permute.xlu0 %5375
      %5377 = vrot.lane.b32.xlu0 %v5307, 20
      %v5378 = vpop.permute.xlu0 %5377
      %5379 = vrot.lane.b32.xlu0 %v5308, 20
      %v5380 = vpop.permute.xlu0 %5379
      %5381 = vrot.lane.b32.xlu0 %v5309, 20
      %v5382 = vpop.permute.xlu0 %5381
      %5383 = vrot.lane.b32.xlu0 %v5310, 20
      %v5384 = vpop.permute.xlu0 %5383
      %5385 = vrot.lane.b32.xlu0 %v5311, 20
      %v5386 = vpop.permute.xlu0 %5385
      %5387 = vrot.lane.b32.xlu0 %v5312, 20
      %v5388 = vpop.permute.xlu0 %5387
      %5389 = vrot.lane.b32.xlu0 %v5313, 20
      %v5390 = vpop.permute.xlu0 %5389
      %5391 = vrot.lane.b32.xlu0 %v5314, 20
      %v5392 = vpop.permute.xlu0 %5391
      %5393 = vrot.lane.b32.xlu0 %v5315, 20
      %v5394 = vpop.permute.xlu0 %5393
      %5395 = vrot.lane.b32.xlu0 %v5316, 20
      %v5396 = vpop.permute.xlu0 %5395
      %5397 = vrot.lane.b32.xlu0 %v5317, 20
      %v5398 = vpop.permute.xlu0 %5397
      %5399 = vrot.lane.b32.xlu0 %v5318, 20
      %v5400 = vpop.permute.xlu0 %5399
      %5401 = vrot.lane.b32.xlu0 %v5319, 20
      %v5402 = vpop.permute.xlu0 %5401
      %5403 = vrot.lane.b32.xlu0 %v5320, 20
      %v5404 = vpop.permute.xlu0 %5403
      %5405 = vrot.lane.b32.xlu0 %v5321, 20
      %v5406 = vpop.permute.xlu0 %5405
      %5407 = vrot.lane.b32.xlu0 %v5322, 20
      %v5408 = vpop.permute.xlu0 %5407
      %5409 = vrot.lane.b32.xlu0 %v5323, 20
      %v5410 = vpop.permute.xlu0 %5409
      %5411 = vrot.lane.b32.xlu0 %v5324, 20
      %v5412 = vpop.permute.xlu0 %5411
      %5413 = vrot.lane.b32.xlu0 %v5325, 20
      %v5414 = vpop.permute.xlu0 %5413
      %5415 = vrot.lane.b32.xlu0 %v5326, 20
      %v5416 = vpop.permute.xlu0 %5415
      %5417 = vrot.lane.b32.xlu0 %v5327, 20
      %v5418 = vpop.permute.xlu0 %5417
      %5419 = vrot.lane.b32.xlu0 %v5328, 20
      %v5420 = vpop.permute.xlu0 %5419
      %5421 = vrot.lane.b32.xlu0 %v5329, 20
      %v5422 = vpop.permute.xlu0 %5421
      %5423 = vrot.lane.b32.xlu0 %v5330, 20
      %v5424 = vpop.permute.xlu0 %5423
      %5425 = vrot.lane.b32.xlu0 %v5331, 20
      %v5426 = vpop.permute.xlu0 %5425
      %5427 = vrot.lane.b32.xlu0 %v5332, 20
      %v5428 = vpop.permute.xlu0 %5427
      %5461 = vst.msk [vmem:[#allocation3] sm:$0xff] %vm1380, %v5366
      %5462 = vst.msk [vmem:[#allocation3 + $0x8] sm:$0xff] %vm1380, %v5368
      %5463 = vst.msk [vmem:[#allocation3 + $0x10] sm:$0xff] %vm1380, %v5370
      %5464 = vst.msk [vmem:[#allocation3 + $0x18] sm:$0xff] %vm1380, %v5372
      %5465 = vst.msk [vmem:[#allocation3 + $0x20] sm:$0xff] %vm1380, %v5374
      %5466 = vst.msk [vmem:[#allocation3 + $0x28] sm:$0xff] %vm1380, %v5376
      %5467 = vst.msk [vmem:[#allocation3 + $0x30] sm:$0xff] %vm1380, %v5378
      %5468 = vst.msk [vmem:[#allocation3 + $0x38] sm:$0xff] %vm1380, %v5380
      %5469 = vst.msk [vmem:[#allocation3 + $0x40] sm:$0xff] %vm1380, %v5382
      %5470 = vst.msk [vmem:[#allocation3 + $0x48] sm:$0xff] %vm1380, %v5384
      %5471 = vst.msk [vmem:[#allocation3 + $0x50] sm:$0xff] %vm1380, %v5386
      %5472 = vst.msk [vmem:[#allocation3 + $0x58] sm:$0xff] %vm1380, %v5388
      %5473 = vst.msk [vmem:[#allocation3 + $0x60] sm:$0xff] %vm1380, %v5390
      %5474 = vst.msk [vmem:[#allocation3 + $0x68] sm:$0xff] %vm1380, %v5392
      %5475 = vst.msk [vmem:[#allocation3 + $0x70] sm:$0xff] %vm1380, %v5394
      %5476 = vst.msk [vmem:[#allocation3 + $0x78] sm:$0xff] %vm1380, %v5396
      %5477 = vst.msk [vmem:[#allocation3 + $0x80] sm:$0xff] %vm1380, %v5398
      %5478 = vst.msk [vmem:[#allocation3 + $0x88] sm:$0xff] %vm1380, %v5400
      %5479 = vst.msk [vmem:[#allocation3 + $0x90] sm:$0xff] %vm1380, %v5402
      %5480 = vst.msk [vmem:[#allocation3 + $0x98] sm:$0xff] %vm1380, %v5404
      %5481 = vst.msk [vmem:[#allocation3 + $0xa0] sm:$0xff] %vm1380, %v5406
      %5482 = vst.msk [vmem:[#allocation3 + $0xa8] sm:$0xff] %vm1380, %v5408
      %5483 = vst.msk [vmem:[#allocation3 + $0xb0] sm:$0xff] %vm1380, %v5410
      %5484 = vst.msk [vmem:[#allocation3 + $0xb8] sm:$0xff] %vm1380, %v5412
      %5485 = vst.msk [vmem:[#allocation3 + $0xc0] sm:$0xff] %vm1380, %v5414
      %5486 = vst.msk [vmem:[#allocation3 + $0xc8] sm:$0xff] %vm1380, %v5416
      %5487 = vst.msk [vmem:[#allocation3 + $0xd0] sm:$0xff] %vm1380, %v5418
      %5488 = vst.msk [vmem:[#allocation3 + $0xd8] sm:$0xff] %vm1380, %v5420
      %5489 = vst.msk [vmem:[#allocation3 + $0xe0] sm:$0xff] %vm1380, %v5422
      %5490 = vst.msk [vmem:[#allocation3 + $0xe8] sm:$0xff] %vm1380, %v5424
      %5491 = vst.msk [vmem:[#allocation3 + $0xf0] sm:$0xff] %vm1380, %v5426
      %5492 = vst.msk [vmem:[#allocation3 + $0xf8] sm:$0xff] %vm1380, %v5428
      %v5493 = vld [vmem:[%s1413] sm:$0xff]
      %v5494 = vld [vmem:[%s1413 + $0x8] sm:$0xff]
      %v5495 = vld [vmem:[%s1413 + $0x18] sm:$0xff]
      %v5496 = vld [vmem:[%s1413 + $0x20] sm:$0xff]
      %v5497 = vld [vmem:[%s1413 + $0x30] sm:$0xff]
      %v5498 = vld [vmem:[%s1413 + $0x38] sm:$0xff]
      %v5499 = vld [vmem:[%s1413 + $0x48] sm:$0xff]
      %v5500 = vld [vmem:[%s1413 + $0x50] sm:$0xff]
      %v5501 = vld [vmem:[%s1413 + $0x60] sm:$0xff]
      %v5502 = vld [vmem:[%s1413 + $0x68] sm:$0xff]
      %v5503 = vld [vmem:[%s1413 + $0x78] sm:$0xff]
      %v5504 = vld [vmem:[%s1413 + $0x80] sm:$0xff]
      %v5505 = vld [vmem:[%s1413 + $0x90] sm:$0xff]
      %v5506 = vld [vmem:[%s1413 + $0x98] sm:$0xff]
      %v5507 = vld [vmem:[%s1413 + $0xa8] sm:$0xff]
      %v5508 = vld [vmem:[%s1413 + $0xb0] sm:$0xff]
      %v5509 = vld [vmem:[%s1413 + $0xc0] sm:$0xff]
      %v5510 = vld [vmem:[%s1413 + $0xc8] sm:$0xff]
      %v5511 = vld [vmem:[%s1413 + $0xd8] sm:$0xff]
      %v5512 = vld [vmem:[%s1413 + $0xe0] sm:$0xff]
      %v5513 = vld [vmem:[%s1413 + $0xf0] sm:$0xff]
      %v5514 = vld [vmem:[%s1413 + $0xf8] sm:$0xff]
      %v5515 = vld [vmem:[%s1413 + $0x108] sm:$0xff]
      %v5516 = vld [vmem:[%s1413 + $0x110] sm:$0xff]
      %v5517 = vld [vmem:[%s1413 + $0x120] sm:$0xff]
      %v5518 = vld [vmem:[%s1413 + $0x128] sm:$0xff]
      %v5519 = vld [vmem:[%s1413 + $0x138] sm:$0xff]
      %v5520 = vld [vmem:[%s1413 + $0x140] sm:$0xff]
      %v5521 = vld [vmem:[%s1413 + $0x150] sm:$0xff]
      %v5522 = vld [vmem:[%s1413 + $0x158] sm:$0xff]
      %v5523 = vld [vmem:[%s1413 + $0x168] sm:$0xff]
      %v5524 = vld [vmem:[%s1413 + $0x170] sm:$0xff]
      %5557 = vrot.lane.b32.xlu0 %v5493, 24
      %v5558 = vpop.permute.xlu0 %5557
      %5559 = vrot.lane.b32.xlu0 %v5494, 24
      %v5560 = vpop.permute.xlu0 %5559
      %5561 = vrot.lane.b32.xlu0 %v5495, 24
      %v5562 = vpop.permute.xlu0 %5561
      %5563 = vrot.lane.b32.xlu0 %v5496, 24
      %v5564 = vpop.permute.xlu0 %5563
      %5565 = vrot.lane.b32.xlu0 %v5497, 24
      %v5566 = vpop.permute.xlu0 %5565
      %5567 = vrot.lane.b32.xlu0 %v5498, 24
      %v5568 = vpop.permute.xlu0 %5567
      %5569 = vrot.lane.b32.xlu0 %v5499, 24
      %v5570 = vpop.permute.xlu0 %5569
      %5571 = vrot.lane.b32.xlu0 %v5500, 24
      %v5572 = vpop.permute.xlu0 %5571
      %5573 = vrot.lane.b32.xlu0 %v5501, 24
      %v5574 = vpop.permute.xlu0 %5573
      %5575 = vrot.lane.b32.xlu0 %v5502, 24
      %v5576 = vpop.permute.xlu0 %5575
      %5577 = vrot.lane.b32.xlu0 %v5503, 24
      %v5578 = vpop.permute.xlu0 %5577
      %5579 = vrot.lane.b32.xlu0 %v5504, 24
      %v5580 = vpop.permute.xlu0 %5579
      %5581 = vrot.lane.b32.xlu0 %v5505, 24
      %v5582 = vpop.permute.xlu0 %5581
      %5583 = vrot.lane.b32.xlu0 %v5506, 24
      %v5584 = vpop.permute.xlu0 %5583
      %5585 = vrot.lane.b32.xlu0 %v5507, 24
      %v5586 = vpop.permute.xlu0 %5585
      %5587 = vrot.lane.b32.xlu0 %v5508, 24
      %v5588 = vpop.permute.xlu0 %5587
      %5589 = vrot.lane.b32.xlu0 %v5509, 24
      %v5590 = vpop.permute.xlu0 %5589
      %5591 = vrot.lane.b32.xlu0 %v5510, 24
      %v5592 = vpop.permute.xlu0 %5591
      %5593 = vrot.lane.b32.xlu0 %v5511, 24
      %v5594 = vpop.permute.xlu0 %5593
      %5595 = vrot.lane.b32.xlu0 %v5512, 24
      %v5596 = vpop.permute.xlu0 %5595
      %5597 = vrot.lane.b32.xlu0 %v5513, 24
      %v5598 = vpop.permute.xlu0 %5597
      %5599 = vrot.lane.b32.xlu0 %v5514, 24
      %v5600 = vpop.permute.xlu0 %5599
      %5601 = vrot.lane.b32.xlu0 %v5515, 24
      %v5602 = vpop.permute.xlu0 %5601
      %5603 = vrot.lane.b32.xlu0 %v5516, 24
      %v5604 = vpop.permute.xlu0 %5603
      %5605 = vrot.lane.b32.xlu0 %v5517, 24
      %v5606 = vpop.permute.xlu0 %5605
      %5607 = vrot.lane.b32.xlu0 %v5518, 24
      %v5608 = vpop.permute.xlu0 %5607
      %5609 = vrot.lane.b32.xlu0 %v5519, 24
      %v5610 = vpop.permute.xlu0 %5609
      %5611 = vrot.lane.b32.xlu0 %v5520, 24
      %v5612 = vpop.permute.xlu0 %5611
      %5613 = vrot.lane.b32.xlu0 %v5521, 24
      %v5614 = vpop.permute.xlu0 %5613
      %5615 = vrot.lane.b32.xlu0 %v5522, 24
      %v5616 = vpop.permute.xlu0 %5615
      %5617 = vrot.lane.b32.xlu0 %v5523, 24
      %v5618 = vpop.permute.xlu0 %5617
      %5619 = vrot.lane.b32.xlu0 %v5524, 24
      %v5620 = vpop.permute.xlu0 %5619
      %5653 = vst.msk [vmem:[#allocation3] sm:$0xff] %vm1574, %v5558
      %5654 = vst.msk [vmem:[#allocation3 + $0x8] sm:$0xff] %vm1574, %v5560
      %5655 = vst.msk [vmem:[#allocation3 + $0x10] sm:$0xff] %vm1574, %v5562
      %5656 = vst.msk [vmem:[#allocation3 + $0x18] sm:$0xff] %vm1574, %v5564
      %5657 = vst.msk [vmem:[#allocation3 + $0x20] sm:$0xff] %vm1574, %v5566
      %5658 = vst.msk [vmem:[#allocation3 + $0x28] sm:$0xff] %vm1574, %v5568
      %5659 = vst.msk [vmem:[#allocation3 + $0x30] sm:$0xff] %vm1574, %v5570
      %5660 = vst.msk [vmem:[#allocation3 + $0x38] sm:$0xff] %vm1574, %v5572
      %5661 = vst.msk [vmem:[#allocation3 + $0x40] sm:$0xff] %vm1574, %v5574
      %5662 = vst.msk [vmem:[#allocation3 + $0x48] sm:$0xff] %vm1574, %v5576
      %5663 = vst.msk [vmem:[#allocation3 + $0x50] sm:$0xff] %vm1574, %v5578
      %5664 = vst.msk [vmem:[#allocation3 + $0x58] sm:$0xff] %vm1574, %v5580
      %5665 = vst.msk [vmem:[#allocation3 + $0x60] sm:$0xff] %vm1574, %v5582
      %5666 = vst.msk [vmem:[#allocation3 + $0x68] sm:$0xff] %vm1574, %v5584
      %5667 = vst.msk [vmem:[#allocation3 + $0x70] sm:$0xff] %vm1574, %v5586
      %5668 = vst.msk [vmem:[#allocation3 + $0x78] sm:$0xff] %vm1574, %v5588
      %5669 = vst.msk [vmem:[#allocation3 + $0x80] sm:$0xff] %vm1574, %v5590
      %5670 = vst.msk [vmem:[#allocation3 + $0x88] sm:$0xff] %vm1574, %v5592
      %5671 = vst.msk [vmem:[#allocation3 + $0x90] sm:$0xff] %vm1574, %v5594
      %5672 = vst.msk [vmem:[#allocation3 + $0x98] sm:$0xff] %vm1574, %v5596
      %5673 = vst.msk [vmem:[#allocation3 + $0xa0] sm:$0xff] %vm1574, %v5598
      %5674 = vst.msk [vmem:[#allocation3 + $0xa8] sm:$0xff] %vm1574, %v5600
      %5675 = vst.msk [vmem:[#allocation3 + $0xb0] sm:$0xff] %vm1574, %v5602
      %5676 = vst.msk [vmem:[#allocation3 + $0xb8] sm:$0xff] %vm1574, %v5604
      %5677 = vst.msk [vmem:[#allocation3 + $0xc0] sm:$0xff] %vm1574, %v5606
      %5678 = vst.msk [vmem:[#allocation3 + $0xc8] sm:$0xff] %vm1574, %v5608
      %5679 = vst.msk [vmem:[#allocation3 + $0xd0] sm:$0xff] %vm1574, %v5610
      %5680 = vst.msk [vmem:[#allocation3 + $0xd8] sm:$0xff] %vm1574, %v5612
      %5681 = vst.msk [vmem:[#allocation3 + $0xe0] sm:$0xff] %vm1574, %v5614
      %5682 = vst.msk [vmem:[#allocation3 + $0xe8] sm:$0xff] %vm1574, %v5616
      %5683 = vst.msk [vmem:[#allocation3 + $0xf0] sm:$0xff] %vm1574, %v5618
      %5684 = vst.msk [vmem:[#allocation3 + $0xf8] sm:$0xff] %vm1574, %v5620
      %v5685 = vld [vmem:[%s1413 + $0x1] sm:$0xff]
      %v5686 = vld [vmem:[%s1413 + $0x9] sm:$0xff]
      %v5687 = vld [vmem:[%s1413 + $0x19] sm:$0xff]
      %v5688 = vld [vmem:[%s1413 + $0x21] sm:$0xff]
      %v5689 = vld [vmem:[%s1413 + $0x31] sm:$0xff]
      %v5690 = vld [vmem:[%s1413 + $0x39] sm:$0xff]
      %v5691 = vld [vmem:[%s1413 + $0x49] sm:$0xff]
      %v5692 = vld [vmem:[%s1413 + $0x51] sm:$0xff]
      %v5693 = vld [vmem:[%s1413 + $0x61] sm:$0xff]
      %v5694 = vld [vmem:[%s1413 + $0x69] sm:$0xff]
      %v5695 = vld [vmem:[%s1413 + $0x79] sm:$0xff]
      %v5696 = vld [vmem:[%s1413 + $0x81] sm:$0xff]
      %v5697 = vld [vmem:[%s1413 + $0x91] sm:$0xff]
      %v5698 = vld [vmem:[%s1413 + $0x99] sm:$0xff]
      %v5699 = vld [vmem:[%s1413 + $0xa9] sm:$0xff]
      %v5700 = vld [vmem:[%s1413 + $0xb1] sm:$0xff]
      %v5701 = vld [vmem:[%s1413 + $0xc1] sm:$0xff]
      %v5702 = vld [vmem:[%s1413 + $0xc9] sm:$0xff]
      %v5703 = vld [vmem:[%s1413 + $0xd9] sm:$0xff]
      %v5704 = vld [vmem:[%s1413 + $0xe1] sm:$0xff]
      %v5705 = vld [vmem:[%s1413 + $0xf1] sm:$0xff]
      %v5706 = vld [vmem:[%s1413 + $0xf9] sm:$0xff]
      %v5707 = vld [vmem:[%s1413 + $0x109] sm:$0xff]
      %v5708 = vld [vmem:[%s1413 + $0x111] sm:$0xff]
      %v5709 = vld [vmem:[%s1413 + $0x121] sm:$0xff]
      %v5710 = vld [vmem:[%s1413 + $0x129] sm:$0xff]
      %v5711 = vld [vmem:[%s1413 + $0x139] sm:$0xff]
      %v5712 = vld [vmem:[%s1413 + $0x141] sm:$0xff]
      %v5713 = vld [vmem:[%s1413 + $0x151] sm:$0xff]
      %v5714 = vld [vmem:[%s1413 + $0x159] sm:$0xff]
      %v5715 = vld [vmem:[%s1413 + $0x169] sm:$0xff]
      %v5716 = vld [vmem:[%s1413 + $0x171] sm:$0xff]
      %5749 = vrot.lane.b32.xlu0 %v5685, 28
      %v5750 = vpop.permute.xlu0 %5749
      %5751 = vrot.lane.b32.xlu0 %v5686, 28
      %v5752 = vpop.permute.xlu0 %5751
      %5753 = vrot.lane.b32.xlu0 %v5687, 28
      %v5754 = vpop.permute.xlu0 %5753
      %5755 = vrot.lane.b32.xlu0 %v5688, 28
      %v5756 = vpop.permute.xlu0 %5755
      %5757 = vrot.lane.b32.xlu0 %v5689, 28
      %v5758 = vpop.permute.xlu0 %5757
      %5759 = vrot.lane.b32.xlu0 %v5690, 28
      %v5760 = vpop.permute.xlu0 %5759
      %5761 = vrot.lane.b32.xlu0 %v5691, 28
      %v5762 = vpop.permute.xlu0 %5761
      %5763 = vrot.lane.b32.xlu0 %v5692, 28
      %v5764 = vpop.permute.xlu0 %5763
      %5765 = vrot.lane.b32.xlu0 %v5693, 28
      %v5766 = vpop.permute.xlu0 %5765
      %5767 = vrot.lane.b32.xlu0 %v5694, 28
      %v5768 = vpop.permute.xlu0 %5767
      %5769 = vrot.lane.b32.xlu0 %v5695, 28
      %v5770 = vpop.permute.xlu0 %5769
      %5771 = vrot.lane.b32.xlu0 %v5696, 28
      %v5772 = vpop.permute.xlu0 %5771
      %5773 = vrot.lane.b32.xlu0 %v5697, 28
      %v5774 = vpop.permute.xlu0 %5773
      %5775 = vrot.lane.b32.xlu0 %v5698, 28
      %v5776 = vpop.permute.xlu0 %5775
      %5777 = vrot.lane.b32.xlu0 %v5699, 28
      %v5778 = vpop.permute.xlu0 %5777
      %5779 = vrot.lane.b32.xlu0 %v5700, 28
      %v5780 = vpop.permute.xlu0 %5779
      %5781 = vrot.lane.b32.xlu0 %v5701, 28
      %v5782 = vpop.permute.xlu0 %5781
      %5783 = vrot.lane.b32.xlu0 %v5702, 28
      %v5784 = vpop.permute.xlu0 %5783
      %5785 = vrot.lane.b32.xlu0 %v5703, 28
      %v5786 = vpop.permute.xlu0 %5785
      %5787 = vrot.lane.b32.xlu0 %v5704, 28
      %v5788 = vpop.permute.xlu0 %5787
      %5789 = vrot.lane.b32.xlu0 %v5705, 28
      %v5790 = vpop.permute.xlu0 %5789
      %5791 = vrot.lane.b32.xlu0 %v5706, 28
      %v5792 = vpop.permute.xlu0 %5791
      %5793 = vrot.lane.b32.xlu0 %v5707, 28
      %v5794 = vpop.permute.xlu0 %5793
      %5795 = vrot.lane.b32.xlu0 %v5708, 28
      %v5796 = vpop.permute.xlu0 %5795
      %5797 = vrot.lane.b32.xlu0 %v5709, 28
      %v5798 = vpop.permute.xlu0 %5797
      %5799 = vrot.lane.b32.xlu0 %v5710, 28
      %v5800 = vpop.permute.xlu0 %5799
      %5801 = vrot.lane.b32.xlu0 %v5711, 28
      %v5802 = vpop.permute.xlu0 %5801
      %5803 = vrot.lane.b32.xlu0 %v5712, 28
      %v5804 = vpop.permute.xlu0 %5803
      %5805 = vrot.lane.b32.xlu0 %v5713, 28
      %v5806 = vpop.permute.xlu0 %5805
      %5807 = vrot.lane.b32.xlu0 %v5714, 28
      %v5808 = vpop.permute.xlu0 %5807
      %5809 = vrot.lane.b32.xlu0 %v5715, 28
      %v5810 = vpop.permute.xlu0 %5809
      %5811 = vrot.lane.b32.xlu0 %v5716, 28
      %v5812 = vpop.permute.xlu0 %5811
      %5845 = vst.msk [vmem:[#allocation3] sm:$0xff] %vm1767, %v5750
      %5846 = vst.msk [vmem:[#allocation3 + $0x8] sm:$0xff] %vm1767, %v5752
      %5847 = vst.msk [vmem:[#allocation3 + $0x10] sm:$0xff] %vm1767, %v5754
      %5848 = vst.msk [vmem:[#allocation3 + $0x18] sm:$0xff] %vm1767, %v5756
      %5849 = vst.msk [vmem:[#allocation3 + $0x20] sm:$0xff] %vm1767, %v5758
      %5850 = vst.msk [vmem:[#allocation3 + $0x28] sm:$0xff] %vm1767, %v5760
      %5851 = vst.msk [vmem:[#allocation3 + $0x30] sm:$0xff] %vm1767, %v5762
      %5852 = vst.msk [vmem:[#allocation3 + $0x38] sm:$0xff] %vm1767, %v5764
      %5853 = vst.msk [vmem:[#allocation3 + $0x40] sm:$0xff] %vm1767, %v5766
      %5854 = vst.msk [vmem:[#allocation3 + $0x48] sm:$0xff] %vm1767, %v5768
      %5855 = vst.msk [vmem:[#allocation3 + $0x50] sm:$0xff] %vm1767, %v5770
      %5856 = vst.msk [vmem:[#allocation3 + $0x58] sm:$0xff] %vm1767, %v5772
      %5857 = vst.msk [vmem:[#allocation3 + $0x60] sm:$0xff] %vm1767, %v5774
      %5858 = vst.msk [vmem:[#allocation3 + $0x68] sm:$0xff] %vm1767, %v5776
      %5859 = vst.msk [vmem:[#allocation3 + $0x70] sm:$0xff] %vm1767, %v5778
      %5860 = vst.msk [vmem:[#allocation3 + $0x78] sm:$0xff] %vm1767, %v5780
      %5861 = vst.msk [vmem:[#allocation3 + $0x80] sm:$0xff] %vm1767, %v5782
      %5862 = vst.msk [vmem:[#allocation3 + $0x88] sm:$0xff] %vm1767, %v5784
      %5863 = vst.msk [vmem:[#allocation3 + $0x90] sm:$0xff] %vm1767, %v5786
      %5864 = vst.msk [vmem:[#allocation3 + $0x98] sm:$0xff] %vm1767, %v5788
      %5865 = vst.msk [vmem:[#allocation3 + $0xa0] sm:$0xff] %vm1767, %v5790
      %5866 = vst.msk [vmem:[#allocation3 + $0xa8] sm:$0xff] %vm1767, %v5792
      %5867 = vst.msk [vmem:[#allocation3 + $0xb0] sm:$0xff] %vm1767, %v5794
      %5868 = vst.msk [vmem:[#allocation3 + $0xb8] sm:$0xff] %vm1767, %v5796
      %5869 = vst.msk [vmem:[#allocation3 + $0xc0] sm:$0xff] %vm1767, %v5798
      %5870 = vst.msk [vmem:[#allocation3 + $0xc8] sm:$0xff] %vm1767, %v5800
      %5871 = vst.msk [vmem:[#allocation3 + $0xd0] sm:$0xff] %vm1767, %v5802
      %5872 = vst.msk [vmem:[#allocation3 + $0xd8] sm:$0xff] %vm1767, %v5804
      %5873 = vst.msk [vmem:[#allocation3 + $0xe0] sm:$0xff] %vm1767, %v5806
      %5874 = vst.msk [vmem:[#allocation3 + $0xe8] sm:$0xff] %vm1767, %v5808
      %5875 = vst.msk [vmem:[#allocation3 + $0xf0] sm:$0xff] %vm1767, %v5810
      %5876 = vst.msk [vmem:[#allocation3 + $0xf8] sm:$0xff] %vm1767, %v5812
      %v5877 = vld [vmem:[%s1413 + $0x2] sm:$0xff]
      %v5878 = vld [vmem:[%s1413 + $0xa] sm:$0xff]
      %v5879 = vld [vmem:[%s1413 + $0x1a] sm:$0xff]
      %v5880 = vld [vmem:[%s1413 + $0x22] sm:$0xff]
      %v5881 = vld [vmem:[%s1413 + $0x32] sm:$0xff]
      %v5882 = vld [vmem:[%s1413 + $0x3a] sm:$0xff]
      %v5883 = vld [vmem:[%s1413 + $0x4a] sm:$0xff]
      %v5884 = vld [vmem:[%s1413 + $0x52] sm:$0xff]
      %v5885 = vld [vmem:[%s1413 + $0x62] sm:$0xff]
      %v5886 = vld [vmem:[%s1413 + $0x6a] sm:$0xff]
      %v5887 = vld [vmem:[%s1413 + $0x7a] sm:$0xff]
      %v5888 = vld [vmem:[%s1413 + $0x82] sm:$0xff]
      %v5889 = vld [vmem:[%s1413 + $0x92] sm:$0xff]
      %v5890 = vld [vmem:[%s1413 + $0x9a] sm:$0xff]
      %v5891 = vld [vmem:[%s1413 + $0xaa] sm:$0xff]
      %v5892 = vld [vmem:[%s1413 + $0xb2] sm:$0xff]
      %v5893 = vld [vmem:[%s1413 + $0xc2] sm:$0xff]
      %v5894 = vld [vmem:[%s1413 + $0xca] sm:$0xff]
      %v5895 = vld [vmem:[%s1413 + $0xda] sm:$0xff]
      %v5896 = vld [vmem:[%s1413 + $0xe2] sm:$0xff]
      %v5897 = vld [vmem:[%s1413 + $0xf2] sm:$0xff]
      %v5898 = vld [vmem:[%s1413 + $0xfa] sm:$0xff]
      %v5899 = vld [vmem:[%s1413 + $0x10a] sm:$0xff]
      %v5900 = vld [vmem:[%s1413 + $0x112] sm:$0xff]
      %v5901 = vld [vmem:[%s1413 + $0x122] sm:$0xff]
      %v5902 = vld [vmem:[%s1413 + $0x12a] sm:$0xff]
      %v5903 = vld [vmem:[%s1413 + $0x13a] sm:$0xff]
      %v5904 = vld [vmem:[%s1413 + $0x142] sm:$0xff]
      %v5905 = vld [vmem:[%s1413 + $0x152] sm:$0xff]
      %v5906 = vld [vmem:[%s1413 + $0x15a] sm:$0xff]
      %v5907 = vld [vmem:[%s1413 + $0x16a] sm:$0xff]
      %v5908 = vld [vmem:[%s1413 + $0x172] sm:$0xff]
      %5941 = vrot.lane.b32.xlu0 %v5877, 32
      %v5942 = vpop.permute.xlu0 %5941
      %5943 = vrot.lane.b32.xlu0 %v5878, 32
      %v5944 = vpop.permute.xlu0 %5943
      %5945 = vrot.lane.b32.xlu0 %v5879, 32
      %v5946 = vpop.permute.xlu0 %5945
      %5947 = vrot.lane.b32.xlu0 %v5880, 32
      %v5948 = vpop.permute.xlu0 %5947
      %5949 = vrot.lane.b32.xlu0 %v5881, 32
      %v5950 = vpop.permute.xlu0 %5949
      %5951 = vrot.lane.b32.xlu0 %v5882, 32
      %v5952 = vpop.permute.xlu0 %5951
      %5953 = vrot.lane.b32.xlu0 %v5883, 32
      %v5954 = vpop.permute.xlu0 %5953
      %5955 = vrot.lane.b32.xlu0 %v5884, 32
      %v5956 = vpop.permute.xlu0 %5955
      %5957 = vrot.lane.b32.xlu0 %v5885, 32
      %v5958 = vpop.permute.xlu0 %5957
      %5959 = vrot.lane.b32.xlu0 %v5886, 32
      %v5960 = vpop.permute.xlu0 %5959
      %5961 = vrot.lane.b32.xlu0 %v5887, 32
      %v5962 = vpop.permute.xlu0 %5961
      %5963 = vrot.lane.b32.xlu0 %v5888, 32
      %v5964 = vpop.permute.xlu0 %5963
      %5965 = vrot.lane.b32.xlu0 %v5889, 32
      %v5966 = vpop.permute.xlu0 %5965
      %5967 = vrot.lane.b32.xlu0 %v5890, 32
      %v5968 = vpop.permute.xlu0 %5967
      %5969 = vrot.lane.b32.xlu0 %v5891, 32
      %v5970 = vpop.permute.xlu0 %5969
      %5971 = vrot.lane.b32.xlu0 %v5892, 32
      %v5972 = vpop.permute.xlu0 %5971
      %5973 = vrot.lane.b32.xlu0 %v5893, 32
      %v5974 = vpop.permute.xlu0 %5973
      %5975 = vrot.lane.b32.xlu0 %v5894, 32
      %v5976 = vpop.permute.xlu0 %5975
      %5977 = vrot.lane.b32.xlu0 %v5895, 32
      %v5978 = vpop.permute.xlu0 %5977
      %5979 = vrot.lane.b32.xlu0 %v5896, 32
      %v5980 = vpop.permute.xlu0 %5979
      %5981 = vrot.lane.b32.xlu0 %v5897, 32
      %v5982 = vpop.permute.xlu0 %5981
      %5983 = vrot.lane.b32.xlu0 %v5898, 32
      %v5984 = vpop.permute.xlu0 %5983
      %5985 = vrot.lane.b32.xlu0 %v5899, 32
      %v5986 = vpop.permute.xlu0 %5985
      %5987 = vrot.lane.b32.xlu0 %v5900, 32
      %v5988 = vpop.permute.xlu0 %5987
      %5989 = vrot.lane.b32.xlu0 %v5901, 32
      %v5990 = vpop.permute.xlu0 %5989
      %5991 = vrot.lane.b32.xlu0 %v5902, 32
      %v5992 = vpop.permute.xlu0 %5991
      %5993 = vrot.lane.b32.xlu0 %v5903, 32
      %v5994 = vpop.permute.xlu0 %5993
      %5995 = vrot.lane.b32.xlu0 %v5904, 32
      %v5996 = vpop.permute.xlu0 %5995
      %5997 = vrot.lane.b32.xlu0 %v5905, 32
      %v5998 = vpop.permute.xlu0 %5997
      %5999 = vrot.lane.b32.xlu0 %v5906, 32
      %v6000 = vpop.permute.xlu0 %5999
      %6001 = vrot.lane.b32.xlu0 %v5907, 32
      %v6002 = vpop.permute.xlu0 %6001
      %6003 = vrot.lane.b32.xlu0 %v5908, 32
      %v6004 = vpop.permute.xlu0 %6003
      %6037 = vst.msk [vmem:[#allocation3] sm:$0xff] %vm1960, %v5942
      %6038 = vst.msk [vmem:[#allocation3 + $0x8] sm:$0xff] %vm1960, %v5944
      %6039 = vst.msk [vmem:[#allocation3 + $0x10] sm:$0xff] %vm1960, %v5946
      %6040 = vst.msk [vmem:[#allocation3 + $0x18] sm:$0xff] %vm1960, %v5948
      %6041 = vst.msk [vmem:[#allocation3 + $0x20] sm:$0xff] %vm1960, %v5950
      %6042 = vst.msk [vmem:[#allocation3 + $0x28] sm:$0xff] %vm1960, %v5952
      %6043 = vst.msk [vmem:[#allocation3 + $0x30] sm:$0xff] %vm1960, %v5954
      %6044 = vst.msk [vmem:[#allocation3 + $0x38] sm:$0xff] %vm1960, %v5956
      %6045 = vst.msk [vmem:[#allocation3 + $0x40] sm:$0xff] %vm1960, %v5958
      %6046 = vst.msk [vmem:[#allocation3 + $0x48] sm:$0xff] %vm1960, %v5960
      %6047 = vst.msk [vmem:[#allocation3 + $0x50] sm:$0xff] %vm1960, %v5962
      %6048 = vst.msk [vmem:[#allocation3 + $0x58] sm:$0xff] %vm1960, %v5964
      %6049 = vst.msk [vmem:[#allocation3 + $0x60] sm:$0xff] %vm1960, %v5966
      %6050 = vst.msk [vmem:[#allocation3 + $0x68] sm:$0xff] %vm1960, %v5968
      %6051 = vst.msk [vmem:[#allocation3 + $0x70] sm:$0xff] %vm1960, %v5970
      %6052 = vst.msk [vmem:[#allocation3 + $0x78] sm:$0xff] %vm1960, %v5972
      %6053 = vst.msk [vmem:[#allocation3 + $0x80] sm:$0xff] %vm1960, %v5974
      %6054 = vst.msk [vmem:[#allocation3 + $0x88] sm:$0xff] %vm1960, %v5976
      %6055 = vst.msk [vmem:[#allocation3 + $0x90] sm:$0xff] %vm1960, %v5978
      %6056 = vst.msk [vmem:[#allocation3 + $0x98] sm:$0xff] %vm1960, %v5980
      %6057 = vst.msk [vmem:[#allocation3 + $0xa0] sm:$0xff] %vm1960, %v5982
      %6058 = vst.msk [vmem:[#allocation3 + $0xa8] sm:$0xff] %vm1960, %v5984
      %6059 = vst.msk [vmem:[#allocation3 + $0xb0] sm:$0xff] %vm1960, %v5986
      %6060 = vst.msk [vmem:[#allocation3 + $0xb8] sm:$0xff] %vm1960, %v5988
      %6061 = vst.msk [vmem:[#allocation3 + $0xc0] sm:$0xff] %vm1960, %v5990
      %6062 = vst.msk [vmem:[#allocation3 + $0xc8] sm:$0xff] %vm1960, %v5992
      %6063 = vst.msk [vmem:[#allocation3 + $0xd0] sm:$0xff] %vm1960, %v5994
      %6064 = vst.msk [vmem:[#allocation3 + $0xd8] sm:$0xff] %vm1960, %v5996
      %6065 = vst.msk [vmem:[#allocation3 + $0xe0] sm:$0xff] %vm1960, %v5998
      %6066 = vst.msk [vmem:[#allocation3 + $0xe8] sm:$0xff] %vm1960, %v6000
      %6067 = vst.msk [vmem:[#allocation3 + $0xf0] sm:$0xff] %vm1960, %v6002
      %6068 = vst.msk [vmem:[#allocation3 + $0xf8] sm:$0xff] %vm1960, %v6004
      %v6069 = vld [vmem:[#allocation3] sm:$0xff]
      %v6070 = vld [vmem:[#allocation3 + $0x8] sm:$0xff]
      %v6071 = vld [vmem:[#allocation3 + $0x10] sm:$0xff]
      %v6072 = vld [vmem:[#allocation3 + $0x18] sm:$0xff]
      %v6073 = vld [vmem:[#allocation3 + $0x20] sm:$0xff]
      %v6074 = vld [vmem:[#allocation3 + $0x28] sm:$0xff]
      %v6075 = vld [vmem:[#allocation3 + $0x30] sm:$0xff]
      %v6076 = vld [vmem:[#allocation3 + $0x38] sm:$0xff]
      %v6077 = vld [vmem:[#allocation3 + $0x40] sm:$0xff]
      %v6078 = vld [vmem:[#allocation3 + $0x48] sm:$0xff]
      %v6079 = vld [vmem:[#allocation3 + $0x50] sm:$0xff]
      %v6080 = vld [vmem:[#allocation3 + $0x58] sm:$0xff]
      %v6081 = vld [vmem:[#allocation3 + $0x60] sm:$0xff]
      %v6082 = vld [vmem:[#allocation3 + $0x68] sm:$0xff]
      %v6083 = vld [vmem:[#allocation3 + $0x70] sm:$0xff]
      %v6084 = vld [vmem:[#allocation3 + $0x78] sm:$0xff]
      %v6085 = vld [vmem:[#allocation3 + $0x80] sm:$0xff]
      %v6086 = vld [vmem:[#allocation3 + $0x88] sm:$0xff]
      %v6087 = vld [vmem:[#allocation3 + $0x90] sm:$0xff]
      %v6088 = vld [vmem:[#allocation3 + $0x98] sm:$0xff]
      %v6089 = vld [vmem:[#allocation3 + $0xa0] sm:$0xff]
      %v6090 = vld [vmem:[#allocation3 + $0xa8] sm:$0xff]
      %v6091 = vld [vmem:[#allocation3 + $0xb0] sm:$0xff]
      %v6092 = vld [vmem:[#allocation3 + $0xb8] sm:$0xff]
      %v6093 = vld [vmem:[#allocation3 + $0xc0] sm:$0xff]
      %v6094 = vld [vmem:[#allocation3 + $0xc8] sm:$0xff]
      %v6095 = vld [vmem:[#allocation3 + $0xd0] sm:$0xff]
      %v6096 = vld [vmem:[#allocation3 + $0xd8] sm:$0xff]
      %v6097 = vld [vmem:[#allocation3 + $0xe0] sm:$0xff]
      %v6098 = vld [vmem:[#allocation3 + $0xe8] sm:$0xff]
      %v6099 = vld [vmem:[#allocation3 + $0xf0] sm:$0xff]
      %v6100 = vld [vmem:[#allocation3 + $0xf8] sm:$0xff]
      %v6101 = vpack.c.bf16 %v6070, %v6069
      %v6102 = vpack.c.bf16 %v6072, %v6071
      %v6103 = vpack.c.bf16 %v6074, %v6073
      %v6104 = vpack.c.bf16 %v6076, %v6075
      %v6105 = vpack.c.bf16 %v6078, %v6077
      %v6106 = vpack.c.bf16 %v6080, %v6079
      %v6107 = vpack.c.bf16 %v6082, %v6081
      %v6108 = vpack.c.bf16 %v6084, %v6083
      %v6109 = vpack.c.bf16 %v6086, %v6085
      %v6110 = vpack.c.bf16 %v6088, %v6087
      %v6111 = vpack.c.bf16 %v6090, %v6089
      %v6112 = vpack.c.bf16 %v6092, %v6091
      %v6113 = vpack.c.bf16 %v6094, %v6093
      %v6114 = vpack.c.bf16 %v6096, %v6095
      %v6115 = vpack.c.bf16 %v6098, %v6097
      %v6116 = vpack.c.bf16 %v6100, %v6099
      %v6117 = vlaneseq
      %v6118 = vshrl.u32 %v6117, 7
      %v6119 = vsub.s32 0, %v6118
      %v6120 = vrot.slane %v4435, %v6119
      %v6126 = vunpack.c.l.b16 %v4430
      %v6127 = vunpack.c.l.b16 %v4431
      %v6128 = vunpack.c.l.b16 %v4432
      %v6129 = vunpack.c.l.b16 %v4433
      %v6130 = vunpack.c.l.b16 %v4434
      %v6131 = vpack.c.b16 %v6127, %v6126
      %v6132 = vpack.c.b16 %v6129, %v6128
      %v6133 = vpack.c.b16 %v6130, %v6130
      %v6137 = vsel %vm2060, %v6101, 0
      %v6140 = vsel %vm2060, %v6102, 0
      %v6143 = vsel %vm2060, %v6103, 0
      %v6146 = vsel %vm2060, %v6104, 0
      %v6149 = vsel %vm2060, %v6105, 0
      %v6152 = vsel %vm2060, %v6106, 0
      %v6155 = vsel %vm2060, %v6107, 0
      %v6158 = vsel %vm2060, %v6108, 0
      %v6161 = vsel %vm2060, %v6109, 0
      %v6164 = vsel %vm2060, %v6110, 0
      %v6167 = vsel %vm2060, %v6111, 0
      %v6170 = vsel %vm2060, %v6112, 0
      %v6173 = vsel %vm2060, %v6113, 0
      %v6176 = vsel %vm2060, %v6114, 0
      %v6179 = vsel %vm2060, %v6115, 0
      %v6182 = vsel %vm2060, %v6116, 0
      %v6185 = vsel %vm2109, %v6133, 0
      %6187 = vmatprep.subr.bf16.mxu0 0
      %6188 = vmatpush1.bf16.msra.mxu0 %v6131
      %6189 = vmatprep.subr.bf16.mxu0 0
      %6190 = vmatpush1.bf16.msra.mxu0 %v6132
      %6191 = vmatprep.subr.bf16.mxu0 0
      %6192 = vmatpush1.bf16.msra.mxu0 %v6185
      %6193 = vmatprep.subr.bf16.mxu0 0
      %6194 = vmatpush1.bf16.msra.mxu0 0
      %6195 = vmatprep.subr.bf16.mxu0 0
      %6196 = vmatpush1.bf16.msra.mxu0 0
      %6197 = vmatprep.subr.bf16.mxu0 0
      %6198 = vmatpush1.bf16.msra.mxu0 0
      %6199 = vmatprep.subr.bf16.mxu0 0
      %6200 = vmatpush1.bf16.msra.mxu0 0
      %6201 = vmatprep.subr.bf16.mxu0 0
      %6202 = vmatpush1.bf16.msra.mxu0 0
      %6203 = vmatprep.subr.bf16.mxu0 0
      %6204 = vmatpush1.bf16.msra.mxu0 0
      %6205 = vmatprep.subr.bf16.mxu0 0
      %6206 = vmatpush1.bf16.msra.mxu0 0
      %6207 = vmatprep.subr.bf16.mxu0 0
      %6208 = vmatpush1.bf16.msra.mxu0 0
      %6209 = vmatprep.subr.bf16.mxu0 0
      %6210 = vmatpush1.bf16.msra.mxu0 0
      %6211 = vmatprep.subr.bf16.mxu0 0
      %6212 = vmatpush1.bf16.msra.mxu0 0
      %6213 = vmatprep.subr.bf16.mxu0 0
      %6214 = vmatpush1.bf16.msra.mxu0 0
      %6215 = vmatprep.subr.bf16.mxu0 0
      %6216 = vmatpush1.bf16.msra.mxu0 0
      %6217 = vmatprep.subr.bf16.mxu0 0
      %6218 = vmatpush1.bf16.msra.mxu0 0
      %6219 = vmatprep.mubr.bf16.mxu0 0
      %6220 = vmatmul.mubr.bf16.gmra.mrb[0].mxu0 %v6137
      %v6221 = vpop.f32.mrb[0].mxu0
      %v6222 = vadd.f32 %v6120, %v6221
      %v6223 = vpop.f32.mrb[0].mxu0
      %v6224 = vpop.f32.mrb[0].mxu0
      %v6225 = vadd.f32 %v6120, %v6224
      %v6226 = vpop.f32.mrb[0].mxu0
      %6227 = vmatprep.mubr.bf16.mxu0 0
      %6228 = vmatmul.mubr.bf16.gmra.mrb[0].mxu0 %v6140
      %v6229 = vpop.f32.mrb[0].mxu0
      %v6230 = vadd.f32 %v6120, %v6229
      %v6231 = vpop.f32.mrb[0].mxu0
      %v6232 = vpop.f32.mrb[0].mxu0
      %v6233 = vadd.f32 %v6120, %v6232
      %v6234 = vpop.f32.mrb[0].mxu0
      %6235 = vmatprep.mubr.bf16.mxu0 0
      %6236 = vmatmul.mubr.bf16.gmra.mrb[0].mxu0 %v6143
      %v6237 = vpop.f32.mrb[0].mxu0
      %v6238 = vadd.f32 %v6120, %v6237
      %v6239 = vpop.f32.mrb[0].mxu0
      %v6240 = vpop.f32.mrb[0].mxu0
      %v6241 = vadd.f32 %v6120, %v6240
      %v6242 = vpop.f32.mrb[0].mxu0
      %6243 = vmatprep.mubr.bf16.mxu0 0
      %6244 = vmatmul.mubr.bf16.gmra.mrb[0].mxu0 %v6146
      %v6245 = vpop.f32.mrb[0].mxu0
      %v6246 = vadd.f32 %v6120, %v6245
      %v6247 = vpop.f32.mrb[0].mxu0
      %v6248 = vpop.f32.mrb[0].mxu0
      %v6249 = vadd.f32 %v6120, %v6248
      %v6250 = vpop.f32.mrb[0].mxu0
      %6251 = vmatprep.mubr.bf16.mxu0 0
      %6252 = vmatmul.mubr.bf16.gmra.mrb[0].mxu0 %v6149
      %v6253 = vpop.f32.mrb[0].mxu0
      %v6254 = vadd.f32 %v6120, %v6253
      %v6255 = vpop.f32.mrb[0].mxu0
      %v6256 = vpop.f32.mrb[0].mxu0
      %v6257 = vadd.f32 %v6120, %v6256
      %v6258 = vpop.f32.mrb[0].mxu0
      %6259 = vmatprep.mubr.bf16.mxu0 0
      %6260 = vmatmul.mubr.bf16.gmra.mrb[0].mxu0 %v6152
      %v6261 = vpop.f32.mrb[0].mxu0
      %v6262 = vadd.f32 %v6120, %v6261
      %v6263 = vpop.f32.mrb[0].mxu0
      %v6264 = vpop.f32.mrb[0].mxu0
      %v6265 = vadd.f32 %v6120, %v6264
      %v6266 = vpop.f32.mrb[0].mxu0
      %6267 = vmatprep.mubr.bf16.mxu0 0
      %6268 = vmatmul.mubr.bf16.gmra.mrb[0].mxu0 %v6155
      %v6269 = vpop.f32.mrb[0].mxu0
      %v6270 = vadd.f32 %v6120, %v6269
      %v6271 = vpop.f32.mrb[0].mxu0
      %v6272 = vpop.f32.mrb[0].mxu0
      %v6273 = vadd.f32 %v6120, %v6272
      %v6274 = vpop.f32.mrb[0].mxu0
      %6275 = vmatprep.mubr.bf16.mxu0 0
      %6276 = vmatmul.mubr.bf16.gmra.mrb[0].mxu0 %v6158
      %v6277 = vpop.f32.mrb[0].mxu0
      %v6278 = vadd.f32 %v6120, %v6277
      %v6279 = vpop.f32.mrb[0].mxu0
      %v6280 = vpop.f32.mrb[0].mxu0
      %v6281 = vadd.f32 %v6120, %v6280
      %v6282 = vpop.f32.mrb[0].mxu0
      %6283 = vmatprep.mubr.bf16.mxu0 0
      %6284 = vmatmul.mubr.bf16.gmra.mrb[0].mxu0 %v6161
      %v6285 = vpop.f32.mrb[0].mxu0
      %v6286 = vadd.f32 %v6120, %v6285
      %v6287 = vpop.f32.mrb[0].mxu0
      %v6288 = vpop.f32.mrb[0].mxu0
      %v6289 = vadd.f32 %v6120, %v6288
      %v6290 = vpop.f32.mrb[0].mxu0
      %6291 = vmatprep.mubr.bf16.mxu0 0
      %6292 = vmatmul.mubr.bf16.gmra.mrb[0].mxu0 %v6164
      %v6293 = vpop.f32.mrb[0].mxu0
      %v6294 = vadd.f32 %v6120, %v6293
      %v6295 = vpop.f32.mrb[0].mxu0
      %v6296 = vpop.f32.mrb[0].mxu0
      %v6297 = vadd.f32 %v6120, %v6296
      %v6298 = vpop.f32.mrb[0].mxu0
      %6299 = vmatprep.mubr.bf16.mxu0 0
      %6300 = vmatmul.mubr.bf16.gmra.mrb[0].mxu0 %v6167
      %v6301 = vpop.f32.mrb[0].mxu0
      %v6302 = vadd.f32 %v6120, %v6301
      %v6303 = vpop.f32.mrb[0].mxu0
      %v6304 = vpop.f32.mrb[0].mxu0
      %v6305 = vadd.f32 %v6120, %v6304
      %v6306 = vpop.f32.mrb[0].mxu0
      %6307 = vmatprep.mubr.bf16.mxu0 0
      %6308 = vmatmul.mubr.bf16.gmra.mrb[0].mxu0 %v6170
      %v6309 = vpop.f32.mrb[0].mxu0
      %v6310 = vadd.f32 %v6120, %v6309
      %v6311 = vpop.f32.mrb[0].mxu0
      %v6312 = vpop.f32.mrb[0].mxu0
      %v6313 = vadd.f32 %v6120, %v6312
      %v6314 = vpop.f32.mrb[0].mxu0
      %6315 = vmatprep.mubr.bf16.mxu0 0
      %6316 = vmatmul.mubr.bf16.gmra.mrb[0].mxu0 %v6173
      %v6317 = vpop.f32.mrb[0].mxu0
      %v6318 = vadd.f32 %v6120, %v6317
      %v6319 = vpop.f32.mrb[0].mxu0
      %v6320 = vpop.f32.mrb[0].mxu0
      %v6321 = vadd.f32 %v6120, %v6320
      %v6322 = vpop.f32.mrb[0].mxu0
      %6323 = vmatprep.mubr.bf16.mxu0 0
      %6324 = vmatmul.mubr.bf16.gmra.mrb[0].mxu0 %v6176
      %v6325 = vpop.f32.mrb[0].mxu0
      %v6326 = vadd.f32 %v6120, %v6325
      %v6327 = vpop.f32.mrb[0].mxu0
      %v6328 = vpop.f32.mrb[0].mxu0
      %v6329 = vadd.f32 %v6120, %v6328
      %v6330 = vpop.f32.mrb[0].mxu0
      %6331 = vmatprep.mubr.bf16.mxu0 0
      %6332 = vmatmul.mubr.bf16.gmra.mrb[0].mxu0 %v6179
      %v6333 = vpop.f32.mrb[0].mxu0
      %v6334 = vadd.f32 %v6120, %v6333
      %v6335 = vpop.f32.mrb[0].mxu0
      %v6336 = vpop.f32.mrb[0].mxu0
      %v6337 = vadd.f32 %v6120, %v6336
      %v6338 = vpop.f32.mrb[0].mxu0
      %6339 = vmatprep.mubr.bf16.mxu0 0
      %6340 = vmatmul.mubr.bf16.gmra.mrb[0].mxu0 %v6182
      %v6341 = vpop.f32.mrb[0].mxu0
      %v6342 = vadd.f32 %v6120, %v6341
      %v6343 = vpop.f32.mrb[0].mxu0
      %v6344 = vpop.f32.mrb[0].mxu0
      %v6345 = vadd.f32 %v6120, %v6344
      %v6346 = vpop.f32.mrb[0].mxu0
      %6347 = vdwg.mxu0
      %vm6348 = vcmp.ge.f32.partialorder %v6222, 0.0
      %vm6349 = vcmp.ge.f32.partialorder %v6225, 0.0
      %vm6350 = vcmp.ge.f32.partialorder %v6230, 0.0
      %vm6351 = vcmp.ge.f32.partialorder %v6233, 0.0
      %vm6352 = vcmp.ge.f32.partialorder %v6238, 0.0
      %vm6353 = vcmp.ge.f32.partialorder %v6241, 0.0
      %vm6354 = vcmp.ge.f32.partialorder %v6246, 0.0
      %vm6355 = vcmp.ge.f32.partialorder %v6249, 0.0
      %vm6356 = vcmp.ge.f32.partialorder %v6254, 0.0
      %vm6357 = vcmp.ge.f32.partialorder %v6257, 0.0
      %vm6358 = vcmp.ge.f32.partialorder %v6262, 0.0
      %vm6359 = vcmp.ge.f32.partialorder %v6265, 0.0
      %vm6360 = vcmp.ge.f32.partialorder %v6270, 0.0
      %vm6361 = vcmp.ge.f32.partialorder %v6273, 0.0
      %vm6362 = vcmp.ge.f32.partialorder %v6278, 0.0
      %vm6363 = vcmp.ge.f32.partialorder %v6281, 0.0
      %vm6364 = vcmp.ge.f32.partialorder %v6286, 0.0
      %vm6365 = vcmp.ge.f32.partialorder %v6289, 0.0
      %vm6366 = vcmp.ge.f32.partialorder %v6294, 0.0
      %vm6367 = vcmp.ge.f32.partialorder %v6297, 0.0
      %vm6368 = vcmp.ge.f32.partialorder %v6302, 0.0
      %vm6369 = vcmp.ge.f32.partialorder %v6305, 0.0
      %vm6370 = vcmp.ge.f32.partialorder %v6310, 0.0
      %vm6371 = vcmp.ge.f32.partialorder %v6313, 0.0
      %vm6372 = vcmp.ge.f32.partialorder %v6318, 0.0
      %vm6373 = vcmp.ge.f32.partialorder %v6321, 0.0
      %vm6374 = vcmp.ge.f32.partialorder %v6326, 0.0
      %vm6375 = vcmp.ge.f32.partialorder %v6329, 0.0
      %vm6376 = vcmp.ge.f32.partialorder %v6334, 0.0
      %vm6377 = vcmp.ge.f32.partialorder %v6337, 0.0
      %vm6378 = vcmp.ge.f32.partialorder %v6342, 0.0
      %vm6379 = vcmp.ge.f32.partialorder %v6345, 0.0
      %v6380 = vlaneseq
      %v6381 = vshrl.u32 %v6380, 7
      %v6382 = vsub.s32 0, %v6381
      %v6383 = vrot.slane %v4436, %v6382
      %v6384 = vmul.f32 %v6383, %v6222
      %v6385 = vmul.f32 %v6383, %v6225
      %v6386 = vmul.f32 %v6383, %v6230
      %v6387 = vmul.f32 %v6383, %v6233
      %v6388 = vmul.f32 %v6383, %v6238
      %v6389 = vmul.f32 %v6383, %v6241
      %v6390 = vmul.f32 %v6383, %v6246
      %v6391 = vmul.f32 %v6383, %v6249
      %v6392 = vmul.f32 %v6383, %v6254
      %v6393 = vmul.f32 %v6383, %v6257
      %v6394 = vmul.f32 %v6383, %v6262
      %v6395 = vmul.f32 %v6383, %v6265
      %v6396 = vmul.f32 %v6383, %v6270
      %v6397 = vmul.f32 %v6383, %v6273
      %v6398 = vmul.f32 %v6383, %v6278
      %v6399 = vmul.f32 %v6383, %v6281
      %v6400 = vmul.f32 %v6383, %v6286
      %v6401 = vmul.f32 %v6383, %v6289
      %v6402 = vmul.f32 %v6383, %v6294
      %v6403 = vmul.f32 %v6383, %v6297
      %v6404 = vmul.f32 %v6383, %v6302
      %v6405 = vmul.f32 %v6383, %v6305
      %v6406 = vmul.f32 %v6383, %v6310
      %v6407 = vmul.f32 %v6383, %v6313
      %v6408 = vmul.f32 %v6383, %v6318
      %v6409 = vmul.f32 %v6383, %v6321
      %v6410 = vmul.f32 %v6383, %v6326
      %v6411 = vmul.f32 %v6383, %v6329
      %v6412 = vmul.f32 %v6383, %v6334
      %v6413 = vmul.f32 %v6383, %v6337
      %v6414 = vmul.f32 %v6383, %v6342
      %v6415 = vmul.f32 %v6383, %v6345
      %v6416 = vsel %vm6348, %v6222, %v6384
      %v6417 = vsel %vm6349, %v6225, %v6385
      %v6418 = vsel %vm6350, %v6230, %v6386
      %v6419 = vsel %vm6351, %v6233, %v6387
      %v6420 = vsel %vm6352, %v6238, %v6388
      %v6421 = vsel %vm6353, %v6241, %v6389
      %v6422 = vsel %vm6354, %v6246, %v6390
      %v6423 = vsel %vm6355, %v6249, %v6391
      %v6424 = vsel %vm6356, %v6254, %v6392
      %v6425 = vsel %vm6357, %v6257, %v6393
      %v6426 = vsel %vm6358, %v6262, %v6394
      %v6427 = vsel %vm6359, %v6265, %v6395
      %v6428 = vsel %vm6360, %v6270, %v6396
      %v6429 = vsel %vm6361, %v6273, %v6397
      %v6430 = vsel %vm6362, %v6278, %v6398
      %v6431 = vsel %vm6363, %v6281, %v6399
      %v6432 = vsel %vm6364, %v6286, %v6400
      %v6433 = vsel %vm6365, %v6289, %v6401
      %v6434 = vsel %vm6366, %v6294, %v6402
      %v6435 = vsel %vm6367, %v6297, %v6403
      %v6436 = vsel %vm6368, %v6302, %v6404
      %v6437 = vsel %vm6369, %v6305, %v6405
      %v6438 = vsel %vm6370, %v6310, %v6406
      %v6439 = vsel %vm6371, %v6313, %v6407
      %v6440 = vsel %vm6372, %v6318, %v6408
      %v6441 = vsel %vm6373, %v6321, %v6409
      %v6442 = vsel %vm6374, %v6326, %v6410
      %v6443 = vsel %vm6375, %v6329, %v6411
      %v6444 = vsel %vm6376, %v6334, %v6412
      %v6445 = vsel %vm6377, %v6337, %v6413
      %v6446 = vsel %vm6378, %v6342, %v6414
      %v6447 = vsel %vm6379, %v6345, %v6415
      %v6448 = vld [vmem:[%s1 + $0x34] sm:$0xc]
      %v6449 = vld [vmem:[%s1 + $0x38] sm:$0xf]
      %v6450 = vld [vmem:[%s1 + $0x3c] sm:$0xf]
      %v6451 = vld [vmem:[%s1 + $0x40] sm:$0xf]
      %v6452 = vld [vmem:[%s1 + $0x44] sm:$0xf]
      %v6453 = vld [vmem:[%s2 + $0x6] sm:$0x1]
      %v6454 = vld [vmem:[%s2 + $0x7] sm:$0x1]
      %6455 = vst.msk [vmem:[%s351 + $0x1] sm:$0xff] %vm253, %v6416
      %6456 = vst.msk [vmem:[%s351 + $0x9] sm:$0xff] %vm253, %v6417
      %6457 = vst.msk [vmem:[%s351 + $0x19] sm:$0xff] %vm253, %v6418
      %6458 = vst.msk [vmem:[%s351 + $0x21] sm:$0xff] %vm253, %v6419
      %6459 = vst.msk [vmem:[%s351 + $0x31] sm:$0xff] %vm253, %v6420
      %6460 = vst.msk [vmem:[%s351 + $0x39] sm:$0xff] %vm253, %v6421
      %6461 = vst.msk [vmem:[%s351 + $0x49] sm:$0xff] %vm253, %v6422
      %6462 = vst.msk [vmem:[%s351 + $0x51] sm:$0xff] %vm253, %v6423
      %6463 = vst.msk [vmem:[%s351 + $0x61] sm:$0xff] %vm253, %v6424
      %6464 = vst.msk [vmem:[%s351 + $0x69] sm:$0xff] %vm253, %v6425
      %6465 = vst.msk [vmem:[%s351 + $0x79] sm:$0xff] %vm253, %v6426
      %6466 = vst.msk [vmem:[%s351 + $0x81] sm:$0xff] %vm253, %v6427
      %6467 = vst.msk [vmem:[%s351 + $0x91] sm:$0xff] %vm253, %v6428
      %6468 = vst.msk [vmem:[%s351 + $0x99] sm:$0xff] %vm253, %v6429
      %6469 = vst.msk [vmem:[%s351 + $0xa9] sm:$0xff] %vm253, %v6430
      %6470 = vst.msk [vmem:[%s351 + $0xb1] sm:$0xff] %vm253, %v6431
      %6471 = vst.msk [vmem:[%s351 + $0xc1] sm:$0xff] %vm253, %v6432
      %6472 = vst.msk [vmem:[%s351 + $0xc9] sm:$0xff] %vm253, %v6433
      %6473 = vst.msk [vmem:[%s351 + $0xd9] sm:$0xff] %vm253, %v6434
      %6474 = vst.msk [vmem:[%s351 + $0xe1] sm:$0xff] %vm253, %v6435
      %6475 = vst.msk [vmem:[%s351 + $0xf1] sm:$0xff] %vm253, %v6436
      %6476 = vst.msk [vmem:[%s351 + $0xf9] sm:$0xff] %vm253, %v6437
      %6477 = vst.msk [vmem:[%s351 + $0x109] sm:$0xff] %vm253, %v6438
      %6478 = vst.msk [vmem:[%s351 + $0x111] sm:$0xff] %vm253, %v6439
      %6479 = vst.msk [vmem:[%s351 + $0x121] sm:$0xff] %vm253, %v6440
      %6480 = vst.msk [vmem:[%s351 + $0x129] sm:$0xff] %vm253, %v6441
      %6481 = vst.msk [vmem:[%s351 + $0x139] sm:$0xff] %vm253, %v6442
      %6482 = vst.msk [vmem:[%s351 + $0x141] sm:$0xff] %vm253, %v6443
      %6483 = vst.msk [vmem:[%s351 + $0x151] sm:$0xff] %vm253, %v6444
      %6484 = vst.msk [vmem:[%s351 + $0x159] sm:$0xff] %vm253, %v6445
      %6485 = vst.msk [vmem:[%s351 + $0x169] sm:$0xff] %vm253, %v6446
      %6486 = vst.msk [vmem:[%s351 + $0x171] sm:$0xff] %vm253, %v6447
      %v6487 = vld [vmem:[#allocation2] sm:$0xff]
      %v6488 = vld [vmem:[#allocation2 + $0x8] sm:$0xff]
      %v6489 = vld [vmem:[#allocation2 + $0x18] sm:$0xff]
      %v6490 = vld [vmem:[#allocation2 + $0x20] sm:$0xff]
      %v6491 = vld [vmem:[#allocation2 + $0x30] sm:$0xff]
      %v6492 = vld [vmem:[#allocation2 + $0x38] sm:$0xff]
      %v6493 = vld [vmem:[#allocation2 + $0x48] sm:$0xff]
      %v6494 = vld [vmem:[#allocation2 + $0x50] sm:$0xff]
      %v6495 = vld [vmem:[#allocation2 + $0x60] sm:$0xff]
      %v6496 = vld [vmem:[#allocation2 + $0x68] sm:$0xff]
      %v6497 = vld [vmem:[#allocation2 + $0x78] sm:$0xff]
      %v6498 = vld [vmem:[#allocation2 + $0x80] sm:$0xff]
      %v6499 = vld [vmem:[#allocation2 + $0x90] sm:$0xff]
      %v6500 = vld [vmem:[#allocation2 + $0x98] sm:$0xff]
      %v6501 = vld [vmem:[#allocation2 + $0xa8] sm:$0xff]
      %v6502 = vld [vmem:[#allocation2 + $0xb0] sm:$0xff]
      %v6503 = vld [vmem:[#allocation2 + $0xc0] sm:$0xff]
      %v6504 = vld [vmem:[#allocation2 + $0xc8] sm:$0xff]
      %v6505 = vld [vmem:[#allocation2 + $0xd8] sm:$0xff]
      %v6506 = vld [vmem:[#allocation2 + $0xe0] sm:$0xff]
      %v6507 = vld [vmem:[#allocation2 + $0xf0] sm:$0xff]
      %v6508 = vld [vmem:[#allocation2 + $0xf8] sm:$0xff]
      %v6509 = vld [vmem:[#allocation2 + $0x108] sm:$0xff]
      %v6510 = vld [vmem:[#allocation2 + $0x110] sm:$0xff]
      %v6511 = vld [vmem:[#allocation2 + $0x120] sm:$0xff]
      %v6512 = vld [vmem:[#allocation2 + $0x128] sm:$0xff]
      %v6513 = vld [vmem:[#allocation2 + $0x138] sm:$0xff]
      %v6514 = vld [vmem:[#allocation2 + $0x140] sm:$0xff]
      %v6515 = vld [vmem:[#allocation2 + $0x150] sm:$0xff]
      %v6516 = vld [vmem:[#allocation2 + $0x158] sm:$0xff]
      %v6517 = vld [vmem:[#allocation2 + $0x168] sm:$0xff]
      %v6518 = vld [vmem:[#allocation2 + $0x170] sm:$0xff]
      %6519 = vst.msk [vmem:[#allocation3] sm:$0xff] %vm253, %v6487
      %6520 = vst.msk [vmem:[#allocation3 + $0x8] sm:$0xff] %vm253, %v6488
      %6521 = vst.msk [vmem:[#allocation3 + $0x10] sm:$0xff] %vm253, %v6489
      %6522 = vst.msk [vmem:[#allocation3 + $0x18] sm:$0xff] %vm253, %v6490
      %6523 = vst.msk [vmem:[#allocation3 + $0x20] sm:$0xff] %vm253, %v6491
      %6524 = vst.msk [vmem:[#allocation3 + $0x28] sm:$0xff] %vm253, %v6492
      %6525 = vst.msk [vmem:[#allocation3 + $0x30] sm:$0xff] %vm253, %v6493
      %6526 = vst.msk [vmem:[#allocation3 + $0x38] sm:$0xff] %vm253, %v6494
      %6527 = vst.msk [vmem:[#allocation3 + $0x40] sm:$0xff] %vm253, %v6495
      %6528 = vst.msk [vmem:[#allocation3 + $0x48] sm:$0xff] %vm253, %v6496
      %6529 = vst.msk [vmem:[#allocation3 + $0x50] sm:$0xff] %vm253, %v6497
      %6530 = vst.msk [vmem:[#allocation3 + $0x58] sm:$0xff] %vm253, %v6498
      %6531 = vst.msk [vmem:[#allocation3 + $0x60] sm:$0xff] %vm253, %v6499
      %6532 = vst.msk [vmem:[#allocation3 + $0x68] sm:$0xff] %vm253, %v6500
      %6533 = vst.msk [vmem:[#allocation3 + $0x70] sm:$0xff] %vm253, %v6501
      %6534 = vst.msk [vmem:[#allocation3 + $0x78] sm:$0xff] %vm253, %v6502
      %6535 = vst.msk [vmem:[#allocation3 + $0x80] sm:$0xff] %vm253, %v6503
      %6536 = vst.msk [vmem:[#allocation3 + $0x88] sm:$0xff] %vm253, %v6504
      %6537 = vst.msk [vmem:[#allocation3 + $0x90] sm:$0xff] %vm253, %v6505
      %6538 = vst.msk [vmem:[#allocation3 + $0x98] sm:$0xff] %vm253, %v6506
      %6539 = vst.msk [vmem:[#allocation3 + $0xa0] sm:$0xff] %vm253, %v6507
      %6540 = vst.msk [vmem:[#allocation3 + $0xa8] sm:$0xff] %vm253, %v6508
      %6541 = vst.msk [vmem:[#allocation3 + $0xb0] sm:$0xff] %vm253, %v6509
      %6542 = vst.msk [vmem:[#allocation3 + $0xb8] sm:$0xff] %vm253, %v6510
      %6543 = vst.msk [vmem:[#allocation3 + $0xc0] sm:$0xff] %vm253, %v6511
      %6544 = vst.msk [vmem:[#allocation3 + $0xc8] sm:$0xff] %vm253, %v6512
      %6545 = vst.msk [vmem:[#allocation3 + $0xd0] sm:$0xff] %vm253, %v6513
      %6546 = vst.msk [vmem:[#allocation3 + $0xd8] sm:$0xff] %vm253, %v6514
      %6547 = vst.msk [vmem:[#allocation3 + $0xe0] sm:$0xff] %vm253, %v6515
      %6548 = vst.msk [vmem:[#allocation3 + $0xe8] sm:$0xff] %vm253, %v6516
      %6549 = vst.msk [vmem:[#allocation3 + $0xf0] sm:$0xff] %vm253, %v6517
      %6550 = vst.msk [vmem:[#allocation3 + $0xf8] sm:$0xff] %vm253, %v6518
      %v6551 = vld [vmem:[#allocation2 + $0x1] sm:$0xff]
      %v6552 = vld [vmem:[#allocation2 + $0x9] sm:$0xff]
      %v6553 = vld [vmem:[#allocation2 + $0x19] sm:$0xff]
      %v6554 = vld [vmem:[#allocation2 + $0x21] sm:$0xff]
      %v6555 = vld [vmem:[#allocation2 + $0x31] sm:$0xff]
      %v6556 = vld [vmem:[#allocation2 + $0x39] sm:$0xff]
      %v6557 = vld [vmem:[#allocation2 + $0x49] sm:$0xff]
      %v6558 = vld [vmem:[#allocation2 + $0x51] sm:$0xff]
      %v6559 = vld [vmem:[#allocation2 + $0x61] sm:$0xff]
      %v6560 = vld [vmem:[#allocation2 + $0x69] sm:$0xff]
      %v6561 = vld [vmem:[#allocation2 + $0x79] sm:$0xff]
      %v6562 = vld [vmem:[#allocation2 + $0x81] sm:$0xff]
      %v6563 = vld [vmem:[#allocation2 + $0x91] sm:$0xff]
      %v6564 = vld [vmem:[#allocation2 + $0x99] sm:$0xff]
      %v6565 = vld [vmem:[#allocation2 + $0xa9] sm:$0xff]
      %v6566 = vld [vmem:[#allocation2 + $0xb1] sm:$0xff]
      %v6567 = vld [vmem:[#allocation2 + $0xc1] sm:$0xff]
      %v6568 = vld [vmem:[#allocation2 + $0xc9] sm:$0xff]
      %v6569 = vld [vmem:[#allocation2 + $0xd9] sm:$0xff]
      %v6570 = vld [vmem:[#allocation2 + $0xe1] sm:$0xff]
      %v6571 = vld [vmem:[#allocation2 + $0xf1] sm:$0xff]
      %v6572 = vld [vmem:[#allocation2 + $0xf9] sm:$0xff]
      %v6573 = vld [vmem:[#allocation2 + $0x109] sm:$0xff]
      %v6574 = vld [vmem:[#allocation2 + $0x111] sm:$0xff]
      %v6575 = vld [vmem:[#allocation2 + $0x121] sm:$0xff]
      %v6576 = vld [vmem:[#allocation2 + $0x129] sm:$0xff]
      %v6577 = vld [vmem:[#allocation2 + $0x139] sm:$0xff]
      %v6578 = vld [vmem:[#allocation2 + $0x141] sm:$0xff]
      %v6579 = vld [vmem:[#allocation2 + $0x151] sm:$0xff]
      %v6580 = vld [vmem:[#allocation2 + $0x159] sm:$0xff]
      %v6581 = vld [vmem:[#allocation2 + $0x169] sm:$0xff]
      %v6582 = vld [vmem:[#allocation2 + $0x171] sm:$0xff]
      %6615 = vrot.lane.b32.xlu0 %v6551, 4
      %v6616 = vpop.permute.xlu0 %6615
      %6617 = vrot.lane.b32.xlu0 %v6552, 4
      %v6618 = vpop.permute.xlu0 %6617
      %6619 = vrot.lane.b32.xlu0 %v6553, 4
      %v6620 = vpop.permute.xlu0 %6619
      %6621 = vrot.lane.b32.xlu0 %v6554, 4
      %v6622 = vpop.permute.xlu0 %6621
      %6623 = vrot.lane.b32.xlu0 %v6555, 4
      %v6624 = vpop.permute.xlu0 %6623
      %6625 = vrot.lane.b32.xlu0 %v6556, 4
      %v6626 = vpop.permute.xlu0 %6625
      %6627 = vrot.lane.b32.xlu0 %v6557, 4
      %v6628 = vpop.permute.xlu0 %6627
      %6629 = vrot.lane.b32.xlu0 %v6558, 4
      %v6630 = vpop.permute.xlu0 %6629
      %6631 = vrot.lane.b32.xlu0 %v6559, 4
      %v6632 = vpop.permute.xlu0 %6631
      %6633 = vrot.lane.b32.xlu0 %v6560, 4
      %v6634 = vpop.permute.xlu0 %6633
      %6635 = vrot.lane.b32.xlu0 %v6561, 4
      %v6636 = vpop.permute.xlu0 %6635
      %6637 = vrot.lane.b32.xlu0 %v6562, 4
      %v6638 = vpop.permute.xlu0 %6637
      %6639 = vrot.lane.b32.xlu0 %v6563, 4
      %v6640 = vpop.permute.xlu0 %6639
      %6641 = vrot.lane.b32.xlu0 %v6564, 4
      %v6642 = vpop.permute.xlu0 %6641
      %6643 = vrot.lane.b32.xlu0 %v6565, 4
      %v6644 = vpop.permute.xlu0 %6643
      %6645 = vrot.lane.b32.xlu0 %v6566, 4
      %v6646 = vpop.permute.xlu0 %6645
      %6647 = vrot.lane.b32.xlu0 %v6567, 4
      %v6648 = vpop.permute.xlu0 %6647
      %6649 = vrot.lane.b32.xlu0 %v6568, 4
      %v6650 = vpop.permute.xlu0 %6649
      %6651 = vrot.lane.b32.xlu0 %v6569, 4
      %v6652 = vpop.permute.xlu0 %6651
      %6653 = vrot.lane.b32.xlu0 %v6570, 4
      %v6654 = vpop.permute.xlu0 %6653
      %6655 = vrot.lane.b32.xlu0 %v6571, 4
      %v6656 = vpop.permute.xlu0 %6655
      %6657 = vrot.lane.b32.xlu0 %v6572, 4
      %v6658 = vpop.permute.xlu0 %6657
      %6659 = vrot.lane.b32.xlu0 %v6573, 4
      %v6660 = vpop.permute.xlu0 %6659
      %6661 = vrot.lane.b32.xlu0 %v6574, 4
      %v6662 = vpop.permute.xlu0 %6661
      %6663 = vrot.lane.b32.xlu0 %v6575, 4
      %v6664 = vpop.permute.xlu0 %6663
      %6665 = vrot.lane.b32.xlu0 %v6576, 4
      %v6666 = vpop.permute.xlu0 %6665
      %6667 = vrot.lane.b32.xlu0 %v6577, 4
      %v6668 = vpop.permute.xlu0 %6667
      %6669 = vrot.lane.b32.xlu0 %v6578, 4
      %v6670 = vpop.permute.xlu0 %6669
      %6671 = vrot.lane.b32.xlu0 %v6579, 4
      %v6672 = vpop.permute.xlu0 %6671
      %6673 = vrot.lane.b32.xlu0 %v6580, 4
      %v6674 = vpop.permute.xlu0 %6673
      %6675 = vrot.lane.b32.xlu0 %v6581, 4
      %v6676 = vpop.permute.xlu0 %6675
      %6677 = vrot.lane.b32.xlu0 %v6582, 4
      %v6678 = vpop.permute.xlu0 %6677
      %6711 = vst.msk [vmem:[#allocation3] sm:$0xff] %vm608, %v6616
      %6712 = vst.msk [vmem:[#allocation3 + $0x8] sm:$0xff] %vm608, %v6618
      %6713 = vst.msk [vmem:[#allocation3 + $0x10] sm:$0xff] %vm608, %v6620
      %6714 = vst.msk [vmem:[#allocation3 + $0x18] sm:$0xff] %vm608, %v6622
      %6715 = vst.msk [vmem:[#allocation3 + $0x20] sm:$0xff] %vm608, %v6624
      %6716 = vst.msk [vmem:[#allocation3 + $0x28] sm:$0xff] %vm608, %v6626
      %6717 = vst.msk [vmem:[#allocation3 + $0x30] sm:$0xff] %vm608, %v6628
      %6718 = vst.msk [vmem:[#allocation3 + $0x38] sm:$0xff] %vm608, %v6630
      %6719 = vst.msk [vmem:[#allocation3 + $0x40] sm:$0xff] %vm608, %v6632
      %6720 = vst.msk [vmem:[#allocation3 + $0x48] sm:$0xff] %vm608, %v6634
      %6721 = vst.msk [vmem:[#allocation3 + $0x50] sm:$0xff] %vm608, %v6636
      %6722 = vst.msk [vmem:[#allocation3 + $0x58] sm:$0xff] %vm608, %v6638
      %6723 = vst.msk [vmem:[#allocation3 + $0x60] sm:$0xff] %vm608, %v6640
      %6724 = vst.msk [vmem:[#allocation3 + $0x68] sm:$0xff] %vm608, %v6642
      %6725 = vst.msk [vmem:[#allocation3 + $0x70] sm:$0xff] %vm608, %v6644
      %6726 = vst.msk [vmem:[#allocation3 + $0x78] sm:$0xff] %vm608, %v6646
      %6727 = vst.msk [vmem:[#allocation3 + $0x80] sm:$0xff] %vm608, %v6648
      %6728 = vst.msk [vmem:[#allocation3 + $0x88] sm:$0xff] %vm608, %v6650
      %6729 = vst.msk [vmem:[#allocation3 + $0x90] sm:$0xff] %vm608, %v6652
      %6730 = vst.msk [vmem:[#allocation3 + $0x98] sm:$0xff] %vm608, %v6654
      %6731 = vst.msk [vmem:[#allocation3 + $0xa0] sm:$0xff] %vm608, %v6656
      %6732 = vst.msk [vmem:[#allocation3 + $0xa8] sm:$0xff] %vm608, %v6658
      %6733 = vst.msk [vmem:[#allocation3 + $0xb0] sm:$0xff] %vm608, %v6660
      %6734 = vst.msk [vmem:[#allocation3 + $0xb8] sm:$0xff] %vm608, %v6662
      %6735 = vst.msk [vmem:[#allocation3 + $0xc0] sm:$0xff] %vm608, %v6664
      %6736 = vst.msk [vmem:[#allocation3 + $0xc8] sm:$0xff] %vm608, %v6666
      %6737 = vst.msk [vmem:[#allocation3 + $0xd0] sm:$0xff] %vm608, %v6668
      %6738 = vst.msk [vmem:[#allocation3 + $0xd8] sm:$0xff] %vm608, %v6670
      %6739 = vst.msk [vmem:[#allocation3 + $0xe0] sm:$0xff] %vm608, %v6672
      %6740 = vst.msk [vmem:[#allocation3 + $0xe8] sm:$0xff] %vm608, %v6674
      %6741 = vst.msk [vmem:[#allocation3 + $0xf0] sm:$0xff] %vm608, %v6676
      %6742 = vst.msk [vmem:[#allocation3 + $0xf8] sm:$0xff] %vm608, %v6678
      %v6743 = vld [vmem:[#allocation2 + $0x2] sm:$0xff]
      %v6744 = vld [vmem:[#allocation2 + $0xa] sm:$0xff]
      %v6745 = vld [vmem:[#allocation2 + $0x1a] sm:$0xff]
      %v6746 = vld [vmem:[#allocation2 + $0x22] sm:$0xff]
      %v6747 = vld [vmem:[#allocation2 + $0x32] sm:$0xff]
      %v6748 = vld [vmem:[#allocation2 + $0x3a] sm:$0xff]
      %v6749 = vld [vmem:[#allocation2 + $0x4a] sm:$0xff]
      %v6750 = vld [vmem:[#allocation2 + $0x52] sm:$0xff]
      %v6751 = vld [vmem:[#allocation2 + $0x62] sm:$0xff]
      %v6752 = vld [vmem:[#allocation2 + $0x6a] sm:$0xff]
      %v6753 = vld [vmem:[#allocation2 + $0x7a] sm:$0xff]
      %v6754 = vld [vmem:[#allocation2 + $0x82] sm:$0xff]
      %v6755 = vld [vmem:[#allocation2 + $0x92] sm:$0xff]
      %v6756 = vld [vmem:[#allocation2 + $0x9a] sm:$0xff]
      %v6757 = vld [vmem:[#allocation2 + $0xaa] sm:$0xff]
      %v6758 = vld [vmem:[#allocation2 + $0xb2] sm:$0xff]
      %v6759 = vld [vmem:[#allocation2 + $0xc2] sm:$0xff]
      %v6760 = vld [vmem:[#allocation2 + $0xca] sm:$0xff]
      %v6761 = vld [vmem:[#allocation2 + $0xda] sm:$0xff]
      %v6762 = vld [vmem:[#allocation2 + $0xe2] sm:$0xff]
      %v6763 = vld [vmem:[#allocation2 + $0xf2] sm:$0xff]
      %v6764 = vld [vmem:[#allocation2 + $0xfa] sm:$0xff]
      %v6765 = vld [vmem:[#allocation2 + $0x10a] sm:$0xff]
      %v6766 = vld [vmem:[#allocation2 + $0x112] sm:$0xff]
      %v6767 = vld [vmem:[#allocation2 + $0x122] sm:$0xff]
      %v6768 = vld [vmem:[#allocation2 + $0x12a] sm:$0xff]
      %v6769 = vld [vmem:[#allocation2 + $0x13a] sm:$0xff]
      %v6770 = vld [vmem:[#allocation2 + $0x142] sm:$0xff]
      %v6771 = vld [vmem:[#allocation2 + $0x152] sm:$0xff]
      %v6772 = vld [vmem:[#allocation2 + $0x15a] sm:$0xff]
      %v6773 = vld [vmem:[#allocation2 + $0x16a] sm:$0xff]
      %v6774 = vld [vmem:[#allocation2 + $0x172] sm:$0xff]
      %6807 = vrot.lane.b32.xlu0 %v6743, 8
      %v6808 = vpop.permute.xlu0 %6807
      %6809 = vrot.lane.b32.xlu0 %v6744, 8
      %v6810 = vpop.permute.xlu0 %6809
      %6811 = vrot.lane.b32.xlu0 %v6745, 8
      %v6812 = vpop.permute.xlu0 %6811
      %6813 = vrot.lane.b32.xlu0 %v6746, 8
      %v6814 = vpop.permute.xlu0 %6813
      %6815 = vrot.lane.b32.xlu0 %v6747, 8
      %v6816 = vpop.permute.xlu0 %6815
      %6817 = vrot.lane.b32.xlu0 %v6748, 8
      %v6818 = vpop.permute.xlu0 %6817
      %6819 = vrot.lane.b32.xlu0 %v6749, 8
      %v6820 = vpop.permute.xlu0 %6819
      %6821 = vrot.lane.b32.xlu0 %v6750, 8
      %v6822 = vpop.permute.xlu0 %6821
      %6823 = vrot.lane.b32.xlu0 %v6751, 8
      %v6824 = vpop.permute.xlu0 %6823
      %6825 = vrot.lane.b32.xlu0 %v6752, 8
      %v6826 = vpop.permute.xlu0 %6825
      %6827 = vrot.lane.b32.xlu0 %v6753, 8
      %v6828 = vpop.permute.xlu0 %6827
      %6829 = vrot.lane.b32.xlu0 %v6754, 8
      %v6830 = vpop.permute.xlu0 %6829
      %6831 = vrot.lane.b32.xlu0 %v6755, 8
      %v6832 = vpop.permute.xlu0 %6831
      %6833 = vrot.lane.b32.xlu0 %v6756, 8
      %v6834 = vpop.permute.xlu0 %6833
      %6835 = vrot.lane.b32.xlu0 %v6757, 8
      %v6836 = vpop.permute.xlu0 %6835
      %6837 = vrot.lane.b32.xlu0 %v6758, 8
      %v6838 = vpop.permute.xlu0 %6837
      %6839 = vrot.lane.b32.xlu0 %v6759, 8
      %v6840 = vpop.permute.xlu0 %6839
      %6841 = vrot.lane.b32.xlu0 %v6760, 8
      %v6842 = vpop.permute.xlu0 %6841
      %6843 = vrot.lane.b32.xlu0 %v6761, 8
      %v6844 = vpop.permute.xlu0 %6843
      %6845 = vrot.lane.b32.xlu0 %v6762, 8
      %v6846 = vpop.permute.xlu0 %6845
      %6847 = vrot.lane.b32.xlu0 %v6763, 8
      %v6848 = vpop.permute.xlu0 %6847
      %6849 = vrot.lane.b32.xlu0 %v6764, 8
      %v6850 = vpop.permute.xlu0 %6849
      %6851 = vrot.lane.b32.xlu0 %v6765, 8
      %v6852 = vpop.permute.xlu0 %6851
      %6853 = vrot.lane.b32.xlu0 %v6766, 8
      %v6854 = vpop.permute.xlu0 %6853
      %6855 = vrot.lane.b32.xlu0 %v6767, 8
      %v6856 = vpop.permute.xlu0 %6855
      %6857 = vrot.lane.b32.xlu0 %v6768, 8
      %v6858 = vpop.permute.xlu0 %6857
      %6859 = vrot.lane.b32.xlu0 %v6769, 8
      %v6860 = vpop.permute.xlu0 %6859
      %6861 = vrot.lane.b32.xlu0 %v6770, 8
      %v6862 = vpop.permute.xlu0 %6861
      %6863 = vrot.lane.b32.xlu0 %v6771, 8
      %v6864 = vpop.permute.xlu0 %6863
      %6865 = vrot.lane.b32.xlu0 %v6772, 8
      %v6866 = vpop.permute.xlu0 %6865
      %6867 = vrot.lane.b32.xlu0 %v6773, 8
      %v6868 = vpop.permute.xlu0 %6867
      %6869 = vrot.lane.b32.xlu0 %v6774, 8
      %v6870 = vpop.permute.xlu0 %6869
      %6903 = vst.msk [vmem:[#allocation3] sm:$0xff] %vm801, %v6808
      %6904 = vst.msk [vmem:[#allocation3 + $0x8] sm:$0xff] %vm801, %v6810
      %6905 = vst.msk [vmem:[#allocation3 + $0x10] sm:$0xff] %vm801, %v6812
      %6906 = vst.msk [vmem:[#allocation3 + $0x18] sm:$0xff] %vm801, %v6814
      %6907 = vst.msk [vmem:[#allocation3 + $0x20] sm:$0xff] %vm801, %v6816
      %6908 = vst.msk [vmem:[#allocation3 + $0x28] sm:$0xff] %vm801, %v6818
      %6909 = vst.msk [vmem:[#allocation3 + $0x30] sm:$0xff] %vm801, %v6820
      %6910 = vst.msk [vmem:[#allocation3 + $0x38] sm:$0xff] %vm801, %v6822
      %6911 = vst.msk [vmem:[#allocation3 + $0x40] sm:$0xff] %vm801, %v6824
      %6912 = vst.msk [vmem:[#allocation3 + $0x48] sm:$0xff] %vm801, %v6826
      %6913 = vst.msk [vmem:[#allocation3 + $0x50] sm:$0xff] %vm801, %v6828
      %6914 = vst.msk [vmem:[#allocation3 + $0x58] sm:$0xff] %vm801, %v6830
      %6915 = vst.msk [vmem:[#allocation3 + $0x60] sm:$0xff] %vm801, %v6832
      %6916 = vst.msk [vmem:[#allocation3 + $0x68] sm:$0xff] %vm801, %v6834
      %6917 = vst.msk [vmem:[#allocation3 + $0x70] sm:$0xff] %vm801, %v6836
      %6918 = vst.msk [vmem:[#allocation3 + $0x78] sm:$0xff] %vm801, %v6838
      %6919 = vst.msk [vmem:[#allocation3 + $0x80] sm:$0xff] %vm801, %v6840
      %6920 = vst.msk [vmem:[#allocation3 + $0x88] sm:$0xff] %vm801, %v6842
      %6921 = vst.msk [vmem:[#allocation3 + $0x90] sm:$0xff] %vm801, %v6844
      %6922 = vst.msk [vmem:[#allocation3 + $0x98] sm:$0xff] %vm801, %v6846
      %6923 = vst.msk [vmem:[#allocation3 + $0xa0] sm:$0xff] %vm801, %v6848
      %6924 = vst.msk [vmem:[#allocation3 + $0xa8] sm:$0xff] %vm801, %v6850
      %6925 = vst.msk [vmem:[#allocation3 + $0xb0] sm:$0xff] %vm801, %v6852
      %6926 = vst.msk [vmem:[#allocation3 + $0xb8] sm:$0xff] %vm801, %v6854
      %6927 = vst.msk [vmem:[#allocation3 + $0xc0] sm:$0xff] %vm801, %v6856
      %6928 = vst.msk [vmem:[#allocation3 + $0xc8] sm:$0xff] %vm801, %v6858
      %6929 = vst.msk [vmem:[#allocation3 + $0xd0] sm:$0xff] %vm801, %v6860
      %6930 = vst.msk [vmem:[#allocation3 + $0xd8] sm:$0xff] %vm801, %v6862
      %6931 = vst.msk [vmem:[#allocation3 + $0xe0] sm:$0xff] %vm801, %v6864
      %6932 = vst.msk [vmem:[#allocation3 + $0xe8] sm:$0xff] %vm801, %v6866
      %6933 = vst.msk [vmem:[#allocation3 + $0xf0] sm:$0xff] %vm801, %v6868
      %6934 = vst.msk [vmem:[#allocation3 + $0xf8] sm:$0xff] %vm801, %v6870
      %v6935 = vld [vmem:[%s351] sm:$0xff]
      %v6936 = vld [vmem:[%s351 + $0x8] sm:$0xff]
      %v6937 = vld [vmem:[%s351 + $0x18] sm:$0xff]
      %v6938 = vld [vmem:[%s351 + $0x20] sm:$0xff]
      %v6939 = vld [vmem:[%s351 + $0x30] sm:$0xff]
      %v6940 = vld [vmem:[%s351 + $0x38] sm:$0xff]
      %v6941 = vld [vmem:[%s351 + $0x48] sm:$0xff]
      %v6942 = vld [vmem:[%s351 + $0x50] sm:$0xff]
      %v6943 = vld [vmem:[%s351 + $0x60] sm:$0xff]
      %v6944 = vld [vmem:[%s351 + $0x68] sm:$0xff]
      %v6945 = vld [vmem:[%s351 + $0x78] sm:$0xff]
      %v6946 = vld [vmem:[%s351 + $0x80] sm:$0xff]
      %v6947 = vld [vmem:[%s351 + $0x90] sm:$0xff]
      %v6948 = vld [vmem:[%s351 + $0x98] sm:$0xff]
      %v6949 = vld [vmem:[%s351 + $0xa8] sm:$0xff]
      %v6950 = vld [vmem:[%s351 + $0xb0] sm:$0xff]
      %v6951 = vld [vmem:[%s351 + $0xc0] sm:$0xff]
      %v6952 = vld [vmem:[%s351 + $0xc8] sm:$0xff]
      %v6953 = vld [vmem:[%s351 + $0xd8] sm:$0xff]
      %v6954 = vld [vmem:[%s351 + $0xe0] sm:$0xff]
      %v6955 = vld [vmem:[%s351 + $0xf0] sm:$0xff]
      %v6956 = vld [vmem:[%s351 + $0xf8] sm:$0xff]
      %v6957 = vld [vmem:[%s351 + $0x108] sm:$0xff]
      %v6958 = vld [vmem:[%s351 + $0x110] sm:$0xff]
      %v6959 = vld [vmem:[%s351 + $0x120] sm:$0xff]
      %v6960 = vld [vmem:[%s351 + $0x128] sm:$0xff]
      %v6961 = vld [vmem:[%s351 + $0x138] sm:$0xff]
      %v6962 = vld [vmem:[%s351 + $0x140] sm:$0xff]
      %v6963 = vld [vmem:[%s351 + $0x150] sm:$0xff]
      %v6964 = vld [vmem:[%s351 + $0x158] sm:$0xff]
      %v6965 = vld [vmem:[%s351 + $0x168] sm:$0xff]
      %v6966 = vld [vmem:[%s351 + $0x170] sm:$0xff]
      %6999 = vrot.lane.b32.xlu0 %v6935, 12
      %v7000 = vpop.permute.xlu0 %6999
      %7001 = vrot.lane.b32.xlu0 %v6936, 12
      %v7002 = vpop.permute.xlu0 %7001
      %7003 = vrot.lane.b32.xlu0 %v6937, 12
      %v7004 = vpop.permute.xlu0 %7003
      %7005 = vrot.lane.b32.xlu0 %v6938, 12
      %v7006 = vpop.permute.xlu0 %7005
      %7007 = vrot.lane.b32.xlu0 %v6939, 12
      %v7008 = vpop.permute.xlu0 %7007
      %7009 = vrot.lane.b32.xlu0 %v6940, 12
      %v7010 = vpop.permute.xlu0 %7009
      %7011 = vrot.lane.b32.xlu0 %v6941, 12
      %v7012 = vpop.permute.xlu0 %7011
      %7013 = vrot.lane.b32.xlu0 %v6942, 12
      %v7014 = vpop.permute.xlu0 %7013
      %7015 = vrot.lane.b32.xlu0 %v6943, 12
      %v7016 = vpop.permute.xlu0 %7015
      %7017 = vrot.lane.b32.xlu0 %v6944, 12
      %v7018 = vpop.permute.xlu0 %7017
      %7019 = vrot.lane.b32.xlu0 %v6945, 12
      %v7020 = vpop.permute.xlu0 %7019
      %7021 = vrot.lane.b32.xlu0 %v6946, 12
      %v7022 = vpop.permute.xlu0 %7021
      %7023 = vrot.lane.b32.xlu0 %v6947, 12
      %v7024 = vpop.permute.xlu0 %7023
      %7025 = vrot.lane.b32.xlu0 %v6948, 12
      %v7026 = vpop.permute.xlu0 %7025
      %7027 = vrot.lane.b32.xlu0 %v6949, 12
      %v7028 = vpop.permute.xlu0 %7027
      %7029 = vrot.lane.b32.xlu0 %v6950, 12
      %v7030 = vpop.permute.xlu0 %7029
      %7031 = vrot.lane.b32.xlu0 %v6951, 12
      %v7032 = vpop.permute.xlu0 %7031
      %7033 = vrot.lane.b32.xlu0 %v6952, 12
      %v7034 = vpop.permute.xlu0 %7033
      %7035 = vrot.lane.b32.xlu0 %v6953, 12
      %v7036 = vpop.permute.xlu0 %7035
      %7037 = vrot.lane.b32.xlu0 %v6954, 12
      %v7038 = vpop.permute.xlu0 %7037
      %7039 = vrot.lane.b32.xlu0 %v6955, 12
      %v7040 = vpop.permute.xlu0 %7039
      %7041 = vrot.lane.b32.xlu0 %v6956, 12
      %v7042 = vpop.permute.xlu0 %7041
      %7043 = vrot.lane.b32.xlu0 %v6957, 12
      %v7044 = vpop.permute.xlu0 %7043
      %7045 = vrot.lane.b32.xlu0 %v6958, 12
      %v7046 = vpop.permute.xlu0 %7045
      %7047 = vrot.lane.b32.xlu0 %v6959, 12
      %v7048 = vpop.permute.xlu0 %7047
      %7049 = vrot.lane.b32.xlu0 %v6960, 12
      %v7050 = vpop.permute.xlu0 %7049
      %7051 = vrot.lane.b32.xlu0 %v6961, 12
      %v7052 = vpop.permute.xlu0 %7051
      %7053 = vrot.lane.b32.xlu0 %v6962, 12
      %v7054 = vpop.permute.xlu0 %7053
      %7055 = vrot.lane.b32.xlu0 %v6963, 12
      %v7056 = vpop.permute.xlu0 %7055
      %7057 = vrot.lane.b32.xlu0 %v6964, 12
      %v7058 = vpop.permute.xlu0 %7057
      %7059 = vrot.lane.b32.xlu0 %v6965, 12
      %v7060 = vpop.permute.xlu0 %7059
      %7061 = vrot.lane.b32.xlu0 %v6966, 12
      %v7062 = vpop.permute.xlu0 %7061
      %7095 = vst.msk [vmem:[#allocation3] sm:$0xff] %vm994, %v7000
      %7096 = vst.msk [vmem:[#allocation3 + $0x8] sm:$0xff] %vm994, %v7002
      %7097 = vst.msk [vmem:[#allocation3 + $0x10] sm:$0xff] %vm994, %v7004
      %7098 = vst.msk [vmem:[#allocation3 + $0x18] sm:$0xff] %vm994, %v7006
      %7099 = vst.msk [vmem:[#allocation3 + $0x20] sm:$0xff] %vm994, %v7008
      %7100 = vst.msk [vmem:[#allocation3 + $0x28] sm:$0xff] %vm994, %v7010
      %7101 = vst.msk [vmem:[#allocation3 + $0x30] sm:$0xff] %vm994, %v7012
      %7102 = vst.msk [vmem:[#allocation3 + $0x38] sm:$0xff] %vm994, %v7014
      %7103 = vst.msk [vmem:[#allocation3 + $0x40] sm:$0xff] %vm994, %v7016
      %7104 = vst.msk [vmem:[#allocation3 + $0x48] sm:$0xff] %vm994, %v7018
      %7105 = vst.msk [vmem:[#allocation3 + $0x50] sm:$0xff] %vm994, %v7020
      %7106 = vst.msk [vmem:[#allocation3 + $0x58] sm:$0xff] %vm994, %v7022
      %7107 = vst.msk [vmem:[#allocation3 + $0x60] sm:$0xff] %vm994, %v7024
      %7108 = vst.msk [vmem:[#allocation3 + $0x68] sm:$0xff] %vm994, %v7026
      %7109 = vst.msk [vmem:[#allocation3 + $0x70] sm:$0xff] %vm994, %v7028
      %7110 = vst.msk [vmem:[#allocation3 + $0x78] sm:$0xff] %vm994, %v7030
      %7111 = vst.msk [vmem:[#allocation3 + $0x80] sm:$0xff] %vm994, %v7032
      %7112 = vst.msk [vmem:[#allocation3 + $0x88] sm:$0xff] %vm994, %v7034
      %7113 = vst.msk [vmem:[#allocation3 + $0x90] sm:$0xff] %vm994, %v7036
      %7114 = vst.msk [vmem:[#allocation3 + $0x98] sm:$0xff] %vm994, %v7038
      %7115 = vst.msk [vmem:[#allocation3 + $0xa0] sm:$0xff] %vm994, %v7040
      %7116 = vst.msk [vmem:[#allocation3 + $0xa8] sm:$0xff] %vm994, %v7042
      %7117 = vst.msk [vmem:[#allocation3 + $0xb0] sm:$0xff] %vm994, %v7044
      %7118 = vst.msk [vmem:[#allocation3 + $0xb8] sm:$0xff] %vm994, %v7046
      %7119 = vst.msk [vmem:[#allocation3 + $0xc0] sm:$0xff] %vm994, %v7048
      %7120 = vst.msk [vmem:[#allocation3 + $0xc8] sm:$0xff] %vm994, %v7050
      %7121 = vst.msk [vmem:[#allocation3 + $0xd0] sm:$0xff] %vm994, %v7052
      %7122 = vst.msk [vmem:[#allocation3 + $0xd8] sm:$0xff] %vm994, %v7054
      %7123 = vst.msk [vmem:[#allocation3 + $0xe0] sm:$0xff] %vm994, %v7056
      %7124 = vst.msk [vmem:[#allocation3 + $0xe8] sm:$0xff] %vm994, %v7058
      %7125 = vst.msk [vmem:[#allocation3 + $0xf0] sm:$0xff] %vm994, %v7060
      %7126 = vst.msk [vmem:[#allocation3 + $0xf8] sm:$0xff] %vm994, %v7062
      %v7127 = vld [vmem:[%s351 + $0x1] sm:$0xff]
      %v7128 = vld [vmem:[%s351 + $0x9] sm:$0xff]
      %v7129 = vld [vmem:[%s351 + $0x19] sm:$0xff]
      %v7130 = vld [vmem:[%s351 + $0x21] sm:$0xff]
      %v7131 = vld [vmem:[%s351 + $0x31] sm:$0xff]
      %v7132 = vld [vmem:[%s351 + $0x39] sm:$0xff]
      %v7133 = vld [vmem:[%s351 + $0x49] sm:$0xff]
      %v7134 = vld [vmem:[%s351 + $0x51] sm:$0xff]
      %v7135 = vld [vmem:[%s351 + $0x61] sm:$0xff]
      %v7136 = vld [vmem:[%s351 + $0x69] sm:$0xff]
      %v7137 = vld [vmem:[%s351 + $0x79] sm:$0xff]
      %v7138 = vld [vmem:[%s351 + $0x81] sm:$0xff]
      %v7139 = vld [vmem:[%s351 + $0x91] sm:$0xff]
      %v7140 = vld [vmem:[%s351 + $0x99] sm:$0xff]
      %v7141 = vld [vmem:[%s351 + $0xa9] sm:$0xff]
      %v7142 = vld [vmem:[%s351 + $0xb1] sm:$0xff]
      %v7143 = vld [vmem:[%s351 + $0xc1] sm:$0xff]
      %v7144 = vld [vmem:[%s351 + $0xc9] sm:$0xff]
      %v7145 = vld [vmem:[%s351 + $0xd9] sm:$0xff]
      %v7146 = vld [vmem:[%s351 + $0xe1] sm:$0xff]
      %v7147 = vld [vmem:[%s351 + $0xf1] sm:$0xff]
      %v7148 = vld [vmem:[%s351 + $0xf9] sm:$0xff]
      %v7149 = vld [vmem:[%s351 + $0x109] sm:$0xff]
      %v7150 = vld [vmem:[%s351 + $0x111] sm:$0xff]
      %v7151 = vld [vmem:[%s351 + $0x121] sm:$0xff]
      %v7152 = vld [vmem:[%s351 + $0x129] sm:$0xff]
      %v7153 = vld [vmem:[%s351 + $0x139] sm:$0xff]
      %v7154 = vld [vmem:[%s351 + $0x141] sm:$0xff]
      %v7155 = vld [vmem:[%s351 + $0x151] sm:$0xff]
      %v7156 = vld [vmem:[%s351 + $0x159] sm:$0xff]
      %v7157 = vld [vmem:[%s351 + $0x169] sm:$0xff]
      %v7158 = vld [vmem:[%s351 + $0x171] sm:$0xff]
      %7191 = vrot.lane.b32.xlu0 %v7127, 16
      %v7192 = vpop.permute.xlu0 %7191
      %7193 = vrot.lane.b32.xlu0 %v7128, 16
      %v7194 = vpop.permute.xlu0 %7193
      %7195 = vrot.lane.b32.xlu0 %v7129, 16
      %v7196 = vpop.permute.xlu0 %7195
      %7197 = vrot.lane.b32.xlu0 %v7130, 16
      %v7198 = vpop.permute.xlu0 %7197
      %7199 = vrot.lane.b32.xlu0 %v7131, 16
      %v7200 = vpop.permute.xlu0 %7199
      %7201 = vrot.lane.b32.xlu0 %v7132, 16
      %v7202 = vpop.permute.xlu0 %7201
      %7203 = vrot.lane.b32.xlu0 %v7133, 16
      %v7204 = vpop.permute.xlu0 %7203
      %7205 = vrot.lane.b32.xlu0 %v7134, 16
      %v7206 = vpop.permute.xlu0 %7205
      %7207 = vrot.lane.b32.xlu0 %v7135, 16
      %v7208 = vpop.permute.xlu0 %7207
      %7209 = vrot.lane.b32.xlu0 %v7136, 16
      %v7210 = vpop.permute.xlu0 %7209
      %7211 = vrot.lane.b32.xlu0 %v7137, 16
      %v7212 = vpop.permute.xlu0 %7211
      %7213 = vrot.lane.b32.xlu0 %v7138, 16
      %v7214 = vpop.permute.xlu0 %7213
      %7215 = vrot.lane.b32.xlu0 %v7139, 16
      %v7216 = vpop.permute.xlu0 %7215
      %7217 = vrot.lane.b32.xlu0 %v7140, 16
      %v7218 = vpop.permute.xlu0 %7217
      %7219 = vrot.lane.b32.xlu0 %v7141, 16
      %v7220 = vpop.permute.xlu0 %7219
      %7221 = vrot.lane.b32.xlu0 %v7142, 16
      %v7222 = vpop.permute.xlu0 %7221
      %7223 = vrot.lane.b32.xlu0 %v7143, 16
      %v7224 = vpop.permute.xlu0 %7223
      %7225 = vrot.lane.b32.xlu0 %v7144, 16
      %v7226 = vpop.permute.xlu0 %7225
      %7227 = vrot.lane.b32.xlu0 %v7145, 16
      %v7228 = vpop.permute.xlu0 %7227
      %7229 = vrot.lane.b32.xlu0 %v7146, 16
      %v7230 = vpop.permute.xlu0 %7229
      %7231 = vrot.lane.b32.xlu0 %v7147, 16
      %v7232 = vpop.permute.xlu0 %7231
      %7233 = vrot.lane.b32.xlu0 %v7148, 16
      %v7234 = vpop.permute.xlu0 %7233
      %7235 = vrot.lane.b32.xlu0 %v7149, 16
      %v7236 = vpop.permute.xlu0 %7235
      %7237 = vrot.lane.b32.xlu0 %v7150, 16
      %v7238 = vpop.permute.xlu0 %7237
      %7239 = vrot.lane.b32.xlu0 %v7151, 16
      %v7240 = vpop.permute.xlu0 %7239
      %7241 = vrot.lane.b32.xlu0 %v7152, 16
      %v7242 = vpop.permute.xlu0 %7241
      %7243 = vrot.lane.b32.xlu0 %v7153, 16
      %v7244 = vpop.permute.xlu0 %7243
      %7245 = vrot.lane.b32.xlu0 %v7154, 16
      %v7246 = vpop.permute.xlu0 %7245
      %7247 = vrot.lane.b32.xlu0 %v7155, 16
      %v7248 = vpop.permute.xlu0 %7247
      %7249 = vrot.lane.b32.xlu0 %v7156, 16
      %v7250 = vpop.permute.xlu0 %7249
      %7251 = vrot.lane.b32.xlu0 %v7157, 16
      %v7252 = vpop.permute.xlu0 %7251
      %7253 = vrot.lane.b32.xlu0 %v7158, 16
      %v7254 = vpop.permute.xlu0 %7253
      %7287 = vst.msk [vmem:[#allocation3] sm:$0xff] %vm1187, %v7192
      %7288 = vst.msk [vmem:[#allocation3 + $0x8] sm:$0xff] %vm1187, %v7194
      %7289 = vst.msk [vmem:[#allocation3 + $0x10] sm:$0xff] %vm1187, %v7196
      %7290 = vst.msk [vmem:[#allocation3 + $0x18] sm:$0xff] %vm1187, %v7198
      %7291 = vst.msk [vmem:[#allocation3 + $0x20] sm:$0xff] %vm1187, %v7200
      %7292 = vst.msk [vmem:[#allocation3 + $0x28] sm:$0xff] %vm1187, %v7202
      %7293 = vst.msk [vmem:[#allocation3 + $0x30] sm:$0xff] %vm1187, %v7204
      %7294 = vst.msk [vmem:[#allocation3 + $0x38] sm:$0xff] %vm1187, %v7206
      %7295 = vst.msk [vmem:[#allocation3 + $0x40] sm:$0xff] %vm1187, %v7208
      %7296 = vst.msk [vmem:[#allocation3 + $0x48] sm:$0xff] %vm1187, %v7210
      %7297 = vst.msk [vmem:[#allocation3 + $0x50] sm:$0xff] %vm1187, %v7212
      %7298 = vst.msk [vmem:[#allocation3 + $0x58] sm:$0xff] %vm1187, %v7214
      %7299 = vst.msk [vmem:[#allocation3 + $0x60] sm:$0xff] %vm1187, %v7216
      %7300 = vst.msk [vmem:[#allocation3 + $0x68] sm:$0xff] %vm1187, %v7218
      %7301 = vst.msk [vmem:[#allocation3 + $0x70] sm:$0xff] %vm1187, %v7220
      %7302 = vst.msk [vmem:[#allocation3 + $0x78] sm:$0xff] %vm1187, %v7222
      %7303 = vst.msk [vmem:[#allocation3 + $0x80] sm:$0xff] %vm1187, %v7224
      %7304 = vst.msk [vmem:[#allocation3 + $0x88] sm:$0xff] %vm1187, %v7226
      %7305 = vst.msk [vmem:[#allocation3 + $0x90] sm:$0xff] %vm1187, %v7228
      %7306 = vst.msk [vmem:[#allocation3 + $0x98] sm:$0xff] %vm1187, %v7230
      %7307 = vst.msk [vmem:[#allocation3 + $0xa0] sm:$0xff] %vm1187, %v7232
      %7308 = vst.msk [vmem:[#allocation3 + $0xa8] sm:$0xff] %vm1187, %v7234
      %7309 = vst.msk [vmem:[#allocation3 + $0xb0] sm:$0xff] %vm1187, %v7236
      %7310 = vst.msk [vmem:[#allocation3 + $0xb8] sm:$0xff] %vm1187, %v7238
      %7311 = vst.msk [vmem:[#allocation3 + $0xc0] sm:$0xff] %vm1187, %v7240
      %7312 = vst.msk [vmem:[#allocation3 + $0xc8] sm:$0xff] %vm1187, %v7242
      %7313 = vst.msk [vmem:[#allocation3 + $0xd0] sm:$0xff] %vm1187, %v7244
      %7314 = vst.msk [vmem:[#allocation3 + $0xd8] sm:$0xff] %vm1187, %v7246
      %7315 = vst.msk [vmem:[#allocation3 + $0xe0] sm:$0xff] %vm1187, %v7248
      %7316 = vst.msk [vmem:[#allocation3 + $0xe8] sm:$0xff] %vm1187, %v7250
      %7317 = vst.msk [vmem:[#allocation3 + $0xf0] sm:$0xff] %vm1187, %v7252
      %7318 = vst.msk [vmem:[#allocation3 + $0xf8] sm:$0xff] %vm1187, %v7254
      %v7319 = vld [vmem:[%s351 + $0x2] sm:$0xff]
      %v7320 = vld [vmem:[%s351 + $0xa] sm:$0xff]
      %v7321 = vld [vmem:[%s351 + $0x1a] sm:$0xff]
      %v7322 = vld [vmem:[%s351 + $0x22] sm:$0xff]
      %v7323 = vld [vmem:[%s351 + $0x32] sm:$0xff]
      %v7324 = vld [vmem:[%s351 + $0x3a] sm:$0xff]
      %v7325 = vld [vmem:[%s351 + $0x4a] sm:$0xff]
      %v7326 = vld [vmem:[%s351 + $0x52] sm:$0xff]
      %v7327 = vld [vmem:[%s351 + $0x62] sm:$0xff]
      %v7328 = vld [vmem:[%s351 + $0x6a] sm:$0xff]
      %v7329 = vld [vmem:[%s351 + $0x7a] sm:$0xff]
      %v7330 = vld [vmem:[%s351 + $0x82] sm:$0xff]
      %v7331 = vld [vmem:[%s351 + $0x92] sm:$0xff]
      %v7332 = vld [vmem:[%s351 + $0x9a] sm:$0xff]
      %v7333 = vld [vmem:[%s351 + $0xaa] sm:$0xff]
      %v7334 = vld [vmem:[%s351 + $0xb2] sm:$0xff]
      %v7335 = vld [vmem:[%s351 + $0xc2] sm:$0xff]
      %v7336 = vld [vmem:[%s351 + $0xca] sm:$0xff]
      %v7337 = vld [vmem:[%s351 + $0xda] sm:$0xff]
      %v7338 = vld [vmem:[%s351 + $0xe2] sm:$0xff]
      %v7339 = vld [vmem:[%s351 + $0xf2] sm:$0xff]
      %v7340 = vld [vmem:[%s351 + $0xfa] sm:$0xff]
      %v7341 = vld [vmem:[%s351 + $0x10a] sm:$0xff]
      %v7342 = vld [vmem:[%s351 + $0x112] sm:$0xff]
      %v7343 = vld [vmem:[%s351 + $0x122] sm:$0xff]
      %v7344 = vld [vmem:[%s351 + $0x12a] sm:$0xff]
      %v7345 = vld [vmem:[%s351 + $0x13a] sm:$0xff]
      %v7346 = vld [vmem:[%s351 + $0x142] sm:$0xff]
      %v7347 = vld [vmem:[%s351 + $0x152] sm:$0xff]
      %v7348 = vld [vmem:[%s351 + $0x15a] sm:$0xff]
      %v7349 = vld [vmem:[%s351 + $0x16a] sm:$0xff]
      %v7350 = vld [vmem:[%s351 + $0x172] sm:$0xff]
      %7383 = vrot.lane.b32.xlu0 %v7319, 20
      %v7384 = vpop.permute.xlu0 %7383
      %7385 = vrot.lane.b32.xlu0 %v7320, 20
      %v7386 = vpop.permute.xlu0 %7385
      %7387 = vrot.lane.b32.xlu0 %v7321, 20
      %v7388 = vpop.permute.xlu0 %7387
      %7389 = vrot.lane.b32.xlu0 %v7322, 20
      %v7390 = vpop.permute.xlu0 %7389
      %7391 = vrot.lane.b32.xlu0 %v7323, 20
      %v7392 = vpop.permute.xlu0 %7391
      %7393 = vrot.lane.b32.xlu0 %v7324, 20
      %v7394 = vpop.permute.xlu0 %7393
      %7395 = vrot.lane.b32.xlu0 %v7325, 20
      %v7396 = vpop.permute.xlu0 %7395
      %7397 = vrot.lane.b32.xlu0 %v7326, 20
      %v7398 = vpop.permute.xlu0 %7397
      %7399 = vrot.lane.b32.xlu0 %v7327, 20
      %v7400 = vpop.permute.xlu0 %7399
      %7401 = vrot.lane.b32.xlu0 %v7328, 20
      %v7402 = vpop.permute.xlu0 %7401
      %7403 = vrot.lane.b32.xlu0 %v7329, 20
      %v7404 = vpop.permute.xlu0 %7403
      %7405 = vrot.lane.b32.xlu0 %v7330, 20
      %v7406 = vpop.permute.xlu0 %7405
      %7407 = vrot.lane.b32.xlu0 %v7331, 20
      %v7408 = vpop.permute.xlu0 %7407
      %7409 = vrot.lane.b32.xlu0 %v7332, 20
      %v7410 = vpop.permute.xlu0 %7409
      %7411 = vrot.lane.b32.xlu0 %v7333, 20
      %v7412 = vpop.permute.xlu0 %7411
      %7413 = vrot.lane.b32.xlu0 %v7334, 20
      %v7414 = vpop.permute.xlu0 %7413
      %7415 = vrot.lane.b32.xlu0 %v7335, 20
      %v7416 = vpop.permute.xlu0 %7415
      %7417 = vrot.lane.b32.xlu0 %v7336, 20
      %v7418 = vpop.permute.xlu0 %7417
      %7419 = vrot.lane.b32.xlu0 %v7337, 20
      %v7420 = vpop.permute.xlu0 %7419
      %7421 = vrot.lane.b32.xlu0 %v7338, 20
      %v7422 = vpop.permute.xlu0 %7421
      %7423 = vrot.lane.b32.xlu0 %v7339, 20
      %v7424 = vpop.permute.xlu0 %7423
      %7425 = vrot.lane.b32.xlu0 %v7340, 20
      %v7426 = vpop.permute.xlu0 %7425
      %7427 = vrot.lane.b32.xlu0 %v7341, 20
      %v7428 = vpop.permute.xlu0 %7427
      %7429 = vrot.lane.b32.xlu0 %v7342, 20
      %v7430 = vpop.permute.xlu0 %7429
      %7431 = vrot.lane.b32.xlu0 %v7343, 20
      %v7432 = vpop.permute.xlu0 %7431
      %7433 = vrot.lane.b32.xlu0 %v7344, 20
      %v7434 = vpop.permute.xlu0 %7433
      %7435 = vrot.lane.b32.xlu0 %v7345, 20
      %v7436 = vpop.permute.xlu0 %7435
      %7437 = vrot.lane.b32.xlu0 %v7346, 20
      %v7438 = vpop.permute.xlu0 %7437
      %7439 = vrot.lane.b32.xlu0 %v7347, 20
      %v7440 = vpop.permute.xlu0 %7439
      %7441 = vrot.lane.b32.xlu0 %v7348, 20
      %v7442 = vpop.permute.xlu0 %7441
      %7443 = vrot.lane.b32.xlu0 %v7349, 20
      %v7444 = vpop.permute.xlu0 %7443
      %7445 = vrot.lane.b32.xlu0 %v7350, 20
      %v7446 = vpop.permute.xlu0 %7445
      %7479 = vst.msk [vmem:[#allocation3] sm:$0xff] %vm1380, %v7384
      %7480 = vst.msk [vmem:[#allocation3 + $0x8] sm:$0xff] %vm1380, %v7386
      %7481 = vst.msk [vmem:[#allocation3 + $0x10] sm:$0xff] %vm1380, %v7388
      %7482 = vst.msk [vmem:[#allocation3 + $0x18] sm:$0xff] %vm1380, %v7390
      %7483 = vst.msk [vmem:[#allocation3 + $0x20] sm:$0xff] %vm1380, %v7392
      %7484 = vst.msk [vmem:[#allocation3 + $0x28] sm:$0xff] %vm1380, %v7394
      %7485 = vst.msk [vmem:[#allocation3 + $0x30] sm:$0xff] %vm1380, %v7396
      %7486 = vst.msk [vmem:[#allocation3 + $0x38] sm:$0xff] %vm1380, %v7398
      %7487 = vst.msk [vmem:[#allocation3 + $0x40] sm:$0xff] %vm1380, %v7400
      %7488 = vst.msk [vmem:[#allocation3 + $0x48] sm:$0xff] %vm1380, %v7402
      %7489 = vst.msk [vmem:[#allocation3 + $0x50] sm:$0xff] %vm1380, %v7404
      %7490 = vst.msk [vmem:[#allocation3 + $0x58] sm:$0xff] %vm1380, %v7406
      %7491 = vst.msk [vmem:[#allocation3 + $0x60] sm:$0xff] %vm1380, %v7408
      %7492 = vst.msk [vmem:[#allocation3 + $0x68] sm:$0xff] %vm1380, %v7410
      %7493 = vst.msk [vmem:[#allocation3 + $0x70] sm:$0xff] %vm1380, %v7412
      %7494 = vst.msk [vmem:[#allocation3 + $0x78] sm:$0xff] %vm1380, %v7414
      %7495 = vst.msk [vmem:[#allocation3 + $0x80] sm:$0xff] %vm1380, %v7416
      %7496 = vst.msk [vmem:[#allocation3 + $0x88] sm:$0xff] %vm1380, %v7418
      %7497 = vst.msk [vmem:[#allocation3 + $0x90] sm:$0xff] %vm1380, %v7420
      %7498 = vst.msk [vmem:[#allocation3 + $0x98] sm:$0xff] %vm1380, %v7422
      %7499 = vst.msk [vmem:[#allocation3 + $0xa0] sm:$0xff] %vm1380, %v7424
      %7500 = vst.msk [vmem:[#allocation3 + $0xa8] sm:$0xff] %vm1380, %v7426
      %7501 = vst.msk [vmem:[#allocation3 + $0xb0] sm:$0xff] %vm1380, %v7428
      %7502 = vst.msk [vmem:[#allocation3 + $0xb8] sm:$0xff] %vm1380, %v7430
      %7503 = vst.msk [vmem:[#allocation3 + $0xc0] sm:$0xff] %vm1380, %v7432
      %7504 = vst.msk [vmem:[#allocation3 + $0xc8] sm:$0xff] %vm1380, %v7434
      %7505 = vst.msk [vmem:[#allocation3 + $0xd0] sm:$0xff] %vm1380, %v7436
      %7506 = vst.msk [vmem:[#allocation3 + $0xd8] sm:$0xff] %vm1380, %v7438
      %7507 = vst.msk [vmem:[#allocation3 + $0xe0] sm:$0xff] %vm1380, %v7440
      %7508 = vst.msk [vmem:[#allocation3 + $0xe8] sm:$0xff] %vm1380, %v7442
      %7509 = vst.msk [vmem:[#allocation3 + $0xf0] sm:$0xff] %vm1380, %v7444
      %7510 = vst.msk [vmem:[#allocation3 + $0xf8] sm:$0xff] %vm1380, %v7446
      %v7511 = vld [vmem:[%s1413] sm:$0xff]
      %v7512 = vld [vmem:[%s1413 + $0x8] sm:$0xff]
      %v7513 = vld [vmem:[%s1413 + $0x18] sm:$0xff]
      %v7514 = vld [vmem:[%s1413 + $0x20] sm:$0xff]
      %v7515 = vld [vmem:[%s1413 + $0x30] sm:$0xff]
      %v7516 = vld [vmem:[%s1413 + $0x38] sm:$0xff]
      %v7517 = vld [vmem:[%s1413 + $0x48] sm:$0xff]
      %v7518 = vld [vmem:[%s1413 + $0x50] sm:$0xff]
      %v7519 = vld [vmem:[%s1413 + $0x60] sm:$0xff]
      %v7520 = vld [vmem:[%s1413 + $0x68] sm:$0xff]
      %v7521 = vld [vmem:[%s1413 + $0x78] sm:$0xff]
      %v7522 = vld [vmem:[%s1413 + $0x80] sm:$0xff]
      %v7523 = vld [vmem:[%s1413 + $0x90] sm:$0xff]
      %v7524 = vld [vmem:[%s1413 + $0x98] sm:$0xff]
      %v7525 = vld [vmem:[%s1413 + $0xa8] sm:$0xff]
      %v7526 = vld [vmem:[%s1413 + $0xb0] sm:$0xff]
      %v7527 = vld [vmem:[%s1413 + $0xc0] sm:$0xff]
      %v7528 = vld [vmem:[%s1413 + $0xc8] sm:$0xff]
      %v7529 = vld [vmem:[%s1413 + $0xd8] sm:$0xff]
      %v7530 = vld [vmem:[%s1413 + $0xe0] sm:$0xff]
      %v7531 = vld [vmem:[%s1413 + $0xf0] sm:$0xff]
      %v7532 = vld [vmem:[%s1413 + $0xf8] sm:$0xff]
      %v7533 = vld [vmem:[%s1413 + $0x108] sm:$0xff]
      %v7534 = vld [vmem:[%s1413 + $0x110] sm:$0xff]
      %v7535 = vld [vmem:[%s1413 + $0x120] sm:$0xff]
      %v7536 = vld [vmem:[%s1413 + $0x128] sm:$0xff]
      %v7537 = vld [vmem:[%s1413 + $0x138] sm:$0xff]
      %v7538 = vld [vmem:[%s1413 + $0x140] sm:$0xff]
      %v7539 = vld [vmem:[%s1413 + $0x150] sm:$0xff]
      %v7540 = vld [vmem:[%s1413 + $0x158] sm:$0xff]
      %v7541 = vld [vmem:[%s1413 + $0x168] sm:$0xff]
      %v7542 = vld [vmem:[%s1413 + $0x170] sm:$0xff]
      %7575 = vrot.lane.b32.xlu0 %v7511, 24
      %v7576 = vpop.permute.xlu0 %7575
      %7577 = vrot.lane.b32.xlu0 %v7512, 24
      %v7578 = vpop.permute.xlu0 %7577
      %7579 = vrot.lane.b32.xlu0 %v7513, 24
      %v7580 = vpop.permute.xlu0 %7579
      %7581 = vrot.lane.b32.xlu0 %v7514, 24
      %v7582 = vpop.permute.xlu0 %7581
      %7583 = vrot.lane.b32.xlu0 %v7515, 24
      %v7584 = vpop.permute.xlu0 %7583
      %7585 = vrot.lane.b32.xlu0 %v7516, 24
      %v7586 = vpop.permute.xlu0 %7585
      %7587 = vrot.lane.b32.xlu0 %v7517, 24
      %v7588 = vpop.permute.xlu0 %7587
      %7589 = vrot.lane.b32.xlu0 %v7518, 24
      %v7590 = vpop.permute.xlu0 %7589
      %7591 = vrot.lane.b32.xlu0 %v7519, 24
      %v7592 = vpop.permute.xlu0 %7591
      %7593 = vrot.lane.b32.xlu0 %v7520, 24
      %v7594 = vpop.permute.xlu0 %7593
      %7595 = vrot.lane.b32.xlu0 %v7521, 24
      %v7596 = vpop.permute.xlu0 %7595
      %7597 = vrot.lane.b32.xlu0 %v7522, 24
      %v7598 = vpop.permute.xlu0 %7597
      %7599 = vrot.lane.b32.xlu0 %v7523, 24
      %v7600 = vpop.permute.xlu0 %7599
      %7601 = vrot.lane.b32.xlu0 %v7524, 24
      %v7602 = vpop.permute.xlu0 %7601
      %7603 = vrot.lane.b32.xlu0 %v7525, 24
      %v7604 = vpop.permute.xlu0 %7603
      %7605 = vrot.lane.b32.xlu0 %v7526, 24
      %v7606 = vpop.permute.xlu0 %7605
      %7607 = vrot.lane.b32.xlu0 %v7527, 24
      %v7608 = vpop.permute.xlu0 %7607
      %7609 = vrot.lane.b32.xlu0 %v7528, 24
      %v7610 = vpop.permute.xlu0 %7609
      %7611 = vrot.lane.b32.xlu0 %v7529, 24
      %v7612 = vpop.permute.xlu0 %7611
      %7613 = vrot.lane.b32.xlu0 %v7530, 24
      %v7614 = vpop.permute.xlu0 %7613
      %7615 = vrot.lane.b32.xlu0 %v7531, 24
      %v7616 = vpop.permute.xlu0 %7615
      %7617 = vrot.lane.b32.xlu0 %v7532, 24
      %v7618 = vpop.permute.xlu0 %7617
      %7619 = vrot.lane.b32.xlu0 %v7533, 24
      %v7620 = vpop.permute.xlu0 %7619
      %7621 = vrot.lane.b32.xlu0 %v7534, 24
      %v7622 = vpop.permute.xlu0 %7621
      %7623 = vrot.lane.b32.xlu0 %v7535, 24
      %v7624 = vpop.permute.xlu0 %7623
      %7625 = vrot.lane.b32.xlu0 %v7536, 24
      %v7626 = vpop.permute.xlu0 %7625
      %7627 = vrot.lane.b32.xlu0 %v7537, 24
      %v7628 = vpop.permute.xlu0 %7627
      %7629 = vrot.lane.b32.xlu0 %v7538, 24
      %v7630 = vpop.permute.xlu0 %7629
      %7631 = vrot.lane.b32.xlu0 %v7539, 24
      %v7632 = vpop.permute.xlu0 %7631
      %7633 = vrot.lane.b32.xlu0 %v7540, 24
      %v7634 = vpop.permute.xlu0 %7633
      %7635 = vrot.lane.b32.xlu0 %v7541, 24
      %v7636 = vpop.permute.xlu0 %7635
      %7637 = vrot.lane.b32.xlu0 %v7542, 24
      %v7638 = vpop.permute.xlu0 %7637
      %7671 = vst.msk [vmem:[#allocation3] sm:$0xff] %vm1574, %v7576
      %7672 = vst.msk [vmem:[#allocation3 + $0x8] sm:$0xff] %vm1574, %v7578
      %7673 = vst.msk [vmem:[#allocation3 + $0x10] sm:$0xff] %vm1574, %v7580
      %7674 = vst.msk [vmem:[#allocation3 + $0x18] sm:$0xff] %vm1574, %v7582
      %7675 = vst.msk [vmem:[#allocation3 + $0x20] sm:$0xff] %vm1574, %v7584
      %7676 = vst.msk [vmem:[#allocation3 + $0x28] sm:$0xff] %vm1574, %v7586
      %7677 = vst.msk [vmem:[#allocation3 + $0x30] sm:$0xff] %vm1574, %v7588
      %7678 = vst.msk [vmem:[#allocation3 + $0x38] sm:$0xff] %vm1574, %v7590
      %7679 = vst.msk [vmem:[#allocation3 + $0x40] sm:$0xff] %vm1574, %v7592
      %7680 = vst.msk [vmem:[#allocation3 + $0x48] sm:$0xff] %vm1574, %v7594
      %7681 = vst.msk [vmem:[#allocation3 + $0x50] sm:$0xff] %vm1574, %v7596
      %7682 = vst.msk [vmem:[#allocation3 + $0x58] sm:$0xff] %vm1574, %v7598
      %7683 = vst.msk [vmem:[#allocation3 + $0x60] sm:$0xff] %vm1574, %v7600
      %7684 = vst.msk [vmem:[#allocation3 + $0x68] sm:$0xff] %vm1574, %v7602
      %7685 = vst.msk [vmem:[#allocation3 + $0x70] sm:$0xff] %vm1574, %v7604
      %7686 = vst.msk [vmem:[#allocation3 + $0x78] sm:$0xff] %vm1574, %v7606
      %7687 = vst.msk [vmem:[#allocation3 + $0x80] sm:$0xff] %vm1574, %v7608
      %7688 = vst.msk [vmem:[#allocation3 + $0x88] sm:$0xff] %vm1574, %v7610
      %7689 = vst.msk [vmem:[#allocation3 + $0x90] sm:$0xff] %vm1574, %v7612
      %7690 = vst.msk [vmem:[#allocation3 + $0x98] sm:$0xff] %vm1574, %v7614
      %7691 = vst.msk [vmem:[#allocation3 + $0xa0] sm:$0xff] %vm1574, %v7616
      %7692 = vst.msk [vmem:[#allocation3 + $0xa8] sm:$0xff] %vm1574, %v7618
      %7693 = vst.msk [vmem:[#allocation3 + $0xb0] sm:$0xff] %vm1574, %v7620
      %7694 = vst.msk [vmem:[#allocation3 + $0xb8] sm:$0xff] %vm1574, %v7622
      %7695 = vst.msk [vmem:[#allocation3 + $0xc0] sm:$0xff] %vm1574, %v7624
      %7696 = vst.msk [vmem:[#allocation3 + $0xc8] sm:$0xff] %vm1574, %v7626
      %7697 = vst.msk [vmem:[#allocation3 + $0xd0] sm:$0xff] %vm1574, %v7628
      %7698 = vst.msk [vmem:[#allocation3 + $0xd8] sm:$0xff] %vm1574, %v7630
      %7699 = vst.msk [vmem:[#allocation3 + $0xe0] sm:$0xff] %vm1574, %v7632
      %7700 = vst.msk [vmem:[#allocation3 + $0xe8] sm:$0xff] %vm1574, %v7634
      %7701 = vst.msk [vmem:[#allocation3 + $0xf0] sm:$0xff] %vm1574, %v7636
      %7702 = vst.msk [vmem:[#allocation3 + $0xf8] sm:$0xff] %vm1574, %v7638
      %v7703 = vld [vmem:[%s1413 + $0x1] sm:$0xff]
      %v7704 = vld [vmem:[%s1413 + $0x9] sm:$0xff]
      %v7705 = vld [vmem:[%s1413 + $0x19] sm:$0xff]
      %v7706 = vld [vmem:[%s1413 + $0x21] sm:$0xff]
      %v7707 = vld [vmem:[%s1413 + $0x31] sm:$0xff]
      %v7708 = vld [vmem:[%s1413 + $0x39] sm:$0xff]
      %v7709 = vld [vmem:[%s1413 + $0x49] sm:$0xff]
      %v7710 = vld [vmem:[%s1413 + $0x51] sm:$0xff]
      %v7711 = vld [vmem:[%s1413 + $0x61] sm:$0xff]
      %v7712 = vld [vmem:[%s1413 + $0x69] sm:$0xff]
      %v7713 = vld [vmem:[%s1413 + $0x79] sm:$0xff]
      %v7714 = vld [vmem:[%s1413 + $0x81] sm:$0xff]
      %v7715 = vld [vmem:[%s1413 + $0x91] sm:$0xff]
      %v7716 = vld [vmem:[%s1413 + $0x99] sm:$0xff]
      %v7717 = vld [vmem:[%s1413 + $0xa9] sm:$0xff]
      %v7718 = vld [vmem:[%s1413 + $0xb1] sm:$0xff]
      %v7719 = vld [vmem:[%s1413 + $0xc1] sm:$0xff]
      %v7720 = vld [vmem:[%s1413 + $0xc9] sm:$0xff]
      %v7721 = vld [vmem:[%s1413 + $0xd9] sm:$0xff]
      %v7722 = vld [vmem:[%s1413 + $0xe1] sm:$0xff]
      %v7723 = vld [vmem:[%s1413 + $0xf1] sm:$0xff]
      %v7724 = vld [vmem:[%s1413 + $0xf9] sm:$0xff]
      %v7725 = vld [vmem:[%s1413 + $0x109] sm:$0xff]
      %v7726 = vld [vmem:[%s1413 + $0x111] sm:$0xff]
      %v7727 = vld [vmem:[%s1413 + $0x121] sm:$0xff]
      %v7728 = vld [vmem:[%s1413 + $0x129] sm:$0xff]
      %v7729 = vld [vmem:[%s1413 + $0x139] sm:$0xff]
      %v7730 = vld [vmem:[%s1413 + $0x141] sm:$0xff]
      %v7731 = vld [vmem:[%s1413 + $0x151] sm:$0xff]
      %v7732 = vld [vmem:[%s1413 + $0x159] sm:$0xff]
      %v7733 = vld [vmem:[%s1413 + $0x169] sm:$0xff]
      %v7734 = vld [vmem:[%s1413 + $0x171] sm:$0xff]
      %7767 = vrot.lane.b32.xlu0 %v7703, 28
      %v7768 = vpop.permute.xlu0 %7767
      %7769 = vrot.lane.b32.xlu0 %v7704, 28
      %v7770 = vpop.permute.xlu0 %7769
      %7771 = vrot.lane.b32.xlu0 %v7705, 28
      %v7772 = vpop.permute.xlu0 %7771
      %7773 = vrot.lane.b32.xlu0 %v7706, 28
      %v7774 = vpop.permute.xlu0 %7773
      %7775 = vrot.lane.b32.xlu0 %v7707, 28
      %v7776 = vpop.permute.xlu0 %7775
      %7777 = vrot.lane.b32.xlu0 %v7708, 28
      %v7778 = vpop.permute.xlu0 %7777
      %7779 = vrot.lane.b32.xlu0 %v7709, 28
      %v7780 = vpop.permute.xlu0 %7779
      %7781 = vrot.lane.b32.xlu0 %v7710, 28
      %v7782 = vpop.permute.xlu0 %7781
      %7783 = vrot.lane.b32.xlu0 %v7711, 28
      %v7784 = vpop.permute.xlu0 %7783
      %7785 = vrot.lane.b32.xlu0 %v7712, 28
      %v7786 = vpop.permute.xlu0 %7785
      %7787 = vrot.lane.b32.xlu0 %v7713, 28
      %v7788 = vpop.permute.xlu0 %7787
      %7789 = vrot.lane.b32.xlu0 %v7714, 28
      %v7790 = vpop.permute.xlu0 %7789
      %7791 = vrot.lane.b32.xlu0 %v7715, 28
      %v7792 = vpop.permute.xlu0 %7791
      %7793 = vrot.lane.b32.xlu0 %v7716, 28
      %v7794 = vpop.permute.xlu0 %7793
      %7795 = vrot.lane.b32.xlu0 %v7717, 28
      %v7796 = vpop.permute.xlu0 %7795
      %7797 = vrot.lane.b32.xlu0 %v7718, 28
      %v7798 = vpop.permute.xlu0 %7797
      %7799 = vrot.lane.b32.xlu0 %v7719, 28
      %v7800 = vpop.permute.xlu0 %7799
      %7801 = vrot.lane.b32.xlu0 %v7720, 28
      %v7802 = vpop.permute.xlu0 %7801
      %7803 = vrot.lane.b32.xlu0 %v7721, 28
      %v7804 = vpop.permute.xlu0 %7803
      %7805 = vrot.lane.b32.xlu0 %v7722, 28
      %v7806 = vpop.permute.xlu0 %7805
      %7807 = vrot.lane.b32.xlu0 %v7723, 28
      %v7808 = vpop.permute.xlu0 %7807
      %7809 = vrot.lane.b32.xlu0 %v7724, 28
      %v7810 = vpop.permute.xlu0 %7809
      %7811 = vrot.lane.b32.xlu0 %v7725, 28
      %v7812 = vpop.permute.xlu0 %7811
      %7813 = vrot.lane.b32.xlu0 %v7726, 28
      %v7814 = vpop.permute.xlu0 %7813
      %7815 = vrot.lane.b32.xlu0 %v7727, 28
      %v7816 = vpop.permute.xlu0 %7815
      %7817 = vrot.lane.b32.xlu0 %v7728, 28
      %v7818 = vpop.permute.xlu0 %7817
      %7819 = vrot.lane.b32.xlu0 %v7729, 28
      %v7820 = vpop.permute.xlu0 %7819
      %7821 = vrot.lane.b32.xlu0 %v7730, 28
      %v7822 = vpop.permute.xlu0 %7821
      %7823 = vrot.lane.b32.xlu0 %v7731, 28
      %v7824 = vpop.permute.xlu0 %7823
      %7825 = vrot.lane.b32.xlu0 %v7732, 28
      %v7826 = vpop.permute.xlu0 %7825
      %7827 = vrot.lane.b32.xlu0 %v7733, 28
      %v7828 = vpop.permute.xlu0 %7827
      %7829 = vrot.lane.b32.xlu0 %v7734, 28
      %v7830 = vpop.permute.xlu0 %7829
      %7863 = vst.msk [vmem:[#allocation3] sm:$0xff] %vm1767, %v7768
      %7864 = vst.msk [vmem:[#allocation3 + $0x8] sm:$0xff] %vm1767, %v7770
      %7865 = vst.msk [vmem:[#allocation3 + $0x10] sm:$0xff] %vm1767, %v7772
      %7866 = vst.msk [vmem:[#allocation3 + $0x18] sm:$0xff] %vm1767, %v7774
      %7867 = vst.msk [vmem:[#allocation3 + $0x20] sm:$0xff] %vm1767, %v7776
      %7868 = vst.msk [vmem:[#allocation3 + $0x28] sm:$0xff] %vm1767, %v7778
      %7869 = vst.msk [vmem:[#allocation3 + $0x30] sm:$0xff] %vm1767, %v7780
      %7870 = vst.msk [vmem:[#allocation3 + $0x38] sm:$0xff] %vm1767, %v7782
      %7871 = vst.msk [vmem:[#allocation3 + $0x40] sm:$0xff] %vm1767, %v7784
      %7872 = vst.msk [vmem:[#allocation3 + $0x48] sm:$0xff] %vm1767, %v7786
      %7873 = vst.msk [vmem:[#allocation3 + $0x50] sm:$0xff] %vm1767, %v7788
      %7874 = vst.msk [vmem:[#allocation3 + $0x58] sm:$0xff] %vm1767, %v7790
      %7875 = vst.msk [vmem:[#allocation3 + $0x60] sm:$0xff] %vm1767, %v7792
      %7876 = vst.msk [vmem:[#allocation3 + $0x68] sm:$0xff] %vm1767, %v7794
      %7877 = vst.msk [vmem:[#allocation3 + $0x70] sm:$0xff] %vm1767, %v7796
      %7878 = vst.msk [vmem:[#allocation3 + $0x78] sm:$0xff] %vm1767, %v7798
      %7879 = vst.msk [vmem:[#allocation3 + $0x80] sm:$0xff] %vm1767, %v7800
      %7880 = vst.msk [vmem:[#allocation3 + $0x88] sm:$0xff] %vm1767, %v7802
      %7881 = vst.msk [vmem:[#allocation3 + $0x90] sm:$0xff] %vm1767, %v7804
      %7882 = vst.msk [vmem:[#allocation3 + $0x98] sm:$0xff] %vm1767, %v7806
      %7883 = vst.msk [vmem:[#allocation3 + $0xa0] sm:$0xff] %vm1767, %v7808
      %7884 = vst.msk [vmem:[#allocation3 + $0xa8] sm:$0xff] %vm1767, %v7810
      %7885 = vst.msk [vmem:[#allocation3 + $0xb0] sm:$0xff] %vm1767, %v7812
      %7886 = vst.msk [vmem:[#allocation3 + $0xb8] sm:$0xff] %vm1767, %v7814
      %7887 = vst.msk [vmem:[#allocation3 + $0xc0] sm:$0xff] %vm1767, %v7816
      %7888 = vst.msk [vmem:[#allocation3 + $0xc8] sm:$0xff] %vm1767, %v7818
      %7889 = vst.msk [vmem:[#allocation3 + $0xd0] sm:$0xff] %vm1767, %v7820
      %7890 = vst.msk [vmem:[#allocation3 + $0xd8] sm:$0xff] %vm1767, %v7822
      %7891 = vst.msk [vmem:[#allocation3 + $0xe0] sm:$0xff] %vm1767, %v7824
      %7892 = vst.msk [vmem:[#allocation3 + $0xe8] sm:$0xff] %vm1767, %v7826
      %7893 = vst.msk [vmem:[#allocation3 + $0xf0] sm:$0xff] %vm1767, %v7828
      %7894 = vst.msk [vmem:[#allocation3 + $0xf8] sm:$0xff] %vm1767, %v7830
      %v7895 = vld [vmem:[%s1413 + $0x2] sm:$0xff]
      %v7896 = vld [vmem:[%s1413 + $0xa] sm:$0xff]
      %v7897 = vld [vmem:[%s1413 + $0x1a] sm:$0xff]
      %v7898 = vld [vmem:[%s1413 + $0x22] sm:$0xff]
      %v7899 = vld [vmem:[%s1413 + $0x32] sm:$0xff]
      %v7900 = vld [vmem:[%s1413 + $0x3a] sm:$0xff]
      %v7901 = vld [vmem:[%s1413 + $0x4a] sm:$0xff]
      %v7902 = vld [vmem:[%s1413 + $0x52] sm:$0xff]
      %v7903 = vld [vmem:[%s1413 + $0x62] sm:$0xff]
      %v7904 = vld [vmem:[%s1413 + $0x6a] sm:$0xff]
      %v7905 = vld [vmem:[%s1413 + $0x7a] sm:$0xff]
      %v7906 = vld [vmem:[%s1413 + $0x82] sm:$0xff]
      %v7907 = vld [vmem:[%s1413 + $0x92] sm:$0xff]
      %v7908 = vld [vmem:[%s1413 + $0x9a] sm:$0xff]
      %v7909 = vld [vmem:[%s1413 + $0xaa] sm:$0xff]
      %v7910 = vld [vmem:[%s1413 + $0xb2] sm:$0xff]
      %v7911 = vld [vmem:[%s1413 + $0xc2] sm:$0xff]
      %v7912 = vld [vmem:[%s1413 + $0xca] sm:$0xff]
      %v7913 = vld [vmem:[%s1413 + $0xda] sm:$0xff]
      %v7914 = vld [vmem:[%s1413 + $0xe2] sm:$0xff]
      %v7915 = vld [vmem:[%s1413 + $0xf2] sm:$0xff]
      %v7916 = vld [vmem:[%s1413 + $0xfa] sm:$0xff]
      %v7917 = vld [vmem:[%s1413 + $0x10a] sm:$0xff]
      %v7918 = vld [vmem:[%s1413 + $0x112] sm:$0xff]
      %v7919 = vld [vmem:[%s1413 + $0x122] sm:$0xff]
      %v7920 = vld [vmem:[%s1413 + $0x12a] sm:$0xff]
      %v7921 = vld [vmem:[%s1413 + $0x13a] sm:$0xff]
      %v7922 = vld [vmem:[%s1413 + $0x142] sm:$0xff]
      %v7923 = vld [vmem:[%s1413 + $0x152] sm:$0xff]
      %v7924 = vld [vmem:[%s1413 + $0x15a] sm:$0xff]
      %v7925 = vld [vmem:[%s1413 + $0x16a] sm:$0xff]
      %v7926 = vld [vmem:[%s1413 + $0x172] sm:$0xff]
      %7959 = vrot.lane.b32.xlu0 %v7895, 32
      %v7960 = vpop.permute.xlu0 %7959
      %7961 = vrot.lane.b32.xlu0 %v7896, 32
      %v7962 = vpop.permute.xlu0 %7961
      %7963 = vrot.lane.b32.xlu0 %v7897, 32
      %v7964 = vpop.permute.xlu0 %7963
      %7965 = vrot.lane.b32.xlu0 %v7898, 32
      %v7966 = vpop.permute.xlu0 %7965
      %7967 = vrot.lane.b32.xlu0 %v7899, 32
      %v7968 = vpop.permute.xlu0 %7967
      %7969 = vrot.lane.b32.xlu0 %v7900, 32
      %v7970 = vpop.permute.xlu0 %7969
      %7971 = vrot.lane.b32.xlu0 %v7901, 32
      %v7972 = vpop.permute.xlu0 %7971
      %7973 = vrot.lane.b32.xlu0 %v7902, 32
      %v7974 = vpop.permute.xlu0 %7973
      %7975 = vrot.lane.b32.xlu0 %v7903, 32
      %v7976 = vpop.permute.xlu0 %7975
      %7977 = vrot.lane.b32.xlu0 %v7904, 32
      %v7978 = vpop.permute.xlu0 %7977
      %7979 = vrot.lane.b32.xlu0 %v7905, 32
      %v7980 = vpop.permute.xlu0 %7979
      %7981 = vrot.lane.b32.xlu0 %v7906, 32
      %v7982 = vpop.permute.xlu0 %7981
      %7983 = vrot.lane.b32.xlu0 %v7907, 32
      %v7984 = vpop.permute.xlu0 %7983
      %7985 = vrot.lane.b32.xlu0 %v7908, 32
      %v7986 = vpop.permute.xlu0 %7985
      %7987 = vrot.lane.b32.xlu0 %v7909, 32
      %v7988 = vpop.permute.xlu0 %7987
      %7989 = vrot.lane.b32.xlu0 %v7910, 32
      %v7990 = vpop.permute.xlu0 %7989
      %7991 = vrot.lane.b32.xlu0 %v7911, 32
      %v7992 = vpop.permute.xlu0 %7991
      %7993 = vrot.lane.b32.xlu0 %v7912, 32
      %v7994 = vpop.permute.xlu0 %7993
      %7995 = vrot.lane.b32.xlu0 %v7913, 32
      %v7996 = vpop.permute.xlu0 %7995
      %7997 = vrot.lane.b32.xlu0 %v7914, 32
      %v7998 = vpop.permute.xlu0 %7997
      %7999 = vrot.lane.b32.xlu0 %v7915, 32
      %v8000 = vpop.permute.xlu0 %7999
      %8001 = vrot.lane.b32.xlu0 %v7916, 32
      %v8002 = vpop.permute.xlu0 %8001
      %8003 = vrot.lane.b32.xlu0 %v7917, 32
      %v8004 = vpop.permute.xlu0 %8003
      %8005 = vrot.lane.b32.xlu0 %v7918, 32
      %v8006 = vpop.permute.xlu0 %8005
      %8007 = vrot.lane.b32.xlu0 %v7919, 32
      %v8008 = vpop.permute.xlu0 %8007
      %8009 = vrot.lane.b32.xlu0 %v7920, 32
      %v8010 = vpop.permute.xlu0 %8009
      %8011 = vrot.lane.b32.xlu0 %v7921, 32
      %v8012 = vpop.permute.xlu0 %8011
      %8013 = vrot.lane.b32.xlu0 %v7922, 32
      %v8014 = vpop.permute.xlu0 %8013
      %8015 = vrot.lane.b32.xlu0 %v7923, 32
      %v8016 = vpop.permute.xlu0 %8015
      %8017 = vrot.lane.b32.xlu0 %v7924, 32
      %v8018 = vpop.permute.xlu0 %8017
      %8019 = vrot.lane.b32.xlu0 %v7925, 32
      %v8020 = vpop.permute.xlu0 %8019
      %8021 = vrot.lane.b32.xlu0 %v7926, 32
      %v8022 = vpop.permute.xlu0 %8021
      %8055 = vst.msk [vmem:[#allocation3] sm:$0xff] %vm1960, %v7960
      %8056 = vst.msk [vmem:[#allocation3 + $0x8] sm:$0xff] %vm1960, %v7962
      %8057 = vst.msk [vmem:[#allocation3 + $0x10] sm:$0xff] %vm1960, %v7964
      %8058 = vst.msk [vmem:[#allocation3 + $0x18] sm:$0xff] %vm1960, %v7966
      %8059 = vst.msk [vmem:[#allocation3 + $0x20] sm:$0xff] %vm1960, %v7968
      %8060 = vst.msk [vmem:[#allocation3 + $0x28] sm:$0xff] %vm1960, %v7970
      %8061 = vst.msk [vmem:[#allocation3 + $0x30] sm:$0xff] %vm1960, %v7972
      %8062 = vst.msk [vmem:[#allocation3 + $0x38] sm:$0xff] %vm1960, %v7974
      %8063 = vst.msk [vmem:[#allocation3 + $0x40] sm:$0xff] %vm1960, %v7976
      %8064 = vst.msk [vmem:[#allocation3 + $0x48] sm:$0xff] %vm1960, %v7978
      %8065 = vst.msk [vmem:[#allocation3 + $0x50] sm:$0xff] %vm1960, %v7980
      %8066 = vst.msk [vmem:[#allocation3 + $0x58] sm:$0xff] %vm1960, %v7982
      %8067 = vst.msk [vmem:[#allocation3 + $0x60] sm:$0xff] %vm1960, %v7984
      %8068 = vst.msk [vmem:[#allocation3 + $0x68] sm:$0xff] %vm1960, %v7986
      %8069 = vst.msk [vmem:[#allocation3 + $0x70] sm:$0xff] %vm1960, %v7988
      %8070 = vst.msk [vmem:[#allocation3 + $0x78] sm:$0xff] %vm1960, %v7990
      %8071 = vst.msk [vmem:[#allocation3 + $0x80] sm:$0xff] %vm1960, %v7992
      %8072 = vst.msk [vmem:[#allocation3 + $0x88] sm:$0xff] %vm1960, %v7994
      %8073 = vst.msk [vmem:[#allocation3 + $0x90] sm:$0xff] %vm1960, %v7996
      %8074 = vst.msk [vmem:[#allocation3 + $0x98] sm:$0xff] %vm1960, %v7998
      %8075 = vst.msk [vmem:[#allocation3 + $0xa0] sm:$0xff] %vm1960, %v8000
      %8076 = vst.msk [vmem:[#allocation3 + $0xa8] sm:$0xff] %vm1960, %v8002
      %8077 = vst.msk [vmem:[#allocation3 + $0xb0] sm:$0xff] %vm1960, %v8004
      %8078 = vst.msk [vmem:[#allocation3 + $0xb8] sm:$0xff] %vm1960, %v8006
      %8079 = vst.msk [vmem:[#allocation3 + $0xc0] sm:$0xff] %vm1960, %v8008
      %8080 = vst.msk [vmem:[#allocation3 + $0xc8] sm:$0xff] %vm1960, %v8010
      %8081 = vst.msk [vmem:[#allocation3 + $0xd0] sm:$0xff] %vm1960, %v8012
      %8082 = vst.msk [vmem:[#allocation3 + $0xd8] sm:$0xff] %vm1960, %v8014
      %8083 = vst.msk [vmem:[#allocation3 + $0xe0] sm:$0xff] %vm1960, %v8016
      %8084 = vst.msk [vmem:[#allocation3 + $0xe8] sm:$0xff] %vm1960, %v8018
      %8085 = vst.msk [vmem:[#allocation3 + $0xf0] sm:$0xff] %vm1960, %v8020
      %8086 = vst.msk [vmem:[#allocation3 + $0xf8] sm:$0xff] %vm1960, %v8022
      %v8087 = vld [vmem:[#allocation3] sm:$0xff]
      %v8088 = vld [vmem:[#allocation3 + $0x8] sm:$0xff]
      %v8089 = vld [vmem:[#allocation3 + $0x10] sm:$0xff]
      %v8090 = vld [vmem:[#allocation3 + $0x18] sm:$0xff]
      %v8091 = vld [vmem:[#allocation3 + $0x20] sm:$0xff]
      %v8092 = vld [vmem:[#allocation3 + $0x28] sm:$0xff]
      %v8093 = vld [vmem:[#allocation3 + $0x30] sm:$0xff]
      %v8094 = vld [vmem:[#allocation3 + $0x38] sm:$0xff]
      %v8095 = vld [vmem:[#allocation3 + $0x40] sm:$0xff]
      %v8096 = vld [vmem:[#allocation3 + $0x48] sm:$0xff]
      %v8097 = vld [vmem:[#allocation3 + $0x50] sm:$0xff]
      %v8098 = vld [vmem:[#allocation3 + $0x58] sm:$0xff]
      %v8099 = vld [vmem:[#allocation3 + $0x60] sm:$0xff]
      %v8100 = vld [vmem:[#allocation3 + $0x68] sm:$0xff]
      %v8101 = vld [vmem:[#allocation3 + $0x70] sm:$0xff]
      %v8102 = vld [vmem:[#allocation3 + $0x78] sm:$0xff]
      %v8103 = vld [vmem:[#allocation3 + $0x80] sm:$0xff]
      %v8104 = vld [vmem:[#allocation3 + $0x88] sm:$0xff]
      %v8105 = vld [vmem:[#allocation3 + $0x90] sm:$0xff]
      %v8106 = vld [vmem:[#allocation3 + $0x98] sm:$0xff]
      %v8107 = vld [vmem:[#allocation3 + $0xa0] sm:$0xff]
      %v8108 = vld [vmem:[#allocation3 + $0xa8] sm:$0xff]
      %v8109 = vld [vmem:[#allocation3 + $0xb0] sm:$0xff]
      %v8110 = vld [vmem:[#allocation3 + $0xb8] sm:$0xff]
      %v8111 = vld [vmem:[#allocation3 + $0xc0] sm:$0xff]
      %v8112 = vld [vmem:[#allocation3 + $0xc8] sm:$0xff]
      %v8113 = vld [vmem:[#allocation3 + $0xd0] sm:$0xff]
      %v8114 = vld [vmem:[#allocation3 + $0xd8] sm:$0xff]
      %v8115 = vld [vmem:[#allocation3 + $0xe0] sm:$0xff]
      %v8116 = vld [vmem:[#allocation3 + $0xe8] sm:$0xff]
      %v8117 = vld [vmem:[#allocation3 + $0xf0] sm:$0xff]
      %v8118 = vld [vmem:[#allocation3 + $0xf8] sm:$0xff]
      %v8119 = vpack.c.bf16 %v8088, %v8087
      %v8120 = vpack.c.bf16 %v8090, %v8089
      %v8121 = vpack.c.bf16 %v8092, %v8091
      %v8122 = vpack.c.bf16 %v8094, %v8093
      %v8123 = vpack.c.bf16 %v8096, %v8095
      %v8124 = vpack.c.bf16 %v8098, %v8097
      %v8125 = vpack.c.bf16 %v8100, %v8099
      %v8126 = vpack.c.bf16 %v8102, %v8101
      %v8127 = vpack.c.bf16 %v8104, %v8103
      %v8128 = vpack.c.bf16 %v8106, %v8105
      %v8129 = vpack.c.bf16 %v8108, %v8107
      %v8130 = vpack.c.bf16 %v8110, %v8109
      %v8131 = vpack.c.bf16 %v8112, %v8111
      %v8132 = vpack.c.bf16 %v8114, %v8113
      %v8133 = vpack.c.bf16 %v8116, %v8115
      %v8134 = vpack.c.bf16 %v8118, %v8117
      %v8135 = vlaneseq
      %v8136 = vshrl.u32 %v8135, 7
      %v8137 = vsub.s32 0, %v8136
      %v8138 = vrot.slane %v6453, %v8137
      %v8144 = vunpack.c.l.b16 %v6448
      %v8145 = vunpack.c.l.b16 %v6449
      %v8146 = vunpack.c.l.b16 %v6450
      %v8147 = vunpack.c.l.b16 %v6451
      %v8148 = vunpack.c.l.b16 %v6452
      %v8149 = vpack.c.b16 %v8145, %v8144
      %v8150 = vpack.c.b16 %v8147, %v8146
      %v8151 = vpack.c.b16 %v8148, %v8148
      %v8152 = vrot.slane %v8149, 2
      %v8153 = vrot.slane %v8150, 2
      %v8154 = vsel %vm4078, %v8152, %v8153
      %v8155 = vrot.slane %v8151, 2
      %v8156 = vsel %vm4078, %v8153, %v8155
      %v8160 = vsel %vm2060, %v8119, 0
      %v8163 = vsel %vm2060, %v8120, 0
      %v8166 = vsel %vm2060, %v8121, 0
      %v8169 = vsel %vm2060, %v8122, 0
      %v8172 = vsel %vm2060, %v8123, 0
      %v8175 = vsel %vm2060, %v8124, 0
      %v8178 = vsel %vm2060, %v8125, 0
      %v8181 = vsel %vm2060, %v8126, 0
      %v8184 = vsel %vm2060, %v8127, 0
      %v8187 = vsel %vm2060, %v8128, 0
      %v8190 = vsel %vm2060, %v8129, 0
      %v8193 = vsel %vm2060, %v8130, 0
      %v8196 = vsel %vm2060, %v8131, 0
      %v8199 = vsel %vm2060, %v8132, 0
      %v8202 = vsel %vm2060, %v8133, 0
      %v8205 = vsel %vm2060, %v8134, 0
      %v8208 = vsel %vm2109, %v8155, 0
      %8210 = vmatprep.subr.bf16.mxu0 0
      %8211 = vmatpush1.bf16.msra.mxu0 %v8154
      %8212 = vmatprep.subr.bf16.mxu0 0
      %8213 = vmatpush1.bf16.msra.mxu0 %v8156
      %8214 = vmatprep.subr.bf16.mxu0 0
      %8215 = vmatpush1.bf16.msra.mxu0 %v8208
      %8216 = vmatprep.subr.bf16.mxu0 0
      %8217 = vmatpush1.bf16.msra.mxu0 0
      %8218 = vmatprep.subr.bf16.mxu0 0
      %8219 = vmatpush1.bf16.msra.mxu0 0
      %8220 = vmatprep.subr.bf16.mxu0 0
      %8221 = vmatpush1.bf16.msra.mxu0 0
      %8222 = vmatprep.subr.bf16.mxu0 0
      %8223 = vmatpush1.bf16.msra.mxu0 0
      %8224 = vmatprep.subr.bf16.mxu0 0
      %8225 = vmatpush1.bf16.msra.mxu0 0
      %8226 = vmatprep.subr.bf16.mxu0 0
      %8227 = vmatpush1.bf16.msra.mxu0 0
      %8228 = vmatprep.subr.bf16.mxu0 0
      %8229 = vmatpush1.bf16.msra.mxu0 0
      %8230 = vmatprep.subr.bf16.mxu0 0
      %8231 = vmatpush1.bf16.msra.mxu0 0
      %8232 = vmatprep.subr.bf16.mxu0 0
      %8233 = vmatpush1.bf16.msra.mxu0 0
      %8234 = vmatprep.subr.bf16.mxu0 0
      %8235 = vmatpush1.bf16.msra.mxu0 0
      %8236 = vmatprep.subr.bf16.mxu0 0
      %8237 = vmatpush1.bf16.msra.mxu0 0
      %8238 = vmatprep.subr.bf16.mxu0 0
      %8239 = vmatpush1.bf16.msra.mxu0 0
      %8240 = vmatprep.subr.bf16.mxu0 0
      %8241 = vmatpush1.bf16.msra.mxu0 0
      %8242 = vmatprep.mubr.bf16.mxu0 0
      %8243 = vmatmul.mubr.bf16.gmra.mrb[0].mxu0 %v8160
      %v8244 = vpop.f32.mrb[0].mxu0
      %v8245 = vadd.f32 %v8138, %v8244
      %v8246 = vpop.f32.mrb[0].mxu0
      %v8247 = vpop.f32.mrb[0].mxu0
      %v8248 = vadd.f32 %v8138, %v8247
      %v8249 = vpop.f32.mrb[0].mxu0
      %8250 = vmatprep.mubr.bf16.mxu0 0
      %8251 = vmatmul.mubr.bf16.gmra.mrb[0].mxu0 %v8163
      %v8252 = vpop.f32.mrb[0].mxu0
      %v8253 = vadd.f32 %v8138, %v8252
      %v8254 = vpop.f32.mrb[0].mxu0
      %v8255 = vpop.f32.mrb[0].mxu0
      %v8256 = vadd.f32 %v8138, %v8255
      %v8257 = vpop.f32.mrb[0].mxu0
      %8258 = vmatprep.mubr.bf16.mxu0 0
      %8259 = vmatmul.mubr.bf16.gmra.mrb[0].mxu0 %v8166
      %v8260 = vpop.f32.mrb[0].mxu0
      %v8261 = vadd.f32 %v8138, %v8260
      %v8262 = vpop.f32.mrb[0].mxu0
      %v8263 = vpop.f32.mrb[0].mxu0
      %v8264 = vadd.f32 %v8138, %v8263
      %v8265 = vpop.f32.mrb[0].mxu0
      %8266 = vmatprep.mubr.bf16.mxu0 0
      %8267 = vmatmul.mubr.bf16.gmra.mrb[0].mxu0 %v8169
      %v8268 = vpop.f32.mrb[0].mxu0
      %v8269 = vadd.f32 %v8138, %v8268
      %v8270 = vpop.f32.mrb[0].mxu0
      %v8271 = vpop.f32.mrb[0].mxu0
      %v8272 = vadd.f32 %v8138, %v8271
      %v8273 = vpop.f32.mrb[0].mxu0
      %8274 = vmatprep.mubr.bf16.mxu0 0
      %8275 = vmatmul.mubr.bf16.gmra.mrb[0].mxu0 %v8172
      %v8276 = vpop.f32.mrb[0].mxu0
      %v8277 = vadd.f32 %v8138, %v8276
      %v8278 = vpop.f32.mrb[0].mxu0
      %v8279 = vpop.f32.mrb[0].mxu0
      %v8280 = vadd.f32 %v8138, %v8279
      %v8281 = vpop.f32.mrb[0].mxu0
      %8282 = vmatprep.mubr.bf16.mxu0 0
      %8283 = vmatmul.mubr.bf16.gmra.mrb[0].mxu0 %v8175
      %v8284 = vpop.f32.mrb[0].mxu0
      %v8285 = vadd.f32 %v8138, %v8284
      %v8286 = vpop.f32.mrb[0].mxu0
      %v8287 = vpop.f32.mrb[0].mxu0
      %v8288 = vadd.f32 %v8138, %v8287
      %v8289 = vpop.f32.mrb[0].mxu0
      %8290 = vmatprep.mubr.bf16.mxu0 0
      %8291 = vmatmul.mubr.bf16.gmra.mrb[0].mxu0 %v8178
      %v8292 = vpop.f32.mrb[0].mxu0
      %v8293 = vadd.f32 %v8138, %v8292
      %v8294 = vpop.f32.mrb[0].mxu0
      %v8295 = vpop.f32.mrb[0].mxu0
      %v8296 = vadd.f32 %v8138, %v8295
      %v8297 = vpop.f32.mrb[0].mxu0
      %8298 = vmatprep.mubr.bf16.mxu0 0
      %8299 = vmatmul.mubr.bf16.gmra.mrb[0].mxu0 %v8181
      %v8300 = vpop.f32.mrb[0].mxu0
      %v8301 = vadd.f32 %v8138, %v8300
      %v8302 = vpop.f32.mrb[0].mxu0
      %v8303 = vpop.f32.mrb[0].mxu0
      %v8304 = vadd.f32 %v8138, %v8303
      %v8305 = vpop.f32.mrb[0].mxu0
      %8306 = vmatprep.mubr.bf16.mxu0 0
      %8307 = vmatmul.mubr.bf16.gmra.mrb[0].mxu0 %v8184
      %v8308 = vpop.f32.mrb[0].mxu0
      %v8309 = vadd.f32 %v8138, %v8308
      %v8310 = vpop.f32.mrb[0].mxu0
      %v8311 = vpop.f32.mrb[0].mxu0
      %v8312 = vadd.f32 %v8138, %v8311
      %v8313 = vpop.f32.mrb[0].mxu0
      %8314 = vmatprep.mubr.bf16.mxu0 0
      %8315 = vmatmul.mubr.bf16.gmra.mrb[0].mxu0 %v8187
      %v8316 = vpop.f32.mrb[0].mxu0
      %v8317 = vadd.f32 %v8138, %v8316
      %v8318 = vpop.f32.mrb[0].mxu0
      %v8319 = vpop.f32.mrb[0].mxu0
      %v8320 = vadd.f32 %v8138, %v8319
      %v8321 = vpop.f32.mrb[0].mxu0
      %8322 = vmatprep.mubr.bf16.mxu0 0
      %8323 = vmatmul.mubr.bf16.gmra.mrb[0].mxu0 %v8190
      %v8324 = vpop.f32.mrb[0].mxu0
      %v8325 = vadd.f32 %v8138, %v8324
      %v8326 = vpop.f32.mrb[0].mxu0
      %v8327 = vpop.f32.mrb[0].mxu0
      %v8328 = vadd.f32 %v8138, %v8327
      %v8329 = vpop.f32.mrb[0].mxu0
      %8330 = vmatprep.mubr.bf16.mxu0 0
      %8331 = vmatmul.mubr.bf16.gmra.mrb[0].mxu0 %v8193
      %v8332 = vpop.f32.mrb[0].mxu0
      %v8333 = vadd.f32 %v8138, %v8332
      %v8334 = vpop.f32.mrb[0].mxu0
      %v8335 = vpop.f32.mrb[0].mxu0
      %v8336 = vadd.f32 %v8138, %v8335
      %v8337 = vpop.f32.mrb[0].mxu0
      %8338 = vmatprep.mubr.bf16.mxu0 0
      %8339 = vmatmul.mubr.bf16.gmra.mrb[0].mxu0 %v8196
      %v8340 = vpop.f32.mrb[0].mxu0
      %v8341 = vadd.f32 %v8138, %v8340
      %v8342 = vpop.f32.mrb[0].mxu0
      %v8343 = vpop.f32.mrb[0].mxu0
      %v8344 = vadd.f32 %v8138, %v8343
      %v8345 = vpop.f32.mrb[0].mxu0
      %8346 = vmatprep.mubr.bf16.mxu0 0
      %8347 = vmatmul.mubr.bf16.gmra.mrb[0].mxu0 %v8199
      %v8348 = vpop.f32.mrb[0].mxu0
      %v8349 = vadd.f32 %v8138, %v8348
      %v8350 = vpop.f32.mrb[0].mxu0
      %v8351 = vpop.f32.mrb[0].mxu0
      %v8352 = vadd.f32 %v8138, %v8351
      %v8353 = vpop.f32.mrb[0].mxu0
      %8354 = vmatprep.mubr.bf16.mxu0 0
      %8355 = vmatmul.mubr.bf16.gmra.mrb[0].mxu0 %v8202
      %v8356 = vpop.f32.mrb[0].mxu0
      %v8357 = vadd.f32 %v8138, %v8356
      %v8358 = vpop.f32.mrb[0].mxu0
      %v8359 = vpop.f32.mrb[0].mxu0
      %v8360 = vadd.f32 %v8138, %v8359
      %v8361 = vpop.f32.mrb[0].mxu0
      %8362 = vmatprep.mubr.bf16.mxu0 0
      %8363 = vmatmul.mubr.bf16.gmra.mrb[0].mxu0 %v8205
      %v8364 = vpop.f32.mrb[0].mxu0
      %v8365 = vadd.f32 %v8138, %v8364
      %v8366 = vpop.f32.mrb[0].mxu0
      %v8367 = vpop.f32.mrb[0].mxu0
      %v8368 = vadd.f32 %v8138, %v8367
      %v8369 = vpop.f32.mrb[0].mxu0
      %8370 = vdwg.mxu0
      %vm8371 = vcmp.ge.f32.partialorder %v8245, 0.0
      %vm8372 = vcmp.ge.f32.partialorder %v8248, 0.0
      %vm8373 = vcmp.ge.f32.partialorder %v8253, 0.0
      %vm8374 = vcmp.ge.f32.partialorder %v8256, 0.0
      %vm8375 = vcmp.ge.f32.partialorder %v8261, 0.0
      %vm8376 = vcmp.ge.f32.partialorder %v8264, 0.0
      %vm8377 = vcmp.ge.f32.partialorder %v8269, 0.0
      %vm8378 = vcmp.ge.f32.partialorder %v8272, 0.0
      %vm8379 = vcmp.ge.f32.partialorder %v8277, 0.0
      %vm8380 = vcmp.ge.f32.partialorder %v8280, 0.0
      %vm8381 = vcmp.ge.f32.partialorder %v8285, 0.0
      %vm8382 = vcmp.ge.f32.partialorder %v8288, 0.0
      %vm8383 = vcmp.ge.f32.partialorder %v8293, 0.0
      %vm8384 = vcmp.ge.f32.partialorder %v8296, 0.0
      %vm8385 = vcmp.ge.f32.partialorder %v8301, 0.0
      %vm8386 = vcmp.ge.f32.partialorder %v8304, 0.0
      %vm8387 = vcmp.ge.f32.partialorder %v8309, 0.0
      %vm8388 = vcmp.ge.f32.partialorder %v8312, 0.0
      %vm8389 = vcmp.ge.f32.partialorder %v8317, 0.0
      %vm8390 = vcmp.ge.f32.partialorder %v8320, 0.0
      %vm8391 = vcmp.ge.f32.partialorder %v8325, 0.0
      %vm8392 = vcmp.ge.f32.partialorder %v8328, 0.0
      %vm8393 = vcmp.ge.f32.partialorder %v8333, 0.0
      %vm8394 = vcmp.ge.f32.partialorder %v8336, 0.0
      %vm8395 = vcmp.ge.f32.partialorder %v8341, 0.0
      %vm8396 = vcmp.ge.f32.partialorder %v8344, 0.0
      %vm8397 = vcmp.ge.f32.partialorder %v8349, 0.0
      %vm8398 = vcmp.ge.f32.partialorder %v8352, 0.0
      %vm8399 = vcmp.ge.f32.partialorder %v8357, 0.0
      %vm8400 = vcmp.ge.f32.partialorder %v8360, 0.0
      %vm8401 = vcmp.ge.f32.partialorder %v8365, 0.0
      %vm8402 = vcmp.ge.f32.partialorder %v8368, 0.0
      %v8403 = vlaneseq
      %v8404 = vshrl.u32 %v8403, 7
      %v8405 = vsub.s32 0, %v8404
      %v8406 = vrot.slane %v6454, %v8405
      %v8407 = vmul.f32 %v8406, %v8245
      %v8408 = vmul.f32 %v8406, %v8248
      %v8409 = vmul.f32 %v8406, %v8253
      %v8410 = vmul.f32 %v8406, %v8256
      %v8411 = vmul.f32 %v8406, %v8261
      %v8412 = vmul.f32 %v8406, %v8264
      %v8413 = vmul.f32 %v8406, %v8269
      %v8414 = vmul.f32 %v8406, %v8272
      %v8415 = vmul.f32 %v8406, %v8277
      %v8416 = vmul.f32 %v8406, %v8280
      %v8417 = vmul.f32 %v8406, %v8285
      %v8418 = vmul.f32 %v8406, %v8288
      %v8419 = vmul.f32 %v8406, %v8293
      %v8420 = vmul.f32 %v8406, %v8296
      %v8421 = vmul.f32 %v8406, %v8301
      %v8422 = vmul.f32 %v8406, %v8304
      %v8423 = vmul.f32 %v8406, %v8309
      %v8424 = vmul.f32 %v8406, %v8312
      %v8425 = vmul.f32 %v8406, %v8317
      %v8426 = vmul.f32 %v8406, %v8320
      %v8427 = vmul.f32 %v8406, %v8325
      %v8428 = vmul.f32 %v8406, %v8328
      %v8429 = vmul.f32 %v8406, %v8333
      %v8430 = vmul.f32 %v8406, %v8336
      %v8431 = vmul.f32 %v8406, %v8341
      %v8432 = vmul.f32 %v8406, %v8344
      %v8433 = vmul.f32 %v8406, %v8349
      %v8434 = vmul.f32 %v8406, %v8352
      %v8435 = vmul.f32 %v8406, %v8357
      %v8436 = vmul.f32 %v8406, %v8360
      %v8437 = vmul.f32 %v8406, %v8365
      %v8438 = vmul.f32 %v8406, %v8368
      %v8439 = vsel %vm8371, %v8245, %v8407
      %v8440 = vsel %vm8372, %v8248, %v8408
      %v8441 = vsel %vm8373, %v8253, %v8409
      %v8442 = vsel %vm8374, %v8256, %v8410
      %v8443 = vsel %vm8375, %v8261, %v8411
      %v8444 = vsel %vm8376, %v8264, %v8412
      %v8445 = vsel %vm8377, %v8269, %v8413
      %v8446 = vsel %vm8378, %v8272, %v8414
      %v8447 = vsel %vm8379, %v8277, %v8415
      %v8448 = vsel %vm8380, %v8280, %v8416
      %v8449 = vsel %vm8381, %v8285, %v8417
      %v8450 = vsel %vm8382, %v8288, %v8418
      %v8451 = vsel %vm8383, %v8293, %v8419
      %v8452 = vsel %vm8384, %v8296, %v8420
      %v8453 = vsel %vm8385, %v8301, %v8421
      %v8454 = vsel %vm8386, %v8304, %v8422
      %v8455 = vsel %vm8387, %v8309, %v8423
      %v8456 = vsel %vm8388, %v8312, %v8424
      %v8457 = vsel %vm8389, %v8317, %v8425
      %v8458 = vsel %vm8390, %v8320, %v8426
      %v8459 = vsel %vm8391, %v8325, %v8427
      %v8460 = vsel %vm8392, %v8328, %v8428
      %v8461 = vsel %vm8393, %v8333, %v8429
      %v8462 = vsel %vm8394, %v8336, %v8430
      %v8463 = vsel %vm8395, %v8341, %v8431
      %v8464 = vsel %vm8396, %v8344, %v8432
      %v8465 = vsel %vm8397, %v8349, %v8433
      %v8466 = vsel %vm8398, %v8352, %v8434
      %v8467 = vsel %vm8399, %v8357, %v8435
      %v8468 = vsel %vm8400, %v8360, %v8436
      %v8469 = vsel %vm8401, %v8365, %v8437
      %v8470 = vsel %vm8402, %v8368, %v8438
      %v8471 = vsel %vm343, %v8439, %v6416
      %v8472 = vsel %vm343, %v8440, %v6417
      %v8473 = vsel %vm343, %v8441, %v6418
      %v8474 = vsel %vm343, %v8442, %v6419
      %v8475 = vsel %vm343, %v8443, %v6420
      %v8476 = vsel %vm343, %v8444, %v6421
      %v8477 = vsel %vm343, %v8445, %v6422
      %v8478 = vsel %vm343, %v8446, %v6423
      %v8479 = vsel %vm343, %v8447, %v6424
      %v8480 = vsel %vm343, %v8448, %v6425
      %v8481 = vsel %vm343, %v8449, %v6426
      %v8482 = vsel %vm343, %v8450, %v6427
      %v8483 = vsel %vm343, %v8451, %v6428
      %v8484 = vsel %vm343, %v8452, %v6429
      %v8485 = vsel %vm343, %v8453, %v6430
      %v8486 = vsel %vm343, %v8454, %v6431
      %v8487 = vsel %vm343, %v8455, %v6432
      %v8488 = vsel %vm343, %v8456, %v6433
      %v8489 = vsel %vm343, %v8457, %v6434
      %v8490 = vsel %vm343, %v8458, %v6435
      %v8491 = vsel %vm343, %v8459, %v6436
      %v8492 = vsel %vm343, %v8460, %v6437
      %v8493 = vsel %vm343, %v8461, %v6438
      %v8494 = vsel %vm343, %v8462, %v6439
      %v8495 = vsel %vm343, %v8463, %v6440
      %v8496 = vsel %vm343, %v8464, %v6441
      %v8497 = vsel %vm343, %v8465, %v6442
      %v8498 = vsel %vm343, %v8466, %v6443
      %v8499 = vsel %vm343, %v8467, %v6444
      %v8500 = vsel %vm343, %v8468, %v6445
      %v8501 = vsel %vm343, %v8469, %v6446
      %v8502 = vsel %vm343, %v8470, %v6447
      %v8503 = vadd.f32 %v309, %v8471
      %v8504 = vadd.f32 %v310, %v8472
      %v8505 = vadd.f32 %v311, %v8473
      %v8506 = vadd.f32 %v312, %v8474
      %v8507 = vadd.f32 %v313, %v8475
      %v8508 = vadd.f32 %v314, %v8476
      %v8509 = vadd.f32 %v315, %v8477
      %v8510 = vadd.f32 %v316, %v8478
      %v8511 = vadd.f32 %v317, %v8479
      %v8512 = vadd.f32 %v318, %v8480
      %v8513 = vadd.f32 %v319, %v8481
      %v8514 = vadd.f32 %v320, %v8482
      %v8515 = vadd.f32 %v321, %v8483
      %v8516 = vadd.f32 %v322, %v8484
      %v8517 = vadd.f32 %v323, %v8485
      %v8518 = vadd.f32 %v324, %v8486
      %v8519 = vadd.f32 %v325, %v8487
      %v8520 = vadd.f32 %v326, %v8488
      %v8521 = vadd.f32 %v327, %v8489
      %v8522 = vadd.f32 %v328, %v8490
      %v8523 = vadd.f32 %v329, %v8491
      %v8524 = vadd.f32 %v330, %v8492
      %v8525 = vadd.f32 %v331, %v8493
      %v8526 = vadd.f32 %v332, %v8494
      %v8527 = vadd.f32 %v333, %v8495
      %v8528 = vadd.f32 %v334, %v8496
      %v8529 = vadd.f32 %v335, %v8497
      %v8530 = vadd.f32 %v336, %v8498
      %v8531 = vadd.f32 %v337, %v8499
      %v8532 = vadd.f32 %v338, %v8500
      %v8533 = vadd.f32 %v339, %v8501
      %v8534 = vadd.f32 %v340, %v8502
      %8535 = vst.msk [vmem:[%s351 + $0x1] sm:$0xff] %vm253, %v8503
      %8536 = vst.msk [vmem:[%s351 + $0x9] sm:$0xff] %vm253, %v8504
      %8537 = vst.msk [vmem:[%s351 + $0x19] sm:$0xff] %vm253, %v8505
      %8538 = vst.msk [vmem:[%s351 + $0x21] sm:$0xff] %vm253, %v8506
      %8539 = vst.msk [vmem:[%s351 + $0x31] sm:$0xff] %vm253, %v8507
      %8540 = vst.msk [vmem:[%s351 + $0x39] sm:$0xff] %vm253, %v8508
      %8541 = vst.msk [vmem:[%s351 + $0x49] sm:$0xff] %vm253, %v8509
      %8542 = vst.msk [vmem:[%s351 + $0x51] sm:$0xff] %vm253, %v8510
      %8543 = vst.msk [vmem:[%s351 + $0x61] sm:$0xff] %vm253, %v8511
      %8544 = vst.msk [vmem:[%s351 + $0x69] sm:$0xff] %vm253, %v8512
      %8545 = vst.msk [vmem:[%s351 + $0x79] sm:$0xff] %vm253, %v8513
      %8546 = vst.msk [vmem:[%s351 + $0x81] sm:$0xff] %vm253, %v8514
      %8547 = vst.msk [vmem:[%s351 + $0x91] sm:$0xff] %vm253, %v8515
      %8548 = vst.msk [vmem:[%s351 + $0x99] sm:$0xff] %vm253, %v8516
      %8549 = vst.msk [vmem:[%s351 + $0xa9] sm:$0xff] %vm253, %v8517
      %8550 = vst.msk [vmem:[%s351 + $0xb1] sm:$0xff] %vm253, %v8518
      %8551 = vst.msk [vmem:[%s351 + $0xc1] sm:$0xff] %vm253, %v8519
      %8552 = vst.msk [vmem:[%s351 + $0xc9] sm:$0xff] %vm253, %v8520
      %8553 = vst.msk [vmem:[%s351 + $0xd9] sm:$0xff] %vm253, %v8521
      %8554 = vst.msk [vmem:[%s351 + $0xe1] sm:$0xff] %vm253, %v8522
      %8555 = vst.msk [vmem:[%s351 + $0xf1] sm:$0xff] %vm253, %v8523
      %8556 = vst.msk [vmem:[%s351 + $0xf9] sm:$0xff] %vm253, %v8524
      %8557 = vst.msk [vmem:[%s351 + $0x109] sm:$0xff] %vm253, %v8525
      %8558 = vst.msk [vmem:[%s351 + $0x111] sm:$0xff] %vm253, %v8526
      %8559 = vst.msk [vmem:[%s351 + $0x121] sm:$0xff] %vm253, %v8527
      %8560 = vst.msk [vmem:[%s351 + $0x129] sm:$0xff] %vm253, %v8528
      %8561 = vst.msk [vmem:[%s351 + $0x139] sm:$0xff] %vm253, %v8529
      %8562 = vst.msk [vmem:[%s351 + $0x141] sm:$0xff] %vm253, %v8530
      %8563 = vst.msk [vmem:[%s351 + $0x151] sm:$0xff] %vm253, %v8531
      %8564 = vst.msk [vmem:[%s351 + $0x159] sm:$0xff] %vm253, %v8532
      %8565 = vst.msk [vmem:[%s351 + $0x169] sm:$0xff] %vm253, %v8533
      %8566 = vst.msk [vmem:[%s351 + $0x171] sm:$0xff] %vm253, %v8534
      %v8567 = vld [vmem:[#allocation2] sm:$0xff]
      %v8568 = vld [vmem:[#allocation2 + $0x8] sm:$0xff]
      %v8569 = vld [vmem:[#allocation2 + $0x18] sm:$0xff]
      %v8570 = vld [vmem:[#allocation2 + $0x20] sm:$0xff]
      %v8571 = vld [vmem:[#allocation2 + $0x30] sm:$0xff]
      %v8572 = vld [vmem:[#allocation2 + $0x38] sm:$0xff]
      %v8573 = vld [vmem:[#allocation2 + $0x48] sm:$0xff]
      %v8574 = vld [vmem:[#allocation2 + $0x50] sm:$0xff]
      %v8575 = vld [vmem:[#allocation2 + $0x60] sm:$0xff]
      %v8576 = vld [vmem:[#allocation2 + $0x68] sm:$0xff]
      %v8577 = vld [vmem:[#allocation2 + $0x78] sm:$0xff]
      %v8578 = vld [vmem:[#allocation2 + $0x80] sm:$0xff]
      %v8579 = vld [vmem:[#allocation2 + $0x90] sm:$0xff]
      %v8580 = vld [vmem:[#allocation2 + $0x98] sm:$0xff]
      %v8581 = vld [vmem:[#allocation2 + $0xa8] sm:$0xff]
      %v8582 = vld [vmem:[#allocation2 + $0xb0] sm:$0xff]
      %v8583 = vld [vmem:[#allocation2 + $0xc0] sm:$0xff]
      %v8584 = vld [vmem:[#allocation2 + $0xc8] sm:$0xff]
      %v8585 = vld [vmem:[#allocation2 + $0xd8] sm:$0xff]
      %v8586 = vld [vmem:[#allocation2 + $0xe0] sm:$0xff]
      %v8587 = vld [vmem:[#allocation2 + $0xf0] sm:$0xff]
      %v8588 = vld [vmem:[#allocation2 + $0xf8] sm:$0xff]
      %v8589 = vld [vmem:[#allocation2 + $0x108] sm:$0xff]
      %v8590 = vld [vmem:[#allocation2 + $0x110] sm:$0xff]
      %v8591 = vld [vmem:[#allocation2 + $0x120] sm:$0xff]
      %v8592 = vld [vmem:[#allocation2 + $0x128] sm:$0xff]
      %v8593 = vld [vmem:[#allocation2 + $0x138] sm:$0xff]
      %v8594 = vld [vmem:[#allocation2 + $0x140] sm:$0xff]
      %v8595 = vld [vmem:[#allocation2 + $0x150] sm:$0xff]
      %v8596 = vld [vmem:[#allocation2 + $0x158] sm:$0xff]
      %v8597 = vld [vmem:[#allocation2 + $0x168] sm:$0xff]
      %v8598 = vld [vmem:[#allocation2 + $0x170] sm:$0xff]
      %8599 = vst.msk [vmem:[#allocation3] sm:$0xff] %vm253, %v8567
      %8600 = vst.msk [vmem:[#allocation3 + $0x8] sm:$0xff] %vm253, %v8568
      %8601 = vst.msk [vmem:[#allocation3 + $0x10] sm:$0xff] %vm253, %v8569
      %8602 = vst.msk [vmem:[#allocation3 + $0x18] sm:$0xff] %vm253, %v8570
      %8603 = vst.msk [vmem:[#allocation3 + $0x20] sm:$0xff] %vm253, %v8571
      %8604 = vst.msk [vmem:[#allocation3 + $0x28] sm:$0xff] %vm253, %v8572
      %8605 = vst.msk [vmem:[#allocation3 + $0x30] sm:$0xff] %vm253, %v8573
      %8606 = vst.msk [vmem:[#allocation3 + $0x38] sm:$0xff] %vm253, %v8574
      %8607 = vst.msk [vmem:[#allocation3 + $0x40] sm:$0xff] %vm253, %v8575
      %8608 = vst.msk [vmem:[#allocation3 + $0x48] sm:$0xff] %vm253, %v8576
      %8609 = vst.msk [vmem:[#allocation3 + $0x50] sm:$0xff] %vm253, %v8577
      %8610 = vst.msk [vmem:[#allocation3 + $0x58] sm:$0xff] %vm253, %v8578
      %8611 = vst.msk [vmem:[#allocation3 + $0x60] sm:$0xff] %vm253, %v8579
      %8612 = vst.msk [vmem:[#allocation3 + $0x68] sm:$0xff] %vm253, %v8580
      %8613 = vst.msk [vmem:[#allocation3 + $0x70] sm:$0xff] %vm253, %v8581
      %8614 = vst.msk [vmem:[#allocation3 + $0x78] sm:$0xff] %vm253, %v8582
      %8615 = vst.msk [vmem:[#allocation3 + $0x80] sm:$0xff] %vm253, %v8583
      %8616 = vst.msk [vmem:[#allocation3 + $0x88] sm:$0xff] %vm253, %v8584
      %8617 = vst.msk [vmem:[#allocation3 + $0x90] sm:$0xff] %vm253, %v8585
      %8618 = vst.msk [vmem:[#allocation3 + $0x98] sm:$0xff] %vm253, %v8586
      %8619 = vst.msk [vmem:[#allocation3 + $0xa0] sm:$0xff] %vm253, %v8587
      %8620 = vst.msk [vmem:[#allocation3 + $0xa8] sm:$0xff] %vm253, %v8588
      %8621 = vst.msk [vmem:[#allocation3 + $0xb0] sm:$0xff] %vm253, %v8589
      %8622 = vst.msk [vmem:[#allocation3 + $0xb8] sm:$0xff] %vm253, %v8590
      %8623 = vst.msk [vmem:[#allocation3 + $0xc0] sm:$0xff] %vm253, %v8591
      %8624 = vst.msk [vmem:[#allocation3 + $0xc8] sm:$0xff] %vm253, %v8592
      %8625 = vst.msk [vmem:[#allocation3 + $0xd0] sm:$0xff] %vm253, %v8593
      %8626 = vst.msk [vmem:[#allocation3 + $0xd8] sm:$0xff] %vm253, %v8594
      %8627 = vst.msk [vmem:[#allocation3 + $0xe0] sm:$0xff] %vm253, %v8595
      %8628 = vst.msk [vmem:[#allocation3 + $0xe8] sm:$0xff] %vm253, %v8596
      %8629 = vst.msk [vmem:[#allocation3 + $0xf0] sm:$0xff] %vm253, %v8597
      %8630 = vst.msk [vmem:[#allocation3 + $0xf8] sm:$0xff] %vm253, %v8598
      %v8631 = vld [vmem:[#allocation2 + $0x1] sm:$0xff]
      %v8632 = vld [vmem:[#allocation2 + $0x9] sm:$0xff]
      %v8633 = vld [vmem:[#allocation2 + $0x19] sm:$0xff]
      %v8634 = vld [vmem:[#allocation2 + $0x21] sm:$0xff]
      %v8635 = vld [vmem:[#allocation2 + $0x31] sm:$0xff]
      %v8636 = vld [vmem:[#allocation2 + $0x39] sm:$0xff]
      %v8637 = vld [vmem:[#allocation2 + $0x49] sm:$0xff]
      %v8638 = vld [vmem:[#allocation2 + $0x51] sm:$0xff]
      %v8639 = vld [vmem:[#allocation2 + $0x61] sm:$0xff]
      %v8640 = vld [vmem:[#allocation2 + $0x69] sm:$0xff]
      %v8641 = vld [vmem:[#allocation2 + $0x79] sm:$0xff]
      %v8642 = vld [vmem:[#allocation2 + $0x81] sm:$0xff]
      %v8643 = vld [vmem:[#allocation2 + $0x91] sm:$0xff]
      %v8644 = vld [vmem:[#allocation2 + $0x99] sm:$0xff]
      %v8645 = vld [vmem:[#allocation2 + $0xa9] sm:$0xff]
      %v8646 = vld [vmem:[#allocation2 + $0xb1] sm:$0xff]
      %v8647 = vld [vmem:[#allocation2 + $0xc1] sm:$0xff]
      %v8648 = vld [vmem:[#allocation2 + $0xc9] sm:$0xff]
      %v8649 = vld [vmem:[#allocation2 + $0xd9] sm:$0xff]
      %v8650 = vld [vmem:[#allocation2 + $0xe1] sm:$0xff]
      %v8651 = vld [vmem:[#allocation2 + $0xf1] sm:$0xff]
      %v8652 = vld [vmem:[#allocation2 + $0xf9] sm:$0xff]
      %v8653 = vld [vmem:[#allocation2 + $0x109] sm:$0xff]
      %v8654 = vld [vmem:[#allocation2 + $0x111] sm:$0xff]
      %v8655 = vld [vmem:[#allocation2 + $0x121] sm:$0xff]
      %v8656 = vld [vmem:[#allocation2 + $0x129] sm:$0xff]
      %v8657 = vld [vmem:[#allocation2 + $0x139] sm:$0xff]
      %v8658 = vld [vmem:[#allocation2 + $0x141] sm:$0xff]
      %v8659 = vld [vmem:[#allocation2 + $0x151] sm:$0xff]
      %v8660 = vld [vmem:[#allocation2 + $0x159] sm:$0xff]
      %v8661 = vld [vmem:[#allocation2 + $0x169] sm:$0xff]
      %v8662 = vld [vmem:[#allocation2 + $0x171] sm:$0xff]
      %8695 = vrot.lane.b32.xlu0 %v8631, 4
      %v8696 = vpop.permute.xlu0 %8695
      %8697 = vrot.lane.b32.xlu0 %v8632, 4
      %v8698 = vpop.permute.xlu0 %8697
      %8699 = vrot.lane.b32.xlu0 %v8633, 4
      %v8700 = vpop.permute.xlu0 %8699
      %8701 = vrot.lane.b32.xlu0 %v8634, 4
      %v8702 = vpop.permute.xlu0 %8701
      %8703 = vrot.lane.b32.xlu0 %v8635, 4
      %v8704 = vpop.permute.xlu0 %8703
      %8705 = vrot.lane.b32.xlu0 %v8636, 4
      %v8706 = vpop.permute.xlu0 %8705
      %8707 = vrot.lane.b32.xlu0 %v8637, 4
      %v8708 = vpop.permute.xlu0 %8707
      %8709 = vrot.lane.b32.xlu0 %v8638, 4
      %v8710 = vpop.permute.xlu0 %8709
      %8711 = vrot.lane.b32.xlu0 %v8639, 4
      %v8712 = vpop.permute.xlu0 %8711
      %8713 = vrot.lane.b32.xlu0 %v8640, 4
      %v8714 = vpop.permute.xlu0 %8713
      %8715 = vrot.lane.b32.xlu0 %v8641, 4
      %v8716 = vpop.permute.xlu0 %8715
      %8717 = vrot.lane.b32.xlu0 %v8642, 4
      %v8718 = vpop.permute.xlu0 %8717
      %8719 = vrot.lane.b32.xlu0 %v8643, 4
      %v8720 = vpop.permute.xlu0 %8719
      %8721 = vrot.lane.b32.xlu0 %v8644, 4
      %v8722 = vpop.permute.xlu0 %8721
      %8723 = vrot.lane.b32.xlu0 %v8645, 4
      %v8724 = vpop.permute.xlu0 %8723
      %8725 = vrot.lane.b32.xlu0 %v8646, 4
      %v8726 = vpop.permute.xlu0 %8725
      %8727 = vrot.lane.b32.xlu0 %v8647, 4
      %v8728 = vpop.permute.xlu0 %8727
      %8729 = vrot.lane.b32.xlu0 %v8648, 4
      %v8730 = vpop.permute.xlu0 %8729
      %8731 = vrot.lane.b32.xlu0 %v8649, 4
      %v8732 = vpop.permute.xlu0 %8731
      %8733 = vrot.lane.b32.xlu0 %v8650, 4
      %v8734 = vpop.permute.xlu0 %8733
      %8735 = vrot.lane.b32.xlu0 %v8651, 4
      %v8736 = vpop.permute.xlu0 %8735
      %8737 = vrot.lane.b32.xlu0 %v8652, 4
      %v8738 = vpop.permute.xlu0 %8737
      %8739 = vrot.lane.b32.xlu0 %v8653, 4
      %v8740 = vpop.permute.xlu0 %8739
      %8741 = vrot.lane.b32.xlu0 %v8654, 4
      %v8742 = vpop.permute.xlu0 %8741
      %8743 = vrot.lane.b32.xlu0 %v8655, 4
      %v8744 = vpop.permute.xlu0 %8743
      %8745 = vrot.lane.b32.xlu0 %v8656, 4
      %v8746 = vpop.permute.xlu0 %8745
      %8747 = vrot.lane.b32.xlu0 %v8657, 4
      %v8748 = vpop.permute.xlu0 %8747
      %8749 = vrot.lane.b32.xlu0 %v8658, 4
      %v8750 = vpop.permute.xlu0 %8749
      %8751 = vrot.lane.b32.xlu0 %v8659, 4
      %v8752 = vpop.permute.xlu0 %8751
      %8753 = vrot.lane.b32.xlu0 %v8660, 4
      %v8754 = vpop.permute.xlu0 %8753
      %8755 = vrot.lane.b32.xlu0 %v8661, 4
      %v8756 = vpop.permute.xlu0 %8755
      %8757 = vrot.lane.b32.xlu0 %v8662, 4
      %v8758 = vpop.permute.xlu0 %8757
      %8791 = vst.msk [vmem:[#allocation3] sm:$0xff] %vm608, %v8696
      %8792 = vst.msk [vmem:[#allocation3 + $0x8] sm:$0xff] %vm608, %v8698
      %8793 = vst.msk [vmem:[#allocation3 + $0x10] sm:$0xff] %vm608, %v8700
      %8794 = vst.msk [vmem:[#allocation3 + $0x18] sm:$0xff] %vm608, %v8702
      %8795 = vst.msk [vmem:[#allocation3 + $0x20] sm:$0xff] %vm608, %v8704
      %8796 = vst.msk [vmem:[#allocation3 + $0x28] sm:$0xff] %vm608, %v8706
      %8797 = vst.msk [vmem:[#allocation3 + $0x30] sm:$0xff] %vm608, %v8708
      %8798 = vst.msk [vmem:[#allocation3 + $0x38] sm:$0xff] %vm608, %v8710
      %8799 = vst.msk [vmem:[#allocation3 + $0x40] sm:$0xff] %vm608, %v8712
      %8800 = vst.msk [vmem:[#allocation3 + $0x48] sm:$0xff] %vm608, %v8714
      %8801 = vst.msk [vmem:[#allocation3 + $0x50] sm:$0xff] %vm608, %v8716
      %8802 = vst.msk [vmem:[#allocation3 + $0x58] sm:$0xff] %vm608, %v8718
      %8803 = vst.msk [vmem:[#allocation3 + $0x60] sm:$0xff] %vm608, %v8720
      %8804 = vst.msk [vmem:[#allocation3 + $0x68] sm:$0xff] %vm608, %v8722
      %8805 = vst.msk [vmem:[#allocation3 + $0x70] sm:$0xff] %vm608, %v8724
      %8806 = vst.msk [vmem:[#allocation3 + $0x78] sm:$0xff] %vm608, %v8726
      %8807 = vst.msk [vmem:[#allocation3 + $0x80] sm:$0xff] %vm608, %v8728
      %8808 = vst.msk [vmem:[#allocation3 + $0x88] sm:$0xff] %vm608, %v8730
      %8809 = vst.msk [vmem:[#allocation3 + $0x90] sm:$0xff] %vm608, %v8732
      %8810 = vst.msk [vmem:[#allocation3 + $0x98] sm:$0xff] %vm608, %v8734
      %8811 = vst.msk [vmem:[#allocation3 + $0xa0] sm:$0xff] %vm608, %v8736
      %8812 = vst.msk [vmem:[#allocation3 + $0xa8] sm:$0xff] %vm608, %v8738
      %8813 = vst.msk [vmem:[#allocation3 + $0xb0] sm:$0xff] %vm608, %v8740
      %8814 = vst.msk [vmem:[#allocation3 + $0xb8] sm:$0xff] %vm608, %v8742
      %8815 = vst.msk [vmem:[#allocation3 + $0xc0] sm:$0xff] %vm608, %v8744
      %8816 = vst.msk [vmem:[#allocation3 + $0xc8] sm:$0xff] %vm608, %v8746
      %8817 = vst.msk [vmem:[#allocation3 + $0xd0] sm:$0xff] %vm608, %v8748
      %8818 = vst.msk [vmem:[#allocation3 + $0xd8] sm:$0xff] %vm608, %v8750
      %8819 = vst.msk [vmem:[#allocation3 + $0xe0] sm:$0xff] %vm608, %v8752
      %8820 = vst.msk [vmem:[#allocation3 + $0xe8] sm:$0xff] %vm608, %v8754
      %8821 = vst.msk [vmem:[#allocation3 + $0xf0] sm:$0xff] %vm608, %v8756
      %8822 = vst.msk [vmem:[#allocation3 + $0xf8] sm:$0xff] %vm608, %v8758
      %v8823 = vld [vmem:[#allocation2 + $0x2] sm:$0xff]
      %v8824 = vld [vmem:[#allocation2 + $0xa] sm:$0xff]
      %v8825 = vld [vmem:[#allocation2 + $0x1a] sm:$0xff]
      %v8826 = vld [vmem:[#allocation2 + $0x22] sm:$0xff]
      %v8827 = vld [vmem:[#allocation2 + $0x32] sm:$0xff]
      %v8828 = vld [vmem:[#allocation2 + $0x3a] sm:$0xff]
      %v8829 = vld [vmem:[#allocation2 + $0x4a] sm:$0xff]
      %v8830 = vld [vmem:[#allocation2 + $0x52] sm:$0xff]
      %v8831 = vld [vmem:[#allocation2 + $0x62] sm:$0xff]
      %v8832 = vld [vmem:[#allocation2 + $0x6a] sm:$0xff]
      %v8833 = vld [vmem:[#allocation2 + $0x7a] sm:$0xff]
      %v8834 = vld [vmem:[#allocation2 + $0x82] sm:$0xff]
      %v8835 = vld [vmem:[#allocation2 + $0x92] sm:$0xff]
      %v8836 = vld [vmem:[#allocation2 + $0x9a] sm:$0xff]
      %v8837 = vld [vmem:[#allocation2 + $0xaa] sm:$0xff]
      %v8838 = vld [vmem:[#allocation2 + $0xb2] sm:$0xff]
      %v8839 = vld [vmem:[#allocation2 + $0xc2] sm:$0xff]
      %v8840 = vld [vmem:[#allocation2 + $0xca] sm:$0xff]
      %v8841 = vld [vmem:[#allocation2 + $0xda] sm:$0xff]
      %v8842 = vld [vmem:[#allocation2 + $0xe2] sm:$0xff]
      %v8843 = vld [vmem:[#allocation2 + $0xf2] sm:$0xff]
      %v8844 = vld [vmem:[#allocation2 + $0xfa] sm:$0xff]
      %v8845 = vld [vmem:[#allocation2 + $0x10a] sm:$0xff]
      %v8846 = vld [vmem:[#allocation2 + $0x112] sm:$0xff]
      %v8847 = vld [vmem:[#allocation2 + $0x122] sm:$0xff]
      %v8848 = vld [vmem:[#allocation2 + $0x12a] sm:$0xff]
      %v8849 = vld [vmem:[#allocation2 + $0x13a] sm:$0xff]
      %v8850 = vld [vmem:[#allocation2 + $0x142] sm:$0xff]
      %v8851 = vld [vmem:[#allocation2 + $0x152] sm:$0xff]
      %v8852 = vld [vmem:[#allocation2 + $0x15a] sm:$0xff]
      %v8853 = vld [vmem:[#allocation2 + $0x16a] sm:$0xff]
      %v8854 = vld [vmem:[#allocation2 + $0x172] sm:$0xff]
      %8887 = vrot.lane.b32.xlu0 %v8823, 8
      %v8888 = vpop.permute.xlu0 %8887
      %8889 = vrot.lane.b32.xlu0 %v8824, 8
      %v8890 = vpop.permute.xlu0 %8889
      %8891 = vrot.lane.b32.xlu0 %v8825, 8
      %v8892 = vpop.permute.xlu0 %8891
      %8893 = vrot.lane.b32.xlu0 %v8826, 8
      %v8894 = vpop.permute.xlu0 %8893
      %8895 = vrot.lane.b32.xlu0 %v8827, 8
      %v8896 = vpop.permute.xlu0 %8895
      %8897 = vrot.lane.b32.xlu0 %v8828, 8
      %v8898 = vpop.permute.xlu0 %8897
      %8899 = vrot.lane.b32.xlu0 %v8829, 8
      %v8900 = vpop.permute.xlu0 %8899
      %8901 = vrot.lane.b32.xlu0 %v8830, 8
      %v8902 = vpop.permute.xlu0 %8901
      %8903 = vrot.lane.b32.xlu0 %v8831, 8
      %v8904 = vpop.permute.xlu0 %8903
      %8905 = vrot.lane.b32.xlu0 %v8832, 8
      %v8906 = vpop.permute.xlu0 %8905
      %8907 = vrot.lane.b32.xlu0 %v8833, 8
      %v8908 = vpop.permute.xlu0 %8907
      %8909 = vrot.lane.b32.xlu0 %v8834, 8
      %v8910 = vpop.permute.xlu0 %8909
      %8911 = vrot.lane.b32.xlu0 %v8835, 8
      %v8912 = vpop.permute.xlu0 %8911
      %8913 = vrot.lane.b32.xlu0 %v8836, 8
      %v8914 = vpop.permute.xlu0 %8913
      %8915 = vrot.lane.b32.xlu0 %v8837, 8
      %v8916 = vpop.permute.xlu0 %8915
      %8917 = vrot.lane.b32.xlu0 %v8838, 8
      %v8918 = vpop.permute.xlu0 %8917
      %8919 = vrot.lane.b32.xlu0 %v8839, 8
      %v8920 = vpop.permute.xlu0 %8919
      %8921 = vrot.lane.b32.xlu0 %v8840, 8
      %v8922 = vpop.permute.xlu0 %8921
      %8923 = vrot.lane.b32.xlu0 %v8841, 8
      %v8924 = vpop.permute.xlu0 %8923
      %8925 = vrot.lane.b32.xlu0 %v8842, 8
      %v8926 = vpop.permute.xlu0 %8925
      %8927 = vrot.lane.b32.xlu0 %v8843, 8
      %v8928 = vpop.permute.xlu0 %8927
      %8929 = vrot.lane.b32.xlu0 %v8844, 8
      %v8930 = vpop.permute.xlu0 %8929
      %8931 = vrot.lane.b32.xlu0 %v8845, 8
      %v8932 = vpop.permute.xlu0 %8931
      %8933 = vrot.lane.b32.xlu0 %v8846, 8
      %v8934 = vpop.permute.xlu0 %8933
      %8935 = vrot.lane.b32.xlu0 %v8847, 8
      %v8936 = vpop.permute.xlu0 %8935
      %8937 = vrot.lane.b32.xlu0 %v8848, 8
      %v8938 = vpop.permute.xlu0 %8937
      %8939 = vrot.lane.b32.xlu0 %v8849, 8
      %v8940 = vpop.permute.xlu0 %8939
      %8941 = vrot.lane.b32.xlu0 %v8850, 8
      %v8942 = vpop.permute.xlu0 %8941
      %8943 = vrot.lane.b32.xlu0 %v8851, 8
      %v8944 = vpop.permute.xlu0 %8943
      %8945 = vrot.lane.b32.xlu0 %v8852, 8
      %v8946 = vpop.permute.xlu0 %8945
      %8947 = vrot.lane.b32.xlu0 %v8853, 8
      %v8948 = vpop.permute.xlu0 %8947
      %8949 = vrot.lane.b32.xlu0 %v8854, 8
      %v8950 = vpop.permute.xlu0 %8949
      %8983 = vst.msk [vmem:[#allocation3] sm:$0xff] %vm801, %v8888
      %8984 = vst.msk [vmem:[#allocation3 + $0x8] sm:$0xff] %vm801, %v8890
      %8985 = vst.msk [vmem:[#allocation3 + $0x10] sm:$0xff] %vm801, %v8892
      %8986 = vst.msk [vmem:[#allocation3 + $0x18] sm:$0xff] %vm801, %v8894
      %8987 = vst.msk [vmem:[#allocation3 + $0x20] sm:$0xff] %vm801, %v8896
      %8988 = vst.msk [vmem:[#allocation3 + $0x28] sm:$0xff] %vm801, %v8898
      %8989 = vst.msk [vmem:[#allocation3 + $0x30] sm:$0xff] %vm801, %v8900
      %8990 = vst.msk [vmem:[#allocation3 + $0x38] sm:$0xff] %vm801, %v8902
      %8991 = vst.msk [vmem:[#allocation3 + $0x40] sm:$0xff] %vm801, %v8904
      %8992 = vst.msk [vmem:[#allocation3 + $0x48] sm:$0xff] %vm801, %v8906
      %8993 = vst.msk [vmem:[#allocation3 + $0x50] sm:$0xff] %vm801, %v8908
      %8994 = vst.msk [vmem:[#allocation3 + $0x58] sm:$0xff] %vm801, %v8910
      %8995 = vst.msk [vmem:[#allocation3 + $0x60] sm:$0xff] %vm801, %v8912
      %8996 = vst.msk [vmem:[#allocation3 + $0x68] sm:$0xff] %vm801, %v8914
      %8997 = vst.msk [vmem:[#allocation3 + $0x70] sm:$0xff] %vm801, %v8916
      %8998 = vst.msk [vmem:[#allocation3 + $0x78] sm:$0xff] %vm801, %v8918
      %8999 = vst.msk [vmem:[#allocation3 + $0x80] sm:$0xff] %vm801, %v8920
      %9000 = vst.msk [vmem:[#allocation3 + $0x88] sm:$0xff] %vm801, %v8922
      %9001 = vst.msk [vmem:[#allocation3 + $0x90] sm:$0xff] %vm801, %v8924
      %9002 = vst.msk [vmem:[#allocation3 + $0x98] sm:$0xff] %vm801, %v8926
      %9003 = vst.msk [vmem:[#allocation3 + $0xa0] sm:$0xff] %vm801, %v8928
      %9004 = vst.msk [vmem:[#allocation3 + $0xa8] sm:$0xff] %vm801, %v8930
      %9005 = vst.msk [vmem:[#allocation3 + $0xb0] sm:$0xff] %vm801, %v8932
      %9006 = vst.msk [vmem:[#allocation3 + $0xb8] sm:$0xff] %vm801, %v8934
      %9007 = vst.msk [vmem:[#allocation3 + $0xc0] sm:$0xff] %vm801, %v8936
      %9008 = vst.msk [vmem:[#allocation3 + $0xc8] sm:$0xff] %vm801, %v8938
      %9009 = vst.msk [vmem:[#allocation3 + $0xd0] sm:$0xff] %vm801, %v8940
      %9010 = vst.msk [vmem:[#allocation3 + $0xd8] sm:$0xff] %vm801, %v8942
      %9011 = vst.msk [vmem:[#allocation3 + $0xe0] sm:$0xff] %vm801, %v8944
      %9012 = vst.msk [vmem:[#allocation3 + $0xe8] sm:$0xff] %vm801, %v8946
      %9013 = vst.msk [vmem:[#allocation3 + $0xf0] sm:$0xff] %vm801, %v8948
      %9014 = vst.msk [vmem:[#allocation3 + $0xf8] sm:$0xff] %vm801, %v8950
      %v9015 = vld [vmem:[%s351] sm:$0xff]
      %v9016 = vld [vmem:[%s351 + $0x8] sm:$0xff]
      %v9017 = vld [vmem:[%s351 + $0x18] sm:$0xff]
      %v9018 = vld [vmem:[%s351 + $0x20] sm:$0xff]
      %v9019 = vld [vmem:[%s351 + $0x30] sm:$0xff]
      %v9020 = vld [vmem:[%s351 + $0x38] sm:$0xff]
      %v9021 = vld [vmem:[%s351 + $0x48] sm:$0xff]
      %v9022 = vld [vmem:[%s351 + $0x50] sm:$0xff]
      %v9023 = vld [vmem:[%s351 + $0x60] sm:$0xff]
      %v9024 = vld [vmem:[%s351 + $0x68] sm:$0xff]
      %v9025 = vld [vmem:[%s351 + $0x78] sm:$0xff]
      %v9026 = vld [vmem:[%s351 + $0x80] sm:$0xff]
      %v9027 = vld [vmem:[%s351 + $0x90] sm:$0xff]
      %v9028 = vld [vmem:[%s351 + $0x98] sm:$0xff]
      %v9029 = vld [vmem:[%s351 + $0xa8] sm:$0xff]
      %v9030 = vld [vmem:[%s351 + $0xb0] sm:$0xff]
      %v9031 = vld [vmem:[%s351 + $0xc0] sm:$0xff]
      %v9032 = vld [vmem:[%s351 + $0xc8] sm:$0xff]
      %v9033 = vld [vmem:[%s351 + $0xd8] sm:$0xff]
      %v9034 = vld [vmem:[%s351 + $0xe0] sm:$0xff]
      %v9035 = vld [vmem:[%s351 + $0xf0] sm:$0xff]
      %v9036 = vld [vmem:[%s351 + $0xf8] sm:$0xff]
      %v9037 = vld [vmem:[%s351 + $0x108] sm:$0xff]
      %v9038 = vld [vmem:[%s351 + $0x110] sm:$0xff]
      %v9039 = vld [vmem:[%s351 + $0x120] sm:$0xff]
      %v9040 = vld [vmem:[%s351 + $0x128] sm:$0xff]
      %v9041 = vld [vmem:[%s351 + $0x138] sm:$0xff]
      %v9042 = vld [vmem:[%s351 + $0x140] sm:$0xff]
      %v9043 = vld [vmem:[%s351 + $0x150] sm:$0xff]
      %v9044 = vld [vmem:[%s351 + $0x158] sm:$0xff]
      %v9045 = vld [vmem:[%s351 + $0x168] sm:$0xff]
      %v9046 = vld [vmem:[%s351 + $0x170] sm:$0xff]
      %9079 = vrot.lane.b32.xlu0 %v9015, 12
      %v9080 = vpop.permute.xlu0 %9079
      %9081 = vrot.lane.b32.xlu0 %v9016, 12
      %v9082 = vpop.permute.xlu0 %9081
      %9083 = vrot.lane.b32.xlu0 %v9017, 12
      %v9084 = vpop.permute.xlu0 %9083
      %9085 = vrot.lane.b32.xlu0 %v9018, 12
      %v9086 = vpop.permute.xlu0 %9085
      %9087 = vrot.lane.b32.xlu0 %v9019, 12
      %v9088 = vpop.permute.xlu0 %9087
      %9089 = vrot.lane.b32.xlu0 %v9020, 12
      %v9090 = vpop.permute.xlu0 %9089
      %9091 = vrot.lane.b32.xlu0 %v9021, 12
      %v9092 = vpop.permute.xlu0 %9091
      %9093 = vrot.lane.b32.xlu0 %v9022, 12
      %v9094 = vpop.permute.xlu0 %9093
      %9095 = vrot.lane.b32.xlu0 %v9023, 12
      %v9096 = vpop.permute.xlu0 %9095
      %9097 = vrot.lane.b32.xlu0 %v9024, 12
      %v9098 = vpop.permute.xlu0 %9097
      %9099 = vrot.lane.b32.xlu0 %v9025, 12
      %v9100 = vpop.permute.xlu0 %9099
      %9101 = vrot.lane.b32.xlu0 %v9026, 12
      %v9102 = vpop.permute.xlu0 %9101
      %9103 = vrot.lane.b32.xlu0 %v9027, 12
      %v9104 = vpop.permute.xlu0 %9103
      %9105 = vrot.lane.b32.xlu0 %v9028, 12
      %v9106 = vpop.permute.xlu0 %9105
      %9107 = vrot.lane.b32.xlu0 %v9029, 12
      %v9108 = vpop.permute.xlu0 %9107
      %9109 = vrot.lane.b32.xlu0 %v9030, 12
      %v9110 = vpop.permute.xlu0 %9109
      %9111 = vrot.lane.b32.xlu0 %v9031, 12
      %v9112 = vpop.permute.xlu0 %9111
      %9113 = vrot.lane.b32.xlu0 %v9032, 12
      %v9114 = vpop.permute.xlu0 %9113
      %9115 = vrot.lane.b32.xlu0 %v9033, 12
      %v9116 = vpop.permute.xlu0 %9115
      %9117 = vrot.lane.b32.xlu0 %v9034, 12
      %v9118 = vpop.permute.xlu0 %9117
      %9119 = vrot.lane.b32.xlu0 %v9035, 12
      %v9120 = vpop.permute.xlu0 %9119
      %9121 = vrot.lane.b32.xlu0 %v9036, 12
      %v9122 = vpop.permute.xlu0 %9121
      %9123 = vrot.lane.b32.xlu0 %v9037, 12
      %v9124 = vpop.permute.xlu0 %9123
      %9125 = vrot.lane.b32.xlu0 %v9038, 12
      %v9126 = vpop.permute.xlu0 %9125
      %9127 = vrot.lane.b32.xlu0 %v9039, 12
      %v9128 = vpop.permute.xlu0 %9127
      %9129 = vrot.lane.b32.xlu0 %v9040, 12
      %v9130 = vpop.permute.xlu0 %9129
      %9131 = vrot.lane.b32.xlu0 %v9041, 12
      %v9132 = vpop.permute.xlu0 %9131
      %9133 = vrot.lane.b32.xlu0 %v9042, 12
      %v9134 = vpop.permute.xlu0 %9133
      %9135 = vrot.lane.b32.xlu0 %v9043, 12
      %v9136 = vpop.permute.xlu0 %9135
      %9137 = vrot.lane.b32.xlu0 %v9044, 12
      %v9138 = vpop.permute.xlu0 %9137
      %9139 = vrot.lane.b32.xlu0 %v9045, 12
      %v9140 = vpop.permute.xlu0 %9139
      %9141 = vrot.lane.b32.xlu0 %v9046, 12
      %v9142 = vpop.permute.xlu0 %9141
      %9175 = vst.msk [vmem:[#allocation3] sm:$0xff] %vm994, %v9080
      %9176 = vst.msk [vmem:[#allocation3 + $0x8] sm:$0xff] %vm994, %v9082
      %9177 = vst.msk [vmem:[#allocation3 + $0x10] sm:$0xff] %vm994, %v9084
      %9178 = vst.msk [vmem:[#allocation3 + $0x18] sm:$0xff] %vm994, %v9086
      %9179 = vst.msk [vmem:[#allocation3 + $0x20] sm:$0xff] %vm994, %v9088
      %9180 = vst.msk [vmem:[#allocation3 + $0x28] sm:$0xff] %vm994, %v9090
      %9181 = vst.msk [vmem:[#allocation3 + $0x30] sm:$0xff] %vm994, %v9092
      %9182 = vst.msk [vmem:[#allocation3 + $0x38] sm:$0xff] %vm994, %v9094
      %9183 = vst.msk [vmem:[#allocation3 + $0x40] sm:$0xff] %vm994, %v9096
      %9184 = vst.msk [vmem:[#allocation3 + $0x48] sm:$0xff] %vm994, %v9098
      %9185 = vst.msk [vmem:[#allocation3 + $0x50] sm:$0xff] %vm994, %v9100
      %9186 = vst.msk [vmem:[#allocation3 + $0x58] sm:$0xff] %vm994, %v9102
      %9187 = vst.msk [vmem:[#allocation3 + $0x60] sm:$0xff] %vm994, %v9104
      %9188 = vst.msk [vmem:[#allocation3 + $0x68] sm:$0xff] %vm994, %v9106
      %9189 = vst.msk [vmem:[#allocation3 + $0x70] sm:$0xff] %vm994, %v9108
      %9190 = vst.msk [vmem:[#allocation3 + $0x78] sm:$0xff] %vm994, %v9110
      %9191 = vst.msk [vmem:[#allocation3 + $0x80] sm:$0xff] %vm994, %v9112
      %9192 = vst.msk [vmem:[#allocation3 + $0x88] sm:$0xff] %vm994, %v9114
      %9193 = vst.msk [vmem:[#allocation3 + $0x90] sm:$0xff] %vm994, %v9116
      %9194 = vst.msk [vmem:[#allocation3 + $0x98] sm:$0xff] %vm994, %v9118
      %9195 = vst.msk [vmem:[#allocation3 + $0xa0] sm:$0xff] %vm994, %v9120
      %9196 = vst.msk [vmem:[#allocation3 + $0xa8] sm:$0xff] %vm994, %v9122
      %9197 = vst.msk [vmem:[#allocation3 + $0xb0] sm:$0xff] %vm994, %v9124
      %9198 = vst.msk [vmem:[#allocation3 + $0xb8] sm:$0xff] %vm994, %v9126
      %9199 = vst.msk [vmem:[#allocation3 + $0xc0] sm:$0xff] %vm994, %v9128
      %9200 = vst.msk [vmem:[#allocation3 + $0xc8] sm:$0xff] %vm994, %v9130
      %9201 = vst.msk [vmem:[#allocation3 + $0xd0] sm:$0xff] %vm994, %v9132
      %9202 = vst.msk [vmem:[#allocation3 + $0xd8] sm:$0xff] %vm994, %v9134
      %9203 = vst.msk [vmem:[#allocation3 + $0xe0] sm:$0xff] %vm994, %v9136
      %9204 = vst.msk [vmem:[#allocation3 + $0xe8] sm:$0xff] %vm994, %v9138
      %9205 = vst.msk [vmem:[#allocation3 + $0xf0] sm:$0xff] %vm994, %v9140
      %9206 = vst.msk [vmem:[#allocation3 + $0xf8] sm:$0xff] %vm994, %v9142
      %v9207 = vld [vmem:[%s351 + $0x1] sm:$0xff]
      %v9208 = vld [vmem:[%s351 + $0x9] sm:$0xff]
      %v9209 = vld [vmem:[%s351 + $0x19] sm:$0xff]
      %v9210 = vld [vmem:[%s351 + $0x21] sm:$0xff]
      %v9211 = vld [vmem:[%s351 + $0x31] sm:$0xff]
      %v9212 = vld [vmem:[%s351 + $0x39] sm:$0xff]
      %v9213 = vld [vmem:[%s351 + $0x49] sm:$0xff]
      %v9214 = vld [vmem:[%s351 + $0x51] sm:$0xff]
      %v9215 = vld [vmem:[%s351 + $0x61] sm:$0xff]
      %v9216 = vld [vmem:[%s351 + $0x69] sm:$0xff]
      %v9217 = vld [vmem:[%s351 + $0x79] sm:$0xff]
      %v9218 = vld [vmem:[%s351 + $0x81] sm:$0xff]
      %v9219 = vld [vmem:[%s351 + $0x91] sm:$0xff]
      %v9220 = vld [vmem:[%s351 + $0x99] sm:$0xff]
      %v9221 = vld [vmem:[%s351 + $0xa9] sm:$0xff]
      %v9222 = vld [vmem:[%s351 + $0xb1] sm:$0xff]
      %v9223 = vld [vmem:[%s351 + $0xc1] sm:$0xff]
      %v9224 = vld [vmem:[%s351 + $0xc9] sm:$0xff]
      %v9225 = vld [vmem:[%s351 + $0xd9] sm:$0xff]
      %v9226 = vld [vmem:[%s351 + $0xe1] sm:$0xff]
      %v9227 = vld [vmem:[%s351 + $0xf1] sm:$0xff]
      %v9228 = vld [vmem:[%s351 + $0xf9] sm:$0xff]
      %v9229 = vld [vmem:[%s351 + $0x109] sm:$0xff]
      %v9230 = vld [vmem:[%s351 + $0x111] sm:$0xff]
      %v9231 = vld [vmem:[%s351 + $0x121] sm:$0xff]
      %v9232 = vld [vmem:[%s351 + $0x129] sm:$0xff]
      %v9233 = vld [vmem:[%s351 + $0x139] sm:$0xff]
      %v9234 = vld [vmem:[%s351 + $0x141] sm:$0xff]
      %v9235 = vld [vmem:[%s351 + $0x151] sm:$0xff]
      %v9236 = vld [vmem:[%s351 + $0x159] sm:$0xff]
      %v9237 = vld [vmem:[%s351 + $0x169] sm:$0xff]
      %v9238 = vld [vmem:[%s351 + $0x171] sm:$0xff]
      %9271 = vrot.lane.b32.xlu0 %v9207, 16
      %v9272 = vpop.permute.xlu0 %9271
      %9273 = vrot.lane.b32.xlu0 %v9208, 16
      %v9274 = vpop.permute.xlu0 %9273
      %9275 = vrot.lane.b32.xlu0 %v9209, 16
      %v9276 = vpop.permute.xlu0 %9275
      %9277 = vrot.lane.b32.xlu0 %v9210, 16
      %v9278 = vpop.permute.xlu0 %9277
      %9279 = vrot.lane.b32.xlu0 %v9211, 16
      %v9280 = vpop.permute.xlu0 %9279
      %9281 = vrot.lane.b32.xlu0 %v9212, 16
      %v9282 = vpop.permute.xlu0 %9281
      %9283 = vrot.lane.b32.xlu0 %v9213, 16
      %v9284 = vpop.permute.xlu0 %9283
      %9285 = vrot.lane.b32.xlu0 %v9214, 16
      %v9286 = vpop.permute.xlu0 %9285
      %9287 = vrot.lane.b32.xlu0 %v9215, 16
      %v9288 = vpop.permute.xlu0 %9287
      %9289 = vrot.lane.b32.xlu0 %v9216, 16
      %v9290 = vpop.permute.xlu0 %9289
      %9291 = vrot.lane.b32.xlu0 %v9217, 16
      %v9292 = vpop.permute.xlu0 %9291
      %9293 = vrot.lane.b32.xlu0 %v9218, 16
      %v9294 = vpop.permute.xlu0 %9293
      %9295 = vrot.lane.b32.xlu0 %v9219, 16
      %v9296 = vpop.permute.xlu0 %9295
      %9297 = vrot.lane.b32.xlu0 %v9220, 16
      %v9298 = vpop.permute.xlu0 %9297
      %9299 = vrot.lane.b32.xlu0 %v9221, 16
      %v9300 = vpop.permute.xlu0 %9299
      %9301 = vrot.lane.b32.xlu0 %v9222, 16
      %v9302 = vpop.permute.xlu0 %9301
      %9303 = vrot.lane.b32.xlu0 %v9223, 16
      %v9304 = vpop.permute.xlu0 %9303
      %9305 = vrot.lane.b32.xlu0 %v9224, 16
      %v9306 = vpop.permute.xlu0 %9305
      %9307 = vrot.lane.b32.xlu0 %v9225, 16
      %v9308 = vpop.permute.xlu0 %9307
      %9309 = vrot.lane.b32.xlu0 %v9226, 16
      %v9310 = vpop.permute.xlu0 %9309
      %9311 = vrot.lane.b32.xlu0 %v9227, 16
      %v9312 = vpop.permute.xlu0 %9311
      %9313 = vrot.lane.b32.xlu0 %v9228, 16
      %v9314 = vpop.permute.xlu0 %9313
      %9315 = vrot.lane.b32.xlu0 %v9229, 16
      %v9316 = vpop.permute.xlu0 %9315
      %9317 = vrot.lane.b32.xlu0 %v9230, 16
      %v9318 = vpop.permute.xlu0 %9317
      %9319 = vrot.lane.b32.xlu0 %v9231, 16
      %v9320 = vpop.permute.xlu0 %9319
      %9321 = vrot.lane.b32.xlu0 %v9232, 16
      %v9322 = vpop.permute.xlu0 %9321
      %9323 = vrot.lane.b32.xlu0 %v9233, 16
      %v9324 = vpop.permute.xlu0 %9323
      %9325 = vrot.lane.b32.xlu0 %v9234, 16
      %v9326 = vpop.permute.xlu0 %9325
      %9327 = vrot.lane.b32.xlu0 %v9235, 16
      %v9328 = vpop.permute.xlu0 %9327
      %9329 = vrot.lane.b32.xlu0 %v9236, 16
      %v9330 = vpop.permute.xlu0 %9329
      %9331 = vrot.lane.b32.xlu0 %v9237, 16
      %v9332 = vpop.permute.xlu0 %9331
      %9333 = vrot.lane.b32.xlu0 %v9238, 16
      %v9334 = vpop.permute.xlu0 %9333
      %9367 = vst.msk [vmem:[#allocation3] sm:$0xff] %vm1187, %v9272
      %9368 = vst.msk [vmem:[#allocation3 + $0x8] sm:$0xff] %vm1187, %v9274
      %9369 = vst.msk [vmem:[#allocation3 + $0x10] sm:$0xff] %vm1187, %v9276
      %9370 = vst.msk [vmem:[#allocation3 + $0x18] sm:$0xff] %vm1187, %v9278
      %9371 = vst.msk [vmem:[#allocation3 + $0x20] sm:$0xff] %vm1187, %v9280
      %9372 = vst.msk [vmem:[#allocation3 + $0x28] sm:$0xff] %vm1187, %v9282
      %9373 = vst.msk [vmem:[#allocation3 + $0x30] sm:$0xff] %vm1187, %v9284
      %9374 = vst.msk [vmem:[#allocation3 + $0x38] sm:$0xff] %vm1187, %v9286
      %9375 = vst.msk [vmem:[#allocation3 + $0x40] sm:$0xff] %vm1187, %v9288
      %9376 = vst.msk [vmem:[#allocation3 + $0x48] sm:$0xff] %vm1187, %v9290
      %9377 = vst.msk [vmem:[#allocation3 + $0x50] sm:$0xff] %vm1187, %v9292
      %9378 = vst.msk [vmem:[#allocation3 + $0x58] sm:$0xff] %vm1187, %v9294
      %9379 = vst.msk [vmem:[#allocation3 + $0x60] sm:$0xff] %vm1187, %v9296
      %9380 = vst.msk [vmem:[#allocation3 + $0x68] sm:$0xff] %vm1187, %v9298
      %9381 = vst.msk [vmem:[#allocation3 + $0x70] sm:$0xff] %vm1187, %v9300
      %9382 = vst.msk [vmem:[#allocation3 + $0x78] sm:$0xff] %vm1187, %v9302
      %9383 = vst.msk [vmem:[#allocation3 + $0x80] sm:$0xff] %vm1187, %v9304
      %9384 = vst.msk [vmem:[#allocation3 + $0x88] sm:$0xff] %vm1187, %v9306
      %9385 = vst.msk [vmem:[#allocation3 + $0x90] sm:$0xff] %vm1187, %v9308
      %9386 = vst.msk [vmem:[#allocation3 + $0x98] sm:$0xff] %vm1187, %v9310
      %9387 = vst.msk [vmem:[#allocation3 + $0xa0] sm:$0xff] %vm1187, %v9312
      %9388 = vst.msk [vmem:[#allocation3 + $0xa8] sm:$0xff] %vm1187, %v9314
      %9389 = vst.msk [vmem:[#allocation3 + $0xb0] sm:$0xff] %vm1187, %v9316
      %9390 = vst.msk [vmem:[#allocation3 + $0xb8] sm:$0xff] %vm1187, %v9318
      %9391 = vst.msk [vmem:[#allocation3 + $0xc0] sm:$0xff] %vm1187, %v9320
      %9392 = vst.msk [vmem:[#allocation3 + $0xc8] sm:$0xff] %vm1187, %v9322
      %9393 = vst.msk [vmem:[#allocation3 + $0xd0] sm:$0xff] %vm1187, %v9324
      %9394 = vst.msk [vmem:[#allocation3 + $0xd8] sm:$0xff] %vm1187, %v9326
      %9395 = vst.msk [vmem:[#allocation3 + $0xe0] sm:$0xff] %vm1187, %v9328
      %9396 = vst.msk [vmem:[#allocation3 + $0xe8] sm:$0xff] %vm1187, %v9330
      %9397 = vst.msk [vmem:[#allocation3 + $0xf0] sm:$0xff] %vm1187, %v9332
      %9398 = vst.msk [vmem:[#allocation3 + $0xf8] sm:$0xff] %vm1187, %v9334
      %v9399 = vld [vmem:[%s351 + $0x2] sm:$0xff]
      %v9400 = vld [vmem:[%s351 + $0xa] sm:$0xff]
      %v9401 = vld [vmem:[%s351 + $0x1a] sm:$0xff]
      %v9402 = vld [vmem:[%s351 + $0x22] sm:$0xff]
      %v9403 = vld [vmem:[%s351 + $0x32] sm:$0xff]
      %v9404 = vld [vmem:[%s351 + $0x3a] sm:$0xff]
      %v9405 = vld [vmem:[%s351 + $0x4a] sm:$0xff]
      %v9406 = vld [vmem:[%s351 + $0x52] sm:$0xff]
      %v9407 = vld [vmem:[%s351 + $0x62] sm:$0xff]
      %v9408 = vld [vmem:[%s351 + $0x6a] sm:$0xff]
      %v9409 = vld [vmem:[%s351 + $0x7a] sm:$0xff]
      %v9410 = vld [vmem:[%s351 + $0x82] sm:$0xff]
      %v9411 = vld [vmem:[%s351 + $0x92] sm:$0xff]
      %v9412 = vld [vmem:[%s351 + $0x9a] sm:$0xff]
      %v9413 = vld [vmem:[%s351 + $0xaa] sm:$0xff]
      %v9414 = vld [vmem:[%s351 + $0xb2] sm:$0xff]
      %v9415 = vld [vmem:[%s351 + $0xc2] sm:$0xff]
      %v9416 = vld [vmem:[%s351 + $0xca] sm:$0xff]
      %v9417 = vld [vmem:[%s351 + $0xda] sm:$0xff]
      %v9418 = vld [vmem:[%s351 + $0xe2] sm:$0xff]
      %v9419 = vld [vmem:[%s351 + $0xf2] sm:$0xff]
      %v9420 = vld [vmem:[%s351 + $0xfa] sm:$0xff]
      %v9421 = vld [vmem:[%s351 + $0x10a] sm:$0xff]
      %v9422 = vld [vmem:[%s351 + $0x112] sm:$0xff]
      %v9423 = vld [vmem:[%s351 + $0x122] sm:$0xff]
      %v9424 = vld [vmem:[%s351 + $0x12a] sm:$0xff]
      %v9425 = vld [vmem:[%s351 + $0x13a] sm:$0xff]
      %v9426 = vld [vmem:[%s351 + $0x142] sm:$0xff]
      %v9427 = vld [vmem:[%s351 + $0x152] sm:$0xff]
      %v9428 = vld [vmem:[%s351 + $0x15a] sm:$0xff]
      %v9429 = vld [vmem:[%s351 + $0x16a] sm:$0xff]
      %v9430 = vld [vmem:[%s351 + $0x172] sm:$0xff]
      %9463 = vrot.lane.b32.xlu0 %v9399, 20
      %v9464 = vpop.permute.xlu0 %9463
      %9465 = vrot.lane.b32.xlu0 %v9400, 20
      %v9466 = vpop.permute.xlu0 %9465
      %9467 = vrot.lane.b32.xlu0 %v9401, 20
      %v9468 = vpop.permute.xlu0 %9467
      %9469 = vrot.lane.b32.xlu0 %v9402, 20
      %v9470 = vpop.permute.xlu0 %9469
      %9471 = vrot.lane.b32.xlu0 %v9403, 20
      %v9472 = vpop.permute.xlu0 %9471
      %9473 = vrot.lane.b32.xlu0 %v9404, 20
      %v9474 = vpop.permute.xlu0 %9473
      %9475 = vrot.lane.b32.xlu0 %v9405, 20
      %v9476 = vpop.permute.xlu0 %9475
      %9477 = vrot.lane.b32.xlu0 %v9406, 20
      %v9478 = vpop.permute.xlu0 %9477
      %9479 = vrot.lane.b32.xlu0 %v9407, 20
      %v9480 = vpop.permute.xlu0 %9479
      %9481 = vrot.lane.b32.xlu0 %v9408, 20
      %v9482 = vpop.permute.xlu0 %9481
      %9483 = vrot.lane.b32.xlu0 %v9409, 20
      %v9484 = vpop.permute.xlu0 %9483
      %9485 = vrot.lane.b32.xlu0 %v9410, 20
      %v9486 = vpop.permute.xlu0 %9485
      %9487 = vrot.lane.b32.xlu0 %v9411, 20
      %v9488 = vpop.permute.xlu0 %9487
      %9489 = vrot.lane.b32.xlu0 %v9412, 20
      %v9490 = vpop.permute.xlu0 %9489
      %9491 = vrot.lane.b32.xlu0 %v9413, 20
      %v9492 = vpop.permute.xlu0 %9491
      %9493 = vrot.lane.b32.xlu0 %v9414, 20
      %v9494 = vpop.permute.xlu0 %9493
      %9495 = vrot.lane.b32.xlu0 %v9415, 20
      %v9496 = vpop.permute.xlu0 %9495
      %9497 = vrot.lane.b32.xlu0 %v9416, 20
      %v9498 = vpop.permute.xlu0 %9497
      %9499 = vrot.lane.b32.xlu0 %v9417, 20
      %v9500 = vpop.permute.xlu0 %9499
      %9501 = vrot.lane.b32.xlu0 %v9418, 20
      %v9502 = vpop.permute.xlu0 %9501
      %9503 = vrot.lane.b32.xlu0 %v9419, 20
      %v9504 = vpop.permute.xlu0 %9503
      %9505 = vrot.lane.b32.xlu0 %v9420, 20
      %v9506 = vpop.permute.xlu0 %9505
      %9507 = vrot.lane.b32.xlu0 %v9421, 20
      %v9508 = vpop.permute.xlu0 %9507
      %9509 = vrot.lane.b32.xlu0 %v9422, 20
      %v9510 = vpop.permute.xlu0 %9509
      %9511 = vrot.lane.b32.xlu0 %v9423, 20
      %v9512 = vpop.permute.xlu0 %9511
      %9513 = vrot.lane.b32.xlu0 %v9424, 20
      %v9514 = vpop.permute.xlu0 %9513
      %9515 = vrot.lane.b32.xlu0 %v9425, 20
      %v9516 = vpop.permute.xlu0 %9515
      %9517 = vrot.lane.b32.xlu0 %v9426, 20
      %v9518 = vpop.permute.xlu0 %9517
      %9519 = vrot.lane.b32.xlu0 %v9427, 20
      %v9520 = vpop.permute.xlu0 %9519
      %9521 = vrot.lane.b32.xlu0 %v9428, 20
      %v9522 = vpop.permute.xlu0 %9521
      %9523 = vrot.lane.b32.xlu0 %v9429, 20
      %v9524 = vpop.permute.xlu0 %9523
      %9525 = vrot.lane.b32.xlu0 %v9430, 20
      %v9526 = vpop.permute.xlu0 %9525
      %9559 = vst.msk [vmem:[#allocation3] sm:$0xff] %vm1380, %v9464
      %9560 = vst.msk [vmem:[#allocation3 + $0x8] sm:$0xff] %vm1380, %v9466
      %9561 = vst.msk [vmem:[#allocation3 + $0x10] sm:$0xff] %vm1380, %v9468
      %9562 = vst.msk [vmem:[#allocation3 + $0x18] sm:$0xff] %vm1380, %v9470
      %9563 = vst.msk [vmem:[#allocation3 + $0x20] sm:$0xff] %vm1380, %v9472
      %9564 = vst.msk [vmem:[#allocation3 + $0x28] sm:$0xff] %vm1380, %v9474
      %9565 = vst.msk [vmem:[#allocation3 + $0x30] sm:$0xff] %vm1380, %v9476
      %9566 = vst.msk [vmem:[#allocation3 + $0x38] sm:$0xff] %vm1380, %v9478
      %9567 = vst.msk [vmem:[#allocation3 + $0x40] sm:$0xff] %vm1380, %v9480
      %9568 = vst.msk [vmem:[#allocation3 + $0x48] sm:$0xff] %vm1380, %v9482
      %9569 = vst.msk [vmem:[#allocation3 + $0x50] sm:$0xff] %vm1380, %v9484
      %9570 = vst.msk [vmem:[#allocation3 + $0x58] sm:$0xff] %vm1380, %v9486
      %9571 = vst.msk [vmem:[#allocation3 + $0x60] sm:$0xff] %vm1380, %v9488
      %9572 = vst.msk [vmem:[#allocation3 + $0x68] sm:$0xff] %vm1380, %v9490
      %9573 = vst.msk [vmem:[#allocation3 + $0x70] sm:$0xff] %vm1380, %v9492
      %9574 = vst.msk [vmem:[#allocation3 + $0x78] sm:$0xff] %vm1380, %v9494
      %9575 = vst.msk [vmem:[#allocation3 + $0x80] sm:$0xff] %vm1380, %v9496
      %9576 = vst.msk [vmem:[#allocation3 + $0x88] sm:$0xff] %vm1380, %v9498
      %9577 = vst.msk [vmem:[#allocation3 + $0x90] sm:$0xff] %vm1380, %v9500
      %9578 = vst.msk [vmem:[#allocation3 + $0x98] sm:$0xff] %vm1380, %v9502
      %9579 = vst.msk [vmem:[#allocation3 + $0xa0] sm:$0xff] %vm1380, %v9504
      %9580 = vst.msk [vmem:[#allocation3 + $0xa8] sm:$0xff] %vm1380, %v9506
      %9581 = vst.msk [vmem:[#allocation3 + $0xb0] sm:$0xff] %vm1380, %v9508
      %9582 = vst.msk [vmem:[#allocation3 + $0xb8] sm:$0xff] %vm1380, %v9510
      %9583 = vst.msk [vmem:[#allocation3 + $0xc0] sm:$0xff] %vm1380, %v9512
      %9584 = vst.msk [vmem:[#allocation3 + $0xc8] sm:$0xff] %vm1380, %v9514
      %9585 = vst.msk [vmem:[#allocation3 + $0xd0] sm:$0xff] %vm1380, %v9516
      %9586 = vst.msk [vmem:[#allocation3 + $0xd8] sm:$0xff] %vm1380, %v9518
      %9587 = vst.msk [vmem:[#allocation3 + $0xe0] sm:$0xff] %vm1380, %v9520
      %9588 = vst.msk [vmem:[#allocation3 + $0xe8] sm:$0xff] %vm1380, %v9522
      %9589 = vst.msk [vmem:[#allocation3 + $0xf0] sm:$0xff] %vm1380, %v9524
      %9590 = vst.msk [vmem:[#allocation3 + $0xf8] sm:$0xff] %vm1380, %v9526
      %v9591 = vld [vmem:[%s1413] sm:$0xff]
      %v9592 = vld [vmem:[%s1413 + $0x8] sm:$0xff]
      %v9593 = vld [vmem:[%s1413 + $0x18] sm:$0xff]
      %v9594 = vld [vmem:[%s1413 + $0x20] sm:$0xff]
      %v9595 = vld [vmem:[%s1413 + $0x30] sm:$0xff]
      %v9596 = vld [vmem:[%s1413 + $0x38] sm:$0xff]
      %v9597 = vld [vmem:[%s1413 + $0x48] sm:$0xff]
      %v9598 = vld [vmem:[%s1413 + $0x50] sm:$0xff]
      %v9599 = vld [vmem:[%s1413 + $0x60] sm:$0xff]
      %v9600 = vld [vmem:[%s1413 + $0x68] sm:$0xff]
      %v9601 = vld [vmem:[%s1413 + $0x78] sm:$0xff]
      %v9602 = vld [vmem:[%s1413 + $0x80] sm:$0xff]
      %v9603 = vld [vmem:[%s1413 + $0x90] sm:$0xff]
      %v9604 = vld [vmem:[%s1413 + $0x98] sm:$0xff]
      %v9605 = vld [vmem:[%s1413 + $0xa8] sm:$0xff]
      %v9606 = vld [vmem:[%s1413 + $0xb0] sm:$0xff]
      %v9607 = vld [vmem:[%s1413 + $0xc0] sm:$0xff]
      %v9608 = vld [vmem:[%s1413 + $0xc8] sm:$0xff]
      %v9609 = vld [vmem:[%s1413 + $0xd8] sm:$0xff]
      %v9610 = vld [vmem:[%s1413 + $0xe0] sm:$0xff]
      %v9611 = vld [vmem:[%s1413 + $0xf0] sm:$0xff]
      %v9612 = vld [vmem:[%s1413 + $0xf8] sm:$0xff]
      %v9613 = vld [vmem:[%s1413 + $0x108] sm:$0xff]
      %v9614 = vld [vmem:[%s1413 + $0x110] sm:$0xff]
      %v9615 = vld [vmem:[%s1413 + $0x120] sm:$0xff]
      %v9616 = vld [vmem:[%s1413 + $0x128] sm:$0xff]
      %v9617 = vld [vmem:[%s1413 + $0x138] sm:$0xff]
      %v9618 = vld [vmem:[%s1413 + $0x140] sm:$0xff]
      %v9619 = vld [vmem:[%s1413 + $0x150] sm:$0xff]
      %v9620 = vld [vmem:[%s1413 + $0x158] sm:$0xff]
      %v9621 = vld [vmem:[%s1413 + $0x168] sm:$0xff]
      %v9622 = vld [vmem:[%s1413 + $0x170] sm:$0xff]
      %9655 = vrot.lane.b32.xlu0 %v9591, 24
      %v9656 = vpop.permute.xlu0 %9655
      %9657 = vrot.lane.b32.xlu0 %v9592, 24
      %v9658 = vpop.permute.xlu0 %9657
      %9659 = vrot.lane.b32.xlu0 %v9593, 24
      %v9660 = vpop.permute.xlu0 %9659
      %9661 = vrot.lane.b32.xlu0 %v9594, 24
      %v9662 = vpop.permute.xlu0 %9661
      %9663 = vrot.lane.b32.xlu0 %v9595, 24
      %v9664 = vpop.permute.xlu0 %9663
      %9665 = vrot.lane.b32.xlu0 %v9596, 24
      %v9666 = vpop.permute.xlu0 %9665
      %9667 = vrot.lane.b32.xlu0 %v9597, 24
      %v9668 = vpop.permute.xlu0 %9667
      %9669 = vrot.lane.b32.xlu0 %v9598, 24
      %v9670 = vpop.permute.xlu0 %9669
      %9671 = vrot.lane.b32.xlu0 %v9599, 24
      %v9672 = vpop.permute.xlu0 %9671
      %9673 = vrot.lane.b32.xlu0 %v9600, 24
      %v9674 = vpop.permute.xlu0 %9673
      %9675 = vrot.lane.b32.xlu0 %v9601, 24
      %v9676 = vpop.permute.xlu0 %9675
      %9677 = vrot.lane.b32.xlu0 %v9602, 24
      %v9678 = vpop.permute.xlu0 %9677
      %9679 = vrot.lane.b32.xlu0 %v9603, 24
      %v9680 = vpop.permute.xlu0 %9679
      %9681 = vrot.lane.b32.xlu0 %v9604, 24
      %v9682 = vpop.permute.xlu0 %9681
      %9683 = vrot.lane.b32.xlu0 %v9605, 24
      %v9684 = vpop.permute.xlu0 %9683
      %9685 = vrot.lane.b32.xlu0 %v9606, 24
      %v9686 = vpop.permute.xlu0 %9685
      %9687 = vrot.lane.b32.xlu0 %v9607, 24
      %v9688 = vpop.permute.xlu0 %9687
      %9689 = vrot.lane.b32.xlu0 %v9608, 24
      %v9690 = vpop.permute.xlu0 %9689
      %9691 = vrot.lane.b32.xlu0 %v9609, 24
      %v9692 = vpop.permute.xlu0 %9691
      %9693 = vrot.lane.b32.xlu0 %v9610, 24
      %v9694 = vpop.permute.xlu0 %9693
      %9695 = vrot.lane.b32.xlu0 %v9611, 24
      %v9696 = vpop.permute.xlu0 %9695
      %9697 = vrot.lane.b32.xlu0 %v9612, 24
      %v9698 = vpop.permute.xlu0 %9697
      %9699 = vrot.lane.b32.xlu0 %v9613, 24
      %v9700 = vpop.permute.xlu0 %9699
      %9701 = vrot.lane.b32.xlu0 %v9614, 24
      %v9702 = vpop.permute.xlu0 %9701
      %9703 = vrot.lane.b32.xlu0 %v9615, 24
      %v9704 = vpop.permute.xlu0 %9703
      %9705 = vrot.lane.b32.xlu0 %v9616, 24
      %v9706 = vpop.permute.xlu0 %9705
      %9707 = vrot.lane.b32.xlu0 %v9617, 24
      %v9708 = vpop.permute.xlu0 %9707
      %9709 = vrot.lane.b32.xlu0 %v9618, 24
      %v9710 = vpop.permute.xlu0 %9709
      %9711 = vrot.lane.b32.xlu0 %v9619, 24
      %v9712 = vpop.permute.xlu0 %9711
      %9713 = vrot.lane.b32.xlu0 %v9620, 24
      %v9714 = vpop.permute.xlu0 %9713
      %9715 = vrot.lane.b32.xlu0 %v9621, 24
      %v9716 = vpop.permute.xlu0 %9715
      %9717 = vrot.lane.b32.xlu0 %v9622, 24
      %v9718 = vpop.permute.xlu0 %9717
      %9751 = vst.msk [vmem:[#allocation3] sm:$0xff] %vm1574, %v9656
      %9752 = vst.msk [vmem:[#allocation3 + $0x8] sm:$0xff] %vm1574, %v9658
      %9753 = vst.msk [vmem:[#allocation3 + $0x10] sm:$0xff] %vm1574, %v9660
      %9754 = vst.msk [vmem:[#allocation3 + $0x18] sm:$0xff] %vm1574, %v9662
      %9755 = vst.msk [vmem:[#allocation3 + $0x20] sm:$0xff] %vm1574, %v9664
      %9756 = vst.msk [vmem:[#allocation3 + $0x28] sm:$0xff] %vm1574, %v9666
      %9757 = vst.msk [vmem:[#allocation3 + $0x30] sm:$0xff] %vm1574, %v9668
      %9758 = vst.msk [vmem:[#allocation3 + $0x38] sm:$0xff] %vm1574, %v9670
      %9759 = vst.msk [vmem:[#allocation3 + $0x40] sm:$0xff] %vm1574, %v9672
      %9760 = vst.msk [vmem:[#allocation3 + $0x48] sm:$0xff] %vm1574, %v9674
      %9761 = vst.msk [vmem:[#allocation3 + $0x50] sm:$0xff] %vm1574, %v9676
      %9762 = vst.msk [vmem:[#allocation3 + $0x58] sm:$0xff] %vm1574, %v9678
      %9763 = vst.msk [vmem:[#allocation3 + $0x60] sm:$0xff] %vm1574, %v9680
      %9764 = vst.msk [vmem:[#allocation3 + $0x68] sm:$0xff] %vm1574, %v9682
      %9765 = vst.msk [vmem:[#allocation3 + $0x70] sm:$0xff] %vm1574, %v9684
      %9766 = vst.msk [vmem:[#allocation3 + $0x78] sm:$0xff] %vm1574, %v9686
      %9767 = vst.msk [vmem:[#allocation3 + $0x80] sm:$0xff] %vm1574, %v9688
      %9768 = vst.msk [vmem:[#allocation3 + $0x88] sm:$0xff] %vm1574, %v9690
      %9769 = vst.msk [vmem:[#allocation3 + $0x90] sm:$0xff] %vm1574, %v9692
      %9770 = vst.msk [vmem:[#allocation3 + $0x98] sm:$0xff] %vm1574, %v9694
      %9771 = vst.msk [vmem:[#allocation3 + $0xa0] sm:$0xff] %vm1574, %v9696
      %9772 = vst.msk [vmem:[#allocation3 + $0xa8] sm:$0xff] %vm1574, %v9698
      %9773 = vst.msk [vmem:[#allocation3 + $0xb0] sm:$0xff] %vm1574, %v9700
      %9774 = vst.msk [vmem:[#allocation3 + $0xb8] sm:$0xff] %vm1574, %v9702
      %9775 = vst.msk [vmem:[#allocation3 + $0xc0] sm:$0xff] %vm1574, %v9704
      %9776 = vst.msk [vmem:[#allocation3 + $0xc8] sm:$0xff] %vm1574, %v9706
      %9777 = vst.msk [vmem:[#allocation3 + $0xd0] sm:$0xff] %vm1574, %v9708
      %9778 = vst.msk [vmem:[#allocation3 + $0xd8] sm:$0xff] %vm1574, %v9710
      %9779 = vst.msk [vmem:[#allocation3 + $0xe0] sm:$0xff] %vm1574, %v9712
      %9780 = vst.msk [vmem:[#allocation3 + $0xe8] sm:$0xff] %vm1574, %v9714
      %9781 = vst.msk [vmem:[#allocation3 + $0xf0] sm:$0xff] %vm1574, %v9716
      %9782 = vst.msk [vmem:[#allocation3 + $0xf8] sm:$0xff] %vm1574, %v9718
      %v9783 = vld [vmem:[%s1413 + $0x1] sm:$0xff]
      %v9784 = vld [vmem:[%s1413 + $0x9] sm:$0xff]
      %v9785 = vld [vmem:[%s1413 + $0x19] sm:$0xff]
      %v9786 = vld [vmem:[%s1413 + $0x21] sm:$0xff]
      %v9787 = vld [vmem:[%s1413 + $0x31] sm:$0xff]
      %v9788 = vld [vmem:[%s1413 + $0x39] sm:$0xff]
      %v9789 = vld [vmem:[%s1413 + $0x49] sm:$0xff]
      %v9790 = vld [vmem:[%s1413 + $0x51] sm:$0xff]
      %v9791 = vld [vmem:[%s1413 + $0x61] sm:$0xff]
      %v9792 = vld [vmem:[%s1413 + $0x69] sm:$0xff]
      %v9793 = vld [vmem:[%s1413 + $0x79] sm:$0xff]
      %v9794 = vld [vmem:[%s1413 + $0x81] sm:$0xff]
      %v9795 = vld [vmem:[%s1413 + $0x91] sm:$0xff]
      %v9796 = vld [vmem:[%s1413 + $0x99] sm:$0xff]
      %v9797 = vld [vmem:[%s1413 + $0xa9] sm:$0xff]
      %v9798 = vld [vmem:[%s1413 + $0xb1] sm:$0xff]
      %v9799 = vld [vmem:[%s1413 + $0xc1] sm:$0xff]
      %v9800 = vld [vmem:[%s1413 + $0xc9] sm:$0xff]
      %v9801 = vld [vmem:[%s1413 + $0xd9] sm:$0xff]
      %v9802 = vld [vmem:[%s1413 + $0xe1] sm:$0xff]
      %v9803 = vld [vmem:[%s1413 + $0xf1] sm:$0xff]
      %v9804 = vld [vmem:[%s1413 + $0xf9] sm:$0xff]
      %v9805 = vld [vmem:[%s1413 + $0x109] sm:$0xff]
      %v9806 = vld [vmem:[%s1413 + $0x111] sm:$0xff]
      %v9807 = vld [vmem:[%s1413 + $0x121] sm:$0xff]
      %v9808 = vld [vmem:[%s1413 + $0x129] sm:$0xff]
      %v9809 = vld [vmem:[%s1413 + $0x139] sm:$0xff]
      %v9810 = vld [vmem:[%s1413 + $0x141] sm:$0xff]
      %v9811 = vld [vmem:[%s1413 + $0x151] sm:$0xff]
      %v9812 = vld [vmem:[%s1413 + $0x159] sm:$0xff]
      %v9813 = vld [vmem:[%s1413 + $0x169] sm:$0xff]
      %v9814 = vld [vmem:[%s1413 + $0x171] sm:$0xff]
      %9847 = vrot.lane.b32.xlu0 %v9783, 28
      %v9848 = vpop.permute.xlu0 %9847
      %9849 = vrot.lane.b32.xlu0 %v9784, 28
      %v9850 = vpop.permute.xlu0 %9849
      %9851 = vrot.lane.b32.xlu0 %v9785, 28
      %v9852 = vpop.permute.xlu0 %9851
      %9853 = vrot.lane.b32.xlu0 %v9786, 28
      %v9854 = vpop.permute.xlu0 %9853
      %9855 = vrot.lane.b32.xlu0 %v9787, 28
      %v9856 = vpop.permute.xlu0 %9855
      %9857 = vrot.lane.b32.xlu0 %v9788, 28
      %v9858 = vpop.permute.xlu0 %9857
      %9859 = vrot.lane.b32.xlu0 %v9789, 28
      %v9860 = vpop.permute.xlu0 %9859
      %9861 = vrot.lane.b32.xlu0 %v9790, 28
      %v9862 = vpop.permute.xlu0 %9861
      %9863 = vrot.lane.b32.xlu0 %v9791, 28
      %v9864 = vpop.permute.xlu0 %9863
      %9865 = vrot.lane.b32.xlu0 %v9792, 28
      %v9866 = vpop.permute.xlu0 %9865
      %9867 = vrot.lane.b32.xlu0 %v9793, 28
      %v9868 = vpop.permute.xlu0 %9867
      %9869 = vrot.lane.b32.xlu0 %v9794, 28
      %v9870 = vpop.permute.xlu0 %9869
      %9871 = vrot.lane.b32.xlu0 %v9795, 28
      %v9872 = vpop.permute.xlu0 %9871
      %9873 = vrot.lane.b32.xlu0 %v9796, 28
      %v9874 = vpop.permute.xlu0 %9873
      %9875 = vrot.lane.b32.xlu0 %v9797, 28
      %v9876 = vpop.permute.xlu0 %9875
      %9877 = vrot.lane.b32.xlu0 %v9798, 28
      %v9878 = vpop.permute.xlu0 %9877
      %9879 = vrot.lane.b32.xlu0 %v9799, 28
      %v9880 = vpop.permute.xlu0 %9879
      %9881 = vrot.lane.b32.xlu0 %v9800, 28
      %v9882 = vpop.permute.xlu0 %9881
      %9883 = vrot.lane.b32.xlu0 %v9801, 28
      %v9884 = vpop.permute.xlu0 %9883
      %9885 = vrot.lane.b32.xlu0 %v9802, 28
      %v9886 = vpop.permute.xlu0 %9885
      %9887 = vrot.lane.b32.xlu0 %v9803, 28
      %v9888 = vpop.permute.xlu0 %9887
      %9889 = vrot.lane.b32.xlu0 %v9804, 28
      %v9890 = vpop.permute.xlu0 %9889
      %9891 = vrot.lane.b32.xlu0 %v9805, 28
      %v9892 = vpop.permute.xlu0 %9891
      %9893 = vrot.lane.b32.xlu0 %v9806, 28
      %v9894 = vpop.permute.xlu0 %9893
      %9895 = vrot.lane.b32.xlu0 %v9807, 28
      %v9896 = vpop.permute.xlu0 %9895
      %9897 = vrot.lane.b32.xlu0 %v9808, 28
      %v9898 = vpop.permute.xlu0 %9897
      %9899 = vrot.lane.b32.xlu0 %v9809, 28
      %v9900 = vpop.permute.xlu0 %9899
      %9901 = vrot.lane.b32.xlu0 %v9810, 28
      %v9902 = vpop.permute.xlu0 %9901
      %9903 = vrot.lane.b32.xlu0 %v9811, 28
      %v9904 = vpop.permute.xlu0 %9903
      %9905 = vrot.lane.b32.xlu0 %v9812, 28
      %v9906 = vpop.permute.xlu0 %9905
      %9907 = vrot.lane.b32.xlu0 %v9813, 28
      %v9908 = vpop.permute.xlu0 %9907
      %9909 = vrot.lane.b32.xlu0 %v9814, 28
      %v9910 = vpop.permute.xlu0 %9909
      %9943 = vst.msk [vmem:[#allocation3] sm:$0xff] %vm1767, %v9848
      %9944 = vst.msk [vmem:[#allocation3 + $0x8] sm:$0xff] %vm1767, %v9850
      %9945 = vst.msk [vmem:[#allocation3 + $0x10] sm:$0xff] %vm1767, %v9852
      %9946 = vst.msk [vmem:[#allocation3 + $0x18] sm:$0xff] %vm1767, %v9854
      %9947 = vst.msk [vmem:[#allocation3 + $0x20] sm:$0xff] %vm1767, %v9856
      %9948 = vst.msk [vmem:[#allocation3 + $0x28] sm:$0xff] %vm1767, %v9858
      %9949 = vst.msk [vmem:[#allocation3 + $0x30] sm:$0xff] %vm1767, %v9860
      %9950 = vst.msk [vmem:[#allocation3 + $0x38] sm:$0xff] %vm1767, %v9862
      %9951 = vst.msk [vmem:[#allocation3 + $0x40] sm:$0xff] %vm1767, %v9864
      %9952 = vst.msk [vmem:[#allocation3 + $0x48] sm:$0xff] %vm1767, %v9866
      %9953 = vst.msk [vmem:[#allocation3 + $0x50] sm:$0xff] %vm1767, %v9868
      %9954 = vst.msk [vmem:[#allocation3 + $0x58] sm:$0xff] %vm1767, %v9870
      %9955 = vst.msk [vmem:[#allocation3 + $0x60] sm:$0xff] %vm1767, %v9872
      %9956 = vst.msk [vmem:[#allocation3 + $0x68] sm:$0xff] %vm1767, %v9874
      %9957 = vst.msk [vmem:[#allocation3 + $0x70] sm:$0xff] %vm1767, %v9876
      %9958 = vst.msk [vmem:[#allocation3 + $0x78] sm:$0xff] %vm1767, %v9878
      %9959 = vst.msk [vmem:[#allocation3 + $0x80] sm:$0xff] %vm1767, %v9880
      %9960 = vst.msk [vmem:[#allocation3 + $0x88] sm:$0xff] %vm1767, %v9882
      %9961 = vst.msk [vmem:[#allocation3 + $0x90] sm:$0xff] %vm1767, %v9884
      %9962 = vst.msk [vmem:[#allocation3 + $0x98] sm:$0xff] %vm1767, %v9886
      %9963 = vst.msk [vmem:[#allocation3 + $0xa0] sm:$0xff] %vm1767, %v9888
      %9964 = vst.msk [vmem:[#allocation3 + $0xa8] sm:$0xff] %vm1767, %v9890
      %9965 = vst.msk [vmem:[#allocation3 + $0xb0] sm:$0xff] %vm1767, %v9892
      %9966 = vst.msk [vmem:[#allocation3 + $0xb8] sm:$0xff] %vm1767, %v9894
      %9967 = vst.msk [vmem:[#allocation3 + $0xc0] sm:$0xff] %vm1767, %v9896
      %9968 = vst.msk [vmem:[#allocation3 + $0xc8] sm:$0xff] %vm1767, %v9898
      %9969 = vst.msk [vmem:[#allocation3 + $0xd0] sm:$0xff] %vm1767, %v9900
      %9970 = vst.msk [vmem:[#allocation3 + $0xd8] sm:$0xff] %vm1767, %v9902
      %9971 = vst.msk [vmem:[#allocation3 + $0xe0] sm:$0xff] %vm1767, %v9904
      %9972 = vst.msk [vmem:[#allocation3 + $0xe8] sm:$0xff] %vm1767, %v9906
      %9973 = vst.msk [vmem:[#allocation3 + $0xf0] sm:$0xff] %vm1767, %v9908
      %9974 = vst.msk [vmem:[#allocation3 + $0xf8] sm:$0xff] %vm1767, %v9910
      %v9975 = vld [vmem:[%s1413 + $0x2] sm:$0xff]
      %v9976 = vld [vmem:[%s1413 + $0xa] sm:$0xff]
      %v9977 = vld [vmem:[%s1413 + $0x1a] sm:$0xff]
      %v9978 = vld [vmem:[%s1413 + $0x22] sm:$0xff]
      %v9979 = vld [vmem:[%s1413 + $0x32] sm:$0xff]
      %v9980 = vld [vmem:[%s1413 + $0x3a] sm:$0xff]
      %v9981 = vld [vmem:[%s1413 + $0x4a] sm:$0xff]
      %v9982 = vld [vmem:[%s1413 + $0x52] sm:$0xff]
      %v9983 = vld [vmem:[%s1413 + $0x62] sm:$0xff]
      %v9984 = vld [vmem:[%s1413 + $0x6a] sm:$0xff]
      %v9985 = vld [vmem:[%s1413 + $0x7a] sm:$0xff]
      %v9986 = vld [vmem:[%s1413 + $0x82] sm:$0xff]
      %v9987 = vld [vmem:[%s1413 + $0x92] sm:$0xff]
      %v9988 = vld [vmem:[%s1413 + $0x9a] sm:$0xff]
      %v9989 = vld [vmem:[%s1413 + $0xaa] sm:$0xff]
      %v9990 = vld [vmem:[%s1413 + $0xb2] sm:$0xff]
      %v9991 = vld [vmem:[%s1413 + $0xc2] sm:$0xff]
      %v9992 = vld [vmem:[%s1413 + $0xca] sm:$0xff]
      %v9993 = vld [vmem:[%s1413 + $0xda] sm:$0xff]
      %v9994 = vld [vmem:[%s1413 + $0xe2] sm:$0xff]
      %v9995 = vld [vmem:[%s1413 + $0xf2] sm:$0xff]
      %v9996 = vld [vmem:[%s1413 + $0xfa] sm:$0xff]
      %v9997 = vld [vmem:[%s1413 + $0x10a] sm:$0xff]
      %v9998 = vld [vmem:[%s1413 + $0x112] sm:$0xff]
      %v9999 = vld [vmem:[%s1413 + $0x122] sm:$0xff]
      %v10000 = vld [vmem:[%s1413 + $0x12a] sm:$0xff]
      %v10001 = vld [vmem:[%s1413 + $0x13a] sm:$0xff]
      %v10002 = vld [vmem:[%s1413 + $0x142] sm:$0xff]
      %v10003 = vld [vmem:[%s1413 + $0x152] sm:$0xff]
      %v10004 = vld [vmem:[%s1413 + $0x15a] sm:$0xff]
      %v10005 = vld [vmem:[%s1413 + $0x16a] sm:$0xff]
      %v10006 = vld [vmem:[%s1413 + $0x172] sm:$0xff]
      %10039 = vrot.lane.b32.xlu0 %v9975, 32
      %v10040 = vpop.permute.xlu0 %10039
      %10041 = vrot.lane.b32.xlu0 %v9976, 32
      %v10042 = vpop.permute.xlu0 %10041
      %10043 = vrot.lane.b32.xlu0 %v9977, 32
      %v10044 = vpop.permute.xlu0 %10043
      %10045 = vrot.lane.b32.xlu0 %v9978, 32
      %v10046 = vpop.permute.xlu0 %10045
      %10047 = vrot.lane.b32.xlu0 %v9979, 32
      %v10048 = vpop.permute.xlu0 %10047
      %10049 = vrot.lane.b32.xlu0 %v9980, 32
      %v10050 = vpop.permute.xlu0 %10049
      %10051 = vrot.lane.b32.xlu0 %v9981, 32
      %v10052 = vpop.permute.xlu0 %10051
      %10053 = vrot.lane.b32.xlu0 %v9982, 32
      %v10054 = vpop.permute.xlu0 %10053
      %10055 = vrot.lane.b32.xlu0 %v9983, 32
      %v10056 = vpop.permute.xlu0 %10055
      %10057 = vrot.lane.b32.xlu0 %v9984, 32
      %v10058 = vpop.permute.xlu0 %10057
      %10059 = vrot.lane.b32.xlu0 %v9985, 32
      %v10060 = vpop.permute.xlu0 %10059
      %10061 = vrot.lane.b32.xlu0 %v9986, 32
      %v10062 = vpop.permute.xlu0 %10061
      %10063 = vrot.lane.b32.xlu0 %v9987, 32
      %v10064 = vpop.permute.xlu0 %10063
      %10065 = vrot.lane.b32.xlu0 %v9988, 32
      %v10066 = vpop.permute.xlu0 %10065
      %10067 = vrot.lane.b32.xlu0 %v9989, 32
      %v10068 = vpop.permute.xlu0 %10067
      %10069 = vrot.lane.b32.xlu0 %v9990, 32
      %v10070 = vpop.permute.xlu0 %10069
      %10071 = vrot.lane.b32.xlu0 %v9991, 32
      %v10072 = vpop.permute.xlu0 %10071
      %10073 = vrot.lane.b32.xlu0 %v9992, 32
      %v10074 = vpop.permute.xlu0 %10073
      %10075 = vrot.lane.b32.xlu0 %v9993, 32
      %v10076 = vpop.permute.xlu0 %10075
      %10077 = vrot.lane.b32.xlu0 %v9994, 32
      %v10078 = vpop.permute.xlu0 %10077
      %10079 = vrot.lane.b32.xlu0 %v9995, 32
      %v10080 = vpop.permute.xlu0 %10079
      %10081 = vrot.lane.b32.xlu0 %v9996, 32
      %v10082 = vpop.permute.xlu0 %10081
      %10083 = vrot.lane.b32.xlu0 %v9997, 32
      %v10084 = vpop.permute.xlu0 %10083
      %10085 = vrot.lane.b32.xlu0 %v9998, 32
      %v10086 = vpop.permute.xlu0 %10085
      %10087 = vrot.lane.b32.xlu0 %v9999, 32
      %v10088 = vpop.permute.xlu0 %10087
      %10089 = vrot.lane.b32.xlu0 %v10000, 32
      %v10090 = vpop.permute.xlu0 %10089
      %10091 = vrot.lane.b32.xlu0 %v10001, 32
      %v10092 = vpop.permute.xlu0 %10091
      %10093 = vrot.lane.b32.xlu0 %v10002, 32
      %v10094 = vpop.permute.xlu0 %10093
      %10095 = vrot.lane.b32.xlu0 %v10003, 32
      %v10096 = vpop.permute.xlu0 %10095
      %10097 = vrot.lane.b32.xlu0 %v10004, 32
      %v10098 = vpop.permute.xlu0 %10097
      %10099 = vrot.lane.b32.xlu0 %v10005, 32
      %v10100 = vpop.permute.xlu0 %10099
      %10101 = vrot.lane.b32.xlu0 %v10006, 32
      %v10102 = vpop.permute.xlu0 %10101
      %10135 = vst.msk [vmem:[#allocation3] sm:$0xff] %vm1960, %v10040
      %10136 = vst.msk [vmem:[#allocation3 + $0x8] sm:$0xff] %vm1960, %v10042
      %10137 = vst.msk [vmem:[#allocation3 + $0x10] sm:$0xff] %vm1960, %v10044
      %10138 = vst.msk [vmem:[#allocation3 + $0x18] sm:$0xff] %vm1960, %v10046
      %10139 = vst.msk [vmem:[#allocation3 + $0x20] sm:$0xff] %vm1960, %v10048
      %10140 = vst.msk [vmem:[#allocation3 + $0x28] sm:$0xff] %vm1960, %v10050
      %10141 = vst.msk [vmem:[#allocation3 + $0x30] sm:$0xff] %vm1960, %v10052
      %10142 = vst.msk [vmem:[#allocation3 + $0x38] sm:$0xff] %vm1960, %v10054
      %10143 = vst.msk [vmem:[#allocation3 + $0x40] sm:$0xff] %vm1960, %v10056
      %10144 = vst.msk [vmem:[#allocation3 + $0x48] sm:$0xff] %vm1960, %v10058
      %10145 = vst.msk [vmem:[#allocation3 + $0x50] sm:$0xff] %vm1960, %v10060
      %10146 = vst.msk [vmem:[#allocation3 + $0x58] sm:$0xff] %vm1960, %v10062
      %10147 = vst.msk [vmem:[#allocation3 + $0x60] sm:$0xff] %vm1960, %v10064
      %10148 = vst.msk [vmem:[#allocation3 + $0x68] sm:$0xff] %vm1960, %v10066
      %10149 = vst.msk [vmem:[#allocation3 + $0x70] sm:$0xff] %vm1960, %v10068
      %10150 = vst.msk [vmem:[#allocation3 + $0x78] sm:$0xff] %vm1960, %v10070
      %10151 = vst.msk [vmem:[#allocation3 + $0x80] sm:$0xff] %vm1960, %v10072
      %10152 = vst.msk [vmem:[#allocation3 + $0x88] sm:$0xff] %vm1960, %v10074
      %10153 = vst.msk [vmem:[#allocation3 + $0x90] sm:$0xff] %vm1960, %v10076
      %10154 = vst.msk [vmem:[#allocation3 + $0x98] sm:$0xff] %vm1960, %v10078
      %10155 = vst.msk [vmem:[#allocation3 + $0xa0] sm:$0xff] %vm1960, %v10080
      %10156 = vst.msk [vmem:[#allocation3 + $0xa8] sm:$0xff] %vm1960, %v10082
      %10157 = vst.msk [vmem:[#allocation3 + $0xb0] sm:$0xff] %vm1960, %v10084
      %10158 = vst.msk [vmem:[#allocation3 + $0xb8] sm:$0xff] %vm1960, %v10086
      %10159 = vst.msk [vmem:[#allocation3 + $0xc0] sm:$0xff] %vm1960, %v10088
      %10160 = vst.msk [vmem:[#allocation3 + $0xc8] sm:$0xff] %vm1960, %v10090
      %10161 = vst.msk [vmem:[#allocation3 + $0xd0] sm:$0xff] %vm1960, %v10092
      %10162 = vst.msk [vmem:[#allocation3 + $0xd8] sm:$0xff] %vm1960, %v10094
      %10163 = vst.msk [vmem:[#allocation3 + $0xe0] sm:$0xff] %vm1960, %v10096
      %10164 = vst.msk [vmem:[#allocation3 + $0xe8] sm:$0xff] %vm1960, %v10098
      %10165 = vst.msk [vmem:[#allocation3 + $0xf0] sm:$0xff] %vm1960, %v10100
      %10166 = vst.msk [vmem:[#allocation3 + $0xf8] sm:$0xff] %vm1960, %v10102
      %v10167 = vld [vmem:[#allocation3] sm:$0xff]
      %v10168 = vld [vmem:[#allocation3 + $0x8] sm:$0xff]
      %v10169 = vld [vmem:[#allocation3 + $0x10] sm:$0xff]
      %v10170 = vld [vmem:[#allocation3 + $0x18] sm:$0xff]
      %v10171 = vld [vmem:[#allocation3 + $0x20] sm:$0xff]
      %v10172 = vld [vmem:[#allocation3 + $0x28] sm:$0xff]
      %v10173 = vld [vmem:[#allocation3 + $0x30] sm:$0xff]
      %v10174 = vld [vmem:[#allocation3 + $0x38] sm:$0xff]
      %v10175 = vld [vmem:[#allocation3 + $0x40] sm:$0xff]
      %v10176 = vld [vmem:[#allocation3 + $0x48] sm:$0xff]
      %v10177 = vld [vmem:[#allocation3 + $0x50] sm:$0xff]
      %v10178 = vld [vmem:[#allocation3 + $0x58] sm:$0xff]
      %v10179 = vld [vmem:[#allocation3 + $0x60] sm:$0xff]
      %v10180 = vld [vmem:[#allocation3 + $0x68] sm:$0xff]
      %v10181 = vld [vmem:[#allocation3 + $0x70] sm:$0xff]
      %v10182 = vld [vmem:[#allocation3 + $0x78] sm:$0xff]
      %v10183 = vld [vmem:[#allocation3 + $0x80] sm:$0xff]
      %v10184 = vld [vmem:[#allocation3 + $0x88] sm:$0xff]
      %v10185 = vld [vmem:[#allocation3 + $0x90] sm:$0xff]
      %v10186 = vld [vmem:[#allocation3 + $0x98] sm:$0xff]
      %v10187 = vld [vmem:[#allocation3 + $0xa0] sm:$0xff]
      %v10188 = vld [vmem:[#allocation3 + $0xa8] sm:$0xff]
      %v10189 = vld [vmem:[#allocation3 + $0xb0] sm:$0xff]
      %v10190 = vld [vmem:[#allocation3 + $0xb8] sm:$0xff]
      %v10191 = vld [vmem:[#allocation3 + $0xc0] sm:$0xff]
      %v10192 = vld [vmem:[#allocation3 + $0xc8] sm:$0xff]
      %v10193 = vld [vmem:[#allocation3 + $0xd0] sm:$0xff]
      %v10194 = vld [vmem:[#allocation3 + $0xd8] sm:$0xff]
      %v10195 = vld [vmem:[#allocation3 + $0xe0] sm:$0xff]
      %v10196 = vld [vmem:[#allocation3 + $0xe8] sm:$0xff]
      %v10197 = vld [vmem:[#allocation3 + $0xf0] sm:$0xff]
      %v10198 = vld [vmem:[#allocation3 + $0xf8] sm:$0xff]
      %v10199 = vpack.c.bf16 %v10168, %v10167
      %v10200 = vpack.c.bf16 %v10170, %v10169
      %v10201 = vpack.c.bf16 %v10172, %v10171
      %v10202 = vpack.c.bf16 %v10174, %v10173
      %v10203 = vpack.c.bf16 %v10176, %v10175
      %v10204 = vpack.c.bf16 %v10178, %v10177
      %v10205 = vpack.c.bf16 %v10180, %v10179
      %v10206 = vpack.c.bf16 %v10182, %v10181
      %v10207 = vpack.c.bf16 %v10184, %v10183
      %v10208 = vpack.c.bf16 %v10186, %v10185
      %v10209 = vpack.c.bf16 %v10188, %v10187
      %v10210 = vpack.c.bf16 %v10190, %v10189
      %v10211 = vpack.c.bf16 %v10192, %v10191
      %v10212 = vpack.c.bf16 %v10194, %v10193
      %v10213 = vpack.c.bf16 %v10196, %v10195
      %v10214 = vpack.c.bf16 %v10198, %v10197
      %v10215 = vld [vmem:[%s3] sm:$0xf]
      %v10216 = vld [vmem:[%s3 + $0x4] sm:$0xf]
      %v10217 = vld [vmem:[%s3 + $0x8] sm:$0xf]
      %v10218 = vld [vmem:[%s3 + $0xc] sm:$0xf]
      %v10219 = vld [vmem:[%s3 + $0x10] sm:$0x3]
      %v10225 = vunpack.c.l.b16 %v10215
      %v10226 = vunpack.c.l.b16 %v10216
      %v10227 = vunpack.c.l.b16 %v10217
      %v10228 = vunpack.c.l.b16 %v10218
      %v10229 = vunpack.c.l.b16 %v10219
      %v10230 = vpack.c.b16 %v10226, %v10225
      %v10231 = vpack.c.b16 %v10228, %v10227
      %v10232 = vpack.c.b16 %v10229, %v10229
      %v10236 = vsel %vm2060, %v10199, 0
      %v10239 = vsel %vm2060, %v10200, 0
      %v10242 = vsel %vm2060, %v10201, 0
      %v10245 = vsel %vm2060, %v10202, 0
      %v10248 = vsel %vm2060, %v10203, 0
      %v10251 = vsel %vm2060, %v10204, 0
      %v10254 = vsel %vm2060, %v10205, 0
      %v10257 = vsel %vm2060, %v10206, 0
      %v10260 = vsel %vm2060, %v10207, 0
      %v10263 = vsel %vm2060, %v10208, 0
      %v10266 = vsel %vm2060, %v10209, 0
      %v10269 = vsel %vm2060, %v10210, 0
      %v10272 = vsel %vm2060, %v10211, 0
      %v10275 = vsel %vm2060, %v10212, 0
      %v10278 = vsel %vm2060, %v10213, 0
      %v10281 = vsel %vm2060, %v10214, 0
      %v10284 = vsel %vm2109, %v10232, 0
      %10286 = vmatprep.subr.bf16.mxu0 0
      %10287 = vmatpush1.bf16.msra.mxu0 %v10230
      %10288 = vmatprep.subr.bf16.mxu0 0
      %10289 = vmatpush1.bf16.msra.mxu0 %v10231
      %10290 = vmatprep.subr.bf16.mxu0 0
      %10291 = vmatpush1.bf16.msra.mxu0 %v10284
      %10292 = vmatprep.subr.bf16.mxu0 0
      %10293 = vmatpush1.bf16.msra.mxu0 0
      %10294 = vmatprep.subr.bf16.mxu0 0
      %10295 = vmatpush1.bf16.msra.mxu0 0
      %10296 = vmatprep.subr.bf16.mxu0 0
      %10297 = vmatpush1.bf16.msra.mxu0 0
      %10298 = vmatprep.subr.bf16.mxu0 0
      %10299 = vmatpush1.bf16.msra.mxu0 0
      %10300 = vmatprep.subr.bf16.mxu0 0
      %10301 = vmatpush1.bf16.msra.mxu0 0
      %10302 = vmatprep.subr.bf16.mxu0 0
      %10303 = vmatpush1.bf16.msra.mxu0 0
      %10304 = vmatprep.subr.bf16.mxu0 0
      %10305 = vmatpush1.bf16.msra.mxu0 0
      %10306 = vmatprep.subr.bf16.mxu0 0
      %10307 = vmatpush1.bf16.msra.mxu0 0
      %10308 = vmatprep.subr.bf16.mxu0 0
      %10309 = vmatpush1.bf16.msra.mxu0 0
      %10310 = vmatprep.subr.bf16.mxu0 0
      %10311 = vmatpush1.bf16.msra.mxu0 0
      %10312 = vmatprep.subr.bf16.mxu0 0
      %10313 = vmatpush1.bf16.msra.mxu0 0
      %10314 = vmatprep.subr.bf16.mxu0 0
      %10315 = vmatpush1.bf16.msra.mxu0 0
      %10316 = vmatprep.subr.bf16.mxu0 0
      %10317 = vmatpush1.bf16.msra.mxu0 0
      %10318 = vmatprep.mubr.bf16.mxu0 0
      %10319 = vmatmul.mubr.bf16.gmra.mrb[0].mxu0 %v10236
      %v10320 = vpop.f32.mrb[0].mxu0
      %v10321 = vadd.f32 0.0, %v10320
      %v10322 = vpop.f32.mrb[0].mxu0
      %v10323 = vpop.f32.mrb[0].mxu0
      %v10324 = vadd.f32 0.0, %v10323
      %v10325 = vpop.f32.mrb[0].mxu0
      %10326 = vmatprep.mubr.bf16.mxu0 0
      %10327 = vmatmul.mubr.bf16.gmra.mrb[0].mxu0 %v10239
      %v10328 = vpop.f32.mrb[0].mxu0
      %v10329 = vadd.f32 0.0, %v10328
      %v10330 = vpop.f32.mrb[0].mxu0
      %v10331 = vpop.f32.mrb[0].mxu0
      %v10332 = vadd.f32 0.0, %v10331
      %v10333 = vpop.f32.mrb[0].mxu0
      %10334 = vmatprep.mubr.bf16.mxu0 0
      %10335 = vmatmul.mubr.bf16.gmra.mrb[0].mxu0 %v10242
      %v10336 = vpop.f32.mrb[0].mxu0
      %v10337 = vadd.f32 0.0, %v10336
      %v10338 = vpop.f32.mrb[0].mxu0
      %v10339 = vpop.f32.mrb[0].mxu0
      %v10340 = vadd.f32 0.0, %v10339
      %v10341 = vpop.f32.mrb[0].mxu0
      %10342 = vmatprep.mubr.bf16.mxu0 0
      %10343 = vmatmul.mubr.bf16.gmra.mrb[0].mxu0 %v10245
      %v10344 = vpop.f32.mrb[0].mxu0
      %v10345 = vadd.f32 0.0, %v10344
      %v10346 = vpop.f32.mrb[0].mxu0
      %v10347 = vpop.f32.mrb[0].mxu0
      %v10348 = vadd.f32 0.0, %v10347
      %v10349 = vpop.f32.mrb[0].mxu0
      %10350 = vmatprep.mubr.bf16.mxu0 0
      %10351 = vmatmul.mubr.bf16.gmra.mrb[0].mxu0 %v10248
      %v10352 = vpop.f32.mrb[0].mxu0
      %v10353 = vadd.f32 0.0, %v10352
      %v10354 = vpop.f32.mrb[0].mxu0
      %v10355 = vpop.f32.mrb[0].mxu0
      %v10356 = vadd.f32 0.0, %v10355
      %v10357 = vpop.f32.mrb[0].mxu0
      %10358 = vmatprep.mubr.bf16.mxu0 0
      %10359 = vmatmul.mubr.bf16.gmra.mrb[0].mxu0 %v10251
      %v10360 = vpop.f32.mrb[0].mxu0
      %v10361 = vadd.f32 0.0, %v10360
      %v10362 = vpop.f32.mrb[0].mxu0
      %v10363 = vpop.f32.mrb[0].mxu0
      %v10364 = vadd.f32 0.0, %v10363
      %v10365 = vpop.f32.mrb[0].mxu0
      %10366 = vmatprep.mubr.bf16.mxu0 0
      %10367 = vmatmul.mubr.bf16.gmra.mrb[0].mxu0 %v10254
      %v10368 = vpop.f32.mrb[0].mxu0
      %v10369 = vadd.f32 0.0, %v10368
      %v10370 = vpop.f32.mrb[0].mxu0
      %v10371 = vpop.f32.mrb[0].mxu0
      %v10372 = vadd.f32 0.0, %v10371
      %v10373 = vpop.f32.mrb[0].mxu0
      %10374 = vmatprep.mubr.bf16.mxu0 0
      %10375 = vmatmul.mubr.bf16.gmra.mrb[0].mxu0 %v10257
      %v10376 = vpop.f32.mrb[0].mxu0
      %v10377 = vadd.f32 0.0, %v10376
      %v10378 = vpop.f32.mrb[0].mxu0
      %v10379 = vpop.f32.mrb[0].mxu0
      %v10380 = vadd.f32 0.0, %v10379
      %v10381 = vpop.f32.mrb[0].mxu0
      %10382 = vmatprep.mubr.bf16.mxu0 0
      %10383 = vmatmul.mubr.bf16.gmra.mrb[0].mxu0 %v10260
      %v10384 = vpop.f32.mrb[0].mxu0
      %v10385 = vadd.f32 0.0, %v10384
      %v10386 = vpop.f32.mrb[0].mxu0
      %v10387 = vpop.f32.mrb[0].mxu0
      %v10388 = vadd.f32 0.0, %v10387
      %v10389 = vpop.f32.mrb[0].mxu0
      %10390 = vmatprep.mubr.bf16.mxu0 0
      %10391 = vmatmul.mubr.bf16.gmra.mrb[0].mxu0 %v10263
      %v10392 = vpop.f32.mrb[0].mxu0
      %v10393 = vadd.f32 0.0, %v10392
      %v10394 = vpop.f32.mrb[0].mxu0
      %v10395 = vpop.f32.mrb[0].mxu0
      %v10396 = vadd.f32 0.0, %v10395
      %v10397 = vpop.f32.mrb[0].mxu0
      %10398 = vmatprep.mubr.bf16.mxu0 0
      %10399 = vmatmul.mubr.bf16.gmra.mrb[0].mxu0 %v10266
      %v10400 = vpop.f32.mrb[0].mxu0
      %v10401 = vadd.f32 0.0, %v10400
      %v10402 = vpop.f32.mrb[0].mxu0
      %v10403 = vpop.f32.mrb[0].mxu0
      %v10404 = vadd.f32 0.0, %v10403
      %v10405 = vpop.f32.mrb[0].mxu0
      %10406 = vmatprep.mubr.bf16.mxu0 0
      %10407 = vmatmul.mubr.bf16.gmra.mrb[0].mxu0 %v10269
      %v10408 = vpop.f32.mrb[0].mxu0
      %v10409 = vadd.f32 0.0, %v10408
      %v10410 = vpop.f32.mrb[0].mxu0
      %v10411 = vpop.f32.mrb[0].mxu0
      %v10412 = vadd.f32 0.0, %v10411
      %v10413 = vpop.f32.mrb[0].mxu0
      %10414 = vmatprep.mubr.bf16.mxu0 0
      %10415 = vmatmul.mubr.bf16.gmra.mrb[0].mxu0 %v10272
      %v10416 = vpop.f32.mrb[0].mxu0
      %v10417 = vadd.f32 0.0, %v10416
      %v10418 = vpop.f32.mrb[0].mxu0
      %v10419 = vpop.f32.mrb[0].mxu0
      %v10420 = vadd.f32 0.0, %v10419
      %v10421 = vpop.f32.mrb[0].mxu0
      %10422 = vmatprep.mubr.bf16.mxu0 0
      %10423 = vmatmul.mubr.bf16.gmra.mrb[0].mxu0 %v10275
      %v10424 = vpop.f32.mrb[0].mxu0
      %v10425 = vadd.f32 0.0, %v10424
      %v10426 = vpop.f32.mrb[0].mxu0
      %v10427 = vpop.f32.mrb[0].mxu0
      %v10428 = vadd.f32 0.0, %v10427
      %v10429 = vpop.f32.mrb[0].mxu0
      %10430 = vmatprep.mubr.bf16.mxu0 0
      %10431 = vmatmul.mubr.bf16.gmra.mrb[0].mxu0 %v10278
      %v10432 = vpop.f32.mrb[0].mxu0
      %v10433 = vadd.f32 0.0, %v10432
      %v10434 = vpop.f32.mrb[0].mxu0
      %v10435 = vpop.f32.mrb[0].mxu0
      %v10436 = vadd.f32 0.0, %v10435
      %v10437 = vpop.f32.mrb[0].mxu0
      %10438 = vmatprep.mubr.bf16.mxu0 0
      %10439 = vmatmul.mubr.bf16.gmra.mrb[0].mxu0 %v10281
      %v10440 = vpop.f32.mrb[0].mxu0
      %v10441 = vadd.f32 0.0, %v10440
      %v10442 = vpop.f32.mrb[0].mxu0
      %v10443 = vpop.f32.mrb[0].mxu0
      %v10444 = vadd.f32 0.0, %v10443
      %v10445 = vpop.f32.mrb[0].mxu0
      %10446 = vdwg.mxu0
      %v10447 = vld [vmem:[%s5] sm:$0xff]
      %v10448 = vld [vmem:[%s5 + $0x8] sm:$0xff]
      %v10449 = vld [vmem:[%s5 + $0x10] sm:$0xff]
      %v10450 = vld [vmem:[%s5 + $0x18] sm:$0xff]
      %v10451 = vld [vmem:[%s5 + $0x20] sm:$0xff]
      %v10452 = vld [vmem:[%s5 + $0x28] sm:$0xff]
      %v10453 = vld [vmem:[%s5 + $0x30] sm:$0xff]
      %v10454 = vld [vmem:[%s5 + $0x38] sm:$0xff]
      %v10455 = vld [vmem:[%s5 + $0x40] sm:$0xff]
      %v10456 = vld [vmem:[%s5 + $0x48] sm:$0xff]
      %v10457 = vld [vmem:[%s5 + $0x50] sm:$0xff]
      %v10458 = vld [vmem:[%s5 + $0x58] sm:$0xff]
      %v10459 = vld [vmem:[%s5 + $0x60] sm:$0xff]
      %v10460 = vld [vmem:[%s5 + $0x68] sm:$0xff]
      %v10461 = vld [vmem:[%s5 + $0x70] sm:$0xff]
      %v10462 = vld [vmem:[%s5 + $0x78] sm:$0xff]
      %v10463 = vld [vmem:[%s4] sm:$0x1]
      %v10464 = vld [vmem:[%s4 + $0x1] sm:$0x1]
      %v10465 = vlaneseq
      %v10466 = vshrl.u32 %v10465, 7
      %v10467 = vsub.s32 0, %v10466
      %v10468 = vrot.slane %v10463, %v10467
      %10469 = vmatprep.subr.mxu0 0.0
      %10470 = vmatpush1.msra.mxu0 %v10321
      %10471 = vmatprep.subr.mxu0 0.0
      %10472 = vmatpush1.msra.mxu0 %v10324
      %10473 = vmatprep.subr.mxu0 0.0
      %10474 = vmatpush1.msra.mxu0 %v10329
      %10475 = vmatprep.subr.mxu0 0.0
      %10476 = vmatpush1.msra.mxu0 %v10332
      %10477 = vmatprep.subr.mxu0 0.0
      %10478 = vmatpush1.msra.mxu0 %v10337
      %10479 = vmatprep.subr.mxu0 0.0
      %10480 = vmatpush1.msra.mxu0 %v10340
      %10481 = vmatprep.subr.mxu0 0.0
      %10482 = vmatpush1.msra.mxu0 %v10345
      %10483 = vmatprep.subr.mxu0 0.0
      %10484 = vmatpush1.msra.mxu0 %v10348
      %10485 = vmatprep.subr.mxu0 0.0
      %10486 = vmatpush1.msra.mxu0 %v10353
      %10487 = vmatprep.subr.mxu0 0.0
      %10488 = vmatpush1.msra.mxu0 %v10356
      %10489 = vmatprep.subr.mxu0 0.0
      %10490 = vmatpush1.msra.mxu0 %v10361
      %10491 = vmatprep.subr.mxu0 0.0
      %10492 = vmatpush1.msra.mxu0 %v10364
      %10493 = vmatprep.subr.mxu0 0.0
      %10494 = vmatpush1.msra.mxu0 %v10369
      %10495 = vmatprep.subr.mxu0 0.0
      %10496 = vmatpush1.msra.mxu0 %v10372
      %10497 = vmatprep.subr.mxu0 0.0
      %10498 = vmatpush1.msra.mxu0 %v10377
      %10499 = vmatprep.subr.mxu0 0.0
      %10500 = vmatpush1.msra.mxu0 %v10380
      %10501 = vmatprep.subr.mxu0 0.0
      %10502 = vmatpush1.msra.mxu0 %v10385
      %10503 = vmatprep.subr.mxu0 0.0
      %10504 = vmatpush1.msra.mxu0 %v10388
      %10505 = vmatprep.subr.mxu0 0.0
      %10506 = vmatpush1.msra.mxu0 %v10393
      %10507 = vmatprep.subr.mxu0 0.0
      %10508 = vmatpush1.msra.mxu0 %v10396
      %10509 = vmatprep.subr.mxu0 0.0
      %10510 = vmatpush1.msra.mxu0 %v10401
      %10511 = vmatprep.subr.mxu0 0.0
      %10512 = vmatpush1.msra.mxu0 %v10404
      %10513 = vmatprep.subr.mxu0 0.0
      %10514 = vmatpush1.msra.mxu0 %v10409
      %10515 = vmatprep.subr.mxu0 0.0
      %10516 = vmatpush1.msra.mxu0 %v10412
      %10517 = vmatprep.subr.mxu0 0.0
      %10518 = vmatpush1.msra.mxu0 %v10417
      %10519 = vmatprep.subr.mxu0 0.0
      %10520 = vmatpush1.msra.mxu0 %v10420
      %10521 = vmatprep.subr.mxu0 0.0
      %10522 = vmatpush1.msra.mxu0 %v10425
      %10523 = vmatprep.subr.mxu0 0.0
      %10524 = vmatpush1.msra.mxu0 %v10428
      %10525 = vmatprep.subr.mxu0 0.0
      %10526 = vmatpush1.msra.mxu0 %v10433
      %10527 = vmatprep.subr.mxu0 0.0
      %10528 = vmatpush1.msra.mxu0 %v10436
      %10529 = vmatprep.subr.mxu0 0.0
      %10530 = vmatpush1.msra.mxu0 %v10441
      %10531 = vmatprep.subr.mxu0 0.0
      %10532 = vmatpush1.msra.mxu0 %v10444
      %10533 = vmatprep.mubr.f32.mxu0 %v10448
      %10534 = vmatmul.mubr.f32.gmra.mrb[0].mxu0 %v10447
      %v10535 = vpop.f32.mrb[0].mxu0
      %v10536 = vadd.f32 %v10468, %v10535
      %v10537 = vpop.f32.mrb[0].mxu0
      %10538 = vmatprep.mubr.f32.mxu0 %v10450
      %10539 = vmatmul.mubr.f32.gmra.mrb[0].mxu0 %v10449
      %v10540 = vpop.f32.mrb[0].mxu0
      %v10541 = vadd.f32 %v10468, %v10540
      %v10542 = vpop.f32.mrb[0].mxu0
      %10543 = vmatprep.mubr.f32.mxu0 %v10452
      %10544 = vmatmul.mubr.f32.gmra.mrb[0].mxu0 %v10451
      %v10545 = vpop.f32.mrb[0].mxu0
      %v10546 = vadd.f32 %v10468, %v10545
      %v10547 = vpop.f32.mrb[0].mxu0
      %10548 = vmatprep.mubr.f32.mxu0 %v10454
      %10549 = vmatmul.mubr.f32.gmra.mrb[0].mxu0 %v10453
      %v10550 = vpop.f32.mrb[0].mxu0
      %v10551 = vadd.f32 %v10468, %v10550
      %v10552 = vpop.f32.mrb[0].mxu0
      %10553 = vmatprep.mubr.f32.mxu0 %v10456
      %10554 = vmatmul.mubr.f32.gmra.mrb[0].mxu0 %v10455
      %v10555 = vpop.f32.mrb[0].mxu0
      %v10556 = vadd.f32 %v10468, %v10555
      %v10557 = vpop.f32.mrb[0].mxu0
      %10558 = vmatprep.mubr.f32.mxu0 %v10458
      %10559 = vmatmul.mubr.f32.gmra.mrb[0].mxu0 %v10457
      %v10560 = vpop.f32.mrb[0].mxu0
      %v10561 = vadd.f32 %v10468, %v10560
      %v10562 = vpop.f32.mrb[0].mxu0
      %10563 = vmatprep.mubr.f32.mxu0 %v10460
      %10564 = vmatmul.mubr.f32.gmra.mrb[0].mxu0 %v10459
      %v10565 = vpop.f32.mrb[0].mxu0
      %v10566 = vadd.f32 %v10468, %v10565
      %v10567 = vpop.f32.mrb[0].mxu0
      %10568 = vmatprep.mubr.f32.mxu0 %v10462
      %10569 = vmatmul.mubr.f32.gmra.mrb[0].mxu0 %v10461
      %v10570 = vpop.f32.mrb[0].mxu0
      %v10571 = vadd.f32 %v10468, %v10570
      %v10572 = vpop.f32.mrb[0].mxu0
      %10573 = vdwg.mxu0
      %vm10574 = vcmp.ge.f32.partialorder %v10536, 0.0
      %vm10575 = vcmp.ge.f32.partialorder %v10541, 0.0
      %vm10576 = vcmp.ge.f32.partialorder %v10546, 0.0
      %vm10577 = vcmp.ge.f32.partialorder %v10551, 0.0
      %vm10578 = vcmp.ge.f32.partialorder %v10556, 0.0
      %vm10579 = vcmp.ge.f32.partialorder %v10561, 0.0
      %vm10580 = vcmp.ge.f32.partialorder %v10566, 0.0
      %vm10581 = vcmp.ge.f32.partialorder %v10571, 0.0
      %v10582 = vlaneseq
      %v10583 = vshrl.u32 %v10582, 7
      %v10584 = vsub.s32 0, %v10583
      %v10585 = vrot.slane %v10464, %v10584
      %v10586 = vmul.f32 %v10585, %v10536
      %v10587 = vmul.f32 %v10585, %v10541
      %v10588 = vmul.f32 %v10585, %v10546
      %v10589 = vmul.f32 %v10585, %v10551
      %v10590 = vmul.f32 %v10585, %v10556
      %v10591 = vmul.f32 %v10585, %v10561
      %v10592 = vmul.f32 %v10585, %v10566
      %v10593 = vmul.f32 %v10585, %v10571
      %v10594 = vsel %vm10574, %v10536, %v10586
      %v10595 = vsel %vm10575, %v10541, %v10587
      %v10596 = vsel %vm10576, %v10546, %v10588
      %v10597 = vsel %vm10577, %v10551, %v10589
      %v10598 = vsel %vm10578, %v10556, %v10590
      %v10599 = vsel %vm10579, %v10561, %v10591
      %v10600 = vsel %vm10580, %v10566, %v10592
      %v10601 = vsel %vm10581, %v10571, %v10593
      %vm10602 = vcmask 64512
      %10603 = vst.msk [vmem:[%s251] sm:$0xff] %vm10602, %v10594
      %10604 = vst.msk [vmem:[%s251 + $0x8] sm:$0xff] %vm10602, %v10595
      %10605 = vst.msk [vmem:[%s251 + $0x10] sm:$0xff] %vm10602, %v10596
      %10606 = vst.msk [vmem:[%s251 + $0x18] sm:$0xff] %vm10602, %v10597
      %10607 = vst.msk [vmem:[%s251 + $0x20] sm:$0xff] %vm10602, %v10598
      %10608 = vst.msk [vmem:[%s251 + $0x28] sm:$0xff] %vm10602, %v10599
      %10609 = vst.msk [vmem:[%s251 + $0x30] sm:$0xff] %vm10602, %v10600
      %10610 = vst.msk [vmem:[%s251 + $0x38] sm:$0xff] %vm10602, %v10601
      %p10611 = scmp.lt.s32.totalorder %s17, 1
      %s10612 = scalar_select %p10611, %s17, 1
      %s10613 = smul.addr %s10612, 8
      %s10614 = smul.addr %s10613, 8
      %s10615 = scalar_lea.vmem %s6, %s10614
      // Predicated region
      $region45: #{tpu_custom_call.1} parent=43 // pred_check
        %p10616 = pneg %p166
      $region46: #{tpu_custom_call.1} parent=43 // pred_check_branch
        %10618 = sbr.rel (%p10616) target = $region48
      $region47: #{tpu_custom_call.1} parent=43 // pred_region
        _
      $region48: #{tpu_custom_call.1} parent=43 // pred_fallthru
        _
    $region44: #{tpu_custom_call.1} parent=5 // pred_fallthru
      _
    %p10619 = scmp.le.s32.totalorder 2, %s12
    // Predicated region
    $region49: #{tpu_custom_call.1} parent=5 // pred_check
      %p10620 = pneg %p10619
    $region50: #{tpu_custom_call.1} parent=5 // pred_check_branch
      %10622 = sbr.rel (%p10620) target = $region52
    $region51: #{tpu_custom_call.1} parent=5 // pred_region
      %s10623 = ssub.s32 %s12, 2
      // Predicated region
      $region53: #{tpu_custom_call.1} parent=51 // pred_check
        %p10624 = pneg %p172
      $region54: #{tpu_custom_call.1} parent=51 // pred_check_branch
        %10626 = sbr.rel (%p10624) target = $region56
      $region55: #{tpu_custom_call.1} parent=51 // pred_region
        %p10627 = scmp.lt.s32.totalorder %s18, 1
        %s10628 = scalar_select %p10627, %s18, 1
        %s10629 = smul.addr %s10628, 8
        %s10630 = smul.addr %s10629, 8
        %s10631 = scalar_lea.vmem %s6, %s10630
      $region56: #{tpu_custom_call.1} parent=51 // pred_fallthru
        _
    $region52: #{tpu_custom_call.1} parent=5 // pred_fallthru
      _
  $region6: #{tpu_custom_call.1} parent=0 // loop_footer
    %s16 = sadd.s32 1, %s12
  $region7: #{tpu_custom_call.1} parent=0 // loop_footer_branch
    %11 = sbr.rel target = $region3
  $region8: #{tpu_custom_call.1} parent=0 // loop_exit
    _

</llo_original>
